<compile_context>
chip_gen: v6e
topology: v6e:2x2x1
jax: 0.10.0
libtpu: 0.0.40
codegen_flags: <defaults>
</compile_context>

<pallas_src>
import numpy as np
import jax
import jax.numpy as jnp
from jax.experimental import pallas as pl
from jax.experimental.pallas import tpu as pltpu

# ----------------------------------------------------------------------------
# Fixed instantiation of the small conv-net the wrapper interleaves.
# ----------------------------------------------------------------------------
C_IN, C1, C2 = 4, 8, 16          # channels: input, conv1, conv2
HID, NCLS = 32, 10               # classifier sizes
NPAD = 128                       # lane-padded logit width
H0 = 16                          # input spatial
H1 = H0 // 2                     # after pool1 (8)
H2 = H0 // 4                     # after pool2 (4)
R0 = H0 * H0                     # 256
R1 = H1 * H1                     # 64
R2 = H2 * H2                     # 16


# ----------------------------------------------------------------------------
# Prep-time (numpy) folding: conv3x3(pad=1) + 2x2/2 maxpool candidates -> one
# matrix.  Rows index the flattened input, columns index
#   a * (half^2 * Cout) + (ho*half + wo) * Cout + cout        a in [0,4)
# so the 4 pool candidates are 4 contiguous, vreg-aligned lane slices.
# ----------------------------------------------------------------------------
def _fold_conv_pool(w_oihw, side, channel_major_rows):
    cout, cin, _, _ = w_oihw.shape
    half = side // 2
    r_in, r_half = side * side, half * half
    mat = np.zeros((cin, r_in, 4, r_half, cout), np.float32)
    for a in range(4):
        da, db = divmod(a, 2)
        for r1 in range(r_half):
            ho, wo = divmod(r1, half)
            hs, ws = 2 * ho + da, 2 * wo + db        # pre-pool output pixel
            for dy in range(3):
                for dx in range(3):
                    hi, wi = hs + dy - 1, ws + dx - 1
                    if 0 <= hi < side and 0 <= wi < side:
                        mat[:, hi * side + wi, a, r1, :] += w_oihw[:, :, dy, dx].T
    if not channel_major_rows:                       # rows = r_in*cin + ci
        mat = mat.transpose(1, 0, 2, 3, 4)
    return mat.reshape(cin * r_in, 4 * r_half * cout)


# ----------------------------------------------------------------------------
# The fused kernel: one batch tile per grid step, 4 MXU dots total.
# ----------------------------------------------------------------------------
def _fused_kernel(x_ref, k1_ref, b1_ref, k2_ref, b2_ref,
                  fc1w_ref, fc1b_ref, fc2w_ref, fc2b_ref, o_ref):
    f32 = jnp.float32
    bf16 = jnp.bfloat16

    def pool_max(z, q):
        # 4 pool candidates live in 4 vreg-aligned lane slices of width q.
        return jnp.maximum(jnp.maximum(z[:, 0 * q:1 * q], z[:, 1 * q:2 * q]),
                           jnp.maximum(z[:, 2 * q:3 * q], z[:, 3 * q:4 * q]))

    xb = x_ref[...]                                                    # (B,1024) bf16

    # conv1 + pool1 (fused): one (B,1024)x(1024,2048) bf16 MXU dot
    z1 = jnp.dot(xb, k1_ref[...], preferred_element_type=f32)          # (B,2048)
    a1 = jnp.maximum(pool_max(z1, R1 * C1) + b1_ref[...], 0.0)         # (B, 512)

    # conv2 + pool2 (fused): one (B,512)x(512,1024) bf16 MXU dot
    z2 = jnp.dot(a1.astype(bf16), k2_ref[...], preferred_element_type=f32)
    a2 = jnp.maximum(pool_max(z2, R2 * C2) + b2_ref[...], 0.0)         # (B, 256)

    # fc1 + ReLU: NCHW-flatten permutation is baked into fc1 rows at prep time
    h = jnp.dot(a2.astype(bf16), fc1w_ref[...], preferred_element_type=f32)
    h = jnp.maximum(h + fc1b_ref[...], 0.0)                            # (B, 32)

    # fc2 (lane-padded to 128; pad columns biased to -1e30) + log_softmax
    z = jnp.dot(h, fc2w_ref[...], preferred_element_type=f32) + fc2b_ref[...]
    m = jnp.max(z, axis=-1, keepdims=True)
    lse = jnp.log(jnp.sum(jnp.exp(z - m), axis=-1, keepdims=True)) + m
    o_ref[...] = z - lse                                               # (B,128)


# ----------------------------------------------------------------------------
# Parameters: torch-convention init + one-time layout / folding work.
# ----------------------------------------------------------------------------
def init_params(key, c_in=C_IN, c1=C1, c2=C2, hidden=HID,
                n_classes=NCLS, spatial=H0):
    flat = c2 * (spatial // 4) ** 2          # NCHW flatten after two 2x2 pools
    ks = jax.random.split(key, 8)
    s = 0.1
    return {
        "conv1_w": s * jax.random.normal(ks[0], (c1, c_in, 3, 3), jnp.float32),
        "conv1_b": s * jax.random.normal(ks[1], (c1,), jnp.float32),
        "conv2_w": s * jax.random.normal(ks[2], (c2, c1, 3, 3), jnp.float32),
        "conv2_b": s * jax.random.normal(ks[3], (c2,), jnp.float32),
        "fc1_w": s * jax.random.normal(ks[4], (flat, hidden), jnp.float32),
        "fc1_b": s * jax.random.normal(ks[5], (hidden,), jnp.float32),
        "fc2_w": s * jax.random.normal(ks[6], (hidden, n_classes), jnp.float32),
        "fc2_b": s * jax.random.normal(ks[7], (n_classes,), jnp.float32),
    }


def prepare_params(params):
    """One-time layout/folding work so the forward has zero relayout ops."""
    w1 = np.asarray(params["conv1_w"], np.float32)
    b1 = np.asarray(params["conv1_b"], np.float32)
    w2 = np.asarray(params["conv2_w"], np.float32)
    b2 = np.asarray(params["conv2_b"], np.float32)

    # conv1 rows match the NCHW flatten of the image: c*256 + h*16 + w
    k1 = _fold_conv_pool(w1, H0, channel_major_rows=True)     # (1024, 2048)
    # conv2 rows match a1's column layout: (ho*8+wo)*C1 + c
    k2 = _fold_conv_pool(w2, H1, channel_major_rows=False)    # (512, 1024)
    b1t = np.tile(b1, R1).reshape(1, R1 * C1)                 # (1, 512)
    b2t = np.tile(b2, R2).reshape(1, R2 * C2)                 # (1, 256)

    # fc1: torch NCHW-flatten rows (c2*16 + r2) -> our (r2*C2 + c2) rows
    fc1 = np.asarray(params["fc1_w"], np.float32)
    fc1p = fc1.reshape(C2, R2, HID).transpose(1, 0, 2).reshape(R2 * C2, HID)

    # fc2: lane-pad 10 -> 128 output columns; pad logits forced to -1e30
    fc2p = np.zeros((HID, NPAD), np.float32)
    fc2p[:, :NCLS] = np.asarray(params["fc2_w"], np.float32)
    fc2bp = np.full((1, NPAD), -1e30, np.float32)
    fc2bp[0, :NCLS] = np.asarray(params["fc2_b"], np.float32)

    return {
        "k1": jnp.asarray(k1, jnp.bfloat16),
        "b1": jnp.asarray(b1t, jnp.float32),
        "k2": jnp.asarray(k2, jnp.bfloat16),
        "b2": jnp.asarray(b2t, jnp.float32),
        "fc1_w": jnp.asarray(fc1p, jnp.bfloat16),
        "fc1_b": jnp.asarray(params["fc1_b"], jnp.float32).reshape(1, HID),
        "fc2_w": jnp.asarray(fc2p, jnp.float32),
        "fc2_b": jnp.asarray(fc2bp, jnp.float32),
    }


def _batch_tile(n):
    # Sublane-aligned batch tile, capped at 64 (vreg-pressure sweet spot per
    # perf review's 16-64 sweep range); N > 64 then yields >=2 "parallel"
    # grid steps so v7x's two TensorCores both get work.
    return min(64, ((n + 7) // 8) * 8)


# ----------------------------------------------------------------------------
# Forward = one fused pallas_call (wrapper does only reshape / pad / slice).
# ----------------------------------------------------------------------------
@jax.jit
def struct_like_forward(prep, x_nchw):
    n = x_nchw.shape[0]
    x_flat = x_nchw.reshape(n, C_IN * R0).astype(jnp.bfloat16)   # NCHW flatten
    b_tile = _batch_tile(n)
    n_pad = ((n + b_tile - 1) // b_tile) * b_tile
    if n_pad != n:
        x_flat = jnp.pad(x_flat, ((0, n_pad - n), (0, 0)))

    def full(shape):
        return pl.BlockSpec(shape, lambda i: (0,) * len(shape))

    out = pl.pallas_call(
        _fused_kernel,
        out_shape=jax.ShapeDtypeStruct((n_pad, NPAD), jnp.float32),
        grid=(n_pad // b_tile,),
        in_specs=[
            pl.BlockSpec((b_tile, C_IN * R0), lambda i: (i, 0)),
            full(prep["k1"].shape), full(prep["b1"].shape),
            full(prep["k2"].shape), full(prep["b2"].shape),
            full(prep["fc1_w"].shape), full(prep["fc1_b"].shape),
            full(prep["fc2_w"].shape), full(prep["fc2_b"].shape),
        ],
        out_specs=pl.BlockSpec((b_tile, NPAD), lambda i: (i, 0)),
        compiler_params=pltpu.CompilerParams(
            dimension_semantics=("parallel",)),
    )(x_flat, prep["k1"], prep["b1"], prep["k2"], prep["b2"],
      prep["fc1_w"], prep["fc1_b"], prep["fc2_w"], prep["fc2_b"])
    return out[:n, :NCLS]


# ----------------------------------------------------------------------------
# Pure-JAX f32 reference (same math, XLA ops) for a correctness self-check.
# ----------------------------------------------------------------------------
def _reference_forward(params, x_nchw):
    x = jnp.transpose(x_nchw, (0, 2, 3, 1)).astype(jnp.float32)

    def conv3x3_relu(x, w, b):
        n, hh, ww, c = x.shape
        cout = w.shape[0]
        xp = jnp.pad(x, ((0, 0), (1, 1), (1, 1), (0, 0)))
        cols = [xp[:, i:i + hh, j:j + ww, :] for i in range(3) for j in range(3)]
        patches = jnp.stack(cols, axis=3).reshape(n * hh * ww, 9 * c)
        w2d = jnp.transpose(w, (2, 3, 1, 0)).reshape(-1, cout)
        out = jnp.maximum(patches @ w2d + b[None, :], 0.0)
        return out.reshape(n, hh, ww, cout)

    def pool2(x):
        return jnp.maximum(
            jnp.maximum(x[:, 0::2, 0::2, :], x[:, 0::2, 1::2, :]),
            jnp.maximum(x[:, 1::2, 0::2, :], x[:, 1::2, 1::2, :]))

    x = pool2(conv3x3_relu(x, params["conv1_w"], params["conv1_b"]))
    x = pool2(conv3x3_relu(x, params["conv2_w"], params["conv2_b"]))
    x = jnp.transpose(x, (0, 3, 1, 2)).reshape(x.shape[0], -1)
    h = jnp.maximum(x @ params["fc1_w"] + params["fc1_b"][None, :], 0.0)
    z = h @ params["fc2_w"] + params["fc2_b"][None, :]
    return jax.nn.log_softmax(z, axis=1)


if __name__ == "__main__":
    key = jax.random.PRNGKey(0)
    pkey, xkey = jax.random.split(key)

    params = init_params(pkey)
    prep = prepare_params(params)
    x = jax.random.normal(xkey, (2, C_IN, H0, H0), jnp.float32)   # NCHW input

    out = jax.block_until_ready(struct_like_forward(prep, x))

    assert out.shape == (2, NCLS)
    # log_softmax rows must sum (in prob space) to ~1
    assert bool(jnp.allclose(jnp.sum(jnp.exp(out), axis=1), 1.0, atol=1e-3))
    # Match the pure-f32 reference.  MXU operands are bf16 (per perf review),
    # so the comparison tolerance is bf16-level rather than 1e-4.
    ref = _reference_forward(params, x)
    assert bool(jnp.allclose(out, ref, atol=3e-2, rtol=3e-2)), \
        float(jnp.max(jnp.abs(out - ref)))
    print("KERNEL_OK")
</pallas_src>

<mosaic_0001>
module attributes {stable_mosaic.version = 11 : i64} {
  func.func @_fused_kernel(%arg0: i32, %arg1: memref<8x1024xbf16, #tpu.memory_space<vmem>>, %arg2: memref<1024x2048xbf16, #tpu.memory_space<vmem>>, %arg3: memref<1x512xf32, #tpu.memory_space<vmem>>, %arg4: memref<512x1024xbf16, #tpu.memory_space<vmem>>, %arg5: memref<1x256xf32, #tpu.memory_space<vmem>>, %arg6: memref<256x32xbf16, #tpu.memory_space<vmem>>, %arg7: memref<1x32xf32, #tpu.memory_space<vmem>>, %arg8: memref<32x128xf32, #tpu.memory_space<vmem>>, %arg9: memref<1x128xf32, #tpu.memory_space<vmem>>, %arg10: memref<8x128xf32, #tpu.memory_space<vmem>>) attributes {dimension_semantics = [#tpu.dimension_semantics<parallel>], iteration_bounds = array<i64: 1>, scalar_prefetch = 0 : i64, scratch_operands = 0 : i64, tpu.core_type = #tpu.core_type<tc>, window_params = [{transform_indices = @transform_0, window_bounds = array<i64: 8, 1024>}, {pipeline_mode = #tpu.pipeline_mode<synchronous>, transform_indices = @transform_1, window_bounds = array<i64: 1024, 2048>}, {pipeline_mode = #tpu.pipeline_mode<synchronous>, transform_indices = @transform_2, window_bounds = array<i64: 1, 512>}, {pipeline_mode = #tpu.pipeline_mode<synchronous>, transform_indices = @transform_3, window_bounds = array<i64: 512, 1024>}, {pipeline_mode = #tpu.pipeline_mode<synchronous>, transform_indices = @transform_4, window_bounds = array<i64: 1, 256>}, {pipeline_mode = #tpu.pipeline_mode<synchronous>, transform_indices = @transform_5, window_bounds = array<i64: 256, 32>}, {pipeline_mode = #tpu.pipeline_mode<synchronous>, transform_indices = @transform_6, window_bounds = array<i64: 1, 32>}, {pipeline_mode = #tpu.pipeline_mode<synchronous>, transform_indices = @transform_7, window_bounds = array<i64: 32, 128>}, {pipeline_mode = #tpu.pipeline_mode<synchronous>, transform_indices = @transform_8, window_bounds = array<i64: 1, 128>}, {transform_indices = @transform_9, window_bounds = array<i64: 8, 128>}]} {
    %c0 = arith.constant 0 : index
    %c0_0 = arith.constant 0 : index
    %0 = vector.load %arg1[%c0, %c0_0] : memref<8x1024xbf16, #tpu.memory_space<vmem>>, vector<8x1024xbf16>
    %c0_1 = arith.constant 0 : index
    %c0_2 = arith.constant 0 : index
    %1 = vector.load %arg2[%c0_1, %c0_2] : memref<1024x2048xbf16, #tpu.memory_space<vmem>>, vector<1024x2048xbf16>
    %cst = arith.constant dense<0.000000e+00> : vector<8x2048xf32>
    %2 = tpu.matmul %0, %1, %cst {dimension_numbers = #tpu.dot_dimension_numbers<[1], [0], [0], [1], [0, 0, 1, 1], [], []>} : vector<8x1024xbf16>, vector<1024x2048xbf16>, vector<8x2048xf32> -> vector<8x2048xf32>
    %3 = vector.extract_strided_slice %2 {offsets = [0, 0], sizes = [8, 512], strides = [1, 1]} : vector<8x2048xf32> to vector<8x512xf32>
    %4 = vector.extract_strided_slice %2 {offsets = [0, 512], sizes = [8, 512], strides = [1, 1]} : vector<8x2048xf32> to vector<8x512xf32>
    %5 = arith.maximumf %3, %4 : vector<8x512xf32>
    %6 = vector.extract_strided_slice %2 {offsets = [0, 1024], sizes = [8, 512], strides = [1, 1]} : vector<8x2048xf32> to vector<8x512xf32>
    %7 = vector.extract_strided_slice %2 {offsets = [0, 1536], sizes = [8, 512], strides = [1, 1]} : vector<8x2048xf32> to vector<8x512xf32>
    %8 = arith.maximumf %6, %7 : vector<8x512xf32>
    %9 = arith.maximumf %5, %8 : vector<8x512xf32>
    %c0_3 = arith.constant 0 : index
    %c0_4 = arith.constant 0 : index
    %10 = vector.load %arg3[%c0_3, %c0_4] : memref<1x512xf32, #tpu.memory_space<vmem>>, vector<1x512xf32>
    %11 = vector.broadcast %10 : vector<1x512xf32> to vector<8x512xf32>
    %12 = arith.addf %9, %11 : vector<8x512xf32>
    %cst_5 = arith.constant 0.000000e+00 : f32
    %13 = vector.broadcast %cst_5 : f32 to vector<8x512xf32>
    %14 = arith.maximumf %12, %13 : vector<8x512xf32>
    %15 = arith.truncf %14 : vector<8x512xf32> to vector<8x512xbf16>
    %c0_6 = arith.constant 0 : index
    %c0_7 = arith.constant 0 : index
    %16 = vector.load %arg4[%c0_6, %c0_7] : memref<512x1024xbf16, #tpu.memory_space<vmem>>, vector<512x1024xbf16>
    %cst_8 = arith.constant dense<0.000000e+00> : vector<8x1024xf32>
    %17 = tpu.matmul %15, %16, %cst_8 {dimension_numbers = #tpu.dot_dimension_numbers<[1], [0], [0], [1], [0, 0, 1, 1], [], []>} : vector<8x512xbf16>, vector<512x1024xbf16>, vector<8x1024xf32> -> vector<8x1024xf32>
    %18 = vector.extract_strided_slice %17 {offsets = [0, 0], sizes = [8, 256], strides = [1, 1]} : vector<8x1024xf32> to vector<8x256xf32>
    %19 = vector.extract_strided_slice %17 {offsets = [0, 256], sizes = [8, 256], strides = [1, 1]} : vector<8x1024xf32> to vector<8x256xf32>
    %20 = arith.maximumf %18, %19 : vector<8x256xf32>
    %21 = vector.extract_strided_slice %17 {offsets = [0, 512], sizes = [8, 256], strides = [1, 1]} : vector<8x1024xf32> to vector<8x256xf32>
    %22 = vector.extract_strided_slice %17 {offsets = [0, 768], sizes = [8, 256], strides = [1, 1]} : vector<8x1024xf32> to vector<8x256xf32>
    %23 = arith.maximumf %21, %22 : vector<8x256xf32>
    %24 = arith.maximumf %20, %23 : vector<8x256xf32>
    %c0_9 = arith.constant 0 : index
    %c0_10 = arith.constant 0 : index
    %25 = vector.load %arg5[%c0_9, %c0_10] : memref<1x256xf32, #tpu.memory_space<vmem>>, vector<1x256xf32>
    %26 = vector.broadcast %25 : vector<1x256xf32> to vector<8x256xf32>
    %27 = arith.addf %24, %26 : vector<8x256xf32>
    %cst_11 = arith.constant 0.000000e+00 : f32
    %28 = vector.broadcast %cst_11 : f32 to vector<8x256xf32>
    %29 = arith.maximumf %27, %28 : vector<8x256xf32>
    %30 = arith.truncf %29 : vector<8x256xf32> to vector<8x256xbf16>
    %c0_12 = arith.constant 0 : index
    %c0_13 = arith.constant 0 : index
    %31 = vector.load %arg6[%c0_12, %c0_13] : memref<256x32xbf16, #tpu.memory_space<vmem>>, vector<256x32xbf16>
    %cst_14 = arith.constant dense<0.000000e+00> : vector<8x32xf32>
    %32 = tpu.matmul %30, %31, %cst_14 {dimension_numbers = #tpu.dot_dimension_numbers<[1], [0], [0], [1], [0, 0, 1, 1], [], []>} : vector<8x256xbf16>, vector<256x32xbf16>, vector<8x32xf32> -> vector<8x32xf32>
    %c0_15 = arith.constant 0 : index
    %c0_16 = arith.constant 0 : index
    %33 = vector.load %arg7[%c0_15, %c0_16] : memref<1x32xf32, #tpu.memory_space<vmem>>, vector<1x32xf32>
    %34 = vector.broadcast %33 : vector<1x32xf32> to vector<8x32xf32>
    %35 = arith.addf %32, %34 : vector<8x32xf32>
    %cst_17 = arith.constant 0.000000e+00 : f32
    %36 = vector.broadcast %cst_17 : f32 to vector<8x32xf32>
    %37 = arith.maximumf %35, %36 : vector<8x32xf32>
    %c0_18 = arith.constant 0 : index
    %c0_19 = arith.constant 0 : index
    %38 = vector.load %arg8[%c0_18, %c0_19] : memref<32x128xf32, #tpu.memory_space<vmem>>, vector<32x128xf32>
    %cst_20 = arith.constant dense<0.000000e+00> : vector<8x128xf32>
    %39 = tpu.matmul %37, %38, %cst_20 {dimension_numbers = #tpu.dot_dimension_numbers<[1], [0], [0], [1], [0, 0, 1, 1], [], []>} : vector<8x32xf32>, vector<32x128xf32>, vector<8x128xf32> -> vector<8x128xf32>
    %c0_21 = arith.constant 0 : index
    %c0_22 = arith.constant 0 : index
    %40 = vector.load %arg9[%c0_21, %c0_22] : memref<1x128xf32, #tpu.memory_space<vmem>>, vector<1x128xf32>
    %41 = vector.broadcast %40 : vector<1x128xf32> to vector<8x128xf32>
    %42 = arith.addf %39, %41 : vector<8x128xf32>
    %cst_23 = arith.constant dense<0xFF800000> : vector<8xf32>
    %43 = vector.multi_reduction <maximumf>, %42, %cst_23 [1] : vector<8x128xf32> to vector<8xf32>
    %44 = vector.shape_cast %43 : vector<8xf32> to vector<8x1xf32>
    %45 = vector.broadcast %44 : vector<8x1xf32> to vector<8x128xf32>
    %46 = arith.subf %42, %45 : vector<8x128xf32>
    %47 = math.exp %46 : vector<8x128xf32>
    %cst_24 = arith.constant dense<0.000000e+00> : vector<8xf32>
    %48 = vector.multi_reduction <add>, %47, %cst_24 [1] : vector<8x128xf32> to vector<8xf32>
    %49 = vector.shape_cast %48 : vector<8xf32> to vector<8x1xf32>
    %50 = math.log %49 : vector<8x1xf32>
    %51 = arith.addf %50, %44 : vector<8x1xf32>
    %52 = vector.broadcast %51 : vector<8x1xf32> to vector<8x128xf32>
    %53 = arith.subf %42, %52 : vector<8x128xf32>
    %c0_25 = arith.constant 0 : index
    %c0_26 = arith.constant 0 : index
    %54 = vector.load %arg10[%c0_25, %c0_26] : memref<8x128xf32, #tpu.memory_space<vmem>>, vector<8x128xf32>
    tpu.vector_store %arg10[%c0_25, %c0_26], %53 {strides = array<i32>} : memref<8x128xf32, #tpu.memory_space<vmem>>, vector<8x128xf32>,
    return
  }
  func.func @transform_0(%arg0: i32) -> (i32, i32) {
    %c0_i32 = arith.constant 0 : i32
    %c0_i32_0 = arith.constant 0 : i32
    return %arg0, %c0_i32 : i32, i32
  }
  func.func @transform_1(%arg0: i32) -> (i32, i32) {
    %c0_i32 = arith.constant 0 : i32
    %c0_i32_0 = arith.constant 0 : i32
    %c0_i32_1 = arith.constant 0 : i32
    return %c0_i32, %c0_i32_0 : i32, i32
  }
  func.func @transform_2(%arg0: i32) -> (i32, i32) {
    %c0_i32 = arith.constant 0 : i32
    %c0_i32_0 = arith.constant 0 : i32
    %c0_i32_1 = arith.constant 0 : i32
    return %c0_i32, %c0_i32_0 : i32, i32
  }
  func.func @transform_3(%arg0: i32) -> (i32, i32) {
    %c0_i32 = arith.constant 0 : i32
    %c0_i32_0 = arith.constant 0 : i32
    %c0_i32_1 = arith.constant 0 : i32
    return %c0_i32, %c0_i32_0 : i32, i32
  }
  func.func @transform_4(%arg0: i32) -> (i32, i32) {
    %c0_i32 = arith.constant 0 : i32
    %c0_i32_0 = arith.constant 0 : i32
    %c0_i32_1 = arith.constant 0 : i32
    return %c0_i32, %c0_i32_0 : i32, i32
  }
  func.func @transform_5(%arg0: i32) -> (i32, i32) {
    %c0_i32 = arith.constant 0 : i32
    %c0_i32_0 = arith.constant 0 : i32
    %c0_i32_1 = arith.constant 0 : i32
    return %c0_i32, %c0_i32_0 : i32, i32
  }
  func.func @transform_6(%arg0: i32) -> (i32, i32) {
    %c0_i32 = arith.constant 0 : i32
    %c0_i32_0 = arith.constant 0 : i32
    %c0_i32_1 = arith.constant 0 : i32
    return %c0_i32, %c0_i32_0 : i32, i32
  }
  func.func @transform_7(%arg0: i32) -> (i32, i32) {
    %c0_i32 = arith.constant 0 : i32
    %c0_i32_0 = arith.constant 0 : i32
    %c0_i32_1 = arith.constant 0 : i32
    return %c0_i32, %c0_i32_0 : i32, i32
  }
  func.func @transform_8(%arg0: i32) -> (i32, i32) {
    %c0_i32 = arith.constant 0 : i32
    %c0_i32_0 = arith.constant 0 : i32
    %c0_i32_1 = arith.constant 0 : i32
    return %c0_i32, %c0_i32_0 : i32, i32
  }
  func.func @transform_9(%arg0: i32) -> (i32, i32) {
    %c0_i32 = arith.constant 0 : i32
    %c0_i32_0 = arith.constant 0 : i32
    return %arg0, %c0_i32 : i32, i32
  }
}

</mosaic_0001>

<llo_original>
// kernel: struct_like_forward.1
$region0: #{struct_like_forward.1}
  #allocation0 [shape = 'u32[]', space=smem, size = 0x4, offset = 0x4, fixed_abs, tag = 'smem constant byte address 0x4 - core index']
  #allocation1 [shape = 'u32[144,128]{1,0:T(1,128)}', space=vmem, size = 0x12000, scoped, tag = 'internal scratch']
  %s0 = inlined_call_operand.vmem [shape: bf16[8,1024], index: 0, kind: input, shape index: {}]
  %s1 = inlined_call_operand.hbm [shape: bf16[1024,2048], index: 1, kind: input, shape index: {}]
  %s2 = inlined_call_operand.hbm [shape: f32[1,512], index: 2, kind: input, shape index: {}]
  %s3 = inlined_call_operand.hbm [shape: bf16[512,1024], index: 3, kind: input, shape index: {}]
  %s4 = inlined_call_operand.hbm [shape: f32[1,256], index: 4, kind: input, shape index: {}]
  %s5 = inlined_call_operand.vmem [shape: bf16[256,32], index: 5, kind: input, shape index: {}]
  %s6 = inlined_call_operand.hbm [shape: f32[1,32], index: 6, kind: input, shape index: {}]
  %s7 = inlined_call_operand.hbm [shape: f32[32,128], index: 7, kind: input, shape index: {}]
  %s8 = inlined_call_operand.hbm [shape: f32[1,128], index: 8, kind: input, shape index: {}]
  %s9 = inlined_call_operand.vmem [shape: f32[8,128], index: 9, kind: output, shape index: {}]
  %s10 = sld [smem:[#allocation0]]
  $region74: #{struct_like_forward.1} parent=0
    _
  %s12 = ssub.s32 1, %s10
  %s13 = scalar_select 0, %s12, %s10
  $region1: #{struct_like_forward.1} parent=0
    #allocation2 [shape = 'u8[4194304]{0}', space=vmem, size = 0x400000, scoped, tag = 'input window, operand 1, single buffered']
    #allocation3 [shape = 's32[1]{0}', space=sflag, size = 0x4, scoped, tag = 'scoped memory for struct_like_forward.1']
    #allocation4 [shape = 'u8[2048]{0}', space=vmem, size = 0x800, scoped, tag = 'input window, operand 2, single buffered']
    #allocation5 [shape = 's32[1]{0}', space=sflag, size = 0x4, scoped, tag = 'scoped memory for struct_like_forward.1']
    #allocation6 [shape = 'u8[1048576]{0}', space=vmem, size = 0x100000, scoped, tag = 'input window, operand 3, single buffered']
    #allocation7 [shape = 'u8[1024]{0}', space=vmem, size = 0x400, scoped, tag = 'input window, operand 4, single buffered']
    #allocation8 [shape = 's32[1]{0}', space=sflag, size = 0x4, scoped, tag = 'scoped memory for struct_like_forward.1']
    #allocation9 [shape = 'u8[512]{0}', space=vmem, size = 0x400, scoped, tag = 'input window, operand 6, single buffered']
    #allocation10 [shape = 'u8[16384]{0}', space=vmem, size = 0x4000, scoped, tag = 'input window, operand 7, single buffered']
    #allocation11 [shape = 's32[1]{0}', space=sflag, size = 0x4, scoped, tag = 'scoped memory for struct_like_forward.1']
    #allocation12 [shape = 'u8[512]{0}', space=vmem, size = 0x400, scoped, tag = 'input window, operand 8, single buffered']
    %14 = vsyncpa [#allocation3], 0
    %15 = vsyncpa [#allocation5], 0
    %16 = vsyncpa [#allocation8], 0
    %17 = vsyncpa [#allocation11], 0
    // Predicated region
    $region2: #{struct_like_forward.1} parent=1 // pred_check
      _
    $region3: #{struct_like_forward.1} parent=1 // pred_check_branch
      %19 = sbr.rel (0) target = $region5
    $region4: #{struct_like_forward.1} parent=1 // pred_region
      _
    $region5: #{struct_like_forward.1} parent=1 // pred_fallthru
      _
    // Predicated region
    $region6: #{struct_like_forward.1} parent=1 // pred_check
      _
    $region7: #{struct_like_forward.1} parent=1 // pred_check_branch
      %21 = sbr.rel (0) target = $region9
    $region8: #{struct_like_forward.1} parent=1 // pred_region
      %s23 = ssub.s32 131072, 131072
      %24 = vsyncadd [#allocation3], %s23
      %s25 = sshll.u32 [#allocation2], 4
      %s26 = int_to_ptr.vmem [resolvable:$true] %s25
      %31 = dma.hbm_to_vmem [thread:$0]  %s1, 131072, %s26, [#allocation3], 1024, 1024, 64
    $region9: #{struct_like_forward.1} parent=1 // pred_fallthru
      _
    // Predicated region
    $region10: #{struct_like_forward.1} parent=1 // pred_check
      _
    $region11: #{struct_like_forward.1} parent=1 // pred_check_branch
      %33 = sbr.rel (0) target = $region13
    $region12: #{struct_like_forward.1} parent=1 // pred_region
      %s35 = ssub.s32 64, 64
      %36 = vsyncadd [#allocation5], %s35
      %s38 = sshll.u32 [#allocation4], 4
      %s39 = int_to_ptr.vmem [resolvable:$true] %s38
      %41 = dma.hbm_to_vmem [thread:$0]  %s2, 64, %s39, [#allocation5]
    $region13: #{struct_like_forward.1} parent=1 // pred_fallthru
      _
    // Predicated region
    $region14: #{struct_like_forward.1} parent=1 // pred_check
      _
    $region15: #{struct_like_forward.1} parent=1 // pred_check_branch
      %43 = sbr.rel (0) target = $region17
    $region16: #{struct_like_forward.1} parent=1 // pred_region
      %s45 = ssub.s32 32768, 32768
      %46 = vsyncadd [#allocation5], %s45
      %s47 = sshll.u32 [#allocation6], 4
      %s48 = int_to_ptr.vmem [resolvable:$true] %s47
      %53 = dma.hbm_to_vmem [thread:$0]  %s3, 32768, %s48, [#allocation5], 512, 512, 32
    $region17: #{struct_like_forward.1} parent=1 // pred_fallthru
      _
    // Predicated region
    $region18: #{struct_like_forward.1} parent=1 // pred_check
      _
    $region19: #{struct_like_forward.1} parent=1 // pred_check_branch
      %55 = sbr.rel (0) target = $region21
    $region20: #{struct_like_forward.1} parent=1 // pred_region
      %s57 = ssub.s32 32, 32
      %58 = vsyncadd [#allocation8], %s57
      %s60 = sshll.u32 [#allocation7], 4
      %s61 = int_to_ptr.vmem [resolvable:$true] %s60
      %63 = dma.hbm_to_vmem [thread:$0]  %s4, 32, %s61, [#allocation8]
    $region21: #{struct_like_forward.1} parent=1 // pred_fallthru
      _
    // Predicated region
    $region22: #{struct_like_forward.1} parent=1 // pred_check
      _
    $region23: #{struct_like_forward.1} parent=1 // pred_check_branch
      %65 = sbr.rel (0) target = $region25
    $region24: #{struct_like_forward.1} parent=1 // pred_region
      _
    $region25: #{struct_like_forward.1} parent=1 // pred_fallthru
      _
    // Predicated region
    $region26: #{struct_like_forward.1} parent=1 // pred_check
      _
    $region27: #{struct_like_forward.1} parent=1 // pred_check_branch
      %67 = sbr.rel (0) target = $region29
    $region28: #{struct_like_forward.1} parent=1 // pred_region
      %s69 = ssub.s32 16, 16
      %70 = vsyncadd [#allocation8], %s69
      %s72 = sshll.u32 [#allocation9], 4
      %s73 = int_to_ptr.vmem [resolvable:$true] %s72
      %75 = dma.hbm_to_vmem [thread:$0]  %s6, 16, %s73, [#allocation8]
    $region29: #{struct_like_forward.1} parent=1 // pred_fallthru
      _
    // Predicated region
    $region30: #{struct_like_forward.1} parent=1 // pred_check
      _
    $region31: #{struct_like_forward.1} parent=1 // pred_check_branch
      %77 = sbr.rel (0) target = $region33
    $region32: #{struct_like_forward.1} parent=1 // pred_region
      %s79 = ssub.s32 512, 512
      %80 = vsyncadd [#allocation11], %s79
      %s81 = sshll.u32 [#allocation10], 4
      %s82 = int_to_ptr.vmem [resolvable:$true] %s81
      %87 = dma.hbm_to_vmem [thread:$0]  %s7, 512, %s82, [#allocation11], 128, 128, 8
    $region33: #{struct_like_forward.1} parent=1 // pred_fallthru
      _
    // Predicated region
    $region34: #{struct_like_forward.1} parent=1 // pred_check
      _
    $region35: #{struct_like_forward.1} parent=1 // pred_check_branch
      %89 = sbr.rel (0) target = $region37
    $region36: #{struct_like_forward.1} parent=1 // pred_region
      %s91 = ssub.s32 16, 16
      %92 = vsyncadd [#allocation11], %s91
      %s94 = sshll.u32 [#allocation12], 4
      %s95 = int_to_ptr.vmem [resolvable:$true] %s94
      %97 = dma.hbm_to_vmem [thread:$0]  %s8, 16, %s95, [#allocation11]
    $region37: #{struct_like_forward.1} parent=1 // pred_fallthru
      _
    // Predicated region
    $region38: #{struct_like_forward.1} parent=1 // pred_check
      _
    $region39: #{struct_like_forward.1} parent=1 // pred_check_branch
      %99 = sbr.rel (0) target = $region41
    $region40: #{struct_like_forward.1} parent=1 // pred_region
      %100 = dma.done [#allocation3], 131072
    $region41: #{struct_like_forward.1} parent=1 // pred_fallthru
      _
    // Predicated region
    $region42: #{struct_like_forward.1} parent=1 // pred_check
      _
    $region43: #{struct_like_forward.1} parent=1 // pred_check_branch
      %102 = sbr.rel (0) target = $region45
    $region44: #{struct_like_forward.1} parent=1 // pred_region
      %103 = dma.done [#allocation5], 64
    $region45: #{struct_like_forward.1} parent=1 // pred_fallthru
      _
    // Predicated region
    $region46: #{struct_like_forward.1} parent=1 // pred_check
      _
    $region47: #{struct_like_forward.1} parent=1 // pred_check_branch
      %105 = sbr.rel (0) target = $region49
    $region48: #{struct_like_forward.1} parent=1 // pred_region
      %106 = dma.done [#allocation5], 32768
    $region49: #{struct_like_forward.1} parent=1 // pred_fallthru
      _
    // Predicated region
    $region50: #{struct_like_forward.1} parent=1 // pred_check
      _
    $region51: #{struct_like_forward.1} parent=1 // pred_check_branch
      %108 = sbr.rel (0) target = $region53
    $region52: #{struct_like_forward.1} parent=1 // pred_region
      %109 = dma.done [#allocation8], 32
    $region53: #{struct_like_forward.1} parent=1 // pred_fallthru
      _
    // Predicated region
    $region54: #{struct_like_forward.1} parent=1 // pred_check
      _
    $region55: #{struct_like_forward.1} parent=1 // pred_check_branch
      %111 = sbr.rel (0) target = $region57
    $region56: #{struct_like_forward.1} parent=1 // pred_region
      %112 = dma.done [#allocation8], 16
    $region57: #{struct_like_forward.1} parent=1 // pred_fallthru
      _
    // Predicated region
    $region58: #{struct_like_forward.1} parent=1 // pred_check
      _
    $region59: #{struct_like_forward.1} parent=1 // pred_check_branch
      %114 = sbr.rel (0) target = $region61
    $region60: #{struct_like_forward.1} parent=1 // pred_region
      %115 = dma.done [#allocation11], 512
    $region61: #{struct_like_forward.1} parent=1 // pred_fallthru
      _
    // Predicated region
    $region62: #{struct_like_forward.1} parent=1 // pred_check
      _
    $region63: #{struct_like_forward.1} parent=1 // pred_check_branch
      %117 = sbr.rel (0) target = $region65
    $region64: #{struct_like_forward.1} parent=1 // pred_region
      %118 = dma.done [#allocation11], 16
    $region65: #{struct_like_forward.1} parent=1 // pred_fallthru
      _
    %v120 = vld [vmem:[%s0] sm:$0xff]
    %v121 = vld [vmem:[%s0 + $0x8] sm:$0xff]
    %v122 = vld [vmem:[%s0 + $0x10] sm:$0xff]
    %v123 = vld [vmem:[%s0 + $0x18] sm:$0xff]
    %v124 = vld [vmem:[#allocation2] sm:$0xff]
    %v125 = vld [vmem:[#allocation2 + $0x8] sm:$0xff]
    %v126 = vld [vmem:[#allocation2 + $0x10] sm:$0xff]
    %v127 = vld [vmem:[#allocation2 + $0x18] sm:$0xff]
    %v128 = vld [vmem:[#allocation2 + $0x20] sm:$0xff]
    %v129 = vld [vmem:[#allocation2 + $0x28] sm:$0xff]
    %v130 = vld [vmem:[#allocation2 + $0x30] sm:$0xff]
    %v131 = vld [vmem:[#allocation2 + $0x38] sm:$0xff]
    %v132 = vld [vmem:[#allocation2 + $0x40] sm:$0xff]
    %v133 = vld [vmem:[#allocation2 + $0x48] sm:$0xff]
    %v134 = vld [vmem:[#allocation2 + $0x50] sm:$0xff]
    %v135 = vld [vmem:[#allocation2 + $0x58] sm:$0xff]
    %v136 = vld [vmem:[#allocation2 + $0x60] sm:$0xff]
    %v137 = vld [vmem:[#allocation2 + $0x68] sm:$0xff]
    %v138 = vld [vmem:[#allocation2 + $0x70] sm:$0xff]
    %v139 = vld [vmem:[#allocation2 + $0x78] sm:$0xff]
    %v140 = vld [vmem:[#allocation2 + $0x80] sm:$0xff]
    %v141 = vld [vmem:[#allocation2 + $0x88] sm:$0xff]
    %v142 = vld [vmem:[#allocation2 + $0x90] sm:$0xff]
    %v143 = vld [vmem:[#allocation2 + $0x98] sm:$0xff]
    %v144 = vld [vmem:[#allocation2 + $0xa0] sm:$0xff]
    %v145 = vld [vmem:[#allocation2 + $0xa8] sm:$0xff]
    %v146 = vld [vmem:[#allocation2 + $0xb0] sm:$0xff]
    %v147 = vld [vmem:[#allocation2 + $0xb8] sm:$0xff]
    %v148 = vld [vmem:[#allocation2 + $0xc0] sm:$0xff]
    %v149 = vld [vmem:[#allocation2 + $0xc8] sm:$0xff]
    %v150 = vld [vmem:[#allocation2 + $0xd0] sm:$0xff]
    %v151 = vld [vmem:[#allocation2 + $0xd8] sm:$0xff]
    %v152 = vld [vmem:[#allocation2 + $0xe0] sm:$0xff]
    %v153 = vld [vmem:[#allocation2 + $0xe8] sm:$0xff]
    %v154 = vld [vmem:[#allocation2 + $0xf0] sm:$0xff]
    %v155 = vld [vmem:[#allocation2 + $0xf8] sm:$0xff]
    %v156 = vld [vmem:[#allocation2 + $0x100] sm:$0xff]
    %v157 = vld [vmem:[#allocation2 + $0x108] sm:$0xff]
    %v158 = vld [vmem:[#allocation2 + $0x110] sm:$0xff]
    %v159 = vld [vmem:[#allocation2 + $0x118] sm:$0xff]
    %v160 = vld [vmem:[#allocation2 + $0x120] sm:$0xff]
    %v161 = vld [vmem:[#allocation2 + $0x128] sm:$0xff]
    %v162 = vld [vmem:[#allocation2 + $0x130] sm:$0xff]
    %v163 = vld [vmem:[#allocation2 + $0x138] sm:$0xff]
    %v164 = vld [vmem:[#allocation2 + $0x140] sm:$0xff]
    %v165 = vld [vmem:[#allocation2 + $0x148] sm:$0xff]
    %v166 = vld [vmem:[#allocation2 + $0x150] sm:$0xff]
    %v167 = vld [vmem:[#allocation2 + $0x158] sm:$0xff]
    %v168 = vld [vmem:[#allocation2 + $0x160] sm:$0xff]
    %v169 = vld [vmem:[#allocation2 + $0x168] sm:$0xff]
    %v170 = vld [vmem:[#allocation2 + $0x170] sm:$0xff]
    %v171 = vld [vmem:[#allocation2 + $0x178] sm:$0xff]
    %v172 = vld [vmem:[#allocation2 + $0x180] sm:$0xff]
    %v173 = vld [vmem:[#allocation2 + $0x188] sm:$0xff]
    %v174 = vld [vmem:[#allocation2 + $0x190] sm:$0xff]
    %v175 = vld [vmem:[#allocation2 + $0x198] sm:$0xff]
    %v176 = vld [vmem:[#allocation2 + $0x1a0] sm:$0xff]
    %v177 = vld [vmem:[#allocation2 + $0x1a8] sm:$0xff]
    %v178 = vld [vmem:[#allocation2 + $0x1b0] sm:$0xff]
    %v179 = vld [vmem:[#allocation2 + $0x1b8] sm:$0xff]
    %v180 = vld [vmem:[#allocation2 + $0x1c0] sm:$0xff]
    %v181 = vld [vmem:[#allocation2 + $0x1c8] sm:$0xff]
    %v182 = vld [vmem:[#allocation2 + $0x1d0] sm:$0xff]
    %v183 = vld [vmem:[#allocation2 + $0x1d8] sm:$0xff]
    %v184 = vld [vmem:[#allocation2 + $0x1e0] sm:$0xff]
    %v185 = vld [vmem:[#allocation2 + $0x1e8] sm:$0xff]
    %v186 = vld [vmem:[#allocation2 + $0x1f0] sm:$0xff]
    %v187 = vld [vmem:[#allocation2 + $0x1f8] sm:$0xff]
    %v188 = vld [vmem:[#allocation2 + $0x200] sm:$0xff]
    %v189 = vld [vmem:[#allocation2 + $0x208] sm:$0xff]
    %v190 = vld [vmem:[#allocation2 + $0x210] sm:$0xff]
    %v191 = vld [vmem:[#allocation2 + $0x218] sm:$0xff]
    %v192 = vld [vmem:[#allocation2 + $0x220] sm:$0xff]
    %v193 = vld [vmem:[#allocation2 + $0x228] sm:$0xff]
    %v194 = vld [vmem:[#allocation2 + $0x230] sm:$0xff]
    %v195 = vld [vmem:[#allocation2 + $0x238] sm:$0xff]
    %v196 = vld [vmem:[#allocation2 + $0x240] sm:$0xff]
    %v197 = vld [vmem:[#allocation2 + $0x248] sm:$0xff]
    %v198 = vld [vmem:[#allocation2 + $0x250] sm:$0xff]
    %v199 = vld [vmem:[#allocation2 + $0x258] sm:$0xff]
    %v200 = vld [vmem:[#allocation2 + $0x260] sm:$0xff]
    %v201 = vld [vmem:[#allocation2 + $0x268] sm:$0xff]
    %v202 = vld [vmem:[#allocation2 + $0x270] sm:$0xff]
    %v203 = vld [vmem:[#allocation2 + $0x278] sm:$0xff]
    %v204 = vld [vmem:[#allocation2 + $0x280] sm:$0xff]
    %v205 = vld [vmem:[#allocation2 + $0x288] sm:$0xff]
    %v206 = vld [vmem:[#allocation2 + $0x290] sm:$0xff]
    %v207 = vld [vmem:[#allocation2 + $0x298] sm:$0xff]
    %v208 = vld [vmem:[#allocation2 + $0x2a0] sm:$0xff]
    %v209 = vld [vmem:[#allocation2 + $0x2a8] sm:$0xff]
    %v210 = vld [vmem:[#allocation2 + $0x2b0] sm:$0xff]
    %v211 = vld [vmem:[#allocation2 + $0x2b8] sm:$0xff]
    %v212 = vld [vmem:[#allocation2 + $0x2c0] sm:$0xff]
    %v213 = vld [vmem:[#allocation2 + $0x2c8] sm:$0xff]
    %v214 = vld [vmem:[#allocation2 + $0x2d0] sm:$0xff]
    %v215 = vld [vmem:[#allocation2 + $0x2d8] sm:$0xff]
    %v216 = vld [vmem:[#allocation2 + $0x2e0] sm:$0xff]
    %v217 = vld [vmem:[#allocation2 + $0x2e8] sm:$0xff]
    %v218 = vld [vmem:[#allocation2 + $0x2f0] sm:$0xff]
    %v219 = vld [vmem:[#allocation2 + $0x2f8] sm:$0xff]
    %v220 = vld [vmem:[#allocation2 + $0x300] sm:$0xff]
    %v221 = vld [vmem:[#allocation2 + $0x308] sm:$0xff]
    %v222 = vld [vmem:[#allocation2 + $0x310] sm:$0xff]
    %v223 = vld [vmem:[#allocation2 + $0x318] sm:$0xff]
    %v224 = vld [vmem:[#allocation2 + $0x320] sm:$0xff]
    %v225 = vld [vmem:[#allocation2 + $0x328] sm:$0xff]
    %v226 = vld [vmem:[#allocation2 + $0x330] sm:$0xff]
    %v227 = vld [vmem:[#allocation2 + $0x338] sm:$0xff]
    %v228 = vld [vmem:[#allocation2 + $0x340] sm:$0xff]
    %v229 = vld [vmem:[#allocation2 + $0x348] sm:$0xff]
    %v230 = vld [vmem:[#allocation2 + $0x350] sm:$0xff]
    %v231 = vld [vmem:[#allocation2 + $0x358] sm:$0xff]
    %v232 = vld [vmem:[#allocation2 + $0x360] sm:$0xff]
    %v233 = vld [vmem:[#allocation2 + $0x368] sm:$0xff]
    %v234 = vld [vmem:[#allocation2 + $0x370] sm:$0xff]
    %v235 = vld [vmem:[#allocation2 + $0x378] sm:$0xff]
    %v236 = vld [vmem:[#allocation2 + $0x380] sm:$0xff]
    %v237 = vld [vmem:[#allocation2 + $0x388] sm:$0xff]
    %v238 = vld [vmem:[#allocation2 + $0x390] sm:$0xff]
    %v239 = vld [vmem:[#allocation2 + $0x398] sm:$0xff]
    %v240 = vld [vmem:[#allocation2 + $0x3a0] sm:$0xff]
    %v241 = vld [vmem:[#allocation2 + $0x3a8] sm:$0xff]
    %v242 = vld [vmem:[#allocation2 + $0x3b0] sm:$0xff]
    %v243 = vld [vmem:[#allocation2 + $0x3b8] sm:$0xff]
    %v244 = vld [vmem:[#allocation2 + $0x3c0] sm:$0xff]
    %v245 = vld [vmem:[#allocation2 + $0x3c8] sm:$0xff]
    %v246 = vld [vmem:[#allocation2 + $0x3d0] sm:$0xff]
    %v247 = vld [vmem:[#allocation2 + $0x3d8] sm:$0xff]
    %v248 = vld [vmem:[#allocation2 + $0x3e0] sm:$0xff]
    %v249 = vld [vmem:[#allocation2 + $0x3e8] sm:$0xff]
    %v250 = vld [vmem:[#allocation2 + $0x3f0] sm:$0xff]
    %v251 = vld [vmem:[#allocation2 + $0x3f8] sm:$0xff]
    %v252 = vld [vmem:[#allocation2 + $0x400] sm:$0xff]
    %v253 = vld [vmem:[#allocation2 + $0x408] sm:$0xff]
    %v254 = vld [vmem:[#allocation2 + $0x410] sm:$0xff]
    %v255 = vld [vmem:[#allocation2 + $0x418] sm:$0xff]
    %v256 = vld [vmem:[#allocation2 + $0x420] sm:$0xff]
    %v257 = vld [vmem:[#allocation2 + $0x428] sm:$0xff]
    %v258 = vld [vmem:[#allocation2 + $0x430] sm:$0xff]
    %v259 = vld [vmem:[#allocation2 + $0x438] sm:$0xff]
    %v260 = vld [vmem:[#allocation2 + $0x440] sm:$0xff]
    %v261 = vld [vmem:[#allocation2 + $0x448] sm:$0xff]
    %v262 = vld [vmem:[#allocation2 + $0x450] sm:$0xff]
    %v263 = vld [vmem:[#allocation2 + $0x458] sm:$0xff]
    %v264 = vld [vmem:[#allocation2 + $0x460] sm:$0xff]
    %v265 = vld [vmem:[#allocation2 + $0x468] sm:$0xff]
    %v266 = vld [vmem:[#allocation2 + $0x470] sm:$0xff]
    %v267 = vld [vmem:[#allocation2 + $0x478] sm:$0xff]
    %v268 = vld [vmem:[#allocation2 + $0x480] sm:$0xff]
    %v269 = vld [vmem:[#allocation2 + $0x488] sm:$0xff]
    %v270 = vld [vmem:[#allocation2 + $0x490] sm:$0xff]
    %v271 = vld [vmem:[#allocation2 + $0x498] sm:$0xff]
    %v272 = vld [vmem:[#allocation2 + $0x4a0] sm:$0xff]
    %v273 = vld [vmem:[#allocation2 + $0x4a8] sm:$0xff]
    %v274 = vld [vmem:[#allocation2 + $0x4b0] sm:$0xff]
    %v275 = vld [vmem:[#allocation2 + $0x4b8] sm:$0xff]
    %v276 = vld [vmem:[#allocation2 + $0x4c0] sm:$0xff]
    %v277 = vld [vmem:[#allocation2 + $0x4c8] sm:$0xff]
    %v278 = vld [vmem:[#allocation2 + $0x4d0] sm:$0xff]
    %v279 = vld [vmem:[#allocation2 + $0x4d8] sm:$0xff]
    %v280 = vld [vmem:[#allocation2 + $0x4e0] sm:$0xff]
    %v281 = vld [vmem:[#allocation2 + $0x4e8] sm:$0xff]
    %v282 = vld [vmem:[#allocation2 + $0x4f0] sm:$0xff]
    %v283 = vld [vmem:[#allocation2 + $0x4f8] sm:$0xff]
    %v284 = vld [vmem:[#allocation2 + $0x500] sm:$0xff]
    %v285 = vld [vmem:[#allocation2 + $0x508] sm:$0xff]
    %v286 = vld [vmem:[#allocation2 + $0x510] sm:$0xff]
    %v287 = vld [vmem:[#allocation2 + $0x518] sm:$0xff]
    %v288 = vld [vmem:[#allocation2 + $0x520] sm:$0xff]
    %v289 = vld [vmem:[#allocation2 + $0x528] sm:$0xff]
    %v290 = vld [vmem:[#allocation2 + $0x530] sm:$0xff]
    %v291 = vld [vmem:[#allocation2 + $0x538] sm:$0xff]
    %v292 = vld [vmem:[#allocation2 + $0x540] sm:$0xff]
    %v293 = vld [vmem:[#allocation2 + $0x548] sm:$0xff]
    %v294 = vld [vmem:[#allocation2 + $0x550] sm:$0xff]
    %v295 = vld [vmem:[#allocation2 + $0x558] sm:$0xff]
    %v296 = vld [vmem:[#allocation2 + $0x560] sm:$0xff]
    %v297 = vld [vmem:[#allocation2 + $0x568] sm:$0xff]
    %v298 = vld [vmem:[#allocation2 + $0x570] sm:$0xff]
    %v299 = vld [vmem:[#allocation2 + $0x578] sm:$0xff]
    %v300 = vld [vmem:[#allocation2 + $0x580] sm:$0xff]
    %v301 = vld [vmem:[#allocation2 + $0x588] sm:$0xff]
    %v302 = vld [vmem:[#allocation2 + $0x590] sm:$0xff]
    %v303 = vld [vmem:[#allocation2 + $0x598] sm:$0xff]
    %v304 = vld [vmem:[#allocation2 + $0x5a0] sm:$0xff]
    %v305 = vld [vmem:[#allocation2 + $0x5a8] sm:$0xff]
    %v306 = vld [vmem:[#allocation2 + $0x5b0] sm:$0xff]
    %v307 = vld [vmem:[#allocation2 + $0x5b8] sm:$0xff]
    %v308 = vld [vmem:[#allocation2 + $0x5c0] sm:$0xff]
    %v309 = vld [vmem:[#allocation2 + $0x5c8] sm:$0xff]
    %v310 = vld [vmem:[#allocation2 + $0x5d0] sm:$0xff]
    %v311 = vld [vmem:[#allocation2 + $0x5d8] sm:$0xff]
    %v312 = vld [vmem:[#allocation2 + $0x5e0] sm:$0xff]
    %v313 = vld [vmem:[#allocation2 + $0x5e8] sm:$0xff]
    %v314 = vld [vmem:[#allocation2 + $0x5f0] sm:$0xff]
    %v315 = vld [vmem:[#allocation2 + $0x5f8] sm:$0xff]
    %v316 = vld [vmem:[#allocation2 + $0x600] sm:$0xff]
    %v317 = vld [vmem:[#allocation2 + $0x608] sm:$0xff]
    %v318 = vld [vmem:[#allocation2 + $0x610] sm:$0xff]
    %v319 = vld [vmem:[#allocation2 + $0x618] sm:$0xff]
    %v320 = vld [vmem:[#allocation2 + $0x620] sm:$0xff]
    %v321 = vld [vmem:[#allocation2 + $0x628] sm:$0xff]
    %v322 = vld [vmem:[#allocation2 + $0x630] sm:$0xff]
    %v323 = vld [vmem:[#allocation2 + $0x638] sm:$0xff]
    %v324 = vld [vmem:[#allocation2 + $0x640] sm:$0xff]
    %v325 = vld [vmem:[#allocation2 + $0x648] sm:$0xff]
    %v326 = vld [vmem:[#allocation2 + $0x650] sm:$0xff]
    %v327 = vld [vmem:[#allocation2 + $0x658] sm:$0xff]
    %v328 = vld [vmem:[#allocation2 + $0x660] sm:$0xff]
    %v329 = vld [vmem:[#allocation2 + $0x668] sm:$0xff]
    %v330 = vld [vmem:[#allocation2 + $0x670] sm:$0xff]
    %v331 = vld [vmem:[#allocation2 + $0x678] sm:$0xff]
    %v332 = vld [vmem:[#allocation2 + $0x680] sm:$0xff]
    %v333 = vld [vmem:[#allocation2 + $0x688] sm:$0xff]
    %v334 = vld [vmem:[#allocation2 + $0x690] sm:$0xff]
    %v335 = vld [vmem:[#allocation2 + $0x698] sm:$0xff]
    %v336 = vld [vmem:[#allocation2 + $0x6a0] sm:$0xff]
    %v337 = vld [vmem:[#allocation2 + $0x6a8] sm:$0xff]
    %v338 = vld [vmem:[#allocation2 + $0x6b0] sm:$0xff]
    %v339 = vld [vmem:[#allocation2 + $0x6b8] sm:$0xff]
    %v340 = vld [vmem:[#allocation2 + $0x6c0] sm:$0xff]
    %v341 = vld [vmem:[#allocation2 + $0x6c8] sm:$0xff]
    %v342 = vld [vmem:[#allocation2 + $0x6d0] sm:$0xff]
    %v343 = vld [vmem:[#allocation2 + $0x6d8] sm:$0xff]
    %v344 = vld [vmem:[#allocation2 + $0x6e0] sm:$0xff]
    %v345 = vld [vmem:[#allocation2 + $0x6e8] sm:$0xff]
    %v346 = vld [vmem:[#allocation2 + $0x6f0] sm:$0xff]
    %v347 = vld [vmem:[#allocation2 + $0x6f8] sm:$0xff]
    %v348 = vld [vmem:[#allocation2 + $0x700] sm:$0xff]
    %v349 = vld [vmem:[#allocation2 + $0x708] sm:$0xff]
    %v350 = vld [vmem:[#allocation2 + $0x710] sm:$0xff]
    %v351 = vld [vmem:[#allocation2 + $0x718] sm:$0xff]
    %v352 = vld [vmem:[#allocation2 + $0x720] sm:$0xff]
    %v353 = vld [vmem:[#allocation2 + $0x728] sm:$0xff]
    %v354 = vld [vmem:[#allocation2 + $0x730] sm:$0xff]
    %v355 = vld [vmem:[#allocation2 + $0x738] sm:$0xff]
    %v356 = vld [vmem:[#allocation2 + $0x740] sm:$0xff]
    %v357 = vld [vmem:[#allocation2 + $0x748] sm:$0xff]
    %v358 = vld [vmem:[#allocation2 + $0x750] sm:$0xff]
    %v359 = vld [vmem:[#allocation2 + $0x758] sm:$0xff]
    %v360 = vld [vmem:[#allocation2 + $0x760] sm:$0xff]
    %v361 = vld [vmem:[#allocation2 + $0x768] sm:$0xff]
    %v362 = vld [vmem:[#allocation2 + $0x770] sm:$0xff]
    %v363 = vld [vmem:[#allocation2 + $0x778] sm:$0xff]
    %v364 = vld [vmem:[#allocation2 + $0x780] sm:$0xff]
    %v365 = vld [vmem:[#allocation2 + $0x788] sm:$0xff]
    %v366 = vld [vmem:[#allocation2 + $0x790] sm:$0xff]
    %v367 = vld [vmem:[#allocation2 + $0x798] sm:$0xff]
    %v368 = vld [vmem:[#allocation2 + $0x7a0] sm:$0xff]
    %v369 = vld [vmem:[#allocation2 + $0x7a8] sm:$0xff]
    %v370 = vld [vmem:[#allocation2 + $0x7b0] sm:$0xff]
    %v371 = vld [vmem:[#allocation2 + $0x7b8] sm:$0xff]
    %v372 = vld [vmem:[#allocation2 + $0x7c0] sm:$0xff]
    %v373 = vld [vmem:[#allocation2 + $0x7c8] sm:$0xff]
    %v374 = vld [vmem:[#allocation2 + $0x7d0] sm:$0xff]
    %v375 = vld [vmem:[#allocation2 + $0x7d8] sm:$0xff]
    %v376 = vld [vmem:[#allocation2 + $0x7e0] sm:$0xff]
    %v377 = vld [vmem:[#allocation2 + $0x7e8] sm:$0xff]
    %v378 = vld [vmem:[#allocation2 + $0x7f0] sm:$0xff]
    %v379 = vld [vmem:[#allocation2 + $0x7f8] sm:$0xff]
    %v380 = vld [vmem:[#allocation2 + $0x800] sm:$0xff]
    %v381 = vld [vmem:[#allocation2 + $0x808] sm:$0xff]
    %v382 = vld [vmem:[#allocation2 + $0x810] sm:$0xff]
    %v383 = vld [vmem:[#allocation2 + $0x818] sm:$0xff]
    %v384 = vld [vmem:[#allocation2 + $0x820] sm:$0xff]
    %v385 = vld [vmem:[#allocation2 + $0x828] sm:$0xff]
    %v386 = vld [vmem:[#allocation2 + $0x830] sm:$0xff]
    %v387 = vld [vmem:[#allocation2 + $0x838] sm:$0xff]
    %v388 = vld [vmem:[#allocation2 + $0x840] sm:$0xff]
    %v389 = vld [vmem:[#allocation2 + $0x848] sm:$0xff]
    %v390 = vld [vmem:[#allocation2 + $0x850] sm:$0xff]
    %v391 = vld [vmem:[#allocation2 + $0x858] sm:$0xff]
    %v392 = vld [vmem:[#allocation2 + $0x860] sm:$0xff]
    %v393 = vld [vmem:[#allocation2 + $0x868] sm:$0xff]
    %v394 = vld [vmem:[#allocation2 + $0x870] sm:$0xff]
    %v395 = vld [vmem:[#allocation2 + $0x878] sm:$0xff]
    %v396 = vld [vmem:[#allocation2 + $0x880] sm:$0xff]
    %v397 = vld [vmem:[#allocation2 + $0x888] sm:$0xff]
    %v398 = vld [vmem:[#allocation2 + $0x890] sm:$0xff]
    %v399 = vld [vmem:[#allocation2 + $0x898] sm:$0xff]
    %v400 = vld [vmem:[#allocation2 + $0x8a0] sm:$0xff]
    %v401 = vld [vmem:[#allocation2 + $0x8a8] sm:$0xff]
    %v402 = vld [vmem:[#allocation2 + $0x8b0] sm:$0xff]
    %v403 = vld [vmem:[#allocation2 + $0x8b8] sm:$0xff]
    %v404 = vld [vmem:[#allocation2 + $0x8c0] sm:$0xff]
    %v405 = vld [vmem:[#allocation2 + $0x8c8] sm:$0xff]
    %v406 = vld [vmem:[#allocation2 + $0x8d0] sm:$0xff]
    %v407 = vld [vmem:[#allocation2 + $0x8d8] sm:$0xff]
    %v408 = vld [vmem:[#allocation2 + $0x8e0] sm:$0xff]
    %v409 = vld [vmem:[#allocation2 + $0x8e8] sm:$0xff]
    %v410 = vld [vmem:[#allocation2 + $0x8f0] sm:$0xff]
    %v411 = vld [vmem:[#allocation2 + $0x8f8] sm:$0xff]
    %v412 = vld [vmem:[#allocation2 + $0x900] sm:$0xff]
    %v413 = vld [vmem:[#allocation2 + $0x908] sm:$0xff]
    %v414 = vld [vmem:[#allocation2 + $0x910] sm:$0xff]
    %v415 = vld [vmem:[#allocation2 + $0x918] sm:$0xff]
    %v416 = vld [vmem:[#allocation2 + $0x920] sm:$0xff]
    %v417 = vld [vmem:[#allocation2 + $0x928] sm:$0xff]
    %v418 = vld [vmem:[#allocation2 + $0x930] sm:$0xff]
    %v419 = vld [vmem:[#allocation2 + $0x938] sm:$0xff]
    %v420 = vld [vmem:[#allocation2 + $0x940] sm:$0xff]
    %v421 = vld [vmem:[#allocation2 + $0x948] sm:$0xff]
    %v422 = vld [vmem:[#allocation2 + $0x950] sm:$0xff]
    %v423 = vld [vmem:[#allocation2 + $0x958] sm:$0xff]
    %v424 = vld [vmem:[#allocation2 + $0x960] sm:$0xff]
    %v425 = vld [vmem:[#allocation2 + $0x968] sm:$0xff]
    %v426 = vld [vmem:[#allocation2 + $0x970] sm:$0xff]
    %v427 = vld [vmem:[#allocation2 + $0x978] sm:$0xff]
    %v428 = vld [vmem:[#allocation2 + $0x980] sm:$0xff]
    %v429 = vld [vmem:[#allocation2 + $0x988] sm:$0xff]
    %v430 = vld [vmem:[#allocation2 + $0x990] sm:$0xff]
    %v431 = vld [vmem:[#allocation2 + $0x998] sm:$0xff]
    %v432 = vld [vmem:[#allocation2 + $0x9a0] sm:$0xff]
    %v433 = vld [vmem:[#allocation2 + $0x9a8] sm:$0xff]
    %v434 = vld [vmem:[#allocation2 + $0x9b0] sm:$0xff]
    %v435 = vld [vmem:[#allocation2 + $0x9b8] sm:$0xff]
    %v436 = vld [vmem:[#allocation2 + $0x9c0] sm:$0xff]
    %v437 = vld [vmem:[#allocation2 + $0x9c8] sm:$0xff]
    %v438 = vld [vmem:[#allocation2 + $0x9d0] sm:$0xff]
    %v439 = vld [vmem:[#allocation2 + $0x9d8] sm:$0xff]
    %v440 = vld [vmem:[#allocation2 + $0x9e0] sm:$0xff]
    %v441 = vld [vmem:[#allocation2 + $0x9e8] sm:$0xff]
    %v442 = vld [vmem:[#allocation2 + $0x9f0] sm:$0xff]
    %v443 = vld [vmem:[#allocation2 + $0x9f8] sm:$0xff]
    %v444 = vld [vmem:[#allocation2 + $0xa00] sm:$0xff]
    %v445 = vld [vmem:[#allocation2 + $0xa08] sm:$0xff]
    %v446 = vld [vmem:[#allocation2 + $0xa10] sm:$0xff]
    %v447 = vld [vmem:[#allocation2 + $0xa18] sm:$0xff]
    %v448 = vld [vmem:[#allocation2 + $0xa20] sm:$0xff]
    %v449 = vld [vmem:[#allocation2 + $0xa28] sm:$0xff]
    %v450 = vld [vmem:[#allocation2 + $0xa30] sm:$0xff]
    %v451 = vld [vmem:[#allocation2 + $0xa38] sm:$0xff]
    %v452 = vld [vmem:[#allocation2 + $0xa40] sm:$0xff]
    %v453 = vld [vmem:[#allocation2 + $0xa48] sm:$0xff]
    %v454 = vld [vmem:[#allocation2 + $0xa50] sm:$0xff]
    %v455 = vld [vmem:[#allocation2 + $0xa58] sm:$0xff]
    %v456 = vld [vmem:[#allocation2 + $0xa60] sm:$0xff]
    %v457 = vld [vmem:[#allocation2 + $0xa68] sm:$0xff]
    %v458 = vld [vmem:[#allocation2 + $0xa70] sm:$0xff]
    %v459 = vld [vmem:[#allocation2 + $0xa78] sm:$0xff]
    %v460 = vld [vmem:[#allocation2 + $0xa80] sm:$0xff]
    %v461 = vld [vmem:[#allocation2 + $0xa88] sm:$0xff]
    %v462 = vld [vmem:[#allocation2 + $0xa90] sm:$0xff]
    %v463 = vld [vmem:[#allocation2 + $0xa98] sm:$0xff]
    %v464 = vld [vmem:[#allocation2 + $0xaa0] sm:$0xff]
    %v465 = vld [vmem:[#allocation2 + $0xaa8] sm:$0xff]
    %v466 = vld [vmem:[#allocation2 + $0xab0] sm:$0xff]
    %v467 = vld [vmem:[#allocation2 + $0xab8] sm:$0xff]
    %v468 = vld [vmem:[#allocation2 + $0xac0] sm:$0xff]
    %v469 = vld [vmem:[#allocation2 + $0xac8] sm:$0xff]
    %v470 = vld [vmem:[#allocation2 + $0xad0] sm:$0xff]
    %v471 = vld [vmem:[#allocation2 + $0xad8] sm:$0xff]
    %v472 = vld [vmem:[#allocation2 + $0xae0] sm:$0xff]
    %v473 = vld [vmem:[#allocation2 + $0xae8] sm:$0xff]
    %v474 = vld [vmem:[#allocation2 + $0xaf0] sm:$0xff]
    %v475 = vld [vmem:[#allocation2 + $0xaf8] sm:$0xff]
    %v476 = vld [vmem:[#allocation2 + $0xb00] sm:$0xff]
    %v477 = vld [vmem:[#allocation2 + $0xb08] sm:$0xff]
    %v478 = vld [vmem:[#allocation2 + $0xb10] sm:$0xff]
    %v479 = vld [vmem:[#allocation2 + $0xb18] sm:$0xff]
    %v480 = vld [vmem:[#allocation2 + $0xb20] sm:$0xff]
    %v481 = vld [vmem:[#allocation2 + $0xb28] sm:$0xff]
    %v482 = vld [vmem:[#allocation2 + $0xb30] sm:$0xff]
    %v483 = vld [vmem:[#allocation2 + $0xb38] sm:$0xff]
    %v484 = vld [vmem:[#allocation2 + $0xb40] sm:$0xff]
    %v485 = vld [vmem:[#allocation2 + $0xb48] sm:$0xff]
    %v486 = vld [vmem:[#allocation2 + $0xb50] sm:$0xff]
    %v487 = vld [vmem:[#allocation2 + $0xb58] sm:$0xff]
    %v488 = vld [vmem:[#allocation2 + $0xb60] sm:$0xff]
    %v489 = vld [vmem:[#allocation2 + $0xb68] sm:$0xff]
    %v490 = vld [vmem:[#allocation2 + $0xb70] sm:$0xff]
    %v491 = vld [vmem:[#allocation2 + $0xb78] sm:$0xff]
    %v492 = vld [vmem:[#allocation2 + $0xb80] sm:$0xff]
    %v493 = vld [vmem:[#allocation2 + $0xb88] sm:$0xff]
    %v494 = vld [vmem:[#allocation2 + $0xb90] sm:$0xff]
    %v495 = vld [vmem:[#allocation2 + $0xb98] sm:$0xff]
    %v496 = vld [vmem:[#allocation2 + $0xba0] sm:$0xff]
    %v497 = vld [vmem:[#allocation2 + $0xba8] sm:$0xff]
    %v498 = vld [vmem:[#allocation2 + $0xbb0] sm:$0xff]
    %v499 = vld [vmem:[#allocation2 + $0xbb8] sm:$0xff]
    %v500 = vld [vmem:[#allocation2 + $0xbc0] sm:$0xff]
    %v501 = vld [vmem:[#allocation2 + $0xbc8] sm:$0xff]
    %v502 = vld [vmem:[#allocation2 + $0xbd0] sm:$0xff]
    %v503 = vld [vmem:[#allocation2 + $0xbd8] sm:$0xff]
    %v504 = vld [vmem:[#allocation2 + $0xbe0] sm:$0xff]
    %v505 = vld [vmem:[#allocation2 + $0xbe8] sm:$0xff]
    %v506 = vld [vmem:[#allocation2 + $0xbf0] sm:$0xff]
    %v507 = vld [vmem:[#allocation2 + $0xbf8] sm:$0xff]
    %v508 = vld [vmem:[#allocation2 + $0xc00] sm:$0xff]
    %v509 = vld [vmem:[#allocation2 + $0xc08] sm:$0xff]
    %v510 = vld [vmem:[#allocation2 + $0xc10] sm:$0xff]
    %v511 = vld [vmem:[#allocation2 + $0xc18] sm:$0xff]
    %v512 = vld [vmem:[#allocation2 + $0xc20] sm:$0xff]
    %v513 = vld [vmem:[#allocation2 + $0xc28] sm:$0xff]
    %v514 = vld [vmem:[#allocation2 + $0xc30] sm:$0xff]
    %v515 = vld [vmem:[#allocation2 + $0xc38] sm:$0xff]
    %v516 = vld [vmem:[#allocation2 + $0xc40] sm:$0xff]
    %v517 = vld [vmem:[#allocation2 + $0xc48] sm:$0xff]
    %v518 = vld [vmem:[#allocation2 + $0xc50] sm:$0xff]
    %v519 = vld [vmem:[#allocation2 + $0xc58] sm:$0xff]
    %v520 = vld [vmem:[#allocation2 + $0xc60] sm:$0xff]
    %v521 = vld [vmem:[#allocation2 + $0xc68] sm:$0xff]
    %v522 = vld [vmem:[#allocation2 + $0xc70] sm:$0xff]
    %v523 = vld [vmem:[#allocation2 + $0xc78] sm:$0xff]
    %v524 = vld [vmem:[#allocation2 + $0xc80] sm:$0xff]
    %v525 = vld [vmem:[#allocation2 + $0xc88] sm:$0xff]
    %v526 = vld [vmem:[#allocation2 + $0xc90] sm:$0xff]
    %v527 = vld [vmem:[#allocation2 + $0xc98] sm:$0xff]
    %v528 = vld [vmem:[#allocation2 + $0xca0] sm:$0xff]
    %v529 = vld [vmem:[#allocation2 + $0xca8] sm:$0xff]
    %v530 = vld [vmem:[#allocation2 + $0xcb0] sm:$0xff]
    %v531 = vld [vmem:[#allocation2 + $0xcb8] sm:$0xff]
    %v532 = vld [vmem:[#allocation2 + $0xcc0] sm:$0xff]
    %v533 = vld [vmem:[#allocation2 + $0xcc8] sm:$0xff]
    %v534 = vld [vmem:[#allocation2 + $0xcd0] sm:$0xff]
    %v535 = vld [vmem:[#allocation2 + $0xcd8] sm:$0xff]
    %v536 = vld [vmem:[#allocation2 + $0xce0] sm:$0xff]
    %v537 = vld [vmem:[#allocation2 + $0xce8] sm:$0xff]
    %v538 = vld [vmem:[#allocation2 + $0xcf0] sm:$0xff]
    %v539 = vld [vmem:[#allocation2 + $0xcf8] sm:$0xff]
    %v540 = vld [vmem:[#allocation2 + $0xd00] sm:$0xff]
    %v541 = vld [vmem:[#allocation2 + $0xd08] sm:$0xff]
    %v542 = vld [vmem:[#allocation2 + $0xd10] sm:$0xff]
    %v543 = vld [vmem:[#allocation2 + $0xd18] sm:$0xff]
    %v544 = vld [vmem:[#allocation2 + $0xd20] sm:$0xff]
    %v545 = vld [vmem:[#allocation2 + $0xd28] sm:$0xff]
    %v546 = vld [vmem:[#allocation2 + $0xd30] sm:$0xff]
    %v547 = vld [vmem:[#allocation2 + $0xd38] sm:$0xff]
    %v548 = vld [vmem:[#allocation2 + $0xd40] sm:$0xff]
    %v549 = vld [vmem:[#allocation2 + $0xd48] sm:$0xff]
    %v550 = vld [vmem:[#allocation2 + $0xd50] sm:$0xff]
    %v551 = vld [vmem:[#allocation2 + $0xd58] sm:$0xff]
    %v552 = vld [vmem:[#allocation2 + $0xd60] sm:$0xff]
    %v553 = vld [vmem:[#allocation2 + $0xd68] sm:$0xff]
    %v554 = vld [vmem:[#allocation2 + $0xd70] sm:$0xff]
    %v555 = vld [vmem:[#allocation2 + $0xd78] sm:$0xff]
    %v556 = vld [vmem:[#allocation2 + $0xd80] sm:$0xff]
    %v557 = vld [vmem:[#allocation2 + $0xd88] sm:$0xff]
    %v558 = vld [vmem:[#allocation2 + $0xd90] sm:$0xff]
    %v559 = vld [vmem:[#allocation2 + $0xd98] sm:$0xff]
    %v560 = vld [vmem:[#allocation2 + $0xda0] sm:$0xff]
    %v561 = vld [vmem:[#allocation2 + $0xda8] sm:$0xff]
    %v562 = vld [vmem:[#allocation2 + $0xdb0] sm:$0xff]
    %v563 = vld [vmem:[#allocation2 + $0xdb8] sm:$0xff]
    %v564 = vld [vmem:[#allocation2 + $0xdc0] sm:$0xff]
    %v565 = vld [vmem:[#allocation2 + $0xdc8] sm:$0xff]
    %v566 = vld [vmem:[#allocation2 + $0xdd0] sm:$0xff]
    %v567 = vld [vmem:[#allocation2 + $0xdd8] sm:$0xff]
    %v568 = vld [vmem:[#allocation2 + $0xde0] sm:$0xff]
    %v569 = vld [vmem:[#allocation2 + $0xde8] sm:$0xff]
    %v570 = vld [vmem:[#allocation2 + $0xdf0] sm:$0xff]
    %v571 = vld [vmem:[#allocation2 + $0xdf8] sm:$0xff]
    %v572 = vld [vmem:[#allocation2 + $0xe00] sm:$0xff]
    %v573 = vld [vmem:[#allocation2 + $0xe08] sm:$0xff]
    %v574 = vld [vmem:[#allocation2 + $0xe10] sm:$0xff]
    %v575 = vld [vmem:[#allocation2 + $0xe18] sm:$0xff]
    %v576 = vld [vmem:[#allocation2 + $0xe20] sm:$0xff]
    %v577 = vld [vmem:[#allocation2 + $0xe28] sm:$0xff]
    %v578 = vld [vmem:[#allocation2 + $0xe30] sm:$0xff]
    %v579 = vld [vmem:[#allocation2 + $0xe38] sm:$0xff]
    %v580 = vld [vmem:[#allocation2 + $0xe40] sm:$0xff]
    %v581 = vld [vmem:[#allocation2 + $0xe48] sm:$0xff]
    %v582 = vld [vmem:[#allocation2 + $0xe50] sm:$0xff]
    %v583 = vld [vmem:[#allocation2 + $0xe58] sm:$0xff]
    %v584 = vld [vmem:[#allocation2 + $0xe60] sm:$0xff]
    %v585 = vld [vmem:[#allocation2 + $0xe68] sm:$0xff]
    %v586 = vld [vmem:[#allocation2 + $0xe70] sm:$0xff]
    %v587 = vld [vmem:[#allocation2 + $0xe78] sm:$0xff]
    %v588 = vld [vmem:[#allocation2 + $0xe80] sm:$0xff]
    %v589 = vld [vmem:[#allocation2 + $0xe88] sm:$0xff]
    %v590 = vld [vmem:[#allocation2 + $0xe90] sm:$0xff]
    %v591 = vld [vmem:[#allocation2 + $0xe98] sm:$0xff]
    %v592 = vld [vmem:[#allocation2 + $0xea0] sm:$0xff]
    %v593 = vld [vmem:[#allocation2 + $0xea8] sm:$0xff]
    %v594 = vld [vmem:[#allocation2 + $0xeb0] sm:$0xff]
    %v595 = vld [vmem:[#allocation2 + $0xeb8] sm:$0xff]
    %v596 = vld [vmem:[#allocation2 + $0xec0] sm:$0xff]
    %v597 = vld [vmem:[#allocation2 + $0xec8] sm:$0xff]
    %v598 = vld [vmem:[#allocation2 + $0xed0] sm:$0xff]
    %v599 = vld [vmem:[#allocation2 + $0xed8] sm:$0xff]
    %v600 = vld [vmem:[#allocation2 + $0xee0] sm:$0xff]
    %v601 = vld [vmem:[#allocation2 + $0xee8] sm:$0xff]
    %v602 = vld [vmem:[#allocation2 + $0xef0] sm:$0xff]
    %v603 = vld [vmem:[#allocation2 + $0xef8] sm:$0xff]
    %v604 = vld [vmem:[#allocation2 + $0xf00] sm:$0xff]
    %v605 = vld [vmem:[#allocation2 + $0xf08] sm:$0xff]
    %v606 = vld [vmem:[#allocation2 + $0xf10] sm:$0xff]
    %v607 = vld [vmem:[#allocation2 + $0xf18] sm:$0xff]
    %v608 = vld [vmem:[#allocation2 + $0xf20] sm:$0xff]
    %v609 = vld [vmem:[#allocation2 + $0xf28] sm:$0xff]
    %v610 = vld [vmem:[#allocation2 + $0xf30] sm:$0xff]
    %v611 = vld [vmem:[#allocation2 + $0xf38] sm:$0xff]
    %v612 = vld [vmem:[#allocation2 + $0xf40] sm:$0xff]
    %v613 = vld [vmem:[#allocation2 + $0xf48] sm:$0xff]
    %v614 = vld [vmem:[#allocation2 + $0xf50] sm:$0xff]
    %v615 = vld [vmem:[#allocation2 + $0xf58] sm:$0xff]
    %v616 = vld [vmem:[#allocation2 + $0xf60] sm:$0xff]
    %v617 = vld [vmem:[#allocation2 + $0xf68] sm:$0xff]
    %v618 = vld [vmem:[#allocation2 + $0xf70] sm:$0xff]
    %v619 = vld [vmem:[#allocation2 + $0xf78] sm:$0xff]
    %v620 = vld [vmem:[#allocation2 + $0xf80] sm:$0xff]
    %v621 = vld [vmem:[#allocation2 + $0xf88] sm:$0xff]
    %v622 = vld [vmem:[#allocation2 + $0xf90] sm:$0xff]
    %v623 = vld [vmem:[#allocation2 + $0xf98] sm:$0xff]
    %v624 = vld [vmem:[#allocation2 + $0xfa0] sm:$0xff]
    %v625 = vld [vmem:[#allocation2 + $0xfa8] sm:$0xff]
    %v626 = vld [vmem:[#allocation2 + $0xfb0] sm:$0xff]
    %v627 = vld [vmem:[#allocation2 + $0xfb8] sm:$0xff]
    %v628 = vld [vmem:[#allocation2 + $0xfc0] sm:$0xff]
    %v629 = vld [vmem:[#allocation2 + $0xfc8] sm:$0xff]
    %v630 = vld [vmem:[#allocation2 + $0xfd0] sm:$0xff]
    %v631 = vld [vmem:[#allocation2 + $0xfd8] sm:$0xff]
    %v632 = vld [vmem:[#allocation2 + $0xfe0] sm:$0xff]
    %v633 = vld [vmem:[#allocation2 + $0xfe8] sm:$0xff]
    %v634 = vld [vmem:[#allocation2 + $0xff0] sm:$0xff]
    %v635 = vld [vmem:[#allocation2 + $0xff8] sm:$0xff]
    %v636 = vld [vmem:[#allocation2 + $0x1000] sm:$0xff]
    %v637 = vld [vmem:[#allocation2 + $0x1008] sm:$0xff]
    %v638 = vld [vmem:[#allocation2 + $0x1010] sm:$0xff]
    %v639 = vld [vmem:[#allocation2 + $0x1018] sm:$0xff]
    %v640 = vld [vmem:[#allocation2 + $0x1020] sm:$0xff]
    %v641 = vld [vmem:[#allocation2 + $0x1028] sm:$0xff]
    %v642 = vld [vmem:[#allocation2 + $0x1030] sm:$0xff]
    %v643 = vld [vmem:[#allocation2 + $0x1038] sm:$0xff]
    %v644 = vld [vmem:[#allocation2 + $0x1040] sm:$0xff]
    %v645 = vld [vmem:[#allocation2 + $0x1048] sm:$0xff]
    %v646 = vld [vmem:[#allocation2 + $0x1050] sm:$0xff]
    %v647 = vld [vmem:[#allocation2 + $0x1058] sm:$0xff]
    %v648 = vld [vmem:[#allocation2 + $0x1060] sm:$0xff]
    %v649 = vld [vmem:[#allocation2 + $0x1068] sm:$0xff]
    %v650 = vld [vmem:[#allocation2 + $0x1070] sm:$0xff]
    %v651 = vld [vmem:[#allocation2 + $0x1078] sm:$0xff]
    %v652 = vld [vmem:[#allocation2 + $0x1080] sm:$0xff]
    %v653 = vld [vmem:[#allocation2 + $0x1088] sm:$0xff]
    %v654 = vld [vmem:[#allocation2 + $0x1090] sm:$0xff]
    %v655 = vld [vmem:[#allocation2 + $0x1098] sm:$0xff]
    %v656 = vld [vmem:[#allocation2 + $0x10a0] sm:$0xff]
    %v657 = vld [vmem:[#allocation2 + $0x10a8] sm:$0xff]
    %v658 = vld [vmem:[#allocation2 + $0x10b0] sm:$0xff]
    %v659 = vld [vmem:[#allocation2 + $0x10b8] sm:$0xff]
    %v660 = vld [vmem:[#allocation2 + $0x10c0] sm:$0xff]
    %v661 = vld [vmem:[#allocation2 + $0x10c8] sm:$0xff]
    %v662 = vld [vmem:[#allocation2 + $0x10d0] sm:$0xff]
    %v663 = vld [vmem:[#allocation2 + $0x10d8] sm:$0xff]
    %v664 = vld [vmem:[#allocation2 + $0x10e0] sm:$0xff]
    %v665 = vld [vmem:[#allocation2 + $0x10e8] sm:$0xff]
    %v666 = vld [vmem:[#allocation2 + $0x10f0] sm:$0xff]
    %v667 = vld [vmem:[#allocation2 + $0x10f8] sm:$0xff]
    %v668 = vld [vmem:[#allocation2 + $0x1100] sm:$0xff]
    %v669 = vld [vmem:[#allocation2 + $0x1108] sm:$0xff]
    %v670 = vld [vmem:[#allocation2 + $0x1110] sm:$0xff]
    %v671 = vld [vmem:[#allocation2 + $0x1118] sm:$0xff]
    %v672 = vld [vmem:[#allocation2 + $0x1120] sm:$0xff]
    %v673 = vld [vmem:[#allocation2 + $0x1128] sm:$0xff]
    %v674 = vld [vmem:[#allocation2 + $0x1130] sm:$0xff]
    %v675 = vld [vmem:[#allocation2 + $0x1138] sm:$0xff]
    %v676 = vld [vmem:[#allocation2 + $0x1140] sm:$0xff]
    %v677 = vld [vmem:[#allocation2 + $0x1148] sm:$0xff]
    %v678 = vld [vmem:[#allocation2 + $0x1150] sm:$0xff]
    %v679 = vld [vmem:[#allocation2 + $0x1158] sm:$0xff]
    %v680 = vld [vmem:[#allocation2 + $0x1160] sm:$0xff]
    %v681 = vld [vmem:[#allocation2 + $0x1168] sm:$0xff]
    %v682 = vld [vmem:[#allocation2 + $0x1170] sm:$0xff]
    %v683 = vld [vmem:[#allocation2 + $0x1178] sm:$0xff]
    %v684 = vld [vmem:[#allocation2 + $0x1180] sm:$0xff]
    %v685 = vld [vmem:[#allocation2 + $0x1188] sm:$0xff]
    %v686 = vld [vmem:[#allocation2 + $0x1190] sm:$0xff]
    %v687 = vld [vmem:[#allocation2 + $0x1198] sm:$0xff]
    %v688 = vld [vmem:[#allocation2 + $0x11a0] sm:$0xff]
    %v689 = vld [vmem:[#allocation2 + $0x11a8] sm:$0xff]
    %v690 = vld [vmem:[#allocation2 + $0x11b0] sm:$0xff]
    %v691 = vld [vmem:[#allocation2 + $0x11b8] sm:$0xff]
    %v692 = vld [vmem:[#allocation2 + $0x11c0] sm:$0xff]
    %v693 = vld [vmem:[#allocation2 + $0x11c8] sm:$0xff]
    %v694 = vld [vmem:[#allocation2 + $0x11d0] sm:$0xff]
    %v695 = vld [vmem:[#allocation2 + $0x11d8] sm:$0xff]
    %v696 = vld [vmem:[#allocation2 + $0x11e0] sm:$0xff]
    %v697 = vld [vmem:[#allocation2 + $0x11e8] sm:$0xff]
    %v698 = vld [vmem:[#allocation2 + $0x11f0] sm:$0xff]
    %v699 = vld [vmem:[#allocation2 + $0x11f8] sm:$0xff]
    %v700 = vld [vmem:[#allocation2 + $0x1200] sm:$0xff]
    %v701 = vld [vmem:[#allocation2 + $0x1208] sm:$0xff]
    %v702 = vld [vmem:[#allocation2 + $0x1210] sm:$0xff]
    %v703 = vld [vmem:[#allocation2 + $0x1218] sm:$0xff]
    %v704 = vld [vmem:[#allocation2 + $0x1220] sm:$0xff]
    %v705 = vld [vmem:[#allocation2 + $0x1228] sm:$0xff]
    %v706 = vld [vmem:[#allocation2 + $0x1230] sm:$0xff]
    %v707 = vld [vmem:[#allocation2 + $0x1238] sm:$0xff]
    %v708 = vld [vmem:[#allocation2 + $0x1240] sm:$0xff]
    %v709 = vld [vmem:[#allocation2 + $0x1248] sm:$0xff]
    %v710 = vld [vmem:[#allocation2 + $0x1250] sm:$0xff]
    %v711 = vld [vmem:[#allocation2 + $0x1258] sm:$0xff]
    %v712 = vld [vmem:[#allocation2 + $0x1260] sm:$0xff]
    %v713 = vld [vmem:[#allocation2 + $0x1268] sm:$0xff]
    %v714 = vld [vmem:[#allocation2 + $0x1270] sm:$0xff]
    %v715 = vld [vmem:[#allocation2 + $0x1278] sm:$0xff]
    %v716 = vld [vmem:[#allocation2 + $0x1280] sm:$0xff]
    %v717 = vld [vmem:[#allocation2 + $0x1288] sm:$0xff]
    %v718 = vld [vmem:[#allocation2 + $0x1290] sm:$0xff]
    %v719 = vld [vmem:[#allocation2 + $0x1298] sm:$0xff]
    %v720 = vld [vmem:[#allocation2 + $0x12a0] sm:$0xff]
    %v721 = vld [vmem:[#allocation2 + $0x12a8] sm:$0xff]
    %v722 = vld [vmem:[#allocation2 + $0x12b0] sm:$0xff]
    %v723 = vld [vmem:[#allocation2 + $0x12b8] sm:$0xff]
    %v724 = vld [vmem:[#allocation2 + $0x12c0] sm:$0xff]
    %v725 = vld [vmem:[#allocation2 + $0x12c8] sm:$0xff]
    %v726 = vld [vmem:[#allocation2 + $0x12d0] sm:$0xff]
    %v727 = vld [vmem:[#allocation2 + $0x12d8] sm:$0xff]
    %v728 = vld [vmem:[#allocation2 + $0x12e0] sm:$0xff]
    %v729 = vld [vmem:[#allocation2 + $0x12e8] sm:$0xff]
    %v730 = vld [vmem:[#allocation2 + $0x12f0] sm:$0xff]
    %v731 = vld [vmem:[#allocation2 + $0x12f8] sm:$0xff]
    %v732 = vld [vmem:[#allocation2 + $0x1300] sm:$0xff]
    %v733 = vld [vmem:[#allocation2 + $0x1308] sm:$0xff]
    %v734 = vld [vmem:[#allocation2 + $0x1310] sm:$0xff]
    %v735 = vld [vmem:[#allocation2 + $0x1318] sm:$0xff]
    %v736 = vld [vmem:[#allocation2 + $0x1320] sm:$0xff]
    %v737 = vld [vmem:[#allocation2 + $0x1328] sm:$0xff]
    %v738 = vld [vmem:[#allocation2 + $0x1330] sm:$0xff]
    %v739 = vld [vmem:[#allocation2 + $0x1338] sm:$0xff]
    %v740 = vld [vmem:[#allocation2 + $0x1340] sm:$0xff]
    %v741 = vld [vmem:[#allocation2 + $0x1348] sm:$0xff]
    %v742 = vld [vmem:[#allocation2 + $0x1350] sm:$0xff]
    %v743 = vld [vmem:[#allocation2 + $0x1358] sm:$0xff]
    %v744 = vld [vmem:[#allocation2 + $0x1360] sm:$0xff]
    %v745 = vld [vmem:[#allocation2 + $0x1368] sm:$0xff]
    %v746 = vld [vmem:[#allocation2 + $0x1370] sm:$0xff]
    %v747 = vld [vmem:[#allocation2 + $0x1378] sm:$0xff]
    %v748 = vld [vmem:[#allocation2 + $0x1380] sm:$0xff]
    %v749 = vld [vmem:[#allocation2 + $0x1388] sm:$0xff]
    %v750 = vld [vmem:[#allocation2 + $0x1390] sm:$0xff]
    %v751 = vld [vmem:[#allocation2 + $0x1398] sm:$0xff]
    %v752 = vld [vmem:[#allocation2 + $0x13a0] sm:$0xff]
    %v753 = vld [vmem:[#allocation2 + $0x13a8] sm:$0xff]
    %v754 = vld [vmem:[#allocation2 + $0x13b0] sm:$0xff]
    %v755 = vld [vmem:[#allocation2 + $0x13b8] sm:$0xff]
    %v756 = vld [vmem:[#allocation2 + $0x13c0] sm:$0xff]
    %v757 = vld [vmem:[#allocation2 + $0x13c8] sm:$0xff]
    %v758 = vld [vmem:[#allocation2 + $0x13d0] sm:$0xff]
    %v759 = vld [vmem:[#allocation2 + $0x13d8] sm:$0xff]
    %v760 = vld [vmem:[#allocation2 + $0x13e0] sm:$0xff]
    %v761 = vld [vmem:[#allocation2 + $0x13e8] sm:$0xff]
    %v762 = vld [vmem:[#allocation2 + $0x13f0] sm:$0xff]
    %v763 = vld [vmem:[#allocation2 + $0x13f8] sm:$0xff]
    %v764 = vld [vmem:[#allocation2 + $0x1400] sm:$0xff]
    %v765 = vld [vmem:[#allocation2 + $0x1408] sm:$0xff]
    %v766 = vld [vmem:[#allocation2 + $0x1410] sm:$0xff]
    %v767 = vld [vmem:[#allocation2 + $0x1418] sm:$0xff]
    %v768 = vld [vmem:[#allocation2 + $0x1420] sm:$0xff]
    %v769 = vld [vmem:[#allocation2 + $0x1428] sm:$0xff]
    %v770 = vld [vmem:[#allocation2 + $0x1430] sm:$0xff]
    %v771 = vld [vmem:[#allocation2 + $0x1438] sm:$0xff]
    %v772 = vld [vmem:[#allocation2 + $0x1440] sm:$0xff]
    %v773 = vld [vmem:[#allocation2 + $0x1448] sm:$0xff]
    %v774 = vld [vmem:[#allocation2 + $0x1450] sm:$0xff]
    %v775 = vld [vmem:[#allocation2 + $0x1458] sm:$0xff]
    %v776 = vld [vmem:[#allocation2 + $0x1460] sm:$0xff]
    %v777 = vld [vmem:[#allocation2 + $0x1468] sm:$0xff]
    %v778 = vld [vmem:[#allocation2 + $0x1470] sm:$0xff]
    %v779 = vld [vmem:[#allocation2 + $0x1478] sm:$0xff]
    %v780 = vld [vmem:[#allocation2 + $0x1480] sm:$0xff]
    %v781 = vld [vmem:[#allocation2 + $0x1488] sm:$0xff]
    %v782 = vld [vmem:[#allocation2 + $0x1490] sm:$0xff]
    %v783 = vld [vmem:[#allocation2 + $0x1498] sm:$0xff]
    %v784 = vld [vmem:[#allocation2 + $0x14a0] sm:$0xff]
    %v785 = vld [vmem:[#allocation2 + $0x14a8] sm:$0xff]
    %v786 = vld [vmem:[#allocation2 + $0x14b0] sm:$0xff]
    %v787 = vld [vmem:[#allocation2 + $0x14b8] sm:$0xff]
    %v788 = vld [vmem:[#allocation2 + $0x14c0] sm:$0xff]
    %v789 = vld [vmem:[#allocation2 + $0x14c8] sm:$0xff]
    %v790 = vld [vmem:[#allocation2 + $0x14d0] sm:$0xff]
    %v791 = vld [vmem:[#allocation2 + $0x14d8] sm:$0xff]
    %v792 = vld [vmem:[#allocation2 + $0x14e0] sm:$0xff]
    %v793 = vld [vmem:[#allocation2 + $0x14e8] sm:$0xff]
    %v794 = vld [vmem:[#allocation2 + $0x14f0] sm:$0xff]
    %v795 = vld [vmem:[#allocation2 + $0x14f8] sm:$0xff]
    %v796 = vld [vmem:[#allocation2 + $0x1500] sm:$0xff]
    %v797 = vld [vmem:[#allocation2 + $0x1508] sm:$0xff]
    %v798 = vld [vmem:[#allocation2 + $0x1510] sm:$0xff]
    %v799 = vld [vmem:[#allocation2 + $0x1518] sm:$0xff]
    %v800 = vld [vmem:[#allocation2 + $0x1520] sm:$0xff]
    %v801 = vld [vmem:[#allocation2 + $0x1528] sm:$0xff]
    %v802 = vld [vmem:[#allocation2 + $0x1530] sm:$0xff]
    %v803 = vld [vmem:[#allocation2 + $0x1538] sm:$0xff]
    %v804 = vld [vmem:[#allocation2 + $0x1540] sm:$0xff]
    %v805 = vld [vmem:[#allocation2 + $0x1548] sm:$0xff]
    %v806 = vld [vmem:[#allocation2 + $0x1550] sm:$0xff]
    %v807 = vld [vmem:[#allocation2 + $0x1558] sm:$0xff]
    %v808 = vld [vmem:[#allocation2 + $0x1560] sm:$0xff]
    %v809 = vld [vmem:[#allocation2 + $0x1568] sm:$0xff]
    %v810 = vld [vmem:[#allocation2 + $0x1570] sm:$0xff]
    %v811 = vld [vmem:[#allocation2 + $0x1578] sm:$0xff]
    %v812 = vld [vmem:[#allocation2 + $0x1580] sm:$0xff]
    %v813 = vld [vmem:[#allocation2 + $0x1588] sm:$0xff]
    %v814 = vld [vmem:[#allocation2 + $0x1590] sm:$0xff]
    %v815 = vld [vmem:[#allocation2 + $0x1598] sm:$0xff]
    %v816 = vld [vmem:[#allocation2 + $0x15a0] sm:$0xff]
    %v817 = vld [vmem:[#allocation2 + $0x15a8] sm:$0xff]
    %v818 = vld [vmem:[#allocation2 + $0x15b0] sm:$0xff]
    %v819 = vld [vmem:[#allocation2 + $0x15b8] sm:$0xff]
    %v820 = vld [vmem:[#allocation2 + $0x15c0] sm:$0xff]
    %v821 = vld [vmem:[#allocation2 + $0x15c8] sm:$0xff]
    %v822 = vld [vmem:[#allocation2 + $0x15d0] sm:$0xff]
    %v823 = vld [vmem:[#allocation2 + $0x15d8] sm:$0xff]
    %v824 = vld [vmem:[#allocation2 + $0x15e0] sm:$0xff]
    %v825 = vld [vmem:[#allocation2 + $0x15e8] sm:$0xff]
    %v826 = vld [vmem:[#allocation2 + $0x15f0] sm:$0xff]
    %v827 = vld [vmem:[#allocation2 + $0x15f8] sm:$0xff]
    %v828 = vld [vmem:[#allocation2 + $0x1600] sm:$0xff]
    %v829 = vld [vmem:[#allocation2 + $0x1608] sm:$0xff]
    %v830 = vld [vmem:[#allocation2 + $0x1610] sm:$0xff]
    %v831 = vld [vmem:[#allocation2 + $0x1618] sm:$0xff]
    %v832 = vld [vmem:[#allocation2 + $0x1620] sm:$0xff]
    %v833 = vld [vmem:[#allocation2 + $0x1628] sm:$0xff]
    %v834 = vld [vmem:[#allocation2 + $0x1630] sm:$0xff]
    %v835 = vld [vmem:[#allocation2 + $0x1638] sm:$0xff]
    %v836 = vld [vmem:[#allocation2 + $0x1640] sm:$0xff]
    %v837 = vld [vmem:[#allocation2 + $0x1648] sm:$0xff]
    %v838 = vld [vmem:[#allocation2 + $0x1650] sm:$0xff]
    %v839 = vld [vmem:[#allocation2 + $0x1658] sm:$0xff]
    %v840 = vld [vmem:[#allocation2 + $0x1660] sm:$0xff]
    %v841 = vld [vmem:[#allocation2 + $0x1668] sm:$0xff]
    %v842 = vld [vmem:[#allocation2 + $0x1670] sm:$0xff]
    %v843 = vld [vmem:[#allocation2 + $0x1678] sm:$0xff]
    %v844 = vld [vmem:[#allocation2 + $0x1680] sm:$0xff]
    %v845 = vld [vmem:[#allocation2 + $0x1688] sm:$0xff]
    %v846 = vld [vmem:[#allocation2 + $0x1690] sm:$0xff]
    %v847 = vld [vmem:[#allocation2 + $0x1698] sm:$0xff]
    %v848 = vld [vmem:[#allocation2 + $0x16a0] sm:$0xff]
    %v849 = vld [vmem:[#allocation2 + $0x16a8] sm:$0xff]
    %v850 = vld [vmem:[#allocation2 + $0x16b0] sm:$0xff]
    %v851 = vld [vmem:[#allocation2 + $0x16b8] sm:$0xff]
    %v852 = vld [vmem:[#allocation2 + $0x16c0] sm:$0xff]
    %v853 = vld [vmem:[#allocation2 + $0x16c8] sm:$0xff]
    %v854 = vld [vmem:[#allocation2 + $0x16d0] sm:$0xff]
    %v855 = vld [vmem:[#allocation2 + $0x16d8] sm:$0xff]
    %v856 = vld [vmem:[#allocation2 + $0x16e0] sm:$0xff]
    %v857 = vld [vmem:[#allocation2 + $0x16e8] sm:$0xff]
    %v858 = vld [vmem:[#allocation2 + $0x16f0] sm:$0xff]
    %v859 = vld [vmem:[#allocation2 + $0x16f8] sm:$0xff]
    %v860 = vld [vmem:[#allocation2 + $0x1700] sm:$0xff]
    %v861 = vld [vmem:[#allocation2 + $0x1708] sm:$0xff]
    %v862 = vld [vmem:[#allocation2 + $0x1710] sm:$0xff]
    %v863 = vld [vmem:[#allocation2 + $0x1718] sm:$0xff]
    %v864 = vld [vmem:[#allocation2 + $0x1720] sm:$0xff]
    %v865 = vld [vmem:[#allocation2 + $0x1728] sm:$0xff]
    %v866 = vld [vmem:[#allocation2 + $0x1730] sm:$0xff]
    %v867 = vld [vmem:[#allocation2 + $0x1738] sm:$0xff]
    %v868 = vld [vmem:[#allocation2 + $0x1740] sm:$0xff]
    %v869 = vld [vmem:[#allocation2 + $0x1748] sm:$0xff]
    %v870 = vld [vmem:[#allocation2 + $0x1750] sm:$0xff]
    %v871 = vld [vmem:[#allocation2 + $0x1758] sm:$0xff]
    %v872 = vld [vmem:[#allocation2 + $0x1760] sm:$0xff]
    %v873 = vld [vmem:[#allocation2 + $0x1768] sm:$0xff]
    %v874 = vld [vmem:[#allocation2 + $0x1770] sm:$0xff]
    %v875 = vld [vmem:[#allocation2 + $0x1778] sm:$0xff]
    %v876 = vld [vmem:[#allocation2 + $0x1780] sm:$0xff]
    %v877 = vld [vmem:[#allocation2 + $0x1788] sm:$0xff]
    %v878 = vld [vmem:[#allocation2 + $0x1790] sm:$0xff]
    %v879 = vld [vmem:[#allocation2 + $0x1798] sm:$0xff]
    %v880 = vld [vmem:[#allocation2 + $0x17a0] sm:$0xff]
    %v881 = vld [vmem:[#allocation2 + $0x17a8] sm:$0xff]
    %v882 = vld [vmem:[#allocation2 + $0x17b0] sm:$0xff]
    %v883 = vld [vmem:[#allocation2 + $0x17b8] sm:$0xff]
    %v884 = vld [vmem:[#allocation2 + $0x17c0] sm:$0xff]
    %v885 = vld [vmem:[#allocation2 + $0x17c8] sm:$0xff]
    %v886 = vld [vmem:[#allocation2 + $0x17d0] sm:$0xff]
    %v887 = vld [vmem:[#allocation2 + $0x17d8] sm:$0xff]
    %v888 = vld [vmem:[#allocation2 + $0x17e0] sm:$0xff]
    %v889 = vld [vmem:[#allocation2 + $0x17e8] sm:$0xff]
    %v890 = vld [vmem:[#allocation2 + $0x17f0] sm:$0xff]
    %v891 = vld [vmem:[#allocation2 + $0x17f8] sm:$0xff]
    %v892 = vld [vmem:[#allocation2 + $0x1800] sm:$0xff]
    %v893 = vld [vmem:[#allocation2 + $0x1808] sm:$0xff]
    %v894 = vld [vmem:[#allocation2 + $0x1810] sm:$0xff]
    %v895 = vld [vmem:[#allocation2 + $0x1818] sm:$0xff]
    %v896 = vld [vmem:[#allocation2 + $0x1820] sm:$0xff]
    %v897 = vld [vmem:[#allocation2 + $0x1828] sm:$0xff]
    %v898 = vld [vmem:[#allocation2 + $0x1830] sm:$0xff]
    %v899 = vld [vmem:[#allocation2 + $0x1838] sm:$0xff]
    %v900 = vld [vmem:[#allocation2 + $0x1840] sm:$0xff]
    %v901 = vld [vmem:[#allocation2 + $0x1848] sm:$0xff]
    %v902 = vld [vmem:[#allocation2 + $0x1850] sm:$0xff]
    %v903 = vld [vmem:[#allocation2 + $0x1858] sm:$0xff]
    %v904 = vld [vmem:[#allocation2 + $0x1860] sm:$0xff]
    %v905 = vld [vmem:[#allocation2 + $0x1868] sm:$0xff]
    %v906 = vld [vmem:[#allocation2 + $0x1870] sm:$0xff]
    %v907 = vld [vmem:[#allocation2 + $0x1878] sm:$0xff]
    %v908 = vld [vmem:[#allocation2 + $0x1880] sm:$0xff]
    %v909 = vld [vmem:[#allocation2 + $0x1888] sm:$0xff]
    %v910 = vld [vmem:[#allocation2 + $0x1890] sm:$0xff]
    %v911 = vld [vmem:[#allocation2 + $0x1898] sm:$0xff]
    %v912 = vld [vmem:[#allocation2 + $0x18a0] sm:$0xff]
    %v913 = vld [vmem:[#allocation2 + $0x18a8] sm:$0xff]
    %v914 = vld [vmem:[#allocation2 + $0x18b0] sm:$0xff]
    %v915 = vld [vmem:[#allocation2 + $0x18b8] sm:$0xff]
    %v916 = vld [vmem:[#allocation2 + $0x18c0] sm:$0xff]
    %v917 = vld [vmem:[#allocation2 + $0x18c8] sm:$0xff]
    %v918 = vld [vmem:[#allocation2 + $0x18d0] sm:$0xff]
    %v919 = vld [vmem:[#allocation2 + $0x18d8] sm:$0xff]
    %v920 = vld [vmem:[#allocation2 + $0x18e0] sm:$0xff]
    %v921 = vld [vmem:[#allocation2 + $0x18e8] sm:$0xff]
    %v922 = vld [vmem:[#allocation2 + $0x18f0] sm:$0xff]
    %v923 = vld [vmem:[#allocation2 + $0x18f8] sm:$0xff]
    %v924 = vld [vmem:[#allocation2 + $0x1900] sm:$0xff]
    %v925 = vld [vmem:[#allocation2 + $0x1908] sm:$0xff]
    %v926 = vld [vmem:[#allocation2 + $0x1910] sm:$0xff]
    %v927 = vld [vmem:[#allocation2 + $0x1918] sm:$0xff]
    %v928 = vld [vmem:[#allocation2 + $0x1920] sm:$0xff]
    %v929 = vld [vmem:[#allocation2 + $0x1928] sm:$0xff]
    %v930 = vld [vmem:[#allocation2 + $0x1930] sm:$0xff]
    %v931 = vld [vmem:[#allocation2 + $0x1938] sm:$0xff]
    %v932 = vld [vmem:[#allocation2 + $0x1940] sm:$0xff]
    %v933 = vld [vmem:[#allocation2 + $0x1948] sm:$0xff]
    %v934 = vld [vmem:[#allocation2 + $0x1950] sm:$0xff]
    %v935 = vld [vmem:[#allocation2 + $0x1958] sm:$0xff]
    %v936 = vld [vmem:[#allocation2 + $0x1960] sm:$0xff]
    %v937 = vld [vmem:[#allocation2 + $0x1968] sm:$0xff]
    %v938 = vld [vmem:[#allocation2 + $0x1970] sm:$0xff]
    %v939 = vld [vmem:[#allocation2 + $0x1978] sm:$0xff]
    %v940 = vld [vmem:[#allocation2 + $0x1980] sm:$0xff]
    %v941 = vld [vmem:[#allocation2 + $0x1988] sm:$0xff]
    %v942 = vld [vmem:[#allocation2 + $0x1990] sm:$0xff]
    %v943 = vld [vmem:[#allocation2 + $0x1998] sm:$0xff]
    %v944 = vld [vmem:[#allocation2 + $0x19a0] sm:$0xff]
    %v945 = vld [vmem:[#allocation2 + $0x19a8] sm:$0xff]
    %v946 = vld [vmem:[#allocation2 + $0x19b0] sm:$0xff]
    %v947 = vld [vmem:[#allocation2 + $0x19b8] sm:$0xff]
    %v948 = vld [vmem:[#allocation2 + $0x19c0] sm:$0xff]
    %v949 = vld [vmem:[#allocation2 + $0x19c8] sm:$0xff]
    %v950 = vld [vmem:[#allocation2 + $0x19d0] sm:$0xff]
    %v951 = vld [vmem:[#allocation2 + $0x19d8] sm:$0xff]
    %v952 = vld [vmem:[#allocation2 + $0x19e0] sm:$0xff]
    %v953 = vld [vmem:[#allocation2 + $0x19e8] sm:$0xff]
    %v954 = vld [vmem:[#allocation2 + $0x19f0] sm:$0xff]
    %v955 = vld [vmem:[#allocation2 + $0x19f8] sm:$0xff]
    %v956 = vld [vmem:[#allocation2 + $0x1a00] sm:$0xff]
    %v957 = vld [vmem:[#allocation2 + $0x1a08] sm:$0xff]
    %v958 = vld [vmem:[#allocation2 + $0x1a10] sm:$0xff]
    %v959 = vld [vmem:[#allocation2 + $0x1a18] sm:$0xff]
    %v960 = vld [vmem:[#allocation2 + $0x1a20] sm:$0xff]
    %v961 = vld [vmem:[#allocation2 + $0x1a28] sm:$0xff]
    %v962 = vld [vmem:[#allocation2 + $0x1a30] sm:$0xff]
    %v963 = vld [vmem:[#allocation2 + $0x1a38] sm:$0xff]
    %v964 = vld [vmem:[#allocation2 + $0x1a40] sm:$0xff]
    %v965 = vld [vmem:[#allocation2 + $0x1a48] sm:$0xff]
    %v966 = vld [vmem:[#allocation2 + $0x1a50] sm:$0xff]
    %v967 = vld [vmem:[#allocation2 + $0x1a58] sm:$0xff]
    %v968 = vld [vmem:[#allocation2 + $0x1a60] sm:$0xff]
    %v969 = vld [vmem:[#allocation2 + $0x1a68] sm:$0xff]
    %v970 = vld [vmem:[#allocation2 + $0x1a70] sm:$0xff]
    %v971 = vld [vmem:[#allocation2 + $0x1a78] sm:$0xff]
    %v972 = vld [vmem:[#allocation2 + $0x1a80] sm:$0xff]
    %v973 = vld [vmem:[#allocation2 + $0x1a88] sm:$0xff]
    %v974 = vld [vmem:[#allocation2 + $0x1a90] sm:$0xff]
    %v975 = vld [vmem:[#allocation2 + $0x1a98] sm:$0xff]
    %v976 = vld [vmem:[#allocation2 + $0x1aa0] sm:$0xff]
    %v977 = vld [vmem:[#allocation2 + $0x1aa8] sm:$0xff]
    %v978 = vld [vmem:[#allocation2 + $0x1ab0] sm:$0xff]
    %v979 = vld [vmem:[#allocation2 + $0x1ab8] sm:$0xff]
    %v980 = vld [vmem:[#allocation2 + $0x1ac0] sm:$0xff]
    %v981 = vld [vmem:[#allocation2 + $0x1ac8] sm:$0xff]
    %v982 = vld [vmem:[#allocation2 + $0x1ad0] sm:$0xff]
    %v983 = vld [vmem:[#allocation2 + $0x1ad8] sm:$0xff]
    %v984 = vld [vmem:[#allocation2 + $0x1ae0] sm:$0xff]
    %v985 = vld [vmem:[#allocation2 + $0x1ae8] sm:$0xff]
    %v986 = vld [vmem:[#allocation2 + $0x1af0] sm:$0xff]
    %v987 = vld [vmem:[#allocation2 + $0x1af8] sm:$0xff]
    %v988 = vld [vmem:[#allocation2 + $0x1b00] sm:$0xff]
    %v989 = vld [vmem:[#allocation2 + $0x1b08] sm:$0xff]
    %v990 = vld [vmem:[#allocation2 + $0x1b10] sm:$0xff]
    %v991 = vld [vmem:[#allocation2 + $0x1b18] sm:$0xff]
    %v992 = vld [vmem:[#allocation2 + $0x1b20] sm:$0xff]
    %v993 = vld [vmem:[#allocation2 + $0x1b28] sm:$0xff]
    %v994 = vld [vmem:[#allocation2 + $0x1b30] sm:$0xff]
    %v995 = vld [vmem:[#allocation2 + $0x1b38] sm:$0xff]
    %v996 = vld [vmem:[#allocation2 + $0x1b40] sm:$0xff]
    %v997 = vld [vmem:[#allocation2 + $0x1b48] sm:$0xff]
    %v998 = vld [vmem:[#allocation2 + $0x1b50] sm:$0xff]
    %v999 = vld [vmem:[#allocation2 + $0x1b58] sm:$0xff]
    %v1000 = vld [vmem:[#allocation2 + $0x1b60] sm:$0xff]
    %v1001 = vld [vmem:[#allocation2 + $0x1b68] sm:$0xff]
    %v1002 = vld [vmem:[#allocation2 + $0x1b70] sm:$0xff]
    %v1003 = vld [vmem:[#allocation2 + $0x1b78] sm:$0xff]
    %v1004 = vld [vmem:[#allocation2 + $0x1b80] sm:$0xff]
    %v1005 = vld [vmem:[#allocation2 + $0x1b88] sm:$0xff]
    %v1006 = vld [vmem:[#allocation2 + $0x1b90] sm:$0xff]
    %v1007 = vld [vmem:[#allocation2 + $0x1b98] sm:$0xff]
    %v1008 = vld [vmem:[#allocation2 + $0x1ba0] sm:$0xff]
    %v1009 = vld [vmem:[#allocation2 + $0x1ba8] sm:$0xff]
    %v1010 = vld [vmem:[#allocation2 + $0x1bb0] sm:$0xff]
    %v1011 = vld [vmem:[#allocation2 + $0x1bb8] sm:$0xff]
    %v1012 = vld [vmem:[#allocation2 + $0x1bc0] sm:$0xff]
    %v1013 = vld [vmem:[#allocation2 + $0x1bc8] sm:$0xff]
    %v1014 = vld [vmem:[#allocation2 + $0x1bd0] sm:$0xff]
    %v1015 = vld [vmem:[#allocation2 + $0x1bd8] sm:$0xff]
    %v1016 = vld [vmem:[#allocation2 + $0x1be0] sm:$0xff]
    %v1017 = vld [vmem:[#allocation2 + $0x1be8] sm:$0xff]
    %v1018 = vld [vmem:[#allocation2 + $0x1bf0] sm:$0xff]
    %v1019 = vld [vmem:[#allocation2 + $0x1bf8] sm:$0xff]
    %v1020 = vld [vmem:[#allocation2 + $0x1c00] sm:$0xff]
    %v1021 = vld [vmem:[#allocation2 + $0x1c08] sm:$0xff]
    %v1022 = vld [vmem:[#allocation2 + $0x1c10] sm:$0xff]
    %v1023 = vld [vmem:[#allocation2 + $0x1c18] sm:$0xff]
    %v1024 = vld [vmem:[#allocation2 + $0x1c20] sm:$0xff]
    %v1025 = vld [vmem:[#allocation2 + $0x1c28] sm:$0xff]
    %v1026 = vld [vmem:[#allocation2 + $0x1c30] sm:$0xff]
    %v1027 = vld [vmem:[#allocation2 + $0x1c38] sm:$0xff]
    %v1028 = vld [vmem:[#allocation2 + $0x1c40] sm:$0xff]
    %v1029 = vld [vmem:[#allocation2 + $0x1c48] sm:$0xff]
    %v1030 = vld [vmem:[#allocation2 + $0x1c50] sm:$0xff]
    %v1031 = vld [vmem:[#allocation2 + $0x1c58] sm:$0xff]
    %v1032 = vld [vmem:[#allocation2 + $0x1c60] sm:$0xff]
    %v1033 = vld [vmem:[#allocation2 + $0x1c68] sm:$0xff]
    %v1034 = vld [vmem:[#allocation2 + $0x1c70] sm:$0xff]
    %v1035 = vld [vmem:[#allocation2 + $0x1c78] sm:$0xff]
    %v1036 = vld [vmem:[#allocation2 + $0x1c80] sm:$0xff]
    %v1037 = vld [vmem:[#allocation2 + $0x1c88] sm:$0xff]
    %v1038 = vld [vmem:[#allocation2 + $0x1c90] sm:$0xff]
    %v1039 = vld [vmem:[#allocation2 + $0x1c98] sm:$0xff]
    %v1040 = vld [vmem:[#allocation2 + $0x1ca0] sm:$0xff]
    %v1041 = vld [vmem:[#allocation2 + $0x1ca8] sm:$0xff]
    %v1042 = vld [vmem:[#allocation2 + $0x1cb0] sm:$0xff]
    %v1043 = vld [vmem:[#allocation2 + $0x1cb8] sm:$0xff]
    %v1044 = vld [vmem:[#allocation2 + $0x1cc0] sm:$0xff]
    %v1045 = vld [vmem:[#allocation2 + $0x1cc8] sm:$0xff]
    %v1046 = vld [vmem:[#allocation2 + $0x1cd0] sm:$0xff]
    %v1047 = vld [vmem:[#allocation2 + $0x1cd8] sm:$0xff]
    %v1048 = vld [vmem:[#allocation2 + $0x1ce0] sm:$0xff]
    %v1049 = vld [vmem:[#allocation2 + $0x1ce8] sm:$0xff]
    %v1050 = vld [vmem:[#allocation2 + $0x1cf0] sm:$0xff]
    %v1051 = vld [vmem:[#allocation2 + $0x1cf8] sm:$0xff]
    %v1052 = vld [vmem:[#allocation2 + $0x1d00] sm:$0xff]
    %v1053 = vld [vmem:[#allocation2 + $0x1d08] sm:$0xff]
    %v1054 = vld [vmem:[#allocation2 + $0x1d10] sm:$0xff]
    %v1055 = vld [vmem:[#allocation2 + $0x1d18] sm:$0xff]
    %v1056 = vld [vmem:[#allocation2 + $0x1d20] sm:$0xff]
    %v1057 = vld [vmem:[#allocation2 + $0x1d28] sm:$0xff]
    %v1058 = vld [vmem:[#allocation2 + $0x1d30] sm:$0xff]
    %v1059 = vld [vmem:[#allocation2 + $0x1d38] sm:$0xff]
    %v1060 = vld [vmem:[#allocation2 + $0x1d40] sm:$0xff]
    %v1061 = vld [vmem:[#allocation2 + $0x1d48] sm:$0xff]
    %v1062 = vld [vmem:[#allocation2 + $0x1d50] sm:$0xff]
    %v1063 = vld [vmem:[#allocation2 + $0x1d58] sm:$0xff]
    %v1064 = vld [vmem:[#allocation2 + $0x1d60] sm:$0xff]
    %v1065 = vld [vmem:[#allocation2 + $0x1d68] sm:$0xff]
    %v1066 = vld [vmem:[#allocation2 + $0x1d70] sm:$0xff]
    %v1067 = vld [vmem:[#allocation2 + $0x1d78] sm:$0xff]
    %v1068 = vld [vmem:[#allocation2 + $0x1d80] sm:$0xff]
    %v1069 = vld [vmem:[#allocation2 + $0x1d88] sm:$0xff]
    %v1070 = vld [vmem:[#allocation2 + $0x1d90] sm:$0xff]
    %v1071 = vld [vmem:[#allocation2 + $0x1d98] sm:$0xff]
    %v1072 = vld [vmem:[#allocation2 + $0x1da0] sm:$0xff]
    %v1073 = vld [vmem:[#allocation2 + $0x1da8] sm:$0xff]
    %v1074 = vld [vmem:[#allocation2 + $0x1db0] sm:$0xff]
    %v1075 = vld [vmem:[#allocation2 + $0x1db8] sm:$0xff]
    %v1076 = vld [vmem:[#allocation2 + $0x1dc0] sm:$0xff]
    %v1077 = vld [vmem:[#allocation2 + $0x1dc8] sm:$0xff]
    %v1078 = vld [vmem:[#allocation2 + $0x1dd0] sm:$0xff]
    %v1079 = vld [vmem:[#allocation2 + $0x1dd8] sm:$0xff]
    %v1080 = vld [vmem:[#allocation2 + $0x1de0] sm:$0xff]
    %v1081 = vld [vmem:[#allocation2 + $0x1de8] sm:$0xff]
    %v1082 = vld [vmem:[#allocation2 + $0x1df0] sm:$0xff]
    %v1083 = vld [vmem:[#allocation2 + $0x1df8] sm:$0xff]
    %v1084 = vld [vmem:[#allocation2 + $0x1e00] sm:$0xff]
    %v1085 = vld [vmem:[#allocation2 + $0x1e08] sm:$0xff]
    %v1086 = vld [vmem:[#allocation2 + $0x1e10] sm:$0xff]
    %v1087 = vld [vmem:[#allocation2 + $0x1e18] sm:$0xff]
    %v1088 = vld [vmem:[#allocation2 + $0x1e20] sm:$0xff]
    %v1089 = vld [vmem:[#allocation2 + $0x1e28] sm:$0xff]
    %v1090 = vld [vmem:[#allocation2 + $0x1e30] sm:$0xff]
    %v1091 = vld [vmem:[#allocation2 + $0x1e38] sm:$0xff]
    %v1092 = vld [vmem:[#allocation2 + $0x1e40] sm:$0xff]
    %v1093 = vld [vmem:[#allocation2 + $0x1e48] sm:$0xff]
    %v1094 = vld [vmem:[#allocation2 + $0x1e50] sm:$0xff]
    %v1095 = vld [vmem:[#allocation2 + $0x1e58] sm:$0xff]
    %v1096 = vld [vmem:[#allocation2 + $0x1e60] sm:$0xff]
    %v1097 = vld [vmem:[#allocation2 + $0x1e68] sm:$0xff]
    %v1098 = vld [vmem:[#allocation2 + $0x1e70] sm:$0xff]
    %v1099 = vld [vmem:[#allocation2 + $0x1e78] sm:$0xff]
    %v1100 = vld [vmem:[#allocation2 + $0x1e80] sm:$0xff]
    %v1101 = vld [vmem:[#allocation2 + $0x1e88] sm:$0xff]
    %v1102 = vld [vmem:[#allocation2 + $0x1e90] sm:$0xff]
    %v1103 = vld [vmem:[#allocation2 + $0x1e98] sm:$0xff]
    %v1104 = vld [vmem:[#allocation2 + $0x1ea0] sm:$0xff]
    %v1105 = vld [vmem:[#allocation2 + $0x1ea8] sm:$0xff]
    %v1106 = vld [vmem:[#allocation2 + $0x1eb0] sm:$0xff]
    %v1107 = vld [vmem:[#allocation2 + $0x1eb8] sm:$0xff]
    %v1108 = vld [vmem:[#allocation2 + $0x1ec0] sm:$0xff]
    %v1109 = vld [vmem:[#allocation2 + $0x1ec8] sm:$0xff]
    %v1110 = vld [vmem:[#allocation2 + $0x1ed0] sm:$0xff]
    %v1111 = vld [vmem:[#allocation2 + $0x1ed8] sm:$0xff]
    %v1112 = vld [vmem:[#allocation2 + $0x1ee0] sm:$0xff]
    %v1113 = vld [vmem:[#allocation2 + $0x1ee8] sm:$0xff]
    %v1114 = vld [vmem:[#allocation2 + $0x1ef0] sm:$0xff]
    %v1115 = vld [vmem:[#allocation2 + $0x1ef8] sm:$0xff]
    %v1116 = vld [vmem:[#allocation2 + $0x1f00] sm:$0xff]
    %v1117 = vld [vmem:[#allocation2 + $0x1f08] sm:$0xff]
    %v1118 = vld [vmem:[#allocation2 + $0x1f10] sm:$0xff]
    %v1119 = vld [vmem:[#allocation2 + $0x1f18] sm:$0xff]
    %v1120 = vld [vmem:[#allocation2 + $0x1f20] sm:$0xff]
    %v1121 = vld [vmem:[#allocation2 + $0x1f28] sm:$0xff]
    %v1122 = vld [vmem:[#allocation2 + $0x1f30] sm:$0xff]
    %v1123 = vld [vmem:[#allocation2 + $0x1f38] sm:$0xff]
    %v1124 = vld [vmem:[#allocation2 + $0x1f40] sm:$0xff]
    %v1125 = vld [vmem:[#allocation2 + $0x1f48] sm:$0xff]
    %v1126 = vld [vmem:[#allocation2 + $0x1f50] sm:$0xff]
    %v1127 = vld [vmem:[#allocation2 + $0x1f58] sm:$0xff]
    %v1128 = vld [vmem:[#allocation2 + $0x1f60] sm:$0xff]
    %v1129 = vld [vmem:[#allocation2 + $0x1f68] sm:$0xff]
    %v1130 = vld [vmem:[#allocation2 + $0x1f70] sm:$0xff]
    %v1131 = vld [vmem:[#allocation2 + $0x1f78] sm:$0xff]
    %v1132 = vld [vmem:[#allocation2 + $0x1f80] sm:$0xff]
    %v1133 = vld [vmem:[#allocation2 + $0x1f88] sm:$0xff]
    %v1134 = vld [vmem:[#allocation2 + $0x1f90] sm:$0xff]
    %v1135 = vld [vmem:[#allocation2 + $0x1f98] sm:$0xff]
    %v1136 = vld [vmem:[#allocation2 + $0x1fa0] sm:$0xff]
    %v1137 = vld [vmem:[#allocation2 + $0x1fa8] sm:$0xff]
    %v1138 = vld [vmem:[#allocation2 + $0x1fb0] sm:$0xff]
    %v1139 = vld [vmem:[#allocation2 + $0x1fb8] sm:$0xff]
    %v1140 = vld [vmem:[#allocation2 + $0x1fc0] sm:$0xff]
    %v1141 = vld [vmem:[#allocation2 + $0x1fc8] sm:$0xff]
    %v1142 = vld [vmem:[#allocation2 + $0x1fd0] sm:$0xff]
    %v1143 = vld [vmem:[#allocation2 + $0x1fd8] sm:$0xff]
    %v1144 = vld [vmem:[#allocation2 + $0x1fe0] sm:$0xff]
    %v1145 = vld [vmem:[#allocation2 + $0x1fe8] sm:$0xff]
    %v1146 = vld [vmem:[#allocation2 + $0x1ff0] sm:$0xff]
    %v1147 = vld [vmem:[#allocation2 + $0x1ff8] sm:$0xff]
    %v1152 = vunpack.c.l.b16 %v120
    %v1153 = vunpack.c.h.b16 %v120
    %v1154 = vunpack.c.l.b16 %v121
    %v1155 = vunpack.c.h.b16 %v121
    %v1156 = vunpack.c.l.b16 %v122
    %v1157 = vunpack.c.h.b16 %v122
    %v1158 = vunpack.c.l.b16 %v123
    %v1159 = vunpack.c.h.b16 %v123
    %v1160 = vpack.c.b16 %v1152, %v1152
    %v1161 = vpack.c.b16 %v1153, %v1153
    %v1162 = vpack.c.b16 %v1154, %v1154
    %v1163 = vpack.c.b16 %v1155, %v1155
    %v1164 = vpack.c.b16 %v1156, %v1156
    %v1165 = vpack.c.b16 %v1157, %v1157
    %v1166 = vpack.c.b16 %v1158, %v1158
    %v1167 = vpack.c.b16 %v1159, %v1159
    %v2200 = vunpack.c.l.b16 %v124
    %v2201 = vunpack.c.h.b16 %v124
    %v2202 = vunpack.c.l.b16 %v125
    %v2203 = vunpack.c.h.b16 %v125
    %v2204 = vunpack.c.l.b16 %v126
    %v2205 = vunpack.c.h.b16 %v126
    %v2206 = vunpack.c.l.b16 %v127
    %v2207 = vunpack.c.h.b16 %v127
    %v2208 = vunpack.c.l.b16 %v128
    %v2209 = vunpack.c.h.b16 %v128
    %v2210 = vunpack.c.l.b16 %v129
    %v2211 = vunpack.c.h.b16 %v129
    %v2212 = vunpack.c.l.b16 %v130
    %v2213 = vunpack.c.h.b16 %v130
    %v2214 = vunpack.c.l.b16 %v131
    %v2215 = vunpack.c.h.b16 %v131
    %v2216 = vunpack.c.l.b16 %v132
    %v2217 = vunpack.c.h.b16 %v132
    %v2218 = vunpack.c.l.b16 %v133
    %v2219 = vunpack.c.h.b16 %v133
    %v2220 = vunpack.c.l.b16 %v134
    %v2221 = vunpack.c.h.b16 %v134
    %v2222 = vunpack.c.l.b16 %v135
    %v2223 = vunpack.c.h.b16 %v135
    %v2224 = vunpack.c.l.b16 %v136
    %v2225 = vunpack.c.h.b16 %v136
    %v2226 = vunpack.c.l.b16 %v137
    %v2227 = vunpack.c.h.b16 %v137
    %v2228 = vunpack.c.l.b16 %v138
    %v2229 = vunpack.c.h.b16 %v138
    %v2230 = vunpack.c.l.b16 %v139
    %v2231 = vunpack.c.h.b16 %v139
    %v2232 = vunpack.c.l.b16 %v140
    %v2233 = vunpack.c.h.b16 %v140
    %v2234 = vunpack.c.l.b16 %v141
    %v2235 = vunpack.c.h.b16 %v141
    %v2236 = vunpack.c.l.b16 %v142
    %v2237 = vunpack.c.h.b16 %v142
    %v2238 = vunpack.c.l.b16 %v143
    %v2239 = vunpack.c.h.b16 %v143
    %v2240 = vunpack.c.l.b16 %v144
    %v2241 = vunpack.c.h.b16 %v144
    %v2242 = vunpack.c.l.b16 %v145
    %v2243 = vunpack.c.h.b16 %v145
    %v2244 = vunpack.c.l.b16 %v146
    %v2245 = vunpack.c.h.b16 %v146
    %v2246 = vunpack.c.l.b16 %v147
    %v2247 = vunpack.c.h.b16 %v147
    %v2248 = vunpack.c.l.b16 %v148
    %v2249 = vunpack.c.h.b16 %v148
    %v2250 = vunpack.c.l.b16 %v149
    %v2251 = vunpack.c.h.b16 %v149
    %v2252 = vunpack.c.l.b16 %v150
    %v2253 = vunpack.c.h.b16 %v150
    %v2254 = vunpack.c.l.b16 %v151
    %v2255 = vunpack.c.h.b16 %v151
    %v2256 = vunpack.c.l.b16 %v152
    %v2257 = vunpack.c.h.b16 %v152
    %v2258 = vunpack.c.l.b16 %v153
    %v2259 = vunpack.c.h.b16 %v153
    %v2260 = vunpack.c.l.b16 %v154
    %v2261 = vunpack.c.h.b16 %v154
    %v2262 = vunpack.c.l.b16 %v155
    %v2263 = vunpack.c.h.b16 %v155
    %v2264 = vunpack.c.l.b16 %v156
    %v2265 = vunpack.c.h.b16 %v156
    %v2266 = vunpack.c.l.b16 %v157
    %v2267 = vunpack.c.h.b16 %v157
    %v2268 = vunpack.c.l.b16 %v158
    %v2269 = vunpack.c.h.b16 %v158
    %v2270 = vunpack.c.l.b16 %v159
    %v2271 = vunpack.c.h.b16 %v159
    %v2272 = vunpack.c.l.b16 %v160
    %v2273 = vunpack.c.h.b16 %v160
    %v2274 = vunpack.c.l.b16 %v161
    %v2275 = vunpack.c.h.b16 %v161
    %v2276 = vunpack.c.l.b16 %v162
    %v2277 = vunpack.c.h.b16 %v162
    %v2278 = vunpack.c.l.b16 %v163
    %v2279 = vunpack.c.h.b16 %v163
    %v2280 = vunpack.c.l.b16 %v164
    %v2281 = vunpack.c.h.b16 %v164
    %v2282 = vunpack.c.l.b16 %v165
    %v2283 = vunpack.c.h.b16 %v165
    %v2284 = vunpack.c.l.b16 %v166
    %v2285 = vunpack.c.h.b16 %v166
    %v2286 = vunpack.c.l.b16 %v167
    %v2287 = vunpack.c.h.b16 %v167
    %v2288 = vunpack.c.l.b16 %v168
    %v2289 = vunpack.c.h.b16 %v168
    %v2290 = vunpack.c.l.b16 %v169
    %v2291 = vunpack.c.h.b16 %v169
    %v2292 = vunpack.c.l.b16 %v170
    %v2293 = vunpack.c.h.b16 %v170
    %v2294 = vunpack.c.l.b16 %v171
    %v2295 = vunpack.c.h.b16 %v171
    %v2296 = vunpack.c.l.b16 %v172
    %v2297 = vunpack.c.h.b16 %v172
    %v2298 = vunpack.c.l.b16 %v173
    %v2299 = vunpack.c.h.b16 %v173
    %v2300 = vunpack.c.l.b16 %v174
    %v2301 = vunpack.c.h.b16 %v174
    %v2302 = vunpack.c.l.b16 %v175
    %v2303 = vunpack.c.h.b16 %v175
    %v2304 = vunpack.c.l.b16 %v176
    %v2305 = vunpack.c.h.b16 %v176
    %v2306 = vunpack.c.l.b16 %v177
    %v2307 = vunpack.c.h.b16 %v177
    %v2308 = vunpack.c.l.b16 %v178
    %v2309 = vunpack.c.h.b16 %v178
    %v2310 = vunpack.c.l.b16 %v179
    %v2311 = vunpack.c.h.b16 %v179
    %v2312 = vunpack.c.l.b16 %v180
    %v2313 = vunpack.c.h.b16 %v180
    %v2314 = vunpack.c.l.b16 %v181
    %v2315 = vunpack.c.h.b16 %v181
    %v2316 = vunpack.c.l.b16 %v182
    %v2317 = vunpack.c.h.b16 %v182
    %v2318 = vunpack.c.l.b16 %v183
    %v2319 = vunpack.c.h.b16 %v183
    %v2320 = vunpack.c.l.b16 %v184
    %v2321 = vunpack.c.h.b16 %v184
    %v2322 = vunpack.c.l.b16 %v185
    %v2323 = vunpack.c.h.b16 %v185
    %v2324 = vunpack.c.l.b16 %v186
    %v2325 = vunpack.c.h.b16 %v186
    %v2326 = vunpack.c.l.b16 %v187
    %v2327 = vunpack.c.h.b16 %v187
    %v2328 = vunpack.c.l.b16 %v188
    %v2329 = vunpack.c.h.b16 %v188
    %v2330 = vunpack.c.l.b16 %v189
    %v2331 = vunpack.c.h.b16 %v189
    %v2332 = vunpack.c.l.b16 %v190
    %v2333 = vunpack.c.h.b16 %v190
    %v2334 = vunpack.c.l.b16 %v191
    %v2335 = vunpack.c.h.b16 %v191
    %v2336 = vunpack.c.l.b16 %v192
    %v2337 = vunpack.c.h.b16 %v192
    %v2338 = vunpack.c.l.b16 %v193
    %v2339 = vunpack.c.h.b16 %v193
    %v2340 = vunpack.c.l.b16 %v194
    %v2341 = vunpack.c.h.b16 %v194
    %v2342 = vunpack.c.l.b16 %v195
    %v2343 = vunpack.c.h.b16 %v195
    %v2344 = vunpack.c.l.b16 %v196
    %v2345 = vunpack.c.h.b16 %v196
    %v2346 = vunpack.c.l.b16 %v197
    %v2347 = vunpack.c.h.b16 %v197
    %v2348 = vunpack.c.l.b16 %v198
    %v2349 = vunpack.c.h.b16 %v198
    %v2350 = vunpack.c.l.b16 %v199
    %v2351 = vunpack.c.h.b16 %v199
    %v2352 = vunpack.c.l.b16 %v200
    %v2353 = vunpack.c.h.b16 %v200
    %v2354 = vunpack.c.l.b16 %v201
    %v2355 = vunpack.c.h.b16 %v201
    %v2356 = vunpack.c.l.b16 %v202
    %v2357 = vunpack.c.h.b16 %v202
    %v2358 = vunpack.c.l.b16 %v203
    %v2359 = vunpack.c.h.b16 %v203
    %v2360 = vunpack.c.l.b16 %v204
    %v2361 = vunpack.c.h.b16 %v204
    %v2362 = vunpack.c.l.b16 %v205
    %v2363 = vunpack.c.h.b16 %v205
    %v2364 = vunpack.c.l.b16 %v206
    %v2365 = vunpack.c.h.b16 %v206
    %v2366 = vunpack.c.l.b16 %v207
    %v2367 = vunpack.c.h.b16 %v207
    %v2368 = vunpack.c.l.b16 %v208
    %v2369 = vunpack.c.h.b16 %v208
    %v2370 = vunpack.c.l.b16 %v209
    %v2371 = vunpack.c.h.b16 %v209
    %v2372 = vunpack.c.l.b16 %v210
    %v2373 = vunpack.c.h.b16 %v210
    %v2374 = vunpack.c.l.b16 %v211
    %v2375 = vunpack.c.h.b16 %v211
    %v2376 = vunpack.c.l.b16 %v212
    %v2377 = vunpack.c.h.b16 %v212
    %v2378 = vunpack.c.l.b16 %v213
    %v2379 = vunpack.c.h.b16 %v213
    %v2380 = vunpack.c.l.b16 %v214
    %v2381 = vunpack.c.h.b16 %v214
    %v2382 = vunpack.c.l.b16 %v215
    %v2383 = vunpack.c.h.b16 %v215
    %v2384 = vunpack.c.l.b16 %v216
    %v2385 = vunpack.c.h.b16 %v216
    %v2386 = vunpack.c.l.b16 %v217
    %v2387 = vunpack.c.h.b16 %v217
    %v2388 = vunpack.c.l.b16 %v218
    %v2389 = vunpack.c.h.b16 %v218
    %v2390 = vunpack.c.l.b16 %v219
    %v2391 = vunpack.c.h.b16 %v219
    %v2392 = vunpack.c.l.b16 %v220
    %v2393 = vunpack.c.h.b16 %v220
    %v2394 = vunpack.c.l.b16 %v221
    %v2395 = vunpack.c.h.b16 %v221
    %v2396 = vunpack.c.l.b16 %v222
    %v2397 = vunpack.c.h.b16 %v222
    %v2398 = vunpack.c.l.b16 %v223
    %v2399 = vunpack.c.h.b16 %v223
    %v2400 = vunpack.c.l.b16 %v224
    %v2401 = vunpack.c.h.b16 %v224
    %v2402 = vunpack.c.l.b16 %v225
    %v2403 = vunpack.c.h.b16 %v225
    %v2404 = vunpack.c.l.b16 %v226
    %v2405 = vunpack.c.h.b16 %v226
    %v2406 = vunpack.c.l.b16 %v227
    %v2407 = vunpack.c.h.b16 %v227
    %v2408 = vunpack.c.l.b16 %v228
    %v2409 = vunpack.c.h.b16 %v228
    %v2410 = vunpack.c.l.b16 %v229
    %v2411 = vunpack.c.h.b16 %v229
    %v2412 = vunpack.c.l.b16 %v230
    %v2413 = vunpack.c.h.b16 %v230
    %v2414 = vunpack.c.l.b16 %v231
    %v2415 = vunpack.c.h.b16 %v231
    %v2416 = vunpack.c.l.b16 %v232
    %v2417 = vunpack.c.h.b16 %v232
    %v2418 = vunpack.c.l.b16 %v233
    %v2419 = vunpack.c.h.b16 %v233
    %v2420 = vunpack.c.l.b16 %v234
    %v2421 = vunpack.c.h.b16 %v234
    %v2422 = vunpack.c.l.b16 %v235
    %v2423 = vunpack.c.h.b16 %v235
    %v2424 = vunpack.c.l.b16 %v236
    %v2425 = vunpack.c.h.b16 %v236
    %v2426 = vunpack.c.l.b16 %v237
    %v2427 = vunpack.c.h.b16 %v237
    %v2428 = vunpack.c.l.b16 %v238
    %v2429 = vunpack.c.h.b16 %v238
    %v2430 = vunpack.c.l.b16 %v239
    %v2431 = vunpack.c.h.b16 %v239
    %v2432 = vunpack.c.l.b16 %v240
    %v2433 = vunpack.c.h.b16 %v240
    %v2434 = vunpack.c.l.b16 %v241
    %v2435 = vunpack.c.h.b16 %v241
    %v2436 = vunpack.c.l.b16 %v242
    %v2437 = vunpack.c.h.b16 %v242
    %v2438 = vunpack.c.l.b16 %v243
    %v2439 = vunpack.c.h.b16 %v243
    %v2440 = vunpack.c.l.b16 %v244
    %v2441 = vunpack.c.h.b16 %v244
    %v2442 = vunpack.c.l.b16 %v245
    %v2443 = vunpack.c.h.b16 %v245
    %v2444 = vunpack.c.l.b16 %v246
    %v2445 = vunpack.c.h.b16 %v246
    %v2446 = vunpack.c.l.b16 %v247
    %v2447 = vunpack.c.h.b16 %v247
    %v2448 = vunpack.c.l.b16 %v248
    %v2449 = vunpack.c.h.b16 %v248
    %v2450 = vunpack.c.l.b16 %v249
    %v2451 = vunpack.c.h.b16 %v249
    %v2452 = vunpack.c.l.b16 %v250
    %v2453 = vunpack.c.h.b16 %v250
    %v2454 = vunpack.c.l.b16 %v251
    %v2455 = vunpack.c.h.b16 %v251
    %v2456 = vunpack.c.l.b16 %v252
    %v2457 = vunpack.c.h.b16 %v252
    %v2458 = vunpack.c.l.b16 %v253
    %v2459 = vunpack.c.h.b16 %v253
    %v2460 = vunpack.c.l.b16 %v254
    %v2461 = vunpack.c.h.b16 %v254
    %v2462 = vunpack.c.l.b16 %v255
    %v2463 = vunpack.c.h.b16 %v255
    %v2464 = vunpack.c.l.b16 %v256
    %v2465 = vunpack.c.h.b16 %v256
    %v2466 = vunpack.c.l.b16 %v257
    %v2467 = vunpack.c.h.b16 %v257
    %v2468 = vunpack.c.l.b16 %v258
    %v2469 = vunpack.c.h.b16 %v258
    %v2470 = vunpack.c.l.b16 %v259
    %v2471 = vunpack.c.h.b16 %v259
    %v2472 = vunpack.c.l.b16 %v260
    %v2473 = vunpack.c.h.b16 %v260
    %v2474 = vunpack.c.l.b16 %v261
    %v2475 = vunpack.c.h.b16 %v261
    %v2476 = vunpack.c.l.b16 %v262
    %v2477 = vunpack.c.h.b16 %v262
    %v2478 = vunpack.c.l.b16 %v263
    %v2479 = vunpack.c.h.b16 %v263
    %v2480 = vunpack.c.l.b16 %v264
    %v2481 = vunpack.c.h.b16 %v264
    %v2482 = vunpack.c.l.b16 %v265
    %v2483 = vunpack.c.h.b16 %v265
    %v2484 = vunpack.c.l.b16 %v266
    %v2485 = vunpack.c.h.b16 %v266
    %v2486 = vunpack.c.l.b16 %v267
    %v2487 = vunpack.c.h.b16 %v267
    %v2488 = vunpack.c.l.b16 %v268
    %v2489 = vunpack.c.h.b16 %v268
    %v2490 = vunpack.c.l.b16 %v269
    %v2491 = vunpack.c.h.b16 %v269
    %v2492 = vunpack.c.l.b16 %v270
    %v2493 = vunpack.c.h.b16 %v270
    %v2494 = vunpack.c.l.b16 %v271
    %v2495 = vunpack.c.h.b16 %v271
    %v2496 = vunpack.c.l.b16 %v272
    %v2497 = vunpack.c.h.b16 %v272
    %v2498 = vunpack.c.l.b16 %v273
    %v2499 = vunpack.c.h.b16 %v273
    %v2500 = vunpack.c.l.b16 %v274
    %v2501 = vunpack.c.h.b16 %v274
    %v2502 = vunpack.c.l.b16 %v275
    %v2503 = vunpack.c.h.b16 %v275
    %v2504 = vunpack.c.l.b16 %v276
    %v2505 = vunpack.c.h.b16 %v276
    %v2506 = vunpack.c.l.b16 %v277
    %v2507 = vunpack.c.h.b16 %v277
    %v2508 = vunpack.c.l.b16 %v278
    %v2509 = vunpack.c.h.b16 %v278
    %v2510 = vunpack.c.l.b16 %v279
    %v2511 = vunpack.c.h.b16 %v279
    %v2512 = vunpack.c.l.b16 %v280
    %v2513 = vunpack.c.h.b16 %v280
    %v2514 = vunpack.c.l.b16 %v281
    %v2515 = vunpack.c.h.b16 %v281
    %v2516 = vunpack.c.l.b16 %v282
    %v2517 = vunpack.c.h.b16 %v282
    %v2518 = vunpack.c.l.b16 %v283
    %v2519 = vunpack.c.h.b16 %v283
    %v2520 = vunpack.c.l.b16 %v284
    %v2521 = vunpack.c.h.b16 %v284
    %v2522 = vunpack.c.l.b16 %v285
    %v2523 = vunpack.c.h.b16 %v285
    %v2524 = vunpack.c.l.b16 %v286
    %v2525 = vunpack.c.h.b16 %v286
    %v2526 = vunpack.c.l.b16 %v287
    %v2527 = vunpack.c.h.b16 %v287
    %v2528 = vunpack.c.l.b16 %v288
    %v2529 = vunpack.c.h.b16 %v288
    %v2530 = vunpack.c.l.b16 %v289
    %v2531 = vunpack.c.h.b16 %v289
    %v2532 = vunpack.c.l.b16 %v290
    %v2533 = vunpack.c.h.b16 %v290
    %v2534 = vunpack.c.l.b16 %v291
    %v2535 = vunpack.c.h.b16 %v291
    %v2536 = vunpack.c.l.b16 %v292
    %v2537 = vunpack.c.h.b16 %v292
    %v2538 = vunpack.c.l.b16 %v293
    %v2539 = vunpack.c.h.b16 %v293
    %v2540 = vunpack.c.l.b16 %v294
    %v2541 = vunpack.c.h.b16 %v294
    %v2542 = vunpack.c.l.b16 %v295
    %v2543 = vunpack.c.h.b16 %v295
    %v2544 = vunpack.c.l.b16 %v296
    %v2545 = vunpack.c.h.b16 %v296
    %v2546 = vunpack.c.l.b16 %v297
    %v2547 = vunpack.c.h.b16 %v297
    %v2548 = vunpack.c.l.b16 %v298
    %v2549 = vunpack.c.h.b16 %v298
    %v2550 = vunpack.c.l.b16 %v299
    %v2551 = vunpack.c.h.b16 %v299
    %v2552 = vunpack.c.l.b16 %v300
    %v2553 = vunpack.c.h.b16 %v300
    %v2554 = vunpack.c.l.b16 %v301
    %v2555 = vunpack.c.h.b16 %v301
    %v2556 = vunpack.c.l.b16 %v302
    %v2557 = vunpack.c.h.b16 %v302
    %v2558 = vunpack.c.l.b16 %v303
    %v2559 = vunpack.c.h.b16 %v303
    %v2560 = vunpack.c.l.b16 %v304
    %v2561 = vunpack.c.h.b16 %v304
    %v2562 = vunpack.c.l.b16 %v305
    %v2563 = vunpack.c.h.b16 %v305
    %v2564 = vunpack.c.l.b16 %v306
    %v2565 = vunpack.c.h.b16 %v306
    %v2566 = vunpack.c.l.b16 %v307
    %v2567 = vunpack.c.h.b16 %v307
    %v2568 = vunpack.c.l.b16 %v308
    %v2569 = vunpack.c.h.b16 %v308
    %v2570 = vunpack.c.l.b16 %v309
    %v2571 = vunpack.c.h.b16 %v309
    %v2572 = vunpack.c.l.b16 %v310
    %v2573 = vunpack.c.h.b16 %v310
    %v2574 = vunpack.c.l.b16 %v311
    %v2575 = vunpack.c.h.b16 %v311
    %v2576 = vunpack.c.l.b16 %v312
    %v2577 = vunpack.c.h.b16 %v312
    %v2578 = vunpack.c.l.b16 %v313
    %v2579 = vunpack.c.h.b16 %v313
    %v2580 = vunpack.c.l.b16 %v314
    %v2581 = vunpack.c.h.b16 %v314
    %v2582 = vunpack.c.l.b16 %v315
    %v2583 = vunpack.c.h.b16 %v315
    %v2584 = vunpack.c.l.b16 %v316
    %v2585 = vunpack.c.h.b16 %v316
    %v2586 = vunpack.c.l.b16 %v317
    %v2587 = vunpack.c.h.b16 %v317
    %v2588 = vunpack.c.l.b16 %v318
    %v2589 = vunpack.c.h.b16 %v318
    %v2590 = vunpack.c.l.b16 %v319
    %v2591 = vunpack.c.h.b16 %v319
    %v2592 = vunpack.c.l.b16 %v320
    %v2593 = vunpack.c.h.b16 %v320
    %v2594 = vunpack.c.l.b16 %v321
    %v2595 = vunpack.c.h.b16 %v321
    %v2596 = vunpack.c.l.b16 %v322
    %v2597 = vunpack.c.h.b16 %v322
    %v2598 = vunpack.c.l.b16 %v323
    %v2599 = vunpack.c.h.b16 %v323
    %v2600 = vunpack.c.l.b16 %v324
    %v2601 = vunpack.c.h.b16 %v324
    %v2602 = vunpack.c.l.b16 %v325
    %v2603 = vunpack.c.h.b16 %v325
    %v2604 = vunpack.c.l.b16 %v326
    %v2605 = vunpack.c.h.b16 %v326
    %v2606 = vunpack.c.l.b16 %v327
    %v2607 = vunpack.c.h.b16 %v327
    %v2608 = vunpack.c.l.b16 %v328
    %v2609 = vunpack.c.h.b16 %v328
    %v2610 = vunpack.c.l.b16 %v329
    %v2611 = vunpack.c.h.b16 %v329
    %v2612 = vunpack.c.l.b16 %v330
    %v2613 = vunpack.c.h.b16 %v330
    %v2614 = vunpack.c.l.b16 %v331
    %v2615 = vunpack.c.h.b16 %v331
    %v2616 = vunpack.c.l.b16 %v332
    %v2617 = vunpack.c.h.b16 %v332
    %v2618 = vunpack.c.l.b16 %v333
    %v2619 = vunpack.c.h.b16 %v333
    %v2620 = vunpack.c.l.b16 %v334
    %v2621 = vunpack.c.h.b16 %v334
    %v2622 = vunpack.c.l.b16 %v335
    %v2623 = vunpack.c.h.b16 %v335
    %v2624 = vunpack.c.l.b16 %v336
    %v2625 = vunpack.c.h.b16 %v336
    %v2626 = vunpack.c.l.b16 %v337
    %v2627 = vunpack.c.h.b16 %v337
    %v2628 = vunpack.c.l.b16 %v338
    %v2629 = vunpack.c.h.b16 %v338
    %v2630 = vunpack.c.l.b16 %v339
    %v2631 = vunpack.c.h.b16 %v339
    %v2632 = vunpack.c.l.b16 %v340
    %v2633 = vunpack.c.h.b16 %v340
    %v2634 = vunpack.c.l.b16 %v341
    %v2635 = vunpack.c.h.b16 %v341
    %v2636 = vunpack.c.l.b16 %v342
    %v2637 = vunpack.c.h.b16 %v342
    %v2638 = vunpack.c.l.b16 %v343
    %v2639 = vunpack.c.h.b16 %v343
    %v2640 = vunpack.c.l.b16 %v344
    %v2641 = vunpack.c.h.b16 %v344
    %v2642 = vunpack.c.l.b16 %v345
    %v2643 = vunpack.c.h.b16 %v345
    %v2644 = vunpack.c.l.b16 %v346
    %v2645 = vunpack.c.h.b16 %v346
    %v2646 = vunpack.c.l.b16 %v347
    %v2647 = vunpack.c.h.b16 %v347
    %v2648 = vunpack.c.l.b16 %v348
    %v2649 = vunpack.c.h.b16 %v348
    %v2650 = vunpack.c.l.b16 %v349
    %v2651 = vunpack.c.h.b16 %v349
    %v2652 = vunpack.c.l.b16 %v350
    %v2653 = vunpack.c.h.b16 %v350
    %v2654 = vunpack.c.l.b16 %v351
    %v2655 = vunpack.c.h.b16 %v351
    %v2656 = vunpack.c.l.b16 %v352
    %v2657 = vunpack.c.h.b16 %v352
    %v2658 = vunpack.c.l.b16 %v353
    %v2659 = vunpack.c.h.b16 %v353
    %v2660 = vunpack.c.l.b16 %v354
    %v2661 = vunpack.c.h.b16 %v354
    %v2662 = vunpack.c.l.b16 %v355
    %v2663 = vunpack.c.h.b16 %v355
    %v2664 = vunpack.c.l.b16 %v356
    %v2665 = vunpack.c.h.b16 %v356
    %v2666 = vunpack.c.l.b16 %v357
    %v2667 = vunpack.c.h.b16 %v357
    %v2668 = vunpack.c.l.b16 %v358
    %v2669 = vunpack.c.h.b16 %v358
    %v2670 = vunpack.c.l.b16 %v359
    %v2671 = vunpack.c.h.b16 %v359
    %v2672 = vunpack.c.l.b16 %v360
    %v2673 = vunpack.c.h.b16 %v360
    %v2674 = vunpack.c.l.b16 %v361
    %v2675 = vunpack.c.h.b16 %v361
    %v2676 = vunpack.c.l.b16 %v362
    %v2677 = vunpack.c.h.b16 %v362
    %v2678 = vunpack.c.l.b16 %v363
    %v2679 = vunpack.c.h.b16 %v363
    %v2680 = vunpack.c.l.b16 %v364
    %v2681 = vunpack.c.h.b16 %v364
    %v2682 = vunpack.c.l.b16 %v365
    %v2683 = vunpack.c.h.b16 %v365
    %v2684 = vunpack.c.l.b16 %v366
    %v2685 = vunpack.c.h.b16 %v366
    %v2686 = vunpack.c.l.b16 %v367
    %v2687 = vunpack.c.h.b16 %v367
    %v2688 = vunpack.c.l.b16 %v368
    %v2689 = vunpack.c.h.b16 %v368
    %v2690 = vunpack.c.l.b16 %v369
    %v2691 = vunpack.c.h.b16 %v369
    %v2692 = vunpack.c.l.b16 %v370
    %v2693 = vunpack.c.h.b16 %v370
    %v2694 = vunpack.c.l.b16 %v371
    %v2695 = vunpack.c.h.b16 %v371
    %v2696 = vunpack.c.l.b16 %v372
    %v2697 = vunpack.c.h.b16 %v372
    %v2698 = vunpack.c.l.b16 %v373
    %v2699 = vunpack.c.h.b16 %v373
    %v2700 = vunpack.c.l.b16 %v374
    %v2701 = vunpack.c.h.b16 %v374
    %v2702 = vunpack.c.l.b16 %v375
    %v2703 = vunpack.c.h.b16 %v375
    %v2704 = vunpack.c.l.b16 %v376
    %v2705 = vunpack.c.h.b16 %v376
    %v2706 = vunpack.c.l.b16 %v377
    %v2707 = vunpack.c.h.b16 %v377
    %v2708 = vunpack.c.l.b16 %v378
    %v2709 = vunpack.c.h.b16 %v378
    %v2710 = vunpack.c.l.b16 %v379
    %v2711 = vunpack.c.h.b16 %v379
    %v2712 = vunpack.c.l.b16 %v380
    %v2713 = vunpack.c.h.b16 %v380
    %v2714 = vunpack.c.l.b16 %v381
    %v2715 = vunpack.c.h.b16 %v381
    %v2716 = vunpack.c.l.b16 %v382
    %v2717 = vunpack.c.h.b16 %v382
    %v2718 = vunpack.c.l.b16 %v383
    %v2719 = vunpack.c.h.b16 %v383
    %v2720 = vunpack.c.l.b16 %v384
    %v2721 = vunpack.c.h.b16 %v384
    %v2722 = vunpack.c.l.b16 %v385
    %v2723 = vunpack.c.h.b16 %v385
    %v2724 = vunpack.c.l.b16 %v386
    %v2725 = vunpack.c.h.b16 %v386
    %v2726 = vunpack.c.l.b16 %v387
    %v2727 = vunpack.c.h.b16 %v387
    %v2728 = vunpack.c.l.b16 %v388
    %v2729 = vunpack.c.h.b16 %v388
    %v2730 = vunpack.c.l.b16 %v389
    %v2731 = vunpack.c.h.b16 %v389
    %v2732 = vunpack.c.l.b16 %v390
    %v2733 = vunpack.c.h.b16 %v390
    %v2734 = vunpack.c.l.b16 %v391
    %v2735 = vunpack.c.h.b16 %v391
    %v2736 = vunpack.c.l.b16 %v392
    %v2737 = vunpack.c.h.b16 %v392
    %v2738 = vunpack.c.l.b16 %v393
    %v2739 = vunpack.c.h.b16 %v393
    %v2740 = vunpack.c.l.b16 %v394
    %v2741 = vunpack.c.h.b16 %v394
    %v2742 = vunpack.c.l.b16 %v395
    %v2743 = vunpack.c.h.b16 %v395
    %v2744 = vunpack.c.l.b16 %v396
    %v2745 = vunpack.c.h.b16 %v396
    %v2746 = vunpack.c.l.b16 %v397
    %v2747 = vunpack.c.h.b16 %v397
    %v2748 = vunpack.c.l.b16 %v398
    %v2749 = vunpack.c.h.b16 %v398
    %v2750 = vunpack.c.l.b16 %v399
    %v2751 = vunpack.c.h.b16 %v399
    %v2752 = vunpack.c.l.b16 %v400
    %v2753 = vunpack.c.h.b16 %v400
    %v2754 = vunpack.c.l.b16 %v401
    %v2755 = vunpack.c.h.b16 %v401
    %v2756 = vunpack.c.l.b16 %v402
    %v2757 = vunpack.c.h.b16 %v402
    %v2758 = vunpack.c.l.b16 %v403
    %v2759 = vunpack.c.h.b16 %v403
    %v2760 = vunpack.c.l.b16 %v404
    %v2761 = vunpack.c.h.b16 %v404
    %v2762 = vunpack.c.l.b16 %v405
    %v2763 = vunpack.c.h.b16 %v405
    %v2764 = vunpack.c.l.b16 %v406
    %v2765 = vunpack.c.h.b16 %v406
    %v2766 = vunpack.c.l.b16 %v407
    %v2767 = vunpack.c.h.b16 %v407
    %v2768 = vunpack.c.l.b16 %v408
    %v2769 = vunpack.c.h.b16 %v408
    %v2770 = vunpack.c.l.b16 %v409
    %v2771 = vunpack.c.h.b16 %v409
    %v2772 = vunpack.c.l.b16 %v410
    %v2773 = vunpack.c.h.b16 %v410
    %v2774 = vunpack.c.l.b16 %v411
    %v2775 = vunpack.c.h.b16 %v411
    %v2776 = vunpack.c.l.b16 %v412
    %v2777 = vunpack.c.h.b16 %v412
    %v2778 = vunpack.c.l.b16 %v413
    %v2779 = vunpack.c.h.b16 %v413
    %v2780 = vunpack.c.l.b16 %v414
    %v2781 = vunpack.c.h.b16 %v414
    %v2782 = vunpack.c.l.b16 %v415
    %v2783 = vunpack.c.h.b16 %v415
    %v2784 = vunpack.c.l.b16 %v416
    %v2785 = vunpack.c.h.b16 %v416
    %v2786 = vunpack.c.l.b16 %v417
    %v2787 = vunpack.c.h.b16 %v417
    %v2788 = vunpack.c.l.b16 %v418
    %v2789 = vunpack.c.h.b16 %v418
    %v2790 = vunpack.c.l.b16 %v419
    %v2791 = vunpack.c.h.b16 %v419
    %v2792 = vunpack.c.l.b16 %v420
    %v2793 = vunpack.c.h.b16 %v420
    %v2794 = vunpack.c.l.b16 %v421
    %v2795 = vunpack.c.h.b16 %v421
    %v2796 = vunpack.c.l.b16 %v422
    %v2797 = vunpack.c.h.b16 %v422
    %v2798 = vunpack.c.l.b16 %v423
    %v2799 = vunpack.c.h.b16 %v423
    %v2800 = vunpack.c.l.b16 %v424
    %v2801 = vunpack.c.h.b16 %v424
    %v2802 = vunpack.c.l.b16 %v425
    %v2803 = vunpack.c.h.b16 %v425
    %v2804 = vunpack.c.l.b16 %v426
    %v2805 = vunpack.c.h.b16 %v426
    %v2806 = vunpack.c.l.b16 %v427
    %v2807 = vunpack.c.h.b16 %v427
    %v2808 = vunpack.c.l.b16 %v428
    %v2809 = vunpack.c.h.b16 %v428
    %v2810 = vunpack.c.l.b16 %v429
    %v2811 = vunpack.c.h.b16 %v429
    %v2812 = vunpack.c.l.b16 %v430
    %v2813 = vunpack.c.h.b16 %v430
    %v2814 = vunpack.c.l.b16 %v431
    %v2815 = vunpack.c.h.b16 %v431
    %v2816 = vunpack.c.l.b16 %v432
    %v2817 = vunpack.c.h.b16 %v432
    %v2818 = vunpack.c.l.b16 %v433
    %v2819 = vunpack.c.h.b16 %v433
    %v2820 = vunpack.c.l.b16 %v434
    %v2821 = vunpack.c.h.b16 %v434
    %v2822 = vunpack.c.l.b16 %v435
    %v2823 = vunpack.c.h.b16 %v435
    %v2824 = vunpack.c.l.b16 %v436
    %v2825 = vunpack.c.h.b16 %v436
    %v2826 = vunpack.c.l.b16 %v437
    %v2827 = vunpack.c.h.b16 %v437
    %v2828 = vunpack.c.l.b16 %v438
    %v2829 = vunpack.c.h.b16 %v438
    %v2830 = vunpack.c.l.b16 %v439
    %v2831 = vunpack.c.h.b16 %v439
    %v2832 = vunpack.c.l.b16 %v440
    %v2833 = vunpack.c.h.b16 %v440
    %v2834 = vunpack.c.l.b16 %v441
    %v2835 = vunpack.c.h.b16 %v441
    %v2836 = vunpack.c.l.b16 %v442
    %v2837 = vunpack.c.h.b16 %v442
    %v2838 = vunpack.c.l.b16 %v443
    %v2839 = vunpack.c.h.b16 %v443
    %v2840 = vunpack.c.l.b16 %v444
    %v2841 = vunpack.c.h.b16 %v444
    %v2842 = vunpack.c.l.b16 %v445
    %v2843 = vunpack.c.h.b16 %v445
    %v2844 = vunpack.c.l.b16 %v446
    %v2845 = vunpack.c.h.b16 %v446
    %v2846 = vunpack.c.l.b16 %v447
    %v2847 = vunpack.c.h.b16 %v447
    %v2848 = vunpack.c.l.b16 %v448
    %v2849 = vunpack.c.h.b16 %v448
    %v2850 = vunpack.c.l.b16 %v449
    %v2851 = vunpack.c.h.b16 %v449
    %v2852 = vunpack.c.l.b16 %v450
    %v2853 = vunpack.c.h.b16 %v450
    %v2854 = vunpack.c.l.b16 %v451
    %v2855 = vunpack.c.h.b16 %v451
    %v2856 = vunpack.c.l.b16 %v452
    %v2857 = vunpack.c.h.b16 %v452
    %v2858 = vunpack.c.l.b16 %v453
    %v2859 = vunpack.c.h.b16 %v453
    %v2860 = vunpack.c.l.b16 %v454
    %v2861 = vunpack.c.h.b16 %v454
    %v2862 = vunpack.c.l.b16 %v455
    %v2863 = vunpack.c.h.b16 %v455
    %v2864 = vunpack.c.l.b16 %v456
    %v2865 = vunpack.c.h.b16 %v456
    %v2866 = vunpack.c.l.b16 %v457
    %v2867 = vunpack.c.h.b16 %v457
    %v2868 = vunpack.c.l.b16 %v458
    %v2869 = vunpack.c.h.b16 %v458
    %v2870 = vunpack.c.l.b16 %v459
    %v2871 = vunpack.c.h.b16 %v459
    %v2872 = vunpack.c.l.b16 %v460
    %v2873 = vunpack.c.h.b16 %v460
    %v2874 = vunpack.c.l.b16 %v461
    %v2875 = vunpack.c.h.b16 %v461
    %v2876 = vunpack.c.l.b16 %v462
    %v2877 = vunpack.c.h.b16 %v462
    %v2878 = vunpack.c.l.b16 %v463
    %v2879 = vunpack.c.h.b16 %v463
    %v2880 = vunpack.c.l.b16 %v464
    %v2881 = vunpack.c.h.b16 %v464
    %v2882 = vunpack.c.l.b16 %v465
    %v2883 = vunpack.c.h.b16 %v465
    %v2884 = vunpack.c.l.b16 %v466
    %v2885 = vunpack.c.h.b16 %v466
    %v2886 = vunpack.c.l.b16 %v467
    %v2887 = vunpack.c.h.b16 %v467
    %v2888 = vunpack.c.l.b16 %v468
    %v2889 = vunpack.c.h.b16 %v468
    %v2890 = vunpack.c.l.b16 %v469
    %v2891 = vunpack.c.h.b16 %v469
    %v2892 = vunpack.c.l.b16 %v470
    %v2893 = vunpack.c.h.b16 %v470
    %v2894 = vunpack.c.l.b16 %v471
    %v2895 = vunpack.c.h.b16 %v471
    %v2896 = vunpack.c.l.b16 %v472
    %v2897 = vunpack.c.h.b16 %v472
    %v2898 = vunpack.c.l.b16 %v473
    %v2899 = vunpack.c.h.b16 %v473
    %v2900 = vunpack.c.l.b16 %v474
    %v2901 = vunpack.c.h.b16 %v474
    %v2902 = vunpack.c.l.b16 %v475
    %v2903 = vunpack.c.h.b16 %v475
    %v2904 = vunpack.c.l.b16 %v476
    %v2905 = vunpack.c.h.b16 %v476
    %v2906 = vunpack.c.l.b16 %v477
    %v2907 = vunpack.c.h.b16 %v477
    %v2908 = vunpack.c.l.b16 %v478
    %v2909 = vunpack.c.h.b16 %v478
    %v2910 = vunpack.c.l.b16 %v479
    %v2911 = vunpack.c.h.b16 %v479
    %v2912 = vunpack.c.l.b16 %v480
    %v2913 = vunpack.c.h.b16 %v480
    %v2914 = vunpack.c.l.b16 %v481
    %v2915 = vunpack.c.h.b16 %v481
    %v2916 = vunpack.c.l.b16 %v482
    %v2917 = vunpack.c.h.b16 %v482
    %v2918 = vunpack.c.l.b16 %v483
    %v2919 = vunpack.c.h.b16 %v483
    %v2920 = vunpack.c.l.b16 %v484
    %v2921 = vunpack.c.h.b16 %v484
    %v2922 = vunpack.c.l.b16 %v485
    %v2923 = vunpack.c.h.b16 %v485
    %v2924 = vunpack.c.l.b16 %v486
    %v2925 = vunpack.c.h.b16 %v486
    %v2926 = vunpack.c.l.b16 %v487
    %v2927 = vunpack.c.h.b16 %v487
    %v2928 = vunpack.c.l.b16 %v488
    %v2929 = vunpack.c.h.b16 %v488
    %v2930 = vunpack.c.l.b16 %v489
    %v2931 = vunpack.c.h.b16 %v489
    %v2932 = vunpack.c.l.b16 %v490
    %v2933 = vunpack.c.h.b16 %v490
    %v2934 = vunpack.c.l.b16 %v491
    %v2935 = vunpack.c.h.b16 %v491
    %v2936 = vunpack.c.l.b16 %v492
    %v2937 = vunpack.c.h.b16 %v492
    %v2938 = vunpack.c.l.b16 %v493
    %v2939 = vunpack.c.h.b16 %v493
    %v2940 = vunpack.c.l.b16 %v494
    %v2941 = vunpack.c.h.b16 %v494
    %v2942 = vunpack.c.l.b16 %v495
    %v2943 = vunpack.c.h.b16 %v495
    %v2944 = vunpack.c.l.b16 %v496
    %v2945 = vunpack.c.h.b16 %v496
    %v2946 = vunpack.c.l.b16 %v497
    %v2947 = vunpack.c.h.b16 %v497
    %v2948 = vunpack.c.l.b16 %v498
    %v2949 = vunpack.c.h.b16 %v498
    %v2950 = vunpack.c.l.b16 %v499
    %v2951 = vunpack.c.h.b16 %v499
    %v2952 = vunpack.c.l.b16 %v500
    %v2953 = vunpack.c.h.b16 %v500
    %v2954 = vunpack.c.l.b16 %v501
    %v2955 = vunpack.c.h.b16 %v501
    %v2956 = vunpack.c.l.b16 %v502
    %v2957 = vunpack.c.h.b16 %v502
    %v2958 = vunpack.c.l.b16 %v503
    %v2959 = vunpack.c.h.b16 %v503
    %v2960 = vunpack.c.l.b16 %v504
    %v2961 = vunpack.c.h.b16 %v504
    %v2962 = vunpack.c.l.b16 %v505
    %v2963 = vunpack.c.h.b16 %v505
    %v2964 = vunpack.c.l.b16 %v506
    %v2965 = vunpack.c.h.b16 %v506
    %v2966 = vunpack.c.l.b16 %v507
    %v2967 = vunpack.c.h.b16 %v507
    %v2968 = vunpack.c.l.b16 %v508
    %v2969 = vunpack.c.h.b16 %v508
    %v2970 = vunpack.c.l.b16 %v509
    %v2971 = vunpack.c.h.b16 %v509
    %v2972 = vunpack.c.l.b16 %v510
    %v2973 = vunpack.c.h.b16 %v510
    %v2974 = vunpack.c.l.b16 %v511
    %v2975 = vunpack.c.h.b16 %v511
    %v2976 = vunpack.c.l.b16 %v512
    %v2977 = vunpack.c.h.b16 %v512
    %v2978 = vunpack.c.l.b16 %v513
    %v2979 = vunpack.c.h.b16 %v513
    %v2980 = vunpack.c.l.b16 %v514
    %v2981 = vunpack.c.h.b16 %v514
    %v2982 = vunpack.c.l.b16 %v515
    %v2983 = vunpack.c.h.b16 %v515
    %v2984 = vunpack.c.l.b16 %v516
    %v2985 = vunpack.c.h.b16 %v516
    %v2986 = vunpack.c.l.b16 %v517
    %v2987 = vunpack.c.h.b16 %v517
    %v2988 = vunpack.c.l.b16 %v518
    %v2989 = vunpack.c.h.b16 %v518
    %v2990 = vunpack.c.l.b16 %v519
    %v2991 = vunpack.c.h.b16 %v519
    %v2992 = vunpack.c.l.b16 %v520
    %v2993 = vunpack.c.h.b16 %v520
    %v2994 = vunpack.c.l.b16 %v521
    %v2995 = vunpack.c.h.b16 %v521
    %v2996 = vunpack.c.l.b16 %v522
    %v2997 = vunpack.c.h.b16 %v522
    %v2998 = vunpack.c.l.b16 %v523
    %v2999 = vunpack.c.h.b16 %v523
    %v3000 = vunpack.c.l.b16 %v524
    %v3001 = vunpack.c.h.b16 %v524
    %v3002 = vunpack.c.l.b16 %v525
    %v3003 = vunpack.c.h.b16 %v525
    %v3004 = vunpack.c.l.b16 %v526
    %v3005 = vunpack.c.h.b16 %v526
    %v3006 = vunpack.c.l.b16 %v527
    %v3007 = vunpack.c.h.b16 %v527
    %v3008 = vunpack.c.l.b16 %v528
    %v3009 = vunpack.c.h.b16 %v528
    %v3010 = vunpack.c.l.b16 %v529
    %v3011 = vunpack.c.h.b16 %v529
    %v3012 = vunpack.c.l.b16 %v530
    %v3013 = vunpack.c.h.b16 %v530
    %v3014 = vunpack.c.l.b16 %v531
    %v3015 = vunpack.c.h.b16 %v531
    %v3016 = vunpack.c.l.b16 %v532
    %v3017 = vunpack.c.h.b16 %v532
    %v3018 = vunpack.c.l.b16 %v533
    %v3019 = vunpack.c.h.b16 %v533
    %v3020 = vunpack.c.l.b16 %v534
    %v3021 = vunpack.c.h.b16 %v534
    %v3022 = vunpack.c.l.b16 %v535
    %v3023 = vunpack.c.h.b16 %v535
    %v3024 = vunpack.c.l.b16 %v536
    %v3025 = vunpack.c.h.b16 %v536
    %v3026 = vunpack.c.l.b16 %v537
    %v3027 = vunpack.c.h.b16 %v537
    %v3028 = vunpack.c.l.b16 %v538
    %v3029 = vunpack.c.h.b16 %v538
    %v3030 = vunpack.c.l.b16 %v539
    %v3031 = vunpack.c.h.b16 %v539
    %v3032 = vunpack.c.l.b16 %v540
    %v3033 = vunpack.c.h.b16 %v540
    %v3034 = vunpack.c.l.b16 %v541
    %v3035 = vunpack.c.h.b16 %v541
    %v3036 = vunpack.c.l.b16 %v542
    %v3037 = vunpack.c.h.b16 %v542
    %v3038 = vunpack.c.l.b16 %v543
    %v3039 = vunpack.c.h.b16 %v543
    %v3040 = vunpack.c.l.b16 %v544
    %v3041 = vunpack.c.h.b16 %v544
    %v3042 = vunpack.c.l.b16 %v545
    %v3043 = vunpack.c.h.b16 %v545
    %v3044 = vunpack.c.l.b16 %v546
    %v3045 = vunpack.c.h.b16 %v546
    %v3046 = vunpack.c.l.b16 %v547
    %v3047 = vunpack.c.h.b16 %v547
    %v3048 = vunpack.c.l.b16 %v548
    %v3049 = vunpack.c.h.b16 %v548
    %v3050 = vunpack.c.l.b16 %v549
    %v3051 = vunpack.c.h.b16 %v549
    %v3052 = vunpack.c.l.b16 %v550
    %v3053 = vunpack.c.h.b16 %v550
    %v3054 = vunpack.c.l.b16 %v551
    %v3055 = vunpack.c.h.b16 %v551
    %v3056 = vunpack.c.l.b16 %v552
    %v3057 = vunpack.c.h.b16 %v552
    %v3058 = vunpack.c.l.b16 %v553
    %v3059 = vunpack.c.h.b16 %v553
    %v3060 = vunpack.c.l.b16 %v554
    %v3061 = vunpack.c.h.b16 %v554
    %v3062 = vunpack.c.l.b16 %v555
    %v3063 = vunpack.c.h.b16 %v555
    %v3064 = vunpack.c.l.b16 %v556
    %v3065 = vunpack.c.h.b16 %v556
    %v3066 = vunpack.c.l.b16 %v557
    %v3067 = vunpack.c.h.b16 %v557
    %v3068 = vunpack.c.l.b16 %v558
    %v3069 = vunpack.c.h.b16 %v558
    %v3070 = vunpack.c.l.b16 %v559
    %v3071 = vunpack.c.h.b16 %v559
    %v3072 = vunpack.c.l.b16 %v560
    %v3073 = vunpack.c.h.b16 %v560
    %v3074 = vunpack.c.l.b16 %v561
    %v3075 = vunpack.c.h.b16 %v561
    %v3076 = vunpack.c.l.b16 %v562
    %v3077 = vunpack.c.h.b16 %v562
    %v3078 = vunpack.c.l.b16 %v563
    %v3079 = vunpack.c.h.b16 %v563
    %v3080 = vunpack.c.l.b16 %v564
    %v3081 = vunpack.c.h.b16 %v564
    %v3082 = vunpack.c.l.b16 %v565
    %v3083 = vunpack.c.h.b16 %v565
    %v3084 = vunpack.c.l.b16 %v566
    %v3085 = vunpack.c.h.b16 %v566
    %v3086 = vunpack.c.l.b16 %v567
    %v3087 = vunpack.c.h.b16 %v567
    %v3088 = vunpack.c.l.b16 %v568
    %v3089 = vunpack.c.h.b16 %v568
    %v3090 = vunpack.c.l.b16 %v569
    %v3091 = vunpack.c.h.b16 %v569
    %v3092 = vunpack.c.l.b16 %v570
    %v3093 = vunpack.c.h.b16 %v570
    %v3094 = vunpack.c.l.b16 %v571
    %v3095 = vunpack.c.h.b16 %v571
    %v3096 = vunpack.c.l.b16 %v572
    %v3097 = vunpack.c.h.b16 %v572
    %v3098 = vunpack.c.l.b16 %v573
    %v3099 = vunpack.c.h.b16 %v573
    %v3100 = vunpack.c.l.b16 %v574
    %v3101 = vunpack.c.h.b16 %v574
    %v3102 = vunpack.c.l.b16 %v575
    %v3103 = vunpack.c.h.b16 %v575
    %v3104 = vunpack.c.l.b16 %v576
    %v3105 = vunpack.c.h.b16 %v576
    %v3106 = vunpack.c.l.b16 %v577
    %v3107 = vunpack.c.h.b16 %v577
    %v3108 = vunpack.c.l.b16 %v578
    %v3109 = vunpack.c.h.b16 %v578
    %v3110 = vunpack.c.l.b16 %v579
    %v3111 = vunpack.c.h.b16 %v579
    %v3112 = vunpack.c.l.b16 %v580
    %v3113 = vunpack.c.h.b16 %v580
    %v3114 = vunpack.c.l.b16 %v581
    %v3115 = vunpack.c.h.b16 %v581
    %v3116 = vunpack.c.l.b16 %v582
    %v3117 = vunpack.c.h.b16 %v582
    %v3118 = vunpack.c.l.b16 %v583
    %v3119 = vunpack.c.h.b16 %v583
    %v3120 = vunpack.c.l.b16 %v584
    %v3121 = vunpack.c.h.b16 %v584
    %v3122 = vunpack.c.l.b16 %v585
    %v3123 = vunpack.c.h.b16 %v585
    %v3124 = vunpack.c.l.b16 %v586
    %v3125 = vunpack.c.h.b16 %v586
    %v3126 = vunpack.c.l.b16 %v587
    %v3127 = vunpack.c.h.b16 %v587
    %v3128 = vunpack.c.l.b16 %v588
    %v3129 = vunpack.c.h.b16 %v588
    %v3130 = vunpack.c.l.b16 %v589
    %v3131 = vunpack.c.h.b16 %v589
    %v3132 = vunpack.c.l.b16 %v590
    %v3133 = vunpack.c.h.b16 %v590
    %v3134 = vunpack.c.l.b16 %v591
    %v3135 = vunpack.c.h.b16 %v591
    %v3136 = vunpack.c.l.b16 %v592
    %v3137 = vunpack.c.h.b16 %v592
    %v3138 = vunpack.c.l.b16 %v593
    %v3139 = vunpack.c.h.b16 %v593
    %v3140 = vunpack.c.l.b16 %v594
    %v3141 = vunpack.c.h.b16 %v594
    %v3142 = vunpack.c.l.b16 %v595
    %v3143 = vunpack.c.h.b16 %v595
    %v3144 = vunpack.c.l.b16 %v596
    %v3145 = vunpack.c.h.b16 %v596
    %v3146 = vunpack.c.l.b16 %v597
    %v3147 = vunpack.c.h.b16 %v597
    %v3148 = vunpack.c.l.b16 %v598
    %v3149 = vunpack.c.h.b16 %v598
    %v3150 = vunpack.c.l.b16 %v599
    %v3151 = vunpack.c.h.b16 %v599
    %v3152 = vunpack.c.l.b16 %v600
    %v3153 = vunpack.c.h.b16 %v600
    %v3154 = vunpack.c.l.b16 %v601
    %v3155 = vunpack.c.h.b16 %v601
    %v3156 = vunpack.c.l.b16 %v602
    %v3157 = vunpack.c.h.b16 %v602
    %v3158 = vunpack.c.l.b16 %v603
    %v3159 = vunpack.c.h.b16 %v603
    %v3160 = vunpack.c.l.b16 %v604
    %v3161 = vunpack.c.h.b16 %v604
    %v3162 = vunpack.c.l.b16 %v605
    %v3163 = vunpack.c.h.b16 %v605
    %v3164 = vunpack.c.l.b16 %v606
    %v3165 = vunpack.c.h.b16 %v606
    %v3166 = vunpack.c.l.b16 %v607
    %v3167 = vunpack.c.h.b16 %v607
    %v3168 = vunpack.c.l.b16 %v608
    %v3169 = vunpack.c.h.b16 %v608
    %v3170 = vunpack.c.l.b16 %v609
    %v3171 = vunpack.c.h.b16 %v609
    %v3172 = vunpack.c.l.b16 %v610
    %v3173 = vunpack.c.h.b16 %v610
    %v3174 = vunpack.c.l.b16 %v611
    %v3175 = vunpack.c.h.b16 %v611
    %v3176 = vunpack.c.l.b16 %v612
    %v3177 = vunpack.c.h.b16 %v612
    %v3178 = vunpack.c.l.b16 %v613
    %v3179 = vunpack.c.h.b16 %v613
    %v3180 = vunpack.c.l.b16 %v614
    %v3181 = vunpack.c.h.b16 %v614
    %v3182 = vunpack.c.l.b16 %v615
    %v3183 = vunpack.c.h.b16 %v615
    %v3184 = vunpack.c.l.b16 %v616
    %v3185 = vunpack.c.h.b16 %v616
    %v3186 = vunpack.c.l.b16 %v617
    %v3187 = vunpack.c.h.b16 %v617
    %v3188 = vunpack.c.l.b16 %v618
    %v3189 = vunpack.c.h.b16 %v618
    %v3190 = vunpack.c.l.b16 %v619
    %v3191 = vunpack.c.h.b16 %v619
    %v3192 = vunpack.c.l.b16 %v620
    %v3193 = vunpack.c.h.b16 %v620
    %v3194 = vunpack.c.l.b16 %v621
    %v3195 = vunpack.c.h.b16 %v621
    %v3196 = vunpack.c.l.b16 %v622
    %v3197 = vunpack.c.h.b16 %v622
    %v3198 = vunpack.c.l.b16 %v623
    %v3199 = vunpack.c.h.b16 %v623
    %v3200 = vunpack.c.l.b16 %v624
    %v3201 = vunpack.c.h.b16 %v624
    %v3202 = vunpack.c.l.b16 %v625
    %v3203 = vunpack.c.h.b16 %v625
    %v3204 = vunpack.c.l.b16 %v626
    %v3205 = vunpack.c.h.b16 %v626
    %v3206 = vunpack.c.l.b16 %v627
    %v3207 = vunpack.c.h.b16 %v627
    %v3208 = vunpack.c.l.b16 %v628
    %v3209 = vunpack.c.h.b16 %v628
    %v3210 = vunpack.c.l.b16 %v629
    %v3211 = vunpack.c.h.b16 %v629
    %v3212 = vunpack.c.l.b16 %v630
    %v3213 = vunpack.c.h.b16 %v630
    %v3214 = vunpack.c.l.b16 %v631
    %v3215 = vunpack.c.h.b16 %v631
    %v3216 = vunpack.c.l.b16 %v632
    %v3217 = vunpack.c.h.b16 %v632
    %v3218 = vunpack.c.l.b16 %v633
    %v3219 = vunpack.c.h.b16 %v633
    %v3220 = vunpack.c.l.b16 %v634
    %v3221 = vunpack.c.h.b16 %v634
    %v3222 = vunpack.c.l.b16 %v635
    %v3223 = vunpack.c.h.b16 %v635
    %v3224 = vunpack.c.l.b16 %v636
    %v3225 = vunpack.c.h.b16 %v636
    %v3226 = vunpack.c.l.b16 %v637
    %v3227 = vunpack.c.h.b16 %v637
    %v3228 = vunpack.c.l.b16 %v638
    %v3229 = vunpack.c.h.b16 %v638
    %v3230 = vunpack.c.l.b16 %v639
    %v3231 = vunpack.c.h.b16 %v639
    %v3232 = vunpack.c.l.b16 %v640
    %v3233 = vunpack.c.h.b16 %v640
    %v3234 = vunpack.c.l.b16 %v641
    %v3235 = vunpack.c.h.b16 %v641
    %v3236 = vunpack.c.l.b16 %v642
    %v3237 = vunpack.c.h.b16 %v642
    %v3238 = vunpack.c.l.b16 %v643
    %v3239 = vunpack.c.h.b16 %v643
    %v3240 = vunpack.c.l.b16 %v644
    %v3241 = vunpack.c.h.b16 %v644
    %v3242 = vunpack.c.l.b16 %v645
    %v3243 = vunpack.c.h.b16 %v645
    %v3244 = vunpack.c.l.b16 %v646
    %v3245 = vunpack.c.h.b16 %v646
    %v3246 = vunpack.c.l.b16 %v647
    %v3247 = vunpack.c.h.b16 %v647
    %v3248 = vunpack.c.l.b16 %v648
    %v3249 = vunpack.c.h.b16 %v648
    %v3250 = vunpack.c.l.b16 %v649
    %v3251 = vunpack.c.h.b16 %v649
    %v3252 = vunpack.c.l.b16 %v650
    %v3253 = vunpack.c.h.b16 %v650
    %v3254 = vunpack.c.l.b16 %v651
    %v3255 = vunpack.c.h.b16 %v651
    %v3256 = vunpack.c.l.b16 %v652
    %v3257 = vunpack.c.h.b16 %v652
    %v3258 = vunpack.c.l.b16 %v653
    %v3259 = vunpack.c.h.b16 %v653
    %v3260 = vunpack.c.l.b16 %v654
    %v3261 = vunpack.c.h.b16 %v654
    %v3262 = vunpack.c.l.b16 %v655
    %v3263 = vunpack.c.h.b16 %v655
    %v3264 = vunpack.c.l.b16 %v656
    %v3265 = vunpack.c.h.b16 %v656
    %v3266 = vunpack.c.l.b16 %v657
    %v3267 = vunpack.c.h.b16 %v657
    %v3268 = vunpack.c.l.b16 %v658
    %v3269 = vunpack.c.h.b16 %v658
    %v3270 = vunpack.c.l.b16 %v659
    %v3271 = vunpack.c.h.b16 %v659
    %v3272 = vunpack.c.l.b16 %v660
    %v3273 = vunpack.c.h.b16 %v660
    %v3274 = vunpack.c.l.b16 %v661
    %v3275 = vunpack.c.h.b16 %v661
    %v3276 = vunpack.c.l.b16 %v662
    %v3277 = vunpack.c.h.b16 %v662
    %v3278 = vunpack.c.l.b16 %v663
    %v3279 = vunpack.c.h.b16 %v663
    %v3280 = vunpack.c.l.b16 %v664
    %v3281 = vunpack.c.h.b16 %v664
    %v3282 = vunpack.c.l.b16 %v665
    %v3283 = vunpack.c.h.b16 %v665
    %v3284 = vunpack.c.l.b16 %v666
    %v3285 = vunpack.c.h.b16 %v666
    %v3286 = vunpack.c.l.b16 %v667
    %v3287 = vunpack.c.h.b16 %v667
    %v3288 = vunpack.c.l.b16 %v668
    %v3289 = vunpack.c.h.b16 %v668
    %v3290 = vunpack.c.l.b16 %v669
    %v3291 = vunpack.c.h.b16 %v669
    %v3292 = vunpack.c.l.b16 %v670
    %v3293 = vunpack.c.h.b16 %v670
    %v3294 = vunpack.c.l.b16 %v671
    %v3295 = vunpack.c.h.b16 %v671
    %v3296 = vunpack.c.l.b16 %v672
    %v3297 = vunpack.c.h.b16 %v672
    %v3298 = vunpack.c.l.b16 %v673
    %v3299 = vunpack.c.h.b16 %v673
    %v3300 = vunpack.c.l.b16 %v674
    %v3301 = vunpack.c.h.b16 %v674
    %v3302 = vunpack.c.l.b16 %v675
    %v3303 = vunpack.c.h.b16 %v675
    %v3304 = vunpack.c.l.b16 %v676
    %v3305 = vunpack.c.h.b16 %v676
    %v3306 = vunpack.c.l.b16 %v677
    %v3307 = vunpack.c.h.b16 %v677
    %v3308 = vunpack.c.l.b16 %v678
    %v3309 = vunpack.c.h.b16 %v678
    %v3310 = vunpack.c.l.b16 %v679
    %v3311 = vunpack.c.h.b16 %v679
    %v3312 = vunpack.c.l.b16 %v680
    %v3313 = vunpack.c.h.b16 %v680
    %v3314 = vunpack.c.l.b16 %v681
    %v3315 = vunpack.c.h.b16 %v681
    %v3316 = vunpack.c.l.b16 %v682
    %v3317 = vunpack.c.h.b16 %v682
    %v3318 = vunpack.c.l.b16 %v683
    %v3319 = vunpack.c.h.b16 %v683
    %v3320 = vunpack.c.l.b16 %v684
    %v3321 = vunpack.c.h.b16 %v684
    %v3322 = vunpack.c.l.b16 %v685
    %v3323 = vunpack.c.h.b16 %v685
    %v3324 = vunpack.c.l.b16 %v686
    %v3325 = vunpack.c.h.b16 %v686
    %v3326 = vunpack.c.l.b16 %v687
    %v3327 = vunpack.c.h.b16 %v687
    %v3328 = vunpack.c.l.b16 %v688
    %v3329 = vunpack.c.h.b16 %v688
    %v3330 = vunpack.c.l.b16 %v689
    %v3331 = vunpack.c.h.b16 %v689
    %v3332 = vunpack.c.l.b16 %v690
    %v3333 = vunpack.c.h.b16 %v690
    %v3334 = vunpack.c.l.b16 %v691
    %v3335 = vunpack.c.h.b16 %v691
    %v3336 = vunpack.c.l.b16 %v692
    %v3337 = vunpack.c.h.b16 %v692
    %v3338 = vunpack.c.l.b16 %v693
    %v3339 = vunpack.c.h.b16 %v693
    %v3340 = vunpack.c.l.b16 %v694
    %v3341 = vunpack.c.h.b16 %v694
    %v3342 = vunpack.c.l.b16 %v695
    %v3343 = vunpack.c.h.b16 %v695
    %v3344 = vunpack.c.l.b16 %v696
    %v3345 = vunpack.c.h.b16 %v696
    %v3346 = vunpack.c.l.b16 %v697
    %v3347 = vunpack.c.h.b16 %v697
    %v3348 = vunpack.c.l.b16 %v698
    %v3349 = vunpack.c.h.b16 %v698
    %v3350 = vunpack.c.l.b16 %v699
    %v3351 = vunpack.c.h.b16 %v699
    %v3352 = vunpack.c.l.b16 %v700
    %v3353 = vunpack.c.h.b16 %v700
    %v3354 = vunpack.c.l.b16 %v701
    %v3355 = vunpack.c.h.b16 %v701
    %v3356 = vunpack.c.l.b16 %v702
    %v3357 = vunpack.c.h.b16 %v702
    %v3358 = vunpack.c.l.b16 %v703
    %v3359 = vunpack.c.h.b16 %v703
    %v3360 = vunpack.c.l.b16 %v704
    %v3361 = vunpack.c.h.b16 %v704
    %v3362 = vunpack.c.l.b16 %v705
    %v3363 = vunpack.c.h.b16 %v705
    %v3364 = vunpack.c.l.b16 %v706
    %v3365 = vunpack.c.h.b16 %v706
    %v3366 = vunpack.c.l.b16 %v707
    %v3367 = vunpack.c.h.b16 %v707
    %v3368 = vunpack.c.l.b16 %v708
    %v3369 = vunpack.c.h.b16 %v708
    %v3370 = vunpack.c.l.b16 %v709
    %v3371 = vunpack.c.h.b16 %v709
    %v3372 = vunpack.c.l.b16 %v710
    %v3373 = vunpack.c.h.b16 %v710
    %v3374 = vunpack.c.l.b16 %v711
    %v3375 = vunpack.c.h.b16 %v711
    %v3376 = vunpack.c.l.b16 %v712
    %v3377 = vunpack.c.h.b16 %v712
    %v3378 = vunpack.c.l.b16 %v713
    %v3379 = vunpack.c.h.b16 %v713
    %v3380 = vunpack.c.l.b16 %v714
    %v3381 = vunpack.c.h.b16 %v714
    %v3382 = vunpack.c.l.b16 %v715
    %v3383 = vunpack.c.h.b16 %v715
    %v3384 = vunpack.c.l.b16 %v716
    %v3385 = vunpack.c.h.b16 %v716
    %v3386 = vunpack.c.l.b16 %v717
    %v3387 = vunpack.c.h.b16 %v717
    %v3388 = vunpack.c.l.b16 %v718
    %v3389 = vunpack.c.h.b16 %v718
    %v3390 = vunpack.c.l.b16 %v719
    %v3391 = vunpack.c.h.b16 %v719
    %v3392 = vunpack.c.l.b16 %v720
    %v3393 = vunpack.c.h.b16 %v720
    %v3394 = vunpack.c.l.b16 %v721
    %v3395 = vunpack.c.h.b16 %v721
    %v3396 = vunpack.c.l.b16 %v722
    %v3397 = vunpack.c.h.b16 %v722
    %v3398 = vunpack.c.l.b16 %v723
    %v3399 = vunpack.c.h.b16 %v723
    %v3400 = vunpack.c.l.b16 %v724
    %v3401 = vunpack.c.h.b16 %v724
    %v3402 = vunpack.c.l.b16 %v725
    %v3403 = vunpack.c.h.b16 %v725
    %v3404 = vunpack.c.l.b16 %v726
    %v3405 = vunpack.c.h.b16 %v726
    %v3406 = vunpack.c.l.b16 %v727
    %v3407 = vunpack.c.h.b16 %v727
    %v3408 = vunpack.c.l.b16 %v728
    %v3409 = vunpack.c.h.b16 %v728
    %v3410 = vunpack.c.l.b16 %v729
    %v3411 = vunpack.c.h.b16 %v729
    %v3412 = vunpack.c.l.b16 %v730
    %v3413 = vunpack.c.h.b16 %v730
    %v3414 = vunpack.c.l.b16 %v731
    %v3415 = vunpack.c.h.b16 %v731
    %v3416 = vunpack.c.l.b16 %v732
    %v3417 = vunpack.c.h.b16 %v732
    %v3418 = vunpack.c.l.b16 %v733
    %v3419 = vunpack.c.h.b16 %v733
    %v3420 = vunpack.c.l.b16 %v734
    %v3421 = vunpack.c.h.b16 %v734
    %v3422 = vunpack.c.l.b16 %v735
    %v3423 = vunpack.c.h.b16 %v735
    %v3424 = vunpack.c.l.b16 %v736
    %v3425 = vunpack.c.h.b16 %v736
    %v3426 = vunpack.c.l.b16 %v737
    %v3427 = vunpack.c.h.b16 %v737
    %v3428 = vunpack.c.l.b16 %v738
    %v3429 = vunpack.c.h.b16 %v738
    %v3430 = vunpack.c.l.b16 %v739
    %v3431 = vunpack.c.h.b16 %v739
    %v3432 = vunpack.c.l.b16 %v740
    %v3433 = vunpack.c.h.b16 %v740
    %v3434 = vunpack.c.l.b16 %v741
    %v3435 = vunpack.c.h.b16 %v741
    %v3436 = vunpack.c.l.b16 %v742
    %v3437 = vunpack.c.h.b16 %v742
    %v3438 = vunpack.c.l.b16 %v743
    %v3439 = vunpack.c.h.b16 %v743
    %v3440 = vunpack.c.l.b16 %v744
    %v3441 = vunpack.c.h.b16 %v744
    %v3442 = vunpack.c.l.b16 %v745
    %v3443 = vunpack.c.h.b16 %v745
    %v3444 = vunpack.c.l.b16 %v746
    %v3445 = vunpack.c.h.b16 %v746
    %v3446 = vunpack.c.l.b16 %v747
    %v3447 = vunpack.c.h.b16 %v747
    %v3448 = vunpack.c.l.b16 %v748
    %v3449 = vunpack.c.h.b16 %v748
    %v3450 = vunpack.c.l.b16 %v749
    %v3451 = vunpack.c.h.b16 %v749
    %v3452 = vunpack.c.l.b16 %v750
    %v3453 = vunpack.c.h.b16 %v750
    %v3454 = vunpack.c.l.b16 %v751
    %v3455 = vunpack.c.h.b16 %v751
    %v3456 = vunpack.c.l.b16 %v752
    %v3457 = vunpack.c.h.b16 %v752
    %v3458 = vunpack.c.l.b16 %v753
    %v3459 = vunpack.c.h.b16 %v753
    %v3460 = vunpack.c.l.b16 %v754
    %v3461 = vunpack.c.h.b16 %v754
    %v3462 = vunpack.c.l.b16 %v755
    %v3463 = vunpack.c.h.b16 %v755
    %v3464 = vunpack.c.l.b16 %v756
    %v3465 = vunpack.c.h.b16 %v756
    %v3466 = vunpack.c.l.b16 %v757
    %v3467 = vunpack.c.h.b16 %v757
    %v3468 = vunpack.c.l.b16 %v758
    %v3469 = vunpack.c.h.b16 %v758
    %v3470 = vunpack.c.l.b16 %v759
    %v3471 = vunpack.c.h.b16 %v759
    %v3472 = vunpack.c.l.b16 %v760
    %v3473 = vunpack.c.h.b16 %v760
    %v3474 = vunpack.c.l.b16 %v761
    %v3475 = vunpack.c.h.b16 %v761
    %v3476 = vunpack.c.l.b16 %v762
    %v3477 = vunpack.c.h.b16 %v762
    %v3478 = vunpack.c.l.b16 %v763
    %v3479 = vunpack.c.h.b16 %v763
    %v3480 = vunpack.c.l.b16 %v764
    %v3481 = vunpack.c.h.b16 %v764
    %v3482 = vunpack.c.l.b16 %v765
    %v3483 = vunpack.c.h.b16 %v765
    %v3484 = vunpack.c.l.b16 %v766
    %v3485 = vunpack.c.h.b16 %v766
    %v3486 = vunpack.c.l.b16 %v767
    %v3487 = vunpack.c.h.b16 %v767
    %v3488 = vunpack.c.l.b16 %v768
    %v3489 = vunpack.c.h.b16 %v768
    %v3490 = vunpack.c.l.b16 %v769
    %v3491 = vunpack.c.h.b16 %v769
    %v3492 = vunpack.c.l.b16 %v770
    %v3493 = vunpack.c.h.b16 %v770
    %v3494 = vunpack.c.l.b16 %v771
    %v3495 = vunpack.c.h.b16 %v771
    %v3496 = vunpack.c.l.b16 %v772
    %v3497 = vunpack.c.h.b16 %v772
    %v3498 = vunpack.c.l.b16 %v773
    %v3499 = vunpack.c.h.b16 %v773
    %v3500 = vunpack.c.l.b16 %v774
    %v3501 = vunpack.c.h.b16 %v774
    %v3502 = vunpack.c.l.b16 %v775
    %v3503 = vunpack.c.h.b16 %v775
    %v3504 = vunpack.c.l.b16 %v776
    %v3505 = vunpack.c.h.b16 %v776
    %v3506 = vunpack.c.l.b16 %v777
    %v3507 = vunpack.c.h.b16 %v777
    %v3508 = vunpack.c.l.b16 %v778
    %v3509 = vunpack.c.h.b16 %v778
    %v3510 = vunpack.c.l.b16 %v779
    %v3511 = vunpack.c.h.b16 %v779
    %v3512 = vunpack.c.l.b16 %v780
    %v3513 = vunpack.c.h.b16 %v780
    %v3514 = vunpack.c.l.b16 %v781
    %v3515 = vunpack.c.h.b16 %v781
    %v3516 = vunpack.c.l.b16 %v782
    %v3517 = vunpack.c.h.b16 %v782
    %v3518 = vunpack.c.l.b16 %v783
    %v3519 = vunpack.c.h.b16 %v783
    %v3520 = vunpack.c.l.b16 %v784
    %v3521 = vunpack.c.h.b16 %v784
    %v3522 = vunpack.c.l.b16 %v785
    %v3523 = vunpack.c.h.b16 %v785
    %v3524 = vunpack.c.l.b16 %v786
    %v3525 = vunpack.c.h.b16 %v786
    %v3526 = vunpack.c.l.b16 %v787
    %v3527 = vunpack.c.h.b16 %v787
    %v3528 = vunpack.c.l.b16 %v788
    %v3529 = vunpack.c.h.b16 %v788
    %v3530 = vunpack.c.l.b16 %v789
    %v3531 = vunpack.c.h.b16 %v789
    %v3532 = vunpack.c.l.b16 %v790
    %v3533 = vunpack.c.h.b16 %v790
    %v3534 = vunpack.c.l.b16 %v791
    %v3535 = vunpack.c.h.b16 %v791
    %v3536 = vunpack.c.l.b16 %v792
    %v3537 = vunpack.c.h.b16 %v792
    %v3538 = vunpack.c.l.b16 %v793
    %v3539 = vunpack.c.h.b16 %v793
    %v3540 = vunpack.c.l.b16 %v794
    %v3541 = vunpack.c.h.b16 %v794
    %v3542 = vunpack.c.l.b16 %v795
    %v3543 = vunpack.c.h.b16 %v795
    %v3544 = vunpack.c.l.b16 %v796
    %v3545 = vunpack.c.h.b16 %v796
    %v3546 = vunpack.c.l.b16 %v797
    %v3547 = vunpack.c.h.b16 %v797
    %v3548 = vunpack.c.l.b16 %v798
    %v3549 = vunpack.c.h.b16 %v798
    %v3550 = vunpack.c.l.b16 %v799
    %v3551 = vunpack.c.h.b16 %v799
    %v3552 = vunpack.c.l.b16 %v800
    %v3553 = vunpack.c.h.b16 %v800
    %v3554 = vunpack.c.l.b16 %v801
    %v3555 = vunpack.c.h.b16 %v801
    %v3556 = vunpack.c.l.b16 %v802
    %v3557 = vunpack.c.h.b16 %v802
    %v3558 = vunpack.c.l.b16 %v803
    %v3559 = vunpack.c.h.b16 %v803
    %v3560 = vunpack.c.l.b16 %v804
    %v3561 = vunpack.c.h.b16 %v804
    %v3562 = vunpack.c.l.b16 %v805
    %v3563 = vunpack.c.h.b16 %v805
    %v3564 = vunpack.c.l.b16 %v806
    %v3565 = vunpack.c.h.b16 %v806
    %v3566 = vunpack.c.l.b16 %v807
    %v3567 = vunpack.c.h.b16 %v807
    %v3568 = vunpack.c.l.b16 %v808
    %v3569 = vunpack.c.h.b16 %v808
    %v3570 = vunpack.c.l.b16 %v809
    %v3571 = vunpack.c.h.b16 %v809
    %v3572 = vunpack.c.l.b16 %v810
    %v3573 = vunpack.c.h.b16 %v810
    %v3574 = vunpack.c.l.b16 %v811
    %v3575 = vunpack.c.h.b16 %v811
    %v3576 = vunpack.c.l.b16 %v812
    %v3577 = vunpack.c.h.b16 %v812
    %v3578 = vunpack.c.l.b16 %v813
    %v3579 = vunpack.c.h.b16 %v813
    %v3580 = vunpack.c.l.b16 %v814
    %v3581 = vunpack.c.h.b16 %v814
    %v3582 = vunpack.c.l.b16 %v815
    %v3583 = vunpack.c.h.b16 %v815
    %v3584 = vunpack.c.l.b16 %v816
    %v3585 = vunpack.c.h.b16 %v816
    %v3586 = vunpack.c.l.b16 %v817
    %v3587 = vunpack.c.h.b16 %v817
    %v3588 = vunpack.c.l.b16 %v818
    %v3589 = vunpack.c.h.b16 %v818
    %v3590 = vunpack.c.l.b16 %v819
    %v3591 = vunpack.c.h.b16 %v819
    %v3592 = vunpack.c.l.b16 %v820
    %v3593 = vunpack.c.h.b16 %v820
    %v3594 = vunpack.c.l.b16 %v821
    %v3595 = vunpack.c.h.b16 %v821
    %v3596 = vunpack.c.l.b16 %v822
    %v3597 = vunpack.c.h.b16 %v822
    %v3598 = vunpack.c.l.b16 %v823
    %v3599 = vunpack.c.h.b16 %v823
    %v3600 = vunpack.c.l.b16 %v824
    %v3601 = vunpack.c.h.b16 %v824
    %v3602 = vunpack.c.l.b16 %v825
    %v3603 = vunpack.c.h.b16 %v825
    %v3604 = vunpack.c.l.b16 %v826
    %v3605 = vunpack.c.h.b16 %v826
    %v3606 = vunpack.c.l.b16 %v827
    %v3607 = vunpack.c.h.b16 %v827
    %v3608 = vunpack.c.l.b16 %v828
    %v3609 = vunpack.c.h.b16 %v828
    %v3610 = vunpack.c.l.b16 %v829
    %v3611 = vunpack.c.h.b16 %v829
    %v3612 = vunpack.c.l.b16 %v830
    %v3613 = vunpack.c.h.b16 %v830
    %v3614 = vunpack.c.l.b16 %v831
    %v3615 = vunpack.c.h.b16 %v831
    %v3616 = vunpack.c.l.b16 %v832
    %v3617 = vunpack.c.h.b16 %v832
    %v3618 = vunpack.c.l.b16 %v833
    %v3619 = vunpack.c.h.b16 %v833
    %v3620 = vunpack.c.l.b16 %v834
    %v3621 = vunpack.c.h.b16 %v834
    %v3622 = vunpack.c.l.b16 %v835
    %v3623 = vunpack.c.h.b16 %v835
    %v3624 = vunpack.c.l.b16 %v836
    %v3625 = vunpack.c.h.b16 %v836
    %v3626 = vunpack.c.l.b16 %v837
    %v3627 = vunpack.c.h.b16 %v837
    %v3628 = vunpack.c.l.b16 %v838
    %v3629 = vunpack.c.h.b16 %v838
    %v3630 = vunpack.c.l.b16 %v839
    %v3631 = vunpack.c.h.b16 %v839
    %v3632 = vunpack.c.l.b16 %v840
    %v3633 = vunpack.c.h.b16 %v840
    %v3634 = vunpack.c.l.b16 %v841
    %v3635 = vunpack.c.h.b16 %v841
    %v3636 = vunpack.c.l.b16 %v842
    %v3637 = vunpack.c.h.b16 %v842
    %v3638 = vunpack.c.l.b16 %v843
    %v3639 = vunpack.c.h.b16 %v843
    %v3640 = vunpack.c.l.b16 %v844
    %v3641 = vunpack.c.h.b16 %v844
    %v3642 = vunpack.c.l.b16 %v845
    %v3643 = vunpack.c.h.b16 %v845
    %v3644 = vunpack.c.l.b16 %v846
    %v3645 = vunpack.c.h.b16 %v846
    %v3646 = vunpack.c.l.b16 %v847
    %v3647 = vunpack.c.h.b16 %v847
    %v3648 = vunpack.c.l.b16 %v848
    %v3649 = vunpack.c.h.b16 %v848
    %v3650 = vunpack.c.l.b16 %v849
    %v3651 = vunpack.c.h.b16 %v849
    %v3652 = vunpack.c.l.b16 %v850
    %v3653 = vunpack.c.h.b16 %v850
    %v3654 = vunpack.c.l.b16 %v851
    %v3655 = vunpack.c.h.b16 %v851
    %v3656 = vunpack.c.l.b16 %v852
    %v3657 = vunpack.c.h.b16 %v852
    %v3658 = vunpack.c.l.b16 %v853
    %v3659 = vunpack.c.h.b16 %v853
    %v3660 = vunpack.c.l.b16 %v854
    %v3661 = vunpack.c.h.b16 %v854
    %v3662 = vunpack.c.l.b16 %v855
    %v3663 = vunpack.c.h.b16 %v855
    %v3664 = vunpack.c.l.b16 %v856
    %v3665 = vunpack.c.h.b16 %v856
    %v3666 = vunpack.c.l.b16 %v857
    %v3667 = vunpack.c.h.b16 %v857
    %v3668 = vunpack.c.l.b16 %v858
    %v3669 = vunpack.c.h.b16 %v858
    %v3670 = vunpack.c.l.b16 %v859
    %v3671 = vunpack.c.h.b16 %v859
    %v3672 = vunpack.c.l.b16 %v860
    %v3673 = vunpack.c.h.b16 %v860
    %v3674 = vunpack.c.l.b16 %v861
    %v3675 = vunpack.c.h.b16 %v861
    %v3676 = vunpack.c.l.b16 %v862
    %v3677 = vunpack.c.h.b16 %v862
    %v3678 = vunpack.c.l.b16 %v863
    %v3679 = vunpack.c.h.b16 %v863
    %v3680 = vunpack.c.l.b16 %v864
    %v3681 = vunpack.c.h.b16 %v864
    %v3682 = vunpack.c.l.b16 %v865
    %v3683 = vunpack.c.h.b16 %v865
    %v3684 = vunpack.c.l.b16 %v866
    %v3685 = vunpack.c.h.b16 %v866
    %v3686 = vunpack.c.l.b16 %v867
    %v3687 = vunpack.c.h.b16 %v867
    %v3688 = vunpack.c.l.b16 %v868
    %v3689 = vunpack.c.h.b16 %v868
    %v3690 = vunpack.c.l.b16 %v869
    %v3691 = vunpack.c.h.b16 %v869
    %v3692 = vunpack.c.l.b16 %v870
    %v3693 = vunpack.c.h.b16 %v870
    %v3694 = vunpack.c.l.b16 %v871
    %v3695 = vunpack.c.h.b16 %v871
    %v3696 = vunpack.c.l.b16 %v872
    %v3697 = vunpack.c.h.b16 %v872
    %v3698 = vunpack.c.l.b16 %v873
    %v3699 = vunpack.c.h.b16 %v873
    %v3700 = vunpack.c.l.b16 %v874
    %v3701 = vunpack.c.h.b16 %v874
    %v3702 = vunpack.c.l.b16 %v875
    %v3703 = vunpack.c.h.b16 %v875
    %v3704 = vunpack.c.l.b16 %v876
    %v3705 = vunpack.c.h.b16 %v876
    %v3706 = vunpack.c.l.b16 %v877
    %v3707 = vunpack.c.h.b16 %v877
    %v3708 = vunpack.c.l.b16 %v878
    %v3709 = vunpack.c.h.b16 %v878
    %v3710 = vunpack.c.l.b16 %v879
    %v3711 = vunpack.c.h.b16 %v879
    %v3712 = vunpack.c.l.b16 %v880
    %v3713 = vunpack.c.h.b16 %v880
    %v3714 = vunpack.c.l.b16 %v881
    %v3715 = vunpack.c.h.b16 %v881
    %v3716 = vunpack.c.l.b16 %v882
    %v3717 = vunpack.c.h.b16 %v882
    %v3718 = vunpack.c.l.b16 %v883
    %v3719 = vunpack.c.h.b16 %v883
    %v3720 = vunpack.c.l.b16 %v884
    %v3721 = vunpack.c.h.b16 %v884
    %v3722 = vunpack.c.l.b16 %v885
    %v3723 = vunpack.c.h.b16 %v885
    %v3724 = vunpack.c.l.b16 %v886
    %v3725 = vunpack.c.h.b16 %v886
    %v3726 = vunpack.c.l.b16 %v887
    %v3727 = vunpack.c.h.b16 %v887
    %v3728 = vunpack.c.l.b16 %v888
    %v3729 = vunpack.c.h.b16 %v888
    %v3730 = vunpack.c.l.b16 %v889
    %v3731 = vunpack.c.h.b16 %v889
    %v3732 = vunpack.c.l.b16 %v890
    %v3733 = vunpack.c.h.b16 %v890
    %v3734 = vunpack.c.l.b16 %v891
    %v3735 = vunpack.c.h.b16 %v891
    %v3736 = vunpack.c.l.b16 %v892
    %v3737 = vunpack.c.h.b16 %v892
    %v3738 = vunpack.c.l.b16 %v893
    %v3739 = vunpack.c.h.b16 %v893
    %v3740 = vunpack.c.l.b16 %v894
    %v3741 = vunpack.c.h.b16 %v894
    %v3742 = vunpack.c.l.b16 %v895
    %v3743 = vunpack.c.h.b16 %v895
    %v3744 = vunpack.c.l.b16 %v896
    %v3745 = vunpack.c.h.b16 %v896
    %v3746 = vunpack.c.l.b16 %v897
    %v3747 = vunpack.c.h.b16 %v897
    %v3748 = vunpack.c.l.b16 %v898
    %v3749 = vunpack.c.h.b16 %v898
    %v3750 = vunpack.c.l.b16 %v899
    %v3751 = vunpack.c.h.b16 %v899
    %v3752 = vunpack.c.l.b16 %v900
    %v3753 = vunpack.c.h.b16 %v900
    %v3754 = vunpack.c.l.b16 %v901
    %v3755 = vunpack.c.h.b16 %v901
    %v3756 = vunpack.c.l.b16 %v902
    %v3757 = vunpack.c.h.b16 %v902
    %v3758 = vunpack.c.l.b16 %v903
    %v3759 = vunpack.c.h.b16 %v903
    %v3760 = vunpack.c.l.b16 %v904
    %v3761 = vunpack.c.h.b16 %v904
    %v3762 = vunpack.c.l.b16 %v905
    %v3763 = vunpack.c.h.b16 %v905
    %v3764 = vunpack.c.l.b16 %v906
    %v3765 = vunpack.c.h.b16 %v906
    %v3766 = vunpack.c.l.b16 %v907
    %v3767 = vunpack.c.h.b16 %v907
    %v3768 = vunpack.c.l.b16 %v908
    %v3769 = vunpack.c.h.b16 %v908
    %v3770 = vunpack.c.l.b16 %v909
    %v3771 = vunpack.c.h.b16 %v909
    %v3772 = vunpack.c.l.b16 %v910
    %v3773 = vunpack.c.h.b16 %v910
    %v3774 = vunpack.c.l.b16 %v911
    %v3775 = vunpack.c.h.b16 %v911
    %v3776 = vunpack.c.l.b16 %v912
    %v3777 = vunpack.c.h.b16 %v912
    %v3778 = vunpack.c.l.b16 %v913
    %v3779 = vunpack.c.h.b16 %v913
    %v3780 = vunpack.c.l.b16 %v914
    %v3781 = vunpack.c.h.b16 %v914
    %v3782 = vunpack.c.l.b16 %v915
    %v3783 = vunpack.c.h.b16 %v915
    %v3784 = vunpack.c.l.b16 %v916
    %v3785 = vunpack.c.h.b16 %v916
    %v3786 = vunpack.c.l.b16 %v917
    %v3787 = vunpack.c.h.b16 %v917
    %v3788 = vunpack.c.l.b16 %v918
    %v3789 = vunpack.c.h.b16 %v918
    %v3790 = vunpack.c.l.b16 %v919
    %v3791 = vunpack.c.h.b16 %v919
    %v3792 = vunpack.c.l.b16 %v920
    %v3793 = vunpack.c.h.b16 %v920
    %v3794 = vunpack.c.l.b16 %v921
    %v3795 = vunpack.c.h.b16 %v921
    %v3796 = vunpack.c.l.b16 %v922
    %v3797 = vunpack.c.h.b16 %v922
    %v3798 = vunpack.c.l.b16 %v923
    %v3799 = vunpack.c.h.b16 %v923
    %v3800 = vunpack.c.l.b16 %v924
    %v3801 = vunpack.c.h.b16 %v924
    %v3802 = vunpack.c.l.b16 %v925
    %v3803 = vunpack.c.h.b16 %v925
    %v3804 = vunpack.c.l.b16 %v926
    %v3805 = vunpack.c.h.b16 %v926
    %v3806 = vunpack.c.l.b16 %v927
    %v3807 = vunpack.c.h.b16 %v927
    %v3808 = vunpack.c.l.b16 %v928
    %v3809 = vunpack.c.h.b16 %v928
    %v3810 = vunpack.c.l.b16 %v929
    %v3811 = vunpack.c.h.b16 %v929
    %v3812 = vunpack.c.l.b16 %v930
    %v3813 = vunpack.c.h.b16 %v930
    %v3814 = vunpack.c.l.b16 %v931
    %v3815 = vunpack.c.h.b16 %v931
    %v3816 = vunpack.c.l.b16 %v932
    %v3817 = vunpack.c.h.b16 %v932
    %v3818 = vunpack.c.l.b16 %v933
    %v3819 = vunpack.c.h.b16 %v933
    %v3820 = vunpack.c.l.b16 %v934
    %v3821 = vunpack.c.h.b16 %v934
    %v3822 = vunpack.c.l.b16 %v935
    %v3823 = vunpack.c.h.b16 %v935
    %v3824 = vunpack.c.l.b16 %v936
    %v3825 = vunpack.c.h.b16 %v936
    %v3826 = vunpack.c.l.b16 %v937
    %v3827 = vunpack.c.h.b16 %v937
    %v3828 = vunpack.c.l.b16 %v938
    %v3829 = vunpack.c.h.b16 %v938
    %v3830 = vunpack.c.l.b16 %v939
    %v3831 = vunpack.c.h.b16 %v939
    %v3832 = vunpack.c.l.b16 %v940
    %v3833 = vunpack.c.h.b16 %v940
    %v3834 = vunpack.c.l.b16 %v941
    %v3835 = vunpack.c.h.b16 %v941
    %v3836 = vunpack.c.l.b16 %v942
    %v3837 = vunpack.c.h.b16 %v942
    %v3838 = vunpack.c.l.b16 %v943
    %v3839 = vunpack.c.h.b16 %v943
    %v3840 = vunpack.c.l.b16 %v944
    %v3841 = vunpack.c.h.b16 %v944
    %v3842 = vunpack.c.l.b16 %v945
    %v3843 = vunpack.c.h.b16 %v945
    %v3844 = vunpack.c.l.b16 %v946
    %v3845 = vunpack.c.h.b16 %v946
    %v3846 = vunpack.c.l.b16 %v947
    %v3847 = vunpack.c.h.b16 %v947
    %v3848 = vunpack.c.l.b16 %v948
    %v3849 = vunpack.c.h.b16 %v948
    %v3850 = vunpack.c.l.b16 %v949
    %v3851 = vunpack.c.h.b16 %v949
    %v3852 = vunpack.c.l.b16 %v950
    %v3853 = vunpack.c.h.b16 %v950
    %v3854 = vunpack.c.l.b16 %v951
    %v3855 = vunpack.c.h.b16 %v951
    %v3856 = vunpack.c.l.b16 %v952
    %v3857 = vunpack.c.h.b16 %v952
    %v3858 = vunpack.c.l.b16 %v953
    %v3859 = vunpack.c.h.b16 %v953
    %v3860 = vunpack.c.l.b16 %v954
    %v3861 = vunpack.c.h.b16 %v954
    %v3862 = vunpack.c.l.b16 %v955
    %v3863 = vunpack.c.h.b16 %v955
    %v3864 = vunpack.c.l.b16 %v956
    %v3865 = vunpack.c.h.b16 %v956
    %v3866 = vunpack.c.l.b16 %v957
    %v3867 = vunpack.c.h.b16 %v957
    %v3868 = vunpack.c.l.b16 %v958
    %v3869 = vunpack.c.h.b16 %v958
    %v3870 = vunpack.c.l.b16 %v959
    %v3871 = vunpack.c.h.b16 %v959
    %v3872 = vunpack.c.l.b16 %v960
    %v3873 = vunpack.c.h.b16 %v960
    %v3874 = vunpack.c.l.b16 %v961
    %v3875 = vunpack.c.h.b16 %v961
    %v3876 = vunpack.c.l.b16 %v962
    %v3877 = vunpack.c.h.b16 %v962
    %v3878 = vunpack.c.l.b16 %v963
    %v3879 = vunpack.c.h.b16 %v963
    %v3880 = vunpack.c.l.b16 %v964
    %v3881 = vunpack.c.h.b16 %v964
    %v3882 = vunpack.c.l.b16 %v965
    %v3883 = vunpack.c.h.b16 %v965
    %v3884 = vunpack.c.l.b16 %v966
    %v3885 = vunpack.c.h.b16 %v966
    %v3886 = vunpack.c.l.b16 %v967
    %v3887 = vunpack.c.h.b16 %v967
    %v3888 = vunpack.c.l.b16 %v968
    %v3889 = vunpack.c.h.b16 %v968
    %v3890 = vunpack.c.l.b16 %v969
    %v3891 = vunpack.c.h.b16 %v969
    %v3892 = vunpack.c.l.b16 %v970
    %v3893 = vunpack.c.h.b16 %v970
    %v3894 = vunpack.c.l.b16 %v971
    %v3895 = vunpack.c.h.b16 %v971
    %v3896 = vunpack.c.l.b16 %v972
    %v3897 = vunpack.c.h.b16 %v972
    %v3898 = vunpack.c.l.b16 %v973
    %v3899 = vunpack.c.h.b16 %v973
    %v3900 = vunpack.c.l.b16 %v974
    %v3901 = vunpack.c.h.b16 %v974
    %v3902 = vunpack.c.l.b16 %v975
    %v3903 = vunpack.c.h.b16 %v975
    %v3904 = vunpack.c.l.b16 %v976
    %v3905 = vunpack.c.h.b16 %v976
    %v3906 = vunpack.c.l.b16 %v977
    %v3907 = vunpack.c.h.b16 %v977
    %v3908 = vunpack.c.l.b16 %v978
    %v3909 = vunpack.c.h.b16 %v978
    %v3910 = vunpack.c.l.b16 %v979
    %v3911 = vunpack.c.h.b16 %v979
    %v3912 = vunpack.c.l.b16 %v980
    %v3913 = vunpack.c.h.b16 %v980
    %v3914 = vunpack.c.l.b16 %v981
    %v3915 = vunpack.c.h.b16 %v981
    %v3916 = vunpack.c.l.b16 %v982
    %v3917 = vunpack.c.h.b16 %v982
    %v3918 = vunpack.c.l.b16 %v983
    %v3919 = vunpack.c.h.b16 %v983
    %v3920 = vunpack.c.l.b16 %v984
    %v3921 = vunpack.c.h.b16 %v984
    %v3922 = vunpack.c.l.b16 %v985
    %v3923 = vunpack.c.h.b16 %v985
    %v3924 = vunpack.c.l.b16 %v986
    %v3925 = vunpack.c.h.b16 %v986
    %v3926 = vunpack.c.l.b16 %v987
    %v3927 = vunpack.c.h.b16 %v987
    %v3928 = vunpack.c.l.b16 %v988
    %v3929 = vunpack.c.h.b16 %v988
    %v3930 = vunpack.c.l.b16 %v989
    %v3931 = vunpack.c.h.b16 %v989
    %v3932 = vunpack.c.l.b16 %v990
    %v3933 = vunpack.c.h.b16 %v990
    %v3934 = vunpack.c.l.b16 %v991
    %v3935 = vunpack.c.h.b16 %v991
    %v3936 = vunpack.c.l.b16 %v992
    %v3937 = vunpack.c.h.b16 %v992
    %v3938 = vunpack.c.l.b16 %v993
    %v3939 = vunpack.c.h.b16 %v993
    %v3940 = vunpack.c.l.b16 %v994
    %v3941 = vunpack.c.h.b16 %v994
    %v3942 = vunpack.c.l.b16 %v995
    %v3943 = vunpack.c.h.b16 %v995
    %v3944 = vunpack.c.l.b16 %v996
    %v3945 = vunpack.c.h.b16 %v996
    %v3946 = vunpack.c.l.b16 %v997
    %v3947 = vunpack.c.h.b16 %v997
    %v3948 = vunpack.c.l.b16 %v998
    %v3949 = vunpack.c.h.b16 %v998
    %v3950 = vunpack.c.l.b16 %v999
    %v3951 = vunpack.c.h.b16 %v999
    %v3952 = vunpack.c.l.b16 %v1000
    %v3953 = vunpack.c.h.b16 %v1000
    %v3954 = vunpack.c.l.b16 %v1001
    %v3955 = vunpack.c.h.b16 %v1001
    %v3956 = vunpack.c.l.b16 %v1002
    %v3957 = vunpack.c.h.b16 %v1002
    %v3958 = vunpack.c.l.b16 %v1003
    %v3959 = vunpack.c.h.b16 %v1003
    %v3960 = vunpack.c.l.b16 %v1004
    %v3961 = vunpack.c.h.b16 %v1004
    %v3962 = vunpack.c.l.b16 %v1005
    %v3963 = vunpack.c.h.b16 %v1005
    %v3964 = vunpack.c.l.b16 %v1006
    %v3965 = vunpack.c.h.b16 %v1006
    %v3966 = vunpack.c.l.b16 %v1007
    %v3967 = vunpack.c.h.b16 %v1007
    %v3968 = vunpack.c.l.b16 %v1008
    %v3969 = vunpack.c.h.b16 %v1008
    %v3970 = vunpack.c.l.b16 %v1009
    %v3971 = vunpack.c.h.b16 %v1009
    %v3972 = vunpack.c.l.b16 %v1010
    %v3973 = vunpack.c.h.b16 %v1010
    %v3974 = vunpack.c.l.b16 %v1011
    %v3975 = vunpack.c.h.b16 %v1011
    %v3976 = vunpack.c.l.b16 %v1012
    %v3977 = vunpack.c.h.b16 %v1012
    %v3978 = vunpack.c.l.b16 %v1013
    %v3979 = vunpack.c.h.b16 %v1013
    %v3980 = vunpack.c.l.b16 %v1014
    %v3981 = vunpack.c.h.b16 %v1014
    %v3982 = vunpack.c.l.b16 %v1015
    %v3983 = vunpack.c.h.b16 %v1015
    %v3984 = vunpack.c.l.b16 %v1016
    %v3985 = vunpack.c.h.b16 %v1016
    %v3986 = vunpack.c.l.b16 %v1017
    %v3987 = vunpack.c.h.b16 %v1017
    %v3988 = vunpack.c.l.b16 %v1018
    %v3989 = vunpack.c.h.b16 %v1018
    %v3990 = vunpack.c.l.b16 %v1019
    %v3991 = vunpack.c.h.b16 %v1019
    %v3992 = vunpack.c.l.b16 %v1020
    %v3993 = vunpack.c.h.b16 %v1020
    %v3994 = vunpack.c.l.b16 %v1021
    %v3995 = vunpack.c.h.b16 %v1021
    %v3996 = vunpack.c.l.b16 %v1022
    %v3997 = vunpack.c.h.b16 %v1022
    %v3998 = vunpack.c.l.b16 %v1023
    %v3999 = vunpack.c.h.b16 %v1023
    %v4000 = vunpack.c.l.b16 %v1024
    %v4001 = vunpack.c.h.b16 %v1024
    %v4002 = vunpack.c.l.b16 %v1025
    %v4003 = vunpack.c.h.b16 %v1025
    %v4004 = vunpack.c.l.b16 %v1026
    %v4005 = vunpack.c.h.b16 %v1026
    %v4006 = vunpack.c.l.b16 %v1027
    %v4007 = vunpack.c.h.b16 %v1027
    %v4008 = vunpack.c.l.b16 %v1028
    %v4009 = vunpack.c.h.b16 %v1028
    %v4010 = vunpack.c.l.b16 %v1029
    %v4011 = vunpack.c.h.b16 %v1029
    %v4012 = vunpack.c.l.b16 %v1030
    %v4013 = vunpack.c.h.b16 %v1030
    %v4014 = vunpack.c.l.b16 %v1031
    %v4015 = vunpack.c.h.b16 %v1031
    %v4016 = vunpack.c.l.b16 %v1032
    %v4017 = vunpack.c.h.b16 %v1032
    %v4018 = vunpack.c.l.b16 %v1033
    %v4019 = vunpack.c.h.b16 %v1033
    %v4020 = vunpack.c.l.b16 %v1034
    %v4021 = vunpack.c.h.b16 %v1034
    %v4022 = vunpack.c.l.b16 %v1035
    %v4023 = vunpack.c.h.b16 %v1035
    %v4024 = vunpack.c.l.b16 %v1036
    %v4025 = vunpack.c.h.b16 %v1036
    %v4026 = vunpack.c.l.b16 %v1037
    %v4027 = vunpack.c.h.b16 %v1037
    %v4028 = vunpack.c.l.b16 %v1038
    %v4029 = vunpack.c.h.b16 %v1038
    %v4030 = vunpack.c.l.b16 %v1039
    %v4031 = vunpack.c.h.b16 %v1039
    %v4032 = vunpack.c.l.b16 %v1040
    %v4033 = vunpack.c.h.b16 %v1040
    %v4034 = vunpack.c.l.b16 %v1041
    %v4035 = vunpack.c.h.b16 %v1041
    %v4036 = vunpack.c.l.b16 %v1042
    %v4037 = vunpack.c.h.b16 %v1042
    %v4038 = vunpack.c.l.b16 %v1043
    %v4039 = vunpack.c.h.b16 %v1043
    %v4040 = vunpack.c.l.b16 %v1044
    %v4041 = vunpack.c.h.b16 %v1044
    %v4042 = vunpack.c.l.b16 %v1045
    %v4043 = vunpack.c.h.b16 %v1045
    %v4044 = vunpack.c.l.b16 %v1046
    %v4045 = vunpack.c.h.b16 %v1046
    %v4046 = vunpack.c.l.b16 %v1047
    %v4047 = vunpack.c.h.b16 %v1047
    %v4048 = vunpack.c.l.b16 %v1048
    %v4049 = vunpack.c.h.b16 %v1048
    %v4050 = vunpack.c.l.b16 %v1049
    %v4051 = vunpack.c.h.b16 %v1049
    %v4052 = vunpack.c.l.b16 %v1050
    %v4053 = vunpack.c.h.b16 %v1050
    %v4054 = vunpack.c.l.b16 %v1051
    %v4055 = vunpack.c.h.b16 %v1051
    %v4056 = vunpack.c.l.b16 %v1052
    %v4057 = vunpack.c.h.b16 %v1052
    %v4058 = vunpack.c.l.b16 %v1053
    %v4059 = vunpack.c.h.b16 %v1053
    %v4060 = vunpack.c.l.b16 %v1054
    %v4061 = vunpack.c.h.b16 %v1054
    %v4062 = vunpack.c.l.b16 %v1055
    %v4063 = vunpack.c.h.b16 %v1055
    %v4064 = vunpack.c.l.b16 %v1056
    %v4065 = vunpack.c.h.b16 %v1056
    %v4066 = vunpack.c.l.b16 %v1057
    %v4067 = vunpack.c.h.b16 %v1057
    %v4068 = vunpack.c.l.b16 %v1058
    %v4069 = vunpack.c.h.b16 %v1058
    %v4070 = vunpack.c.l.b16 %v1059
    %v4071 = vunpack.c.h.b16 %v1059
    %v4072 = vunpack.c.l.b16 %v1060
    %v4073 = vunpack.c.h.b16 %v1060
    %v4074 = vunpack.c.l.b16 %v1061
    %v4075 = vunpack.c.h.b16 %v1061
    %v4076 = vunpack.c.l.b16 %v1062
    %v4077 = vunpack.c.h.b16 %v1062
    %v4078 = vunpack.c.l.b16 %v1063
    %v4079 = vunpack.c.h.b16 %v1063
    %v4080 = vunpack.c.l.b16 %v1064
    %v4081 = vunpack.c.h.b16 %v1064
    %v4082 = vunpack.c.l.b16 %v1065
    %v4083 = vunpack.c.h.b16 %v1065
    %v4084 = vunpack.c.l.b16 %v1066
    %v4085 = vunpack.c.h.b16 %v1066
    %v4086 = vunpack.c.l.b16 %v1067
    %v4087 = vunpack.c.h.b16 %v1067
    %v4088 = vunpack.c.l.b16 %v1068
    %v4089 = vunpack.c.h.b16 %v1068
    %v4090 = vunpack.c.l.b16 %v1069
    %v4091 = vunpack.c.h.b16 %v1069
    %v4092 = vunpack.c.l.b16 %v1070
    %v4093 = vunpack.c.h.b16 %v1070
    %v4094 = vunpack.c.l.b16 %v1071
    %v4095 = vunpack.c.h.b16 %v1071
    %v4096 = vunpack.c.l.b16 %v1072
    %v4097 = vunpack.c.h.b16 %v1072
    %v4098 = vunpack.c.l.b16 %v1073
    %v4099 = vunpack.c.h.b16 %v1073
    %v4100 = vunpack.c.l.b16 %v1074
    %v4101 = vunpack.c.h.b16 %v1074
    %v4102 = vunpack.c.l.b16 %v1075
    %v4103 = vunpack.c.h.b16 %v1075
    %v4104 = vunpack.c.l.b16 %v1076
    %v4105 = vunpack.c.h.b16 %v1076
    %v4106 = vunpack.c.l.b16 %v1077
    %v4107 = vunpack.c.h.b16 %v1077
    %v4108 = vunpack.c.l.b16 %v1078
    %v4109 = vunpack.c.h.b16 %v1078
    %v4110 = vunpack.c.l.b16 %v1079
    %v4111 = vunpack.c.h.b16 %v1079
    %v4112 = vunpack.c.l.b16 %v1080
    %v4113 = vunpack.c.h.b16 %v1080
    %v4114 = vunpack.c.l.b16 %v1081
    %v4115 = vunpack.c.h.b16 %v1081
    %v4116 = vunpack.c.l.b16 %v1082
    %v4117 = vunpack.c.h.b16 %v1082
    %v4118 = vunpack.c.l.b16 %v1083
    %v4119 = vunpack.c.h.b16 %v1083
    %v4120 = vunpack.c.l.b16 %v1084
    %v4121 = vunpack.c.h.b16 %v1084
    %v4122 = vunpack.c.l.b16 %v1085
    %v4123 = vunpack.c.h.b16 %v1085
    %v4124 = vunpack.c.l.b16 %v1086
    %v4125 = vunpack.c.h.b16 %v1086
    %v4126 = vunpack.c.l.b16 %v1087
    %v4127 = vunpack.c.h.b16 %v1087
    %v4128 = vunpack.c.l.b16 %v1088
    %v4129 = vunpack.c.h.b16 %v1088
    %v4130 = vunpack.c.l.b16 %v1089
    %v4131 = vunpack.c.h.b16 %v1089
    %v4132 = vunpack.c.l.b16 %v1090
    %v4133 = vunpack.c.h.b16 %v1090
    %v4134 = vunpack.c.l.b16 %v1091
    %v4135 = vunpack.c.h.b16 %v1091
    %v4136 = vunpack.c.l.b16 %v1092
    %v4137 = vunpack.c.h.b16 %v1092
    %v4138 = vunpack.c.l.b16 %v1093
    %v4139 = vunpack.c.h.b16 %v1093
    %v4140 = vunpack.c.l.b16 %v1094
    %v4141 = vunpack.c.h.b16 %v1094
    %v4142 = vunpack.c.l.b16 %v1095
    %v4143 = vunpack.c.h.b16 %v1095
    %v4144 = vunpack.c.l.b16 %v1096
    %v4145 = vunpack.c.h.b16 %v1096
    %v4146 = vunpack.c.l.b16 %v1097
    %v4147 = vunpack.c.h.b16 %v1097
    %v4148 = vunpack.c.l.b16 %v1098
    %v4149 = vunpack.c.h.b16 %v1098
    %v4150 = vunpack.c.l.b16 %v1099
    %v4151 = vunpack.c.h.b16 %v1099
    %v4152 = vunpack.c.l.b16 %v1100
    %v4153 = vunpack.c.h.b16 %v1100
    %v4154 = vunpack.c.l.b16 %v1101
    %v4155 = vunpack.c.h.b16 %v1101
    %v4156 = vunpack.c.l.b16 %v1102
    %v4157 = vunpack.c.h.b16 %v1102
    %v4158 = vunpack.c.l.b16 %v1103
    %v4159 = vunpack.c.h.b16 %v1103
    %v4160 = vunpack.c.l.b16 %v1104
    %v4161 = vunpack.c.h.b16 %v1104
    %v4162 = vunpack.c.l.b16 %v1105
    %v4163 = vunpack.c.h.b16 %v1105
    %v4164 = vunpack.c.l.b16 %v1106
    %v4165 = vunpack.c.h.b16 %v1106
    %v4166 = vunpack.c.l.b16 %v1107
    %v4167 = vunpack.c.h.b16 %v1107
    %v4168 = vunpack.c.l.b16 %v1108
    %v4169 = vunpack.c.h.b16 %v1108
    %v4170 = vunpack.c.l.b16 %v1109
    %v4171 = vunpack.c.h.b16 %v1109
    %v4172 = vunpack.c.l.b16 %v1110
    %v4173 = vunpack.c.h.b16 %v1110
    %v4174 = vunpack.c.l.b16 %v1111
    %v4175 = vunpack.c.h.b16 %v1111
    %v4176 = vunpack.c.l.b16 %v1112
    %v4177 = vunpack.c.h.b16 %v1112
    %v4178 = vunpack.c.l.b16 %v1113
    %v4179 = vunpack.c.h.b16 %v1113
    %v4180 = vunpack.c.l.b16 %v1114
    %v4181 = vunpack.c.h.b16 %v1114
    %v4182 = vunpack.c.l.b16 %v1115
    %v4183 = vunpack.c.h.b16 %v1115
    %v4184 = vunpack.c.l.b16 %v1116
    %v4185 = vunpack.c.h.b16 %v1116
    %v4186 = vunpack.c.l.b16 %v1117
    %v4187 = vunpack.c.h.b16 %v1117
    %v4188 = vunpack.c.l.b16 %v1118
    %v4189 = vunpack.c.h.b16 %v1118
    %v4190 = vunpack.c.l.b16 %v1119
    %v4191 = vunpack.c.h.b16 %v1119
    %v4192 = vunpack.c.l.b16 %v1120
    %v4193 = vunpack.c.h.b16 %v1120
    %v4194 = vunpack.c.l.b16 %v1121
    %v4195 = vunpack.c.h.b16 %v1121
    %v4196 = vunpack.c.l.b16 %v1122
    %v4197 = vunpack.c.h.b16 %v1122
    %v4198 = vunpack.c.l.b16 %v1123
    %v4199 = vunpack.c.h.b16 %v1123
    %v4200 = vunpack.c.l.b16 %v1124
    %v4201 = vunpack.c.h.b16 %v1124
    %v4202 = vunpack.c.l.b16 %v1125
    %v4203 = vunpack.c.h.b16 %v1125
    %v4204 = vunpack.c.l.b16 %v1126
    %v4205 = vunpack.c.h.b16 %v1126
    %v4206 = vunpack.c.l.b16 %v1127
    %v4207 = vunpack.c.h.b16 %v1127
    %v4208 = vunpack.c.l.b16 %v1128
    %v4209 = vunpack.c.h.b16 %v1128
    %v4210 = vunpack.c.l.b16 %v1129
    %v4211 = vunpack.c.h.b16 %v1129
    %v4212 = vunpack.c.l.b16 %v1130
    %v4213 = vunpack.c.h.b16 %v1130
    %v4214 = vunpack.c.l.b16 %v1131
    %v4215 = vunpack.c.h.b16 %v1131
    %v4216 = vunpack.c.l.b16 %v1132
    %v4217 = vunpack.c.h.b16 %v1132
    %v4218 = vunpack.c.l.b16 %v1133
    %v4219 = vunpack.c.h.b16 %v1133
    %v4220 = vunpack.c.l.b16 %v1134
    %v4221 = vunpack.c.h.b16 %v1134
    %v4222 = vunpack.c.l.b16 %v1135
    %v4223 = vunpack.c.h.b16 %v1135
    %v4224 = vunpack.c.l.b16 %v1136
    %v4225 = vunpack.c.h.b16 %v1136
    %v4226 = vunpack.c.l.b16 %v1137
    %v4227 = vunpack.c.h.b16 %v1137
    %v4228 = vunpack.c.l.b16 %v1138
    %v4229 = vunpack.c.h.b16 %v1138
    %v4230 = vunpack.c.l.b16 %v1139
    %v4231 = vunpack.c.h.b16 %v1139
    %v4232 = vunpack.c.l.b16 %v1140
    %v4233 = vunpack.c.h.b16 %v1140
    %v4234 = vunpack.c.l.b16 %v1141
    %v4235 = vunpack.c.h.b16 %v1141
    %v4236 = vunpack.c.l.b16 %v1142
    %v4237 = vunpack.c.h.b16 %v1142
    %v4238 = vunpack.c.l.b16 %v1143
    %v4239 = vunpack.c.h.b16 %v1143
    %v4240 = vunpack.c.l.b16 %v1144
    %v4241 = vunpack.c.h.b16 %v1144
    %v4242 = vunpack.c.l.b16 %v1145
    %v4243 = vunpack.c.h.b16 %v1145
    %v4244 = vunpack.c.l.b16 %v1146
    %v4245 = vunpack.c.h.b16 %v1146
    %v4246 = vunpack.c.l.b16 %v1147
    %v4247 = vunpack.c.h.b16 %v1147
    %v4248 = vpack.c.b16 %v2216, %v2200
    %v4249 = vpack.c.b16 %v2217, %v2201
    %v4250 = vpack.c.b16 %v2218, %v2202
    %v4251 = vpack.c.b16 %v2219, %v2203
    %v4252 = vpack.c.b16 %v2220, %v2204
    %v4253 = vpack.c.b16 %v2221, %v2205
    %v4254 = vpack.c.b16 %v2222, %v2206
    %v4255 = vpack.c.b16 %v2223, %v2207
    %v4256 = vpack.c.b16 %v2224, %v2208
    %v4257 = vpack.c.b16 %v2225, %v2209
    %v4258 = vpack.c.b16 %v2226, %v2210
    %v4259 = vpack.c.b16 %v2227, %v2211
    %v4260 = vpack.c.b16 %v2228, %v2212
    %v4261 = vpack.c.b16 %v2229, %v2213
    %v4262 = vpack.c.b16 %v2230, %v2214
    %v4263 = vpack.c.b16 %v2231, %v2215
    %v4264 = vpack.c.b16 %v2248, %v2232
    %v4265 = vpack.c.b16 %v2249, %v2233
    %v4266 = vpack.c.b16 %v2250, %v2234
    %v4267 = vpack.c.b16 %v2251, %v2235
    %v4268 = vpack.c.b16 %v2252, %v2236
    %v4269 = vpack.c.b16 %v2253, %v2237
    %v4270 = vpack.c.b16 %v2254, %v2238
    %v4271 = vpack.c.b16 %v2255, %v2239
    %v4272 = vpack.c.b16 %v2256, %v2240
    %v4273 = vpack.c.b16 %v2257, %v2241
    %v4274 = vpack.c.b16 %v2258, %v2242
    %v4275 = vpack.c.b16 %v2259, %v2243
    %v4276 = vpack.c.b16 %v2260, %v2244
    %v4277 = vpack.c.b16 %v2261, %v2245
    %v4278 = vpack.c.b16 %v2262, %v2246
    %v4279 = vpack.c.b16 %v2263, %v2247
    %v4280 = vpack.c.b16 %v2280, %v2264
    %v4281 = vpack.c.b16 %v2281, %v2265
    %v4282 = vpack.c.b16 %v2282, %v2266
    %v4283 = vpack.c.b16 %v2283, %v2267
    %v4284 = vpack.c.b16 %v2284, %v2268
    %v4285 = vpack.c.b16 %v2285, %v2269
    %v4286 = vpack.c.b16 %v2286, %v2270
    %v4287 = vpack.c.b16 %v2287, %v2271
    %v4288 = vpack.c.b16 %v2288, %v2272
    %v4289 = vpack.c.b16 %v2289, %v2273
    %v4290 = vpack.c.b16 %v2290, %v2274
    %v4291 = vpack.c.b16 %v2291, %v2275
    %v4292 = vpack.c.b16 %v2292, %v2276
    %v4293 = vpack.c.b16 %v2293, %v2277
    %v4294 = vpack.c.b16 %v2294, %v2278
    %v4295 = vpack.c.b16 %v2295, %v2279
    %v4296 = vpack.c.b16 %v2312, %v2296
    %v4297 = vpack.c.b16 %v2313, %v2297
    %v4298 = vpack.c.b16 %v2314, %v2298
    %v4299 = vpack.c.b16 %v2315, %v2299
    %v4300 = vpack.c.b16 %v2316, %v2300
    %v4301 = vpack.c.b16 %v2317, %v2301
    %v4302 = vpack.c.b16 %v2318, %v2302
    %v4303 = vpack.c.b16 %v2319, %v2303
    %v4304 = vpack.c.b16 %v2320, %v2304
    %v4305 = vpack.c.b16 %v2321, %v2305
    %v4306 = vpack.c.b16 %v2322, %v2306
    %v4307 = vpack.c.b16 %v2323, %v2307
    %v4308 = vpack.c.b16 %v2324, %v2308
    %v4309 = vpack.c.b16 %v2325, %v2309
    %v4310 = vpack.c.b16 %v2326, %v2310
    %v4311 = vpack.c.b16 %v2327, %v2311
    %v4312 = vpack.c.b16 %v2344, %v2328
    %v4313 = vpack.c.b16 %v2345, %v2329
    %v4314 = vpack.c.b16 %v2346, %v2330
    %v4315 = vpack.c.b16 %v2347, %v2331
    %v4316 = vpack.c.b16 %v2348, %v2332
    %v4317 = vpack.c.b16 %v2349, %v2333
    %v4318 = vpack.c.b16 %v2350, %v2334
    %v4319 = vpack.c.b16 %v2351, %v2335
    %v4320 = vpack.c.b16 %v2352, %v2336
    %v4321 = vpack.c.b16 %v2353, %v2337
    %v4322 = vpack.c.b16 %v2354, %v2338
    %v4323 = vpack.c.b16 %v2355, %v2339
    %v4324 = vpack.c.b16 %v2356, %v2340
    %v4325 = vpack.c.b16 %v2357, %v2341
    %v4326 = vpack.c.b16 %v2358, %v2342
    %v4327 = vpack.c.b16 %v2359, %v2343
    %v4328 = vpack.c.b16 %v2376, %v2360
    %v4329 = vpack.c.b16 %v2377, %v2361
    %v4330 = vpack.c.b16 %v2378, %v2362
    %v4331 = vpack.c.b16 %v2379, %v2363
    %v4332 = vpack.c.b16 %v2380, %v2364
    %v4333 = vpack.c.b16 %v2381, %v2365
    %v4334 = vpack.c.b16 %v2382, %v2366
    %v4335 = vpack.c.b16 %v2383, %v2367
    %v4336 = vpack.c.b16 %v2384, %v2368
    %v4337 = vpack.c.b16 %v2385, %v2369
    %v4338 = vpack.c.b16 %v2386, %v2370
    %v4339 = vpack.c.b16 %v2387, %v2371
    %v4340 = vpack.c.b16 %v2388, %v2372
    %v4341 = vpack.c.b16 %v2389, %v2373
    %v4342 = vpack.c.b16 %v2390, %v2374
    %v4343 = vpack.c.b16 %v2391, %v2375
    %v4344 = vpack.c.b16 %v2408, %v2392
    %v4345 = vpack.c.b16 %v2409, %v2393
    %v4346 = vpack.c.b16 %v2410, %v2394
    %v4347 = vpack.c.b16 %v2411, %v2395
    %v4348 = vpack.c.b16 %v2412, %v2396
    %v4349 = vpack.c.b16 %v2413, %v2397
    %v4350 = vpack.c.b16 %v2414, %v2398
    %v4351 = vpack.c.b16 %v2415, %v2399
    %v4352 = vpack.c.b16 %v2416, %v2400
    %v4353 = vpack.c.b16 %v2417, %v2401
    %v4354 = vpack.c.b16 %v2418, %v2402
    %v4355 = vpack.c.b16 %v2419, %v2403
    %v4356 = vpack.c.b16 %v2420, %v2404
    %v4357 = vpack.c.b16 %v2421, %v2405
    %v4358 = vpack.c.b16 %v2422, %v2406
    %v4359 = vpack.c.b16 %v2423, %v2407
    %v4360 = vpack.c.b16 %v2440, %v2424
    %v4361 = vpack.c.b16 %v2441, %v2425
    %v4362 = vpack.c.b16 %v2442, %v2426
    %v4363 = vpack.c.b16 %v2443, %v2427
    %v4364 = vpack.c.b16 %v2444, %v2428
    %v4365 = vpack.c.b16 %v2445, %v2429
    %v4366 = vpack.c.b16 %v2446, %v2430
    %v4367 = vpack.c.b16 %v2447, %v2431
    %v4368 = vpack.c.b16 %v2448, %v2432
    %v4369 = vpack.c.b16 %v2449, %v2433
    %v4370 = vpack.c.b16 %v2450, %v2434
    %v4371 = vpack.c.b16 %v2451, %v2435
    %v4372 = vpack.c.b16 %v2452, %v2436
    %v4373 = vpack.c.b16 %v2453, %v2437
    %v4374 = vpack.c.b16 %v2454, %v2438
    %v4375 = vpack.c.b16 %v2455, %v2439
    %v4376 = vpack.c.b16 %v2472, %v2456
    %v4377 = vpack.c.b16 %v2473, %v2457
    %v4378 = vpack.c.b16 %v2474, %v2458
    %v4379 = vpack.c.b16 %v2475, %v2459
    %v4380 = vpack.c.b16 %v2476, %v2460
    %v4381 = vpack.c.b16 %v2477, %v2461
    %v4382 = vpack.c.b16 %v2478, %v2462
    %v4383 = vpack.c.b16 %v2479, %v2463
    %v4384 = vpack.c.b16 %v2480, %v2464
    %v4385 = vpack.c.b16 %v2481, %v2465
    %v4386 = vpack.c.b16 %v2482, %v2466
    %v4387 = vpack.c.b16 %v2483, %v2467
    %v4388 = vpack.c.b16 %v2484, %v2468
    %v4389 = vpack.c.b16 %v2485, %v2469
    %v4390 = vpack.c.b16 %v2486, %v2470
    %v4391 = vpack.c.b16 %v2487, %v2471
    %v4392 = vpack.c.b16 %v2504, %v2488
    %v4393 = vpack.c.b16 %v2505, %v2489
    %v4394 = vpack.c.b16 %v2506, %v2490
    %v4395 = vpack.c.b16 %v2507, %v2491
    %v4396 = vpack.c.b16 %v2508, %v2492
    %v4397 = vpack.c.b16 %v2509, %v2493
    %v4398 = vpack.c.b16 %v2510, %v2494
    %v4399 = vpack.c.b16 %v2511, %v2495
    %v4400 = vpack.c.b16 %v2512, %v2496
    %v4401 = vpack.c.b16 %v2513, %v2497
    %v4402 = vpack.c.b16 %v2514, %v2498
    %v4403 = vpack.c.b16 %v2515, %v2499
    %v4404 = vpack.c.b16 %v2516, %v2500
    %v4405 = vpack.c.b16 %v2517, %v2501
    %v4406 = vpack.c.b16 %v2518, %v2502
    %v4407 = vpack.c.b16 %v2519, %v2503
    %v4408 = vpack.c.b16 %v2536, %v2520
    %v4409 = vpack.c.b16 %v2537, %v2521
    %v4410 = vpack.c.b16 %v2538, %v2522
    %v4411 = vpack.c.b16 %v2539, %v2523
    %v4412 = vpack.c.b16 %v2540, %v2524
    %v4413 = vpack.c.b16 %v2541, %v2525
    %v4414 = vpack.c.b16 %v2542, %v2526
    %v4415 = vpack.c.b16 %v2543, %v2527
    %v4416 = vpack.c.b16 %v2544, %v2528
    %v4417 = vpack.c.b16 %v2545, %v2529
    %v4418 = vpack.c.b16 %v2546, %v2530
    %v4419 = vpack.c.b16 %v2547, %v2531
    %v4420 = vpack.c.b16 %v2548, %v2532
    %v4421 = vpack.c.b16 %v2549, %v2533
    %v4422 = vpack.c.b16 %v2550, %v2534
    %v4423 = vpack.c.b16 %v2551, %v2535
    %v4424 = vpack.c.b16 %v2568, %v2552
    %v4425 = vpack.c.b16 %v2569, %v2553
    %v4426 = vpack.c.b16 %v2570, %v2554
    %v4427 = vpack.c.b16 %v2571, %v2555
    %v4428 = vpack.c.b16 %v2572, %v2556
    %v4429 = vpack.c.b16 %v2573, %v2557
    %v4430 = vpack.c.b16 %v2574, %v2558
    %v4431 = vpack.c.b16 %v2575, %v2559
    %v4432 = vpack.c.b16 %v2576, %v2560
    %v4433 = vpack.c.b16 %v2577, %v2561
    %v4434 = vpack.c.b16 %v2578, %v2562
    %v4435 = vpack.c.b16 %v2579, %v2563
    %v4436 = vpack.c.b16 %v2580, %v2564
    %v4437 = vpack.c.b16 %v2581, %v2565
    %v4438 = vpack.c.b16 %v2582, %v2566
    %v4439 = vpack.c.b16 %v2583, %v2567
    %v4440 = vpack.c.b16 %v2600, %v2584
    %v4441 = vpack.c.b16 %v2601, %v2585
    %v4442 = vpack.c.b16 %v2602, %v2586
    %v4443 = vpack.c.b16 %v2603, %v2587
    %v4444 = vpack.c.b16 %v2604, %v2588
    %v4445 = vpack.c.b16 %v2605, %v2589
    %v4446 = vpack.c.b16 %v2606, %v2590
    %v4447 = vpack.c.b16 %v2607, %v2591
    %v4448 = vpack.c.b16 %v2608, %v2592
    %v4449 = vpack.c.b16 %v2609, %v2593
    %v4450 = vpack.c.b16 %v2610, %v2594
    %v4451 = vpack.c.b16 %v2611, %v2595
    %v4452 = vpack.c.b16 %v2612, %v2596
    %v4453 = vpack.c.b16 %v2613, %v2597
    %v4454 = vpack.c.b16 %v2614, %v2598
    %v4455 = vpack.c.b16 %v2615, %v2599
    %v4456 = vpack.c.b16 %v2632, %v2616
    %v4457 = vpack.c.b16 %v2633, %v2617
    %v4458 = vpack.c.b16 %v2634, %v2618
    %v4459 = vpack.c.b16 %v2635, %v2619
    %v4460 = vpack.c.b16 %v2636, %v2620
    %v4461 = vpack.c.b16 %v2637, %v2621
    %v4462 = vpack.c.b16 %v2638, %v2622
    %v4463 = vpack.c.b16 %v2639, %v2623
    %v4464 = vpack.c.b16 %v2640, %v2624
    %v4465 = vpack.c.b16 %v2641, %v2625
    %v4466 = vpack.c.b16 %v2642, %v2626
    %v4467 = vpack.c.b16 %v2643, %v2627
    %v4468 = vpack.c.b16 %v2644, %v2628
    %v4469 = vpack.c.b16 %v2645, %v2629
    %v4470 = vpack.c.b16 %v2646, %v2630
    %v4471 = vpack.c.b16 %v2647, %v2631
    %v4472 = vpack.c.b16 %v2664, %v2648
    %v4473 = vpack.c.b16 %v2665, %v2649
    %v4474 = vpack.c.b16 %v2666, %v2650
    %v4475 = vpack.c.b16 %v2667, %v2651
    %v4476 = vpack.c.b16 %v2668, %v2652
    %v4477 = vpack.c.b16 %v2669, %v2653
    %v4478 = vpack.c.b16 %v2670, %v2654
    %v4479 = vpack.c.b16 %v2671, %v2655
    %v4480 = vpack.c.b16 %v2672, %v2656
    %v4481 = vpack.c.b16 %v2673, %v2657
    %v4482 = vpack.c.b16 %v2674, %v2658
    %v4483 = vpack.c.b16 %v2675, %v2659
    %v4484 = vpack.c.b16 %v2676, %v2660
    %v4485 = vpack.c.b16 %v2677, %v2661
    %v4486 = vpack.c.b16 %v2678, %v2662
    %v4487 = vpack.c.b16 %v2679, %v2663
    %v4488 = vpack.c.b16 %v2696, %v2680
    %v4489 = vpack.c.b16 %v2697, %v2681
    %v4490 = vpack.c.b16 %v2698, %v2682
    %v4491 = vpack.c.b16 %v2699, %v2683
    %v4492 = vpack.c.b16 %v2700, %v2684
    %v4493 = vpack.c.b16 %v2701, %v2685
    %v4494 = vpack.c.b16 %v2702, %v2686
    %v4495 = vpack.c.b16 %v2703, %v2687
    %v4496 = vpack.c.b16 %v2704, %v2688
    %v4497 = vpack.c.b16 %v2705, %v2689
    %v4498 = vpack.c.b16 %v2706, %v2690
    %v4499 = vpack.c.b16 %v2707, %v2691
    %v4500 = vpack.c.b16 %v2708, %v2692
    %v4501 = vpack.c.b16 %v2709, %v2693
    %v4502 = vpack.c.b16 %v2710, %v2694
    %v4503 = vpack.c.b16 %v2711, %v2695
    %v4504 = vpack.c.b16 %v2728, %v2712
    %v4505 = vpack.c.b16 %v2729, %v2713
    %v4506 = vpack.c.b16 %v2730, %v2714
    %v4507 = vpack.c.b16 %v2731, %v2715
    %v4508 = vpack.c.b16 %v2732, %v2716
    %v4509 = vpack.c.b16 %v2733, %v2717
    %v4510 = vpack.c.b16 %v2734, %v2718
    %v4511 = vpack.c.b16 %v2735, %v2719
    %v4512 = vpack.c.b16 %v2736, %v2720
    %v4513 = vpack.c.b16 %v2737, %v2721
    %v4514 = vpack.c.b16 %v2738, %v2722
    %v4515 = vpack.c.b16 %v2739, %v2723
    %v4516 = vpack.c.b16 %v2740, %v2724
    %v4517 = vpack.c.b16 %v2741, %v2725
    %v4518 = vpack.c.b16 %v2742, %v2726
    %v4519 = vpack.c.b16 %v2743, %v2727
    %v4520 = vpack.c.b16 %v2760, %v2744
    %v4521 = vpack.c.b16 %v2761, %v2745
    %v4522 = vpack.c.b16 %v2762, %v2746
    %v4523 = vpack.c.b16 %v2763, %v2747
    %v4524 = vpack.c.b16 %v2764, %v2748
    %v4525 = vpack.c.b16 %v2765, %v2749
    %v4526 = vpack.c.b16 %v2766, %v2750
    %v4527 = vpack.c.b16 %v2767, %v2751
    %v4528 = vpack.c.b16 %v2768, %v2752
    %v4529 = vpack.c.b16 %v2769, %v2753
    %v4530 = vpack.c.b16 %v2770, %v2754
    %v4531 = vpack.c.b16 %v2771, %v2755
    %v4532 = vpack.c.b16 %v2772, %v2756
    %v4533 = vpack.c.b16 %v2773, %v2757
    %v4534 = vpack.c.b16 %v2774, %v2758
    %v4535 = vpack.c.b16 %v2775, %v2759
    %v4536 = vpack.c.b16 %v2792, %v2776
    %v4537 = vpack.c.b16 %v2793, %v2777
    %v4538 = vpack.c.b16 %v2794, %v2778
    %v4539 = vpack.c.b16 %v2795, %v2779
    %v4540 = vpack.c.b16 %v2796, %v2780
    %v4541 = vpack.c.b16 %v2797, %v2781
    %v4542 = vpack.c.b16 %v2798, %v2782
    %v4543 = vpack.c.b16 %v2799, %v2783
    %v4544 = vpack.c.b16 %v2800, %v2784
    %v4545 = vpack.c.b16 %v2801, %v2785
    %v4546 = vpack.c.b16 %v2802, %v2786
    %v4547 = vpack.c.b16 %v2803, %v2787
    %v4548 = vpack.c.b16 %v2804, %v2788
    %v4549 = vpack.c.b16 %v2805, %v2789
    %v4550 = vpack.c.b16 %v2806, %v2790
    %v4551 = vpack.c.b16 %v2807, %v2791
    %v4552 = vpack.c.b16 %v2824, %v2808
    %v4553 = vpack.c.b16 %v2825, %v2809
    %v4554 = vpack.c.b16 %v2826, %v2810
    %v4555 = vpack.c.b16 %v2827, %v2811
    %v4556 = vpack.c.b16 %v2828, %v2812
    %v4557 = vpack.c.b16 %v2829, %v2813
    %v4558 = vpack.c.b16 %v2830, %v2814
    %v4559 = vpack.c.b16 %v2831, %v2815
    %v4560 = vpack.c.b16 %v2832, %v2816
    %v4561 = vpack.c.b16 %v2833, %v2817
    %v4562 = vpack.c.b16 %v2834, %v2818
    %v4563 = vpack.c.b16 %v2835, %v2819
    %v4564 = vpack.c.b16 %v2836, %v2820
    %v4565 = vpack.c.b16 %v2837, %v2821
    %v4566 = vpack.c.b16 %v2838, %v2822
    %v4567 = vpack.c.b16 %v2839, %v2823
    %v4568 = vpack.c.b16 %v2856, %v2840
    %v4569 = vpack.c.b16 %v2857, %v2841
    %v4570 = vpack.c.b16 %v2858, %v2842
    %v4571 = vpack.c.b16 %v2859, %v2843
    %v4572 = vpack.c.b16 %v2860, %v2844
    %v4573 = vpack.c.b16 %v2861, %v2845
    %v4574 = vpack.c.b16 %v2862, %v2846
    %v4575 = vpack.c.b16 %v2863, %v2847
    %v4576 = vpack.c.b16 %v2864, %v2848
    %v4577 = vpack.c.b16 %v2865, %v2849
    %v4578 = vpack.c.b16 %v2866, %v2850
    %v4579 = vpack.c.b16 %v2867, %v2851
    %v4580 = vpack.c.b16 %v2868, %v2852
    %v4581 = vpack.c.b16 %v2869, %v2853
    %v4582 = vpack.c.b16 %v2870, %v2854
    %v4583 = vpack.c.b16 %v2871, %v2855
    %v4584 = vpack.c.b16 %v2888, %v2872
    %v4585 = vpack.c.b16 %v2889, %v2873
    %v4586 = vpack.c.b16 %v2890, %v2874
    %v4587 = vpack.c.b16 %v2891, %v2875
    %v4588 = vpack.c.b16 %v2892, %v2876
    %v4589 = vpack.c.b16 %v2893, %v2877
    %v4590 = vpack.c.b16 %v2894, %v2878
    %v4591 = vpack.c.b16 %v2895, %v2879
    %v4592 = vpack.c.b16 %v2896, %v2880
    %v4593 = vpack.c.b16 %v2897, %v2881
    %v4594 = vpack.c.b16 %v2898, %v2882
    %v4595 = vpack.c.b16 %v2899, %v2883
    %v4596 = vpack.c.b16 %v2900, %v2884
    %v4597 = vpack.c.b16 %v2901, %v2885
    %v4598 = vpack.c.b16 %v2902, %v2886
    %v4599 = vpack.c.b16 %v2903, %v2887
    %v4600 = vpack.c.b16 %v2920, %v2904
    %v4601 = vpack.c.b16 %v2921, %v2905
    %v4602 = vpack.c.b16 %v2922, %v2906
    %v4603 = vpack.c.b16 %v2923, %v2907
    %v4604 = vpack.c.b16 %v2924, %v2908
    %v4605 = vpack.c.b16 %v2925, %v2909
    %v4606 = vpack.c.b16 %v2926, %v2910
    %v4607 = vpack.c.b16 %v2927, %v2911
    %v4608 = vpack.c.b16 %v2928, %v2912
    %v4609 = vpack.c.b16 %v2929, %v2913
    %v4610 = vpack.c.b16 %v2930, %v2914
    %v4611 = vpack.c.b16 %v2931, %v2915
    %v4612 = vpack.c.b16 %v2932, %v2916
    %v4613 = vpack.c.b16 %v2933, %v2917
    %v4614 = vpack.c.b16 %v2934, %v2918
    %v4615 = vpack.c.b16 %v2935, %v2919
    %v4616 = vpack.c.b16 %v2952, %v2936
    %v4617 = vpack.c.b16 %v2953, %v2937
    %v4618 = vpack.c.b16 %v2954, %v2938
    %v4619 = vpack.c.b16 %v2955, %v2939
    %v4620 = vpack.c.b16 %v2956, %v2940
    %v4621 = vpack.c.b16 %v2957, %v2941
    %v4622 = vpack.c.b16 %v2958, %v2942
    %v4623 = vpack.c.b16 %v2959, %v2943
    %v4624 = vpack.c.b16 %v2960, %v2944
    %v4625 = vpack.c.b16 %v2961, %v2945
    %v4626 = vpack.c.b16 %v2962, %v2946
    %v4627 = vpack.c.b16 %v2963, %v2947
    %v4628 = vpack.c.b16 %v2964, %v2948
    %v4629 = vpack.c.b16 %v2965, %v2949
    %v4630 = vpack.c.b16 %v2966, %v2950
    %v4631 = vpack.c.b16 %v2967, %v2951
    %v4632 = vpack.c.b16 %v2984, %v2968
    %v4633 = vpack.c.b16 %v2985, %v2969
    %v4634 = vpack.c.b16 %v2986, %v2970
    %v4635 = vpack.c.b16 %v2987, %v2971
    %v4636 = vpack.c.b16 %v2988, %v2972
    %v4637 = vpack.c.b16 %v2989, %v2973
    %v4638 = vpack.c.b16 %v2990, %v2974
    %v4639 = vpack.c.b16 %v2991, %v2975
    %v4640 = vpack.c.b16 %v2992, %v2976
    %v4641 = vpack.c.b16 %v2993, %v2977
    %v4642 = vpack.c.b16 %v2994, %v2978
    %v4643 = vpack.c.b16 %v2995, %v2979
    %v4644 = vpack.c.b16 %v2996, %v2980
    %v4645 = vpack.c.b16 %v2997, %v2981
    %v4646 = vpack.c.b16 %v2998, %v2982
    %v4647 = vpack.c.b16 %v2999, %v2983
    %v4648 = vpack.c.b16 %v3016, %v3000
    %v4649 = vpack.c.b16 %v3017, %v3001
    %v4650 = vpack.c.b16 %v3018, %v3002
    %v4651 = vpack.c.b16 %v3019, %v3003
    %v4652 = vpack.c.b16 %v3020, %v3004
    %v4653 = vpack.c.b16 %v3021, %v3005
    %v4654 = vpack.c.b16 %v3022, %v3006
    %v4655 = vpack.c.b16 %v3023, %v3007
    %v4656 = vpack.c.b16 %v3024, %v3008
    %v4657 = vpack.c.b16 %v3025, %v3009
    %v4658 = vpack.c.b16 %v3026, %v3010
    %v4659 = vpack.c.b16 %v3027, %v3011
    %v4660 = vpack.c.b16 %v3028, %v3012
    %v4661 = vpack.c.b16 %v3029, %v3013
    %v4662 = vpack.c.b16 %v3030, %v3014
    %v4663 = vpack.c.b16 %v3031, %v3015
    %v4664 = vpack.c.b16 %v3048, %v3032
    %v4665 = vpack.c.b16 %v3049, %v3033
    %v4666 = vpack.c.b16 %v3050, %v3034
    %v4667 = vpack.c.b16 %v3051, %v3035
    %v4668 = vpack.c.b16 %v3052, %v3036
    %v4669 = vpack.c.b16 %v3053, %v3037
    %v4670 = vpack.c.b16 %v3054, %v3038
    %v4671 = vpack.c.b16 %v3055, %v3039
    %v4672 = vpack.c.b16 %v3056, %v3040
    %v4673 = vpack.c.b16 %v3057, %v3041
    %v4674 = vpack.c.b16 %v3058, %v3042
    %v4675 = vpack.c.b16 %v3059, %v3043
    %v4676 = vpack.c.b16 %v3060, %v3044
    %v4677 = vpack.c.b16 %v3061, %v3045
    %v4678 = vpack.c.b16 %v3062, %v3046
    %v4679 = vpack.c.b16 %v3063, %v3047
    %v4680 = vpack.c.b16 %v3080, %v3064
    %v4681 = vpack.c.b16 %v3081, %v3065
    %v4682 = vpack.c.b16 %v3082, %v3066
    %v4683 = vpack.c.b16 %v3083, %v3067
    %v4684 = vpack.c.b16 %v3084, %v3068
    %v4685 = vpack.c.b16 %v3085, %v3069
    %v4686 = vpack.c.b16 %v3086, %v3070
    %v4687 = vpack.c.b16 %v3087, %v3071
    %v4688 = vpack.c.b16 %v3088, %v3072
    %v4689 = vpack.c.b16 %v3089, %v3073
    %v4690 = vpack.c.b16 %v3090, %v3074
    %v4691 = vpack.c.b16 %v3091, %v3075
    %v4692 = vpack.c.b16 %v3092, %v3076
    %v4693 = vpack.c.b16 %v3093, %v3077
    %v4694 = vpack.c.b16 %v3094, %v3078
    %v4695 = vpack.c.b16 %v3095, %v3079
    %v4696 = vpack.c.b16 %v3112, %v3096
    %v4697 = vpack.c.b16 %v3113, %v3097
    %v4698 = vpack.c.b16 %v3114, %v3098
    %v4699 = vpack.c.b16 %v3115, %v3099
    %v4700 = vpack.c.b16 %v3116, %v3100
    %v4701 = vpack.c.b16 %v3117, %v3101
    %v4702 = vpack.c.b16 %v3118, %v3102
    %v4703 = vpack.c.b16 %v3119, %v3103
    %v4704 = vpack.c.b16 %v3120, %v3104
    %v4705 = vpack.c.b16 %v3121, %v3105
    %v4706 = vpack.c.b16 %v3122, %v3106
    %v4707 = vpack.c.b16 %v3123, %v3107
    %v4708 = vpack.c.b16 %v3124, %v3108
    %v4709 = vpack.c.b16 %v3125, %v3109
    %v4710 = vpack.c.b16 %v3126, %v3110
    %v4711 = vpack.c.b16 %v3127, %v3111
    %v4712 = vpack.c.b16 %v3144, %v3128
    %v4713 = vpack.c.b16 %v3145, %v3129
    %v4714 = vpack.c.b16 %v3146, %v3130
    %v4715 = vpack.c.b16 %v3147, %v3131
    %v4716 = vpack.c.b16 %v3148, %v3132
    %v4717 = vpack.c.b16 %v3149, %v3133
    %v4718 = vpack.c.b16 %v3150, %v3134
    %v4719 = vpack.c.b16 %v3151, %v3135
    %v4720 = vpack.c.b16 %v3152, %v3136
    %v4721 = vpack.c.b16 %v3153, %v3137
    %v4722 = vpack.c.b16 %v3154, %v3138
    %v4723 = vpack.c.b16 %v3155, %v3139
    %v4724 = vpack.c.b16 %v3156, %v3140
    %v4725 = vpack.c.b16 %v3157, %v3141
    %v4726 = vpack.c.b16 %v3158, %v3142
    %v4727 = vpack.c.b16 %v3159, %v3143
    %v4728 = vpack.c.b16 %v3176, %v3160
    %v4729 = vpack.c.b16 %v3177, %v3161
    %v4730 = vpack.c.b16 %v3178, %v3162
    %v4731 = vpack.c.b16 %v3179, %v3163
    %v4732 = vpack.c.b16 %v3180, %v3164
    %v4733 = vpack.c.b16 %v3181, %v3165
    %v4734 = vpack.c.b16 %v3182, %v3166
    %v4735 = vpack.c.b16 %v3183, %v3167
    %v4736 = vpack.c.b16 %v3184, %v3168
    %v4737 = vpack.c.b16 %v3185, %v3169
    %v4738 = vpack.c.b16 %v3186, %v3170
    %v4739 = vpack.c.b16 %v3187, %v3171
    %v4740 = vpack.c.b16 %v3188, %v3172
    %v4741 = vpack.c.b16 %v3189, %v3173
    %v4742 = vpack.c.b16 %v3190, %v3174
    %v4743 = vpack.c.b16 %v3191, %v3175
    %v4744 = vpack.c.b16 %v3208, %v3192
    %v4745 = vpack.c.b16 %v3209, %v3193
    %v4746 = vpack.c.b16 %v3210, %v3194
    %v4747 = vpack.c.b16 %v3211, %v3195
    %v4748 = vpack.c.b16 %v3212, %v3196
    %v4749 = vpack.c.b16 %v3213, %v3197
    %v4750 = vpack.c.b16 %v3214, %v3198
    %v4751 = vpack.c.b16 %v3215, %v3199
    %v4752 = vpack.c.b16 %v3216, %v3200
    %v4753 = vpack.c.b16 %v3217, %v3201
    %v4754 = vpack.c.b16 %v3218, %v3202
    %v4755 = vpack.c.b16 %v3219, %v3203
    %v4756 = vpack.c.b16 %v3220, %v3204
    %v4757 = vpack.c.b16 %v3221, %v3205
    %v4758 = vpack.c.b16 %v3222, %v3206
    %v4759 = vpack.c.b16 %v3223, %v3207
    %v4760 = vpack.c.b16 %v3240, %v3224
    %v4761 = vpack.c.b16 %v3241, %v3225
    %v4762 = vpack.c.b16 %v3242, %v3226
    %v4763 = vpack.c.b16 %v3243, %v3227
    %v4764 = vpack.c.b16 %v3244, %v3228
    %v4765 = vpack.c.b16 %v3245, %v3229
    %v4766 = vpack.c.b16 %v3246, %v3230
    %v4767 = vpack.c.b16 %v3247, %v3231
    %v4768 = vpack.c.b16 %v3248, %v3232
    %v4769 = vpack.c.b16 %v3249, %v3233
    %v4770 = vpack.c.b16 %v3250, %v3234
    %v4771 = vpack.c.b16 %v3251, %v3235
    %v4772 = vpack.c.b16 %v3252, %v3236
    %v4773 = vpack.c.b16 %v3253, %v3237
    %v4774 = vpack.c.b16 %v3254, %v3238
    %v4775 = vpack.c.b16 %v3255, %v3239
    %v4776 = vpack.c.b16 %v3272, %v3256
    %v4777 = vpack.c.b16 %v3273, %v3257
    %v4778 = vpack.c.b16 %v3274, %v3258
    %v4779 = vpack.c.b16 %v3275, %v3259
    %v4780 = vpack.c.b16 %v3276, %v3260
    %v4781 = vpack.c.b16 %v3277, %v3261
    %v4782 = vpack.c.b16 %v3278, %v3262
    %v4783 = vpack.c.b16 %v3279, %v3263
    %v4784 = vpack.c.b16 %v3280, %v3264
    %v4785 = vpack.c.b16 %v3281, %v3265
    %v4786 = vpack.c.b16 %v3282, %v3266
    %v4787 = vpack.c.b16 %v3283, %v3267
    %v4788 = vpack.c.b16 %v3284, %v3268
    %v4789 = vpack.c.b16 %v3285, %v3269
    %v4790 = vpack.c.b16 %v3286, %v3270
    %v4791 = vpack.c.b16 %v3287, %v3271
    %v4792 = vpack.c.b16 %v3304, %v3288
    %v4793 = vpack.c.b16 %v3305, %v3289
    %v4794 = vpack.c.b16 %v3306, %v3290
    %v4795 = vpack.c.b16 %v3307, %v3291
    %v4796 = vpack.c.b16 %v3308, %v3292
    %v4797 = vpack.c.b16 %v3309, %v3293
    %v4798 = vpack.c.b16 %v3310, %v3294
    %v4799 = vpack.c.b16 %v3311, %v3295
    %v4800 = vpack.c.b16 %v3312, %v3296
    %v4801 = vpack.c.b16 %v3313, %v3297
    %v4802 = vpack.c.b16 %v3314, %v3298
    %v4803 = vpack.c.b16 %v3315, %v3299
    %v4804 = vpack.c.b16 %v3316, %v3300
    %v4805 = vpack.c.b16 %v3317, %v3301
    %v4806 = vpack.c.b16 %v3318, %v3302
    %v4807 = vpack.c.b16 %v3319, %v3303
    %v4808 = vpack.c.b16 %v3336, %v3320
    %v4809 = vpack.c.b16 %v3337, %v3321
    %v4810 = vpack.c.b16 %v3338, %v3322
    %v4811 = vpack.c.b16 %v3339, %v3323
    %v4812 = vpack.c.b16 %v3340, %v3324
    %v4813 = vpack.c.b16 %v3341, %v3325
    %v4814 = vpack.c.b16 %v3342, %v3326
    %v4815 = vpack.c.b16 %v3343, %v3327
    %v4816 = vpack.c.b16 %v3344, %v3328
    %v4817 = vpack.c.b16 %v3345, %v3329
    %v4818 = vpack.c.b16 %v3346, %v3330
    %v4819 = vpack.c.b16 %v3347, %v3331
    %v4820 = vpack.c.b16 %v3348, %v3332
    %v4821 = vpack.c.b16 %v3349, %v3333
    %v4822 = vpack.c.b16 %v3350, %v3334
    %v4823 = vpack.c.b16 %v3351, %v3335
    %v4824 = vpack.c.b16 %v3368, %v3352
    %v4825 = vpack.c.b16 %v3369, %v3353
    %v4826 = vpack.c.b16 %v3370, %v3354
    %v4827 = vpack.c.b16 %v3371, %v3355
    %v4828 = vpack.c.b16 %v3372, %v3356
    %v4829 = vpack.c.b16 %v3373, %v3357
    %v4830 = vpack.c.b16 %v3374, %v3358
    %v4831 = vpack.c.b16 %v3375, %v3359
    %v4832 = vpack.c.b16 %v3376, %v3360
    %v4833 = vpack.c.b16 %v3377, %v3361
    %v4834 = vpack.c.b16 %v3378, %v3362
    %v4835 = vpack.c.b16 %v3379, %v3363
    %v4836 = vpack.c.b16 %v3380, %v3364
    %v4837 = vpack.c.b16 %v3381, %v3365
    %v4838 = vpack.c.b16 %v3382, %v3366
    %v4839 = vpack.c.b16 %v3383, %v3367
    %v4840 = vpack.c.b16 %v3400, %v3384
    %v4841 = vpack.c.b16 %v3401, %v3385
    %v4842 = vpack.c.b16 %v3402, %v3386
    %v4843 = vpack.c.b16 %v3403, %v3387
    %v4844 = vpack.c.b16 %v3404, %v3388
    %v4845 = vpack.c.b16 %v3405, %v3389
    %v4846 = vpack.c.b16 %v3406, %v3390
    %v4847 = vpack.c.b16 %v3407, %v3391
    %v4848 = vpack.c.b16 %v3408, %v3392
    %v4849 = vpack.c.b16 %v3409, %v3393
    %v4850 = vpack.c.b16 %v3410, %v3394
    %v4851 = vpack.c.b16 %v3411, %v3395
    %v4852 = vpack.c.b16 %v3412, %v3396
    %v4853 = vpack.c.b16 %v3413, %v3397
    %v4854 = vpack.c.b16 %v3414, %v3398
    %v4855 = vpack.c.b16 %v3415, %v3399
    %v4856 = vpack.c.b16 %v3432, %v3416
    %v4857 = vpack.c.b16 %v3433, %v3417
    %v4858 = vpack.c.b16 %v3434, %v3418
    %v4859 = vpack.c.b16 %v3435, %v3419
    %v4860 = vpack.c.b16 %v3436, %v3420
    %v4861 = vpack.c.b16 %v3437, %v3421
    %v4862 = vpack.c.b16 %v3438, %v3422
    %v4863 = vpack.c.b16 %v3439, %v3423
    %v4864 = vpack.c.b16 %v3440, %v3424
    %v4865 = vpack.c.b16 %v3441, %v3425
    %v4866 = vpack.c.b16 %v3442, %v3426
    %v4867 = vpack.c.b16 %v3443, %v3427
    %v4868 = vpack.c.b16 %v3444, %v3428
    %v4869 = vpack.c.b16 %v3445, %v3429
    %v4870 = vpack.c.b16 %v3446, %v3430
    %v4871 = vpack.c.b16 %v3447, %v3431
    %v4872 = vpack.c.b16 %v3464, %v3448
    %v4873 = vpack.c.b16 %v3465, %v3449
    %v4874 = vpack.c.b16 %v3466, %v3450
    %v4875 = vpack.c.b16 %v3467, %v3451
    %v4876 = vpack.c.b16 %v3468, %v3452
    %v4877 = vpack.c.b16 %v3469, %v3453
    %v4878 = vpack.c.b16 %v3470, %v3454
    %v4879 = vpack.c.b16 %v3471, %v3455
    %v4880 = vpack.c.b16 %v3472, %v3456
    %v4881 = vpack.c.b16 %v3473, %v3457
    %v4882 = vpack.c.b16 %v3474, %v3458
    %v4883 = vpack.c.b16 %v3475, %v3459
    %v4884 = vpack.c.b16 %v3476, %v3460
    %v4885 = vpack.c.b16 %v3477, %v3461
    %v4886 = vpack.c.b16 %v3478, %v3462
    %v4887 = vpack.c.b16 %v3479, %v3463
    %v4888 = vpack.c.b16 %v3496, %v3480
    %v4889 = vpack.c.b16 %v3497, %v3481
    %v4890 = vpack.c.b16 %v3498, %v3482
    %v4891 = vpack.c.b16 %v3499, %v3483
    %v4892 = vpack.c.b16 %v3500, %v3484
    %v4893 = vpack.c.b16 %v3501, %v3485
    %v4894 = vpack.c.b16 %v3502, %v3486
    %v4895 = vpack.c.b16 %v3503, %v3487
    %v4896 = vpack.c.b16 %v3504, %v3488
    %v4897 = vpack.c.b16 %v3505, %v3489
    %v4898 = vpack.c.b16 %v3506, %v3490
    %v4899 = vpack.c.b16 %v3507, %v3491
    %v4900 = vpack.c.b16 %v3508, %v3492
    %v4901 = vpack.c.b16 %v3509, %v3493
    %v4902 = vpack.c.b16 %v3510, %v3494
    %v4903 = vpack.c.b16 %v3511, %v3495
    %v4904 = vpack.c.b16 %v3528, %v3512
    %v4905 = vpack.c.b16 %v3529, %v3513
    %v4906 = vpack.c.b16 %v3530, %v3514
    %v4907 = vpack.c.b16 %v3531, %v3515
    %v4908 = vpack.c.b16 %v3532, %v3516
    %v4909 = vpack.c.b16 %v3533, %v3517
    %v4910 = vpack.c.b16 %v3534, %v3518
    %v4911 = vpack.c.b16 %v3535, %v3519
    %v4912 = vpack.c.b16 %v3536, %v3520
    %v4913 = vpack.c.b16 %v3537, %v3521
    %v4914 = vpack.c.b16 %v3538, %v3522
    %v4915 = vpack.c.b16 %v3539, %v3523
    %v4916 = vpack.c.b16 %v3540, %v3524
    %v4917 = vpack.c.b16 %v3541, %v3525
    %v4918 = vpack.c.b16 %v3542, %v3526
    %v4919 = vpack.c.b16 %v3543, %v3527
    %v4920 = vpack.c.b16 %v3560, %v3544
    %v4921 = vpack.c.b16 %v3561, %v3545
    %v4922 = vpack.c.b16 %v3562, %v3546
    %v4923 = vpack.c.b16 %v3563, %v3547
    %v4924 = vpack.c.b16 %v3564, %v3548
    %v4925 = vpack.c.b16 %v3565, %v3549
    %v4926 = vpack.c.b16 %v3566, %v3550
    %v4927 = vpack.c.b16 %v3567, %v3551
    %v4928 = vpack.c.b16 %v3568, %v3552
    %v4929 = vpack.c.b16 %v3569, %v3553
    %v4930 = vpack.c.b16 %v3570, %v3554
    %v4931 = vpack.c.b16 %v3571, %v3555
    %v4932 = vpack.c.b16 %v3572, %v3556
    %v4933 = vpack.c.b16 %v3573, %v3557
    %v4934 = vpack.c.b16 %v3574, %v3558
    %v4935 = vpack.c.b16 %v3575, %v3559
    %v4936 = vpack.c.b16 %v3592, %v3576
    %v4937 = vpack.c.b16 %v3593, %v3577
    %v4938 = vpack.c.b16 %v3594, %v3578
    %v4939 = vpack.c.b16 %v3595, %v3579
    %v4940 = vpack.c.b16 %v3596, %v3580
    %v4941 = vpack.c.b16 %v3597, %v3581
    %v4942 = vpack.c.b16 %v3598, %v3582
    %v4943 = vpack.c.b16 %v3599, %v3583
    %v4944 = vpack.c.b16 %v3600, %v3584
    %v4945 = vpack.c.b16 %v3601, %v3585
    %v4946 = vpack.c.b16 %v3602, %v3586
    %v4947 = vpack.c.b16 %v3603, %v3587
    %v4948 = vpack.c.b16 %v3604, %v3588
    %v4949 = vpack.c.b16 %v3605, %v3589
    %v4950 = vpack.c.b16 %v3606, %v3590
    %v4951 = vpack.c.b16 %v3607, %v3591
    %v4952 = vpack.c.b16 %v3624, %v3608
    %v4953 = vpack.c.b16 %v3625, %v3609
    %v4954 = vpack.c.b16 %v3626, %v3610
    %v4955 = vpack.c.b16 %v3627, %v3611
    %v4956 = vpack.c.b16 %v3628, %v3612
    %v4957 = vpack.c.b16 %v3629, %v3613
    %v4958 = vpack.c.b16 %v3630, %v3614
    %v4959 = vpack.c.b16 %v3631, %v3615
    %v4960 = vpack.c.b16 %v3632, %v3616
    %v4961 = vpack.c.b16 %v3633, %v3617
    %v4962 = vpack.c.b16 %v3634, %v3618
    %v4963 = vpack.c.b16 %v3635, %v3619
    %v4964 = vpack.c.b16 %v3636, %v3620
    %v4965 = vpack.c.b16 %v3637, %v3621
    %v4966 = vpack.c.b16 %v3638, %v3622
    %v4967 = vpack.c.b16 %v3639, %v3623
    %v4968 = vpack.c.b16 %v3656, %v3640
    %v4969 = vpack.c.b16 %v3657, %v3641
    %v4970 = vpack.c.b16 %v3658, %v3642
    %v4971 = vpack.c.b16 %v3659, %v3643
    %v4972 = vpack.c.b16 %v3660, %v3644
    %v4973 = vpack.c.b16 %v3661, %v3645
    %v4974 = vpack.c.b16 %v3662, %v3646
    %v4975 = vpack.c.b16 %v3663, %v3647
    %v4976 = vpack.c.b16 %v3664, %v3648
    %v4977 = vpack.c.b16 %v3665, %v3649
    %v4978 = vpack.c.b16 %v3666, %v3650
    %v4979 = vpack.c.b16 %v3667, %v3651
    %v4980 = vpack.c.b16 %v3668, %v3652
    %v4981 = vpack.c.b16 %v3669, %v3653
    %v4982 = vpack.c.b16 %v3670, %v3654
    %v4983 = vpack.c.b16 %v3671, %v3655
    %v4984 = vpack.c.b16 %v3688, %v3672
    %v4985 = vpack.c.b16 %v3689, %v3673
    %v4986 = vpack.c.b16 %v3690, %v3674
    %v4987 = vpack.c.b16 %v3691, %v3675
    %v4988 = vpack.c.b16 %v3692, %v3676
    %v4989 = vpack.c.b16 %v3693, %v3677
    %v4990 = vpack.c.b16 %v3694, %v3678
    %v4991 = vpack.c.b16 %v3695, %v3679
    %v4992 = vpack.c.b16 %v3696, %v3680
    %v4993 = vpack.c.b16 %v3697, %v3681
    %v4994 = vpack.c.b16 %v3698, %v3682
    %v4995 = vpack.c.b16 %v3699, %v3683
    %v4996 = vpack.c.b16 %v3700, %v3684
    %v4997 = vpack.c.b16 %v3701, %v3685
    %v4998 = vpack.c.b16 %v3702, %v3686
    %v4999 = vpack.c.b16 %v3703, %v3687
    %v5000 = vpack.c.b16 %v3720, %v3704
    %v5001 = vpack.c.b16 %v3721, %v3705
    %v5002 = vpack.c.b16 %v3722, %v3706
    %v5003 = vpack.c.b16 %v3723, %v3707
    %v5004 = vpack.c.b16 %v3724, %v3708
    %v5005 = vpack.c.b16 %v3725, %v3709
    %v5006 = vpack.c.b16 %v3726, %v3710
    %v5007 = vpack.c.b16 %v3727, %v3711
    %v5008 = vpack.c.b16 %v3728, %v3712
    %v5009 = vpack.c.b16 %v3729, %v3713
    %v5010 = vpack.c.b16 %v3730, %v3714
    %v5011 = vpack.c.b16 %v3731, %v3715
    %v5012 = vpack.c.b16 %v3732, %v3716
    %v5013 = vpack.c.b16 %v3733, %v3717
    %v5014 = vpack.c.b16 %v3734, %v3718
    %v5015 = vpack.c.b16 %v3735, %v3719
    %v5016 = vpack.c.b16 %v3752, %v3736
    %v5017 = vpack.c.b16 %v3753, %v3737
    %v5018 = vpack.c.b16 %v3754, %v3738
    %v5019 = vpack.c.b16 %v3755, %v3739
    %v5020 = vpack.c.b16 %v3756, %v3740
    %v5021 = vpack.c.b16 %v3757, %v3741
    %v5022 = vpack.c.b16 %v3758, %v3742
    %v5023 = vpack.c.b16 %v3759, %v3743
    %v5024 = vpack.c.b16 %v3760, %v3744
    %v5025 = vpack.c.b16 %v3761, %v3745
    %v5026 = vpack.c.b16 %v3762, %v3746
    %v5027 = vpack.c.b16 %v3763, %v3747
    %v5028 = vpack.c.b16 %v3764, %v3748
    %v5029 = vpack.c.b16 %v3765, %v3749
    %v5030 = vpack.c.b16 %v3766, %v3750
    %v5031 = vpack.c.b16 %v3767, %v3751
    %v5032 = vpack.c.b16 %v3784, %v3768
    %v5033 = vpack.c.b16 %v3785, %v3769
    %v5034 = vpack.c.b16 %v3786, %v3770
    %v5035 = vpack.c.b16 %v3787, %v3771
    %v5036 = vpack.c.b16 %v3788, %v3772
    %v5037 = vpack.c.b16 %v3789, %v3773
    %v5038 = vpack.c.b16 %v3790, %v3774
    %v5039 = vpack.c.b16 %v3791, %v3775
    %v5040 = vpack.c.b16 %v3792, %v3776
    %v5041 = vpack.c.b16 %v3793, %v3777
    %v5042 = vpack.c.b16 %v3794, %v3778
    %v5043 = vpack.c.b16 %v3795, %v3779
    %v5044 = vpack.c.b16 %v3796, %v3780
    %v5045 = vpack.c.b16 %v3797, %v3781
    %v5046 = vpack.c.b16 %v3798, %v3782
    %v5047 = vpack.c.b16 %v3799, %v3783
    %v5048 = vpack.c.b16 %v3816, %v3800
    %v5049 = vpack.c.b16 %v3817, %v3801
    %v5050 = vpack.c.b16 %v3818, %v3802
    %v5051 = vpack.c.b16 %v3819, %v3803
    %v5052 = vpack.c.b16 %v3820, %v3804
    %v5053 = vpack.c.b16 %v3821, %v3805
    %v5054 = vpack.c.b16 %v3822, %v3806
    %v5055 = vpack.c.b16 %v3823, %v3807
    %v5056 = vpack.c.b16 %v3824, %v3808
    %v5057 = vpack.c.b16 %v3825, %v3809
    %v5058 = vpack.c.b16 %v3826, %v3810
    %v5059 = vpack.c.b16 %v3827, %v3811
    %v5060 = vpack.c.b16 %v3828, %v3812
    %v5061 = vpack.c.b16 %v3829, %v3813
    %v5062 = vpack.c.b16 %v3830, %v3814
    %v5063 = vpack.c.b16 %v3831, %v3815
    %v5064 = vpack.c.b16 %v3848, %v3832
    %v5065 = vpack.c.b16 %v3849, %v3833
    %v5066 = vpack.c.b16 %v3850, %v3834
    %v5067 = vpack.c.b16 %v3851, %v3835
    %v5068 = vpack.c.b16 %v3852, %v3836
    %v5069 = vpack.c.b16 %v3853, %v3837
    %v5070 = vpack.c.b16 %v3854, %v3838
    %v5071 = vpack.c.b16 %v3855, %v3839
    %v5072 = vpack.c.b16 %v3856, %v3840
    %v5073 = vpack.c.b16 %v3857, %v3841
    %v5074 = vpack.c.b16 %v3858, %v3842
    %v5075 = vpack.c.b16 %v3859, %v3843
    %v5076 = vpack.c.b16 %v3860, %v3844
    %v5077 = vpack.c.b16 %v3861, %v3845
    %v5078 = vpack.c.b16 %v3862, %v3846
    %v5079 = vpack.c.b16 %v3863, %v3847
    %v5080 = vpack.c.b16 %v3880, %v3864
    %v5081 = vpack.c.b16 %v3881, %v3865
    %v5082 = vpack.c.b16 %v3882, %v3866
    %v5083 = vpack.c.b16 %v3883, %v3867
    %v5084 = vpack.c.b16 %v3884, %v3868
    %v5085 = vpack.c.b16 %v3885, %v3869
    %v5086 = vpack.c.b16 %v3886, %v3870
    %v5087 = vpack.c.b16 %v3887, %v3871
    %v5088 = vpack.c.b16 %v3888, %v3872
    %v5089 = vpack.c.b16 %v3889, %v3873
    %v5090 = vpack.c.b16 %v3890, %v3874
    %v5091 = vpack.c.b16 %v3891, %v3875
    %v5092 = vpack.c.b16 %v3892, %v3876
    %v5093 = vpack.c.b16 %v3893, %v3877
    %v5094 = vpack.c.b16 %v3894, %v3878
    %v5095 = vpack.c.b16 %v3895, %v3879
    %v5096 = vpack.c.b16 %v3912, %v3896
    %v5097 = vpack.c.b16 %v3913, %v3897
    %v5098 = vpack.c.b16 %v3914, %v3898
    %v5099 = vpack.c.b16 %v3915, %v3899
    %v5100 = vpack.c.b16 %v3916, %v3900
    %v5101 = vpack.c.b16 %v3917, %v3901
    %v5102 = vpack.c.b16 %v3918, %v3902
    %v5103 = vpack.c.b16 %v3919, %v3903
    %v5104 = vpack.c.b16 %v3920, %v3904
    %v5105 = vpack.c.b16 %v3921, %v3905
    %v5106 = vpack.c.b16 %v3922, %v3906
    %v5107 = vpack.c.b16 %v3923, %v3907
    %v5108 = vpack.c.b16 %v3924, %v3908
    %v5109 = vpack.c.b16 %v3925, %v3909
    %v5110 = vpack.c.b16 %v3926, %v3910
    %v5111 = vpack.c.b16 %v3927, %v3911
    %v5112 = vpack.c.b16 %v3944, %v3928
    %v5113 = vpack.c.b16 %v3945, %v3929
    %v5114 = vpack.c.b16 %v3946, %v3930
    %v5115 = vpack.c.b16 %v3947, %v3931
    %v5116 = vpack.c.b16 %v3948, %v3932
    %v5117 = vpack.c.b16 %v3949, %v3933
    %v5118 = vpack.c.b16 %v3950, %v3934
    %v5119 = vpack.c.b16 %v3951, %v3935
    %v5120 = vpack.c.b16 %v3952, %v3936
    %v5121 = vpack.c.b16 %v3953, %v3937
    %v5122 = vpack.c.b16 %v3954, %v3938
    %v5123 = vpack.c.b16 %v3955, %v3939
    %v5124 = vpack.c.b16 %v3956, %v3940
    %v5125 = vpack.c.b16 %v3957, %v3941
    %v5126 = vpack.c.b16 %v3958, %v3942
    %v5127 = vpack.c.b16 %v3959, %v3943
    %v5128 = vpack.c.b16 %v3976, %v3960
    %v5129 = vpack.c.b16 %v3977, %v3961
    %v5130 = vpack.c.b16 %v3978, %v3962
    %v5131 = vpack.c.b16 %v3979, %v3963
    %v5132 = vpack.c.b16 %v3980, %v3964
    %v5133 = vpack.c.b16 %v3981, %v3965
    %v5134 = vpack.c.b16 %v3982, %v3966
    %v5135 = vpack.c.b16 %v3983, %v3967
    %v5136 = vpack.c.b16 %v3984, %v3968
    %v5137 = vpack.c.b16 %v3985, %v3969
    %v5138 = vpack.c.b16 %v3986, %v3970
    %v5139 = vpack.c.b16 %v3987, %v3971
    %v5140 = vpack.c.b16 %v3988, %v3972
    %v5141 = vpack.c.b16 %v3989, %v3973
    %v5142 = vpack.c.b16 %v3990, %v3974
    %v5143 = vpack.c.b16 %v3991, %v3975
    %v5144 = vpack.c.b16 %v4008, %v3992
    %v5145 = vpack.c.b16 %v4009, %v3993
    %v5146 = vpack.c.b16 %v4010, %v3994
    %v5147 = vpack.c.b16 %v4011, %v3995
    %v5148 = vpack.c.b16 %v4012, %v3996
    %v5149 = vpack.c.b16 %v4013, %v3997
    %v5150 = vpack.c.b16 %v4014, %v3998
    %v5151 = vpack.c.b16 %v4015, %v3999
    %v5152 = vpack.c.b16 %v4016, %v4000
    %v5153 = vpack.c.b16 %v4017, %v4001
    %v5154 = vpack.c.b16 %v4018, %v4002
    %v5155 = vpack.c.b16 %v4019, %v4003
    %v5156 = vpack.c.b16 %v4020, %v4004
    %v5157 = vpack.c.b16 %v4021, %v4005
    %v5158 = vpack.c.b16 %v4022, %v4006
    %v5159 = vpack.c.b16 %v4023, %v4007
    %v5160 = vpack.c.b16 %v4040, %v4024
    %v5161 = vpack.c.b16 %v4041, %v4025
    %v5162 = vpack.c.b16 %v4042, %v4026
    %v5163 = vpack.c.b16 %v4043, %v4027
    %v5164 = vpack.c.b16 %v4044, %v4028
    %v5165 = vpack.c.b16 %v4045, %v4029
    %v5166 = vpack.c.b16 %v4046, %v4030
    %v5167 = vpack.c.b16 %v4047, %v4031
    %v5168 = vpack.c.b16 %v4048, %v4032
    %v5169 = vpack.c.b16 %v4049, %v4033
    %v5170 = vpack.c.b16 %v4050, %v4034
    %v5171 = vpack.c.b16 %v4051, %v4035
    %v5172 = vpack.c.b16 %v4052, %v4036
    %v5173 = vpack.c.b16 %v4053, %v4037
    %v5174 = vpack.c.b16 %v4054, %v4038
    %v5175 = vpack.c.b16 %v4055, %v4039
    %v5176 = vpack.c.b16 %v4072, %v4056
    %v5177 = vpack.c.b16 %v4073, %v4057
    %v5178 = vpack.c.b16 %v4074, %v4058
    %v5179 = vpack.c.b16 %v4075, %v4059
    %v5180 = vpack.c.b16 %v4076, %v4060
    %v5181 = vpack.c.b16 %v4077, %v4061
    %v5182 = vpack.c.b16 %v4078, %v4062
    %v5183 = vpack.c.b16 %v4079, %v4063
    %v5184 = vpack.c.b16 %v4080, %v4064
    %v5185 = vpack.c.b16 %v4081, %v4065
    %v5186 = vpack.c.b16 %v4082, %v4066
    %v5187 = vpack.c.b16 %v4083, %v4067
    %v5188 = vpack.c.b16 %v4084, %v4068
    %v5189 = vpack.c.b16 %v4085, %v4069
    %v5190 = vpack.c.b16 %v4086, %v4070
    %v5191 = vpack.c.b16 %v4087, %v4071
    %v5192 = vpack.c.b16 %v4104, %v4088
    %v5193 = vpack.c.b16 %v4105, %v4089
    %v5194 = vpack.c.b16 %v4106, %v4090
    %v5195 = vpack.c.b16 %v4107, %v4091
    %v5196 = vpack.c.b16 %v4108, %v4092
    %v5197 = vpack.c.b16 %v4109, %v4093
    %v5198 = vpack.c.b16 %v4110, %v4094
    %v5199 = vpack.c.b16 %v4111, %v4095
    %v5200 = vpack.c.b16 %v4112, %v4096
    %v5201 = vpack.c.b16 %v4113, %v4097
    %v5202 = vpack.c.b16 %v4114, %v4098
    %v5203 = vpack.c.b16 %v4115, %v4099
    %v5204 = vpack.c.b16 %v4116, %v4100
    %v5205 = vpack.c.b16 %v4117, %v4101
    %v5206 = vpack.c.b16 %v4118, %v4102
    %v5207 = vpack.c.b16 %v4119, %v4103
    %v5208 = vpack.c.b16 %v4136, %v4120
    %v5209 = vpack.c.b16 %v4137, %v4121
    %v5210 = vpack.c.b16 %v4138, %v4122
    %v5211 = vpack.c.b16 %v4139, %v4123
    %v5212 = vpack.c.b16 %v4140, %v4124
    %v5213 = vpack.c.b16 %v4141, %v4125
    %v5214 = vpack.c.b16 %v4142, %v4126
    %v5215 = vpack.c.b16 %v4143, %v4127
    %v5216 = vpack.c.b16 %v4144, %v4128
    %v5217 = vpack.c.b16 %v4145, %v4129
    %v5218 = vpack.c.b16 %v4146, %v4130
    %v5219 = vpack.c.b16 %v4147, %v4131
    %v5220 = vpack.c.b16 %v4148, %v4132
    %v5221 = vpack.c.b16 %v4149, %v4133
    %v5222 = vpack.c.b16 %v4150, %v4134
    %v5223 = vpack.c.b16 %v4151, %v4135
    %v5224 = vpack.c.b16 %v4168, %v4152
    %v5225 = vpack.c.b16 %v4169, %v4153
    %v5226 = vpack.c.b16 %v4170, %v4154
    %v5227 = vpack.c.b16 %v4171, %v4155
    %v5228 = vpack.c.b16 %v4172, %v4156
    %v5229 = vpack.c.b16 %v4173, %v4157
    %v5230 = vpack.c.b16 %v4174, %v4158
    %v5231 = vpack.c.b16 %v4175, %v4159
    %v5232 = vpack.c.b16 %v4176, %v4160
    %v5233 = vpack.c.b16 %v4177, %v4161
    %v5234 = vpack.c.b16 %v4178, %v4162
    %v5235 = vpack.c.b16 %v4179, %v4163
    %v5236 = vpack.c.b16 %v4180, %v4164
    %v5237 = vpack.c.b16 %v4181, %v4165
    %v5238 = vpack.c.b16 %v4182, %v4166
    %v5239 = vpack.c.b16 %v4183, %v4167
    %v5240 = vpack.c.b16 %v4200, %v4184
    %v5241 = vpack.c.b16 %v4201, %v4185
    %v5242 = vpack.c.b16 %v4202, %v4186
    %v5243 = vpack.c.b16 %v4203, %v4187
    %v5244 = vpack.c.b16 %v4204, %v4188
    %v5245 = vpack.c.b16 %v4205, %v4189
    %v5246 = vpack.c.b16 %v4206, %v4190
    %v5247 = vpack.c.b16 %v4207, %v4191
    %v5248 = vpack.c.b16 %v4208, %v4192
    %v5249 = vpack.c.b16 %v4209, %v4193
    %v5250 = vpack.c.b16 %v4210, %v4194
    %v5251 = vpack.c.b16 %v4211, %v4195
    %v5252 = vpack.c.b16 %v4212, %v4196
    %v5253 = vpack.c.b16 %v4213, %v4197
    %v5254 = vpack.c.b16 %v4214, %v4198
    %v5255 = vpack.c.b16 %v4215, %v4199
    %v5256 = vpack.c.b16 %v4232, %v4216
    %v5257 = vpack.c.b16 %v4233, %v4217
    %v5258 = vpack.c.b16 %v4234, %v4218
    %v5259 = vpack.c.b16 %v4235, %v4219
    %v5260 = vpack.c.b16 %v4236, %v4220
    %v5261 = vpack.c.b16 %v4237, %v4221
    %v5262 = vpack.c.b16 %v4238, %v4222
    %v5263 = vpack.c.b16 %v4239, %v4223
    %v5264 = vpack.c.b16 %v4240, %v4224
    %v5265 = vpack.c.b16 %v4241, %v4225
    %v5266 = vpack.c.b16 %v4242, %v4226
    %v5267 = vpack.c.b16 %v4243, %v4227
    %v5268 = vpack.c.b16 %v4244, %v4228
    %v5269 = vpack.c.b16 %v4245, %v4229
    %v5270 = vpack.c.b16 %v4246, %v4230
    %v5271 = vpack.c.b16 %v4247, %v4231
    %6296 = vmatprep.subr.bf16.mxu0 %v4361
    %6297 = vmatpush1.bf16.msra.mxu0 %v4360
    %6298 = vmatprep.subr.bf16.mxu0 %v4345
    %6299 = vmatpush1.bf16.msra.mxu0 %v4344
    %6300 = vmatprep.subr.bf16.mxu0 %v4329
    %6301 = vmatpush1.bf16.msra.mxu0 %v4328
    %6302 = vmatprep.subr.bf16.mxu0 %v4313
    %6303 = vmatpush1.bf16.msra.mxu0 %v4312
    %6304 = vmatprep.subr.bf16.mxu0 %v4297
    %6305 = vmatpush1.bf16.msra.mxu0 %v4296
    %6306 = vmatprep.subr.bf16.mxu0 %v4281
    %6307 = vmatpush1.bf16.msra.mxu0 %v4280
    %6308 = vmatprep.subr.bf16.mxu0 %v4265
    %6309 = vmatpush1.bf16.msra.mxu0 %v4264
    %6310 = vmatprep.subr.bf16.mxu0 %v4249
    %6311 = vmatpush1.bf16.msra.mxu0 %v4248
    %6312 = vmatprep.subr.bf16.mxu0 %v4489
    %6313 = vmatpush2.bf16.msra.mxu0 %v4488
    %6314 = vmatprep.subr.bf16.mxu0 %v4473
    %6315 = vmatpush2.bf16.msra.mxu0 %v4472
    %6316 = vmatprep.subr.bf16.mxu0 %v4457
    %6317 = vmatpush2.bf16.msra.mxu0 %v4456
    %6318 = vmatprep.subr.bf16.mxu0 %v4441
    %6319 = vmatpush2.bf16.msra.mxu0 %v4440
    %6320 = vmatprep.subr.bf16.mxu0 %v4425
    %6321 = vmatpush2.bf16.msra.mxu0 %v4424
    %6322 = vmatprep.subr.bf16.mxu0 %v4409
    %6323 = vmatpush2.bf16.msra.mxu0 %v4408
    %6324 = vmatprep.subr.bf16.mxu0 %v4393
    %6325 = vmatpush2.bf16.msra.mxu0 %v4392
    %6326 = vmatprep.subr.bf16.mxu0 %v4377
    %6327 = vmatpush2.bf16.msra.mxu0 %v4376
    %6328 = vmatprep.mubr.bf16.mxu0 %v1161
    %6329 = vmatmul.mubr.bf16.gmra.mxu0 %v1160
    %v6330 = vpop.f32.mrf.mxu0
    %v6331 = vadd.f32 0.0, %v6330
    %v6332 = vpop.f32.mrf.mxu0
    %v6333 = vadd.f32 0.0, %v6332
    %v6334 = vpop.f32.mrf.mxu0
    %v6335 = vpop.f32.mrf.mxu0
    %6336 = vdwg.mxu0
    %6337 = vmatprep.subr.bf16.mxu0 %v4617
    %6338 = vmatpush1.bf16.msra.mxu0 %v4616
    %6339 = vmatprep.subr.bf16.mxu0 %v4601
    %6340 = vmatpush1.bf16.msra.mxu0 %v4600
    %6341 = vmatprep.subr.bf16.mxu0 %v4585
    %6342 = vmatpush1.bf16.msra.mxu0 %v4584
    %6343 = vmatprep.subr.bf16.mxu0 %v4569
    %6344 = vmatpush1.bf16.msra.mxu0 %v4568
    %6345 = vmatprep.subr.bf16.mxu0 %v4553
    %6346 = vmatpush1.bf16.msra.mxu0 %v4552
    %6347 = vmatprep.subr.bf16.mxu0 %v4537
    %6348 = vmatpush1.bf16.msra.mxu0 %v4536
    %6349 = vmatprep.subr.bf16.mxu0 %v4521
    %6350 = vmatpush1.bf16.msra.mxu0 %v4520
    %6351 = vmatprep.subr.bf16.mxu0 %v4505
    %6352 = vmatpush1.bf16.msra.mxu0 %v4504
    %6353 = vmatprep.subr.bf16.mxu0 %v4745
    %6354 = vmatpush2.bf16.msra.mxu0 %v4744
    %6355 = vmatprep.subr.bf16.mxu0 %v4729
    %6356 = vmatpush2.bf16.msra.mxu0 %v4728
    %6357 = vmatprep.subr.bf16.mxu0 %v4713
    %6358 = vmatpush2.bf16.msra.mxu0 %v4712
    %6359 = vmatprep.subr.bf16.mxu0 %v4697
    %6360 = vmatpush2.bf16.msra.mxu0 %v4696
    %6361 = vmatprep.subr.bf16.mxu0 %v4681
    %6362 = vmatpush2.bf16.msra.mxu0 %v4680
    %6363 = vmatprep.subr.bf16.mxu0 %v4665
    %6364 = vmatpush2.bf16.msra.mxu0 %v4664
    %6365 = vmatprep.subr.bf16.mxu0 %v4649
    %6366 = vmatpush2.bf16.msra.mxu0 %v4648
    %6367 = vmatprep.subr.bf16.mxu0 %v4633
    %6368 = vmatpush2.bf16.msra.mxu0 %v4632
    %6369 = vmatprep.mubr.bf16.mxu0 %v1163
    %6370 = vmatmul.mubr.bf16.gmra.mxu0 %v1162
    %v6371 = vpop.f32.mrf.mxu0
    %v6372 = vadd.f32 %v6331, %v6371
    %v6373 = vpop.f32.mrf.mxu0
    %v6374 = vadd.f32 %v6333, %v6373
    %v6375 = vpop.f32.mrf.mxu0
    %v6376 = vpop.f32.mrf.mxu0
    %6377 = vdwg.mxu0
    %6378 = vmatprep.subr.bf16.mxu0 %v4873
    %6379 = vmatpush1.bf16.msra.mxu0 %v4872
    %6380 = vmatprep.subr.bf16.mxu0 %v4857
    %6381 = vmatpush1.bf16.msra.mxu0 %v4856
    %6382 = vmatprep.subr.bf16.mxu0 %v4841
    %6383 = vmatpush1.bf16.msra.mxu0 %v4840
    %6384 = vmatprep.subr.bf16.mxu0 %v4825
    %6385 = vmatpush1.bf16.msra.mxu0 %v4824
    %6386 = vmatprep.subr.bf16.mxu0 %v4809
    %6387 = vmatpush1.bf16.msra.mxu0 %v4808
    %6388 = vmatprep.subr.bf16.mxu0 %v4793
    %6389 = vmatpush1.bf16.msra.mxu0 %v4792
    %6390 = vmatprep.subr.bf16.mxu0 %v4777
    %6391 = vmatpush1.bf16.msra.mxu0 %v4776
    %6392 = vmatprep.subr.bf16.mxu0 %v4761
    %6393 = vmatpush1.bf16.msra.mxu0 %v4760
    %6394 = vmatprep.subr.bf16.mxu0 %v5001
    %6395 = vmatpush2.bf16.msra.mxu0 %v5000
    %6396 = vmatprep.subr.bf16.mxu0 %v4985
    %6397 = vmatpush2.bf16.msra.mxu0 %v4984
    %6398 = vmatprep.subr.bf16.mxu0 %v4969
    %6399 = vmatpush2.bf16.msra.mxu0 %v4968
    %6400 = vmatprep.subr.bf16.mxu0 %v4953
    %6401 = vmatpush2.bf16.msra.mxu0 %v4952
    %6402 = vmatprep.subr.bf16.mxu0 %v4937
    %6403 = vmatpush2.bf16.msra.mxu0 %v4936
    %6404 = vmatprep.subr.bf16.mxu0 %v4921
    %6405 = vmatpush2.bf16.msra.mxu0 %v4920
    %6406 = vmatprep.subr.bf16.mxu0 %v4905
    %6407 = vmatpush2.bf16.msra.mxu0 %v4904
    %6408 = vmatprep.subr.bf16.mxu0 %v4889
    %6409 = vmatpush2.bf16.msra.mxu0 %v4888
    %6410 = vmatprep.mubr.bf16.mxu0 %v1165
    %6411 = vmatmul.mubr.bf16.gmra.mxu0 %v1164
    %v6412 = vpop.f32.mrf.mxu0
    %v6413 = vadd.f32 %v6372, %v6412
    %v6414 = vpop.f32.mrf.mxu0
    %v6415 = vadd.f32 %v6374, %v6414
    %v6416 = vpop.f32.mrf.mxu0
    %v6417 = vpop.f32.mrf.mxu0
    %6418 = vdwg.mxu0
    %6419 = vmatprep.subr.bf16.mxu0 %v5129
    %6420 = vmatpush1.bf16.msra.mxu0 %v5128
    %6421 = vmatprep.subr.bf16.mxu0 %v5113
    %6422 = vmatpush1.bf16.msra.mxu0 %v5112
    %6423 = vmatprep.subr.bf16.mxu0 %v5097
    %6424 = vmatpush1.bf16.msra.mxu0 %v5096
    %6425 = vmatprep.subr.bf16.mxu0 %v5081
    %6426 = vmatpush1.bf16.msra.mxu0 %v5080
    %6427 = vmatprep.subr.bf16.mxu0 %v5065
    %6428 = vmatpush1.bf16.msra.mxu0 %v5064
    %6429 = vmatprep.subr.bf16.mxu0 %v5049
    %6430 = vmatpush1.bf16.msra.mxu0 %v5048
    %6431 = vmatprep.subr.bf16.mxu0 %v5033
    %6432 = vmatpush1.bf16.msra.mxu0 %v5032
    %6433 = vmatprep.subr.bf16.mxu0 %v5017
    %6434 = vmatpush1.bf16.msra.mxu0 %v5016
    %6435 = vmatprep.subr.bf16.mxu0 %v5257
    %6436 = vmatpush2.bf16.msra.mxu0 %v5256
    %6437 = vmatprep.subr.bf16.mxu0 %v5241
    %6438 = vmatpush2.bf16.msra.mxu0 %v5240
    %6439 = vmatprep.subr.bf16.mxu0 %v5225
    %6440 = vmatpush2.bf16.msra.mxu0 %v5224
    %6441 = vmatprep.subr.bf16.mxu0 %v5209
    %6442 = vmatpush2.bf16.msra.mxu0 %v5208
    %6443 = vmatprep.subr.bf16.mxu0 %v5193
    %6444 = vmatpush2.bf16.msra.mxu0 %v5192
    %6445 = vmatprep.subr.bf16.mxu0 %v5177
    %6446 = vmatpush2.bf16.msra.mxu0 %v5176
    %6447 = vmatprep.subr.bf16.mxu0 %v5161
    %6448 = vmatpush2.bf16.msra.mxu0 %v5160
    %6449 = vmatprep.subr.bf16.mxu0 %v5145
    %6450 = vmatpush2.bf16.msra.mxu0 %v5144
    %6451 = vmatprep.mubr.bf16.mxu0 %v1167
    %6452 = vmatmul.mubr.bf16.gmra.mxu0 %v1166
    %v6453 = vpop.f32.mrf.mxu0
    %v6454 = vadd.f32 %v6413, %v6453
    %v6455 = vpop.f32.mrf.mxu0
    %v6456 = vadd.f32 %v6415, %v6455
    %v6457 = vpop.f32.mrf.mxu0
    %v6458 = vpop.f32.mrf.mxu0
    %6459 = vdwg.mxu0
    %6460 = vmatprep.subr.bf16.mxu0 %v4363
    %6461 = vmatpush1.bf16.msra.mxu0 %v4362
    %6462 = vmatprep.subr.bf16.mxu0 %v4347
    %6463 = vmatpush1.bf16.msra.mxu0 %v4346
    %6464 = vmatprep.subr.bf16.mxu0 %v4331
    %6465 = vmatpush1.bf16.msra.mxu0 %v4330
    %6466 = vmatprep.subr.bf16.mxu0 %v4315
    %6467 = vmatpush1.bf16.msra.mxu0 %v4314
    %6468 = vmatprep.subr.bf16.mxu0 %v4299
    %6469 = vmatpush1.bf16.msra.mxu0 %v4298
    %6470 = vmatprep.subr.bf16.mxu0 %v4283
    %6471 = vmatpush1.bf16.msra.mxu0 %v4282
    %6472 = vmatprep.subr.bf16.mxu0 %v4267
    %6473 = vmatpush1.bf16.msra.mxu0 %v4266
    %6474 = vmatprep.subr.bf16.mxu0 %v4251
    %6475 = vmatpush1.bf16.msra.mxu0 %v4250
    %6476 = vmatprep.subr.bf16.mxu0 %v4491
    %6477 = vmatpush2.bf16.msra.mxu0 %v4490
    %6478 = vmatprep.subr.bf16.mxu0 %v4475
    %6479 = vmatpush2.bf16.msra.mxu0 %v4474
    %6480 = vmatprep.subr.bf16.mxu0 %v4459
    %6481 = vmatpush2.bf16.msra.mxu0 %v4458
    %6482 = vmatprep.subr.bf16.mxu0 %v4443
    %6483 = vmatpush2.bf16.msra.mxu0 %v4442
    %6484 = vmatprep.subr.bf16.mxu0 %v4427
    %6485 = vmatpush2.bf16.msra.mxu0 %v4426
    %6486 = vmatprep.subr.bf16.mxu0 %v4411
    %6487 = vmatpush2.bf16.msra.mxu0 %v4410
    %6488 = vmatprep.subr.bf16.mxu0 %v4395
    %6489 = vmatpush2.bf16.msra.mxu0 %v4394
    %6490 = vmatprep.subr.bf16.mxu0 %v4379
    %6491 = vmatpush2.bf16.msra.mxu0 %v4378
    %6492 = vmatprep.mubr.bf16.mxu0 %v1161
    %6493 = vmatmul.mubr.bf16.gmra.mxu0 %v1160
    %v6494 = vpop.f32.mrf.mxu0
    %v6495 = vadd.f32 0.0, %v6494
    %v6496 = vpop.f32.mrf.mxu0
    %v6497 = vadd.f32 0.0, %v6496
    %v6498 = vpop.f32.mrf.mxu0
    %v6499 = vpop.f32.mrf.mxu0
    %6500 = vdwg.mxu0
    %6501 = vmatprep.subr.bf16.mxu0 %v4619
    %6502 = vmatpush1.bf16.msra.mxu0 %v4618
    %6503 = vmatprep.subr.bf16.mxu0 %v4603
    %6504 = vmatpush1.bf16.msra.mxu0 %v4602
    %6505 = vmatprep.subr.bf16.mxu0 %v4587
    %6506 = vmatpush1.bf16.msra.mxu0 %v4586
    %6507 = vmatprep.subr.bf16.mxu0 %v4571
    %6508 = vmatpush1.bf16.msra.mxu0 %v4570
    %6509 = vmatprep.subr.bf16.mxu0 %v4555
    %6510 = vmatpush1.bf16.msra.mxu0 %v4554
    %6511 = vmatprep.subr.bf16.mxu0 %v4539
    %6512 = vmatpush1.bf16.msra.mxu0 %v4538
    %6513 = vmatprep.subr.bf16.mxu0 %v4523
    %6514 = vmatpush1.bf16.msra.mxu0 %v4522
    %6515 = vmatprep.subr.bf16.mxu0 %v4507
    %6516 = vmatpush1.bf16.msra.mxu0 %v4506
    %6517 = vmatprep.subr.bf16.mxu0 %v4747
    %6518 = vmatpush2.bf16.msra.mxu0 %v4746
    %6519 = vmatprep.subr.bf16.mxu0 %v4731
    %6520 = vmatpush2.bf16.msra.mxu0 %v4730
    %6521 = vmatprep.subr.bf16.mxu0 %v4715
    %6522 = vmatpush2.bf16.msra.mxu0 %v4714
    %6523 = vmatprep.subr.bf16.mxu0 %v4699
    %6524 = vmatpush2.bf16.msra.mxu0 %v4698
    %6525 = vmatprep.subr.bf16.mxu0 %v4683
    %6526 = vmatpush2.bf16.msra.mxu0 %v4682
    %6527 = vmatprep.subr.bf16.mxu0 %v4667
    %6528 = vmatpush2.bf16.msra.mxu0 %v4666
    %6529 = vmatprep.subr.bf16.mxu0 %v4651
    %6530 = vmatpush2.bf16.msra.mxu0 %v4650
    %6531 = vmatprep.subr.bf16.mxu0 %v4635
    %6532 = vmatpush2.bf16.msra.mxu0 %v4634
    %6533 = vmatprep.mubr.bf16.mxu0 %v1163
    %6534 = vmatmul.mubr.bf16.gmra.mxu0 %v1162
    %v6535 = vpop.f32.mrf.mxu0
    %v6536 = vadd.f32 %v6495, %v6535
    %v6537 = vpop.f32.mrf.mxu0
    %v6538 = vadd.f32 %v6497, %v6537
    %v6539 = vpop.f32.mrf.mxu0
    %v6540 = vpop.f32.mrf.mxu0
    %6541 = vdwg.mxu0
    %6542 = vmatprep.subr.bf16.mxu0 %v4875
    %6543 = vmatpush1.bf16.msra.mxu0 %v4874
    %6544 = vmatprep.subr.bf16.mxu0 %v4859
    %6545 = vmatpush1.bf16.msra.mxu0 %v4858
    %6546 = vmatprep.subr.bf16.mxu0 %v4843
    %6547 = vmatpush1.bf16.msra.mxu0 %v4842
    %6548 = vmatprep.subr.bf16.mxu0 %v4827
    %6549 = vmatpush1.bf16.msra.mxu0 %v4826
    %6550 = vmatprep.subr.bf16.mxu0 %v4811
    %6551 = vmatpush1.bf16.msra.mxu0 %v4810
    %6552 = vmatprep.subr.bf16.mxu0 %v4795
    %6553 = vmatpush1.bf16.msra.mxu0 %v4794
    %6554 = vmatprep.subr.bf16.mxu0 %v4779
    %6555 = vmatpush1.bf16.msra.mxu0 %v4778
    %6556 = vmatprep.subr.bf16.mxu0 %v4763
    %6557 = vmatpush1.bf16.msra.mxu0 %v4762
    %6558 = vmatprep.subr.bf16.mxu0 %v5003
    %6559 = vmatpush2.bf16.msra.mxu0 %v5002
    %6560 = vmatprep.subr.bf16.mxu0 %v4987
    %6561 = vmatpush2.bf16.msra.mxu0 %v4986
    %6562 = vmatprep.subr.bf16.mxu0 %v4971
    %6563 = vmatpush2.bf16.msra.mxu0 %v4970
    %6564 = vmatprep.subr.bf16.mxu0 %v4955
    %6565 = vmatpush2.bf16.msra.mxu0 %v4954
    %6566 = vmatprep.subr.bf16.mxu0 %v4939
    %6567 = vmatpush2.bf16.msra.mxu0 %v4938
    %6568 = vmatprep.subr.bf16.mxu0 %v4923
    %6569 = vmatpush2.bf16.msra.mxu0 %v4922
    %6570 = vmatprep.subr.bf16.mxu0 %v4907
    %6571 = vmatpush2.bf16.msra.mxu0 %v4906
    %6572 = vmatprep.subr.bf16.mxu0 %v4891
    %6573 = vmatpush2.bf16.msra.mxu0 %v4890
    %6574 = vmatprep.mubr.bf16.mxu0 %v1165
    %6575 = vmatmul.mubr.bf16.gmra.mxu0 %v1164
    %v6576 = vpop.f32.mrf.mxu0
    %v6577 = vadd.f32 %v6536, %v6576
    %v6578 = vpop.f32.mrf.mxu0
    %v6579 = vadd.f32 %v6538, %v6578
    %v6580 = vpop.f32.mrf.mxu0
    %v6581 = vpop.f32.mrf.mxu0
    %6582 = vdwg.mxu0
    %6583 = vmatprep.subr.bf16.mxu0 %v5131
    %6584 = vmatpush1.bf16.msra.mxu0 %v5130
    %6585 = vmatprep.subr.bf16.mxu0 %v5115
    %6586 = vmatpush1.bf16.msra.mxu0 %v5114
    %6587 = vmatprep.subr.bf16.mxu0 %v5099
    %6588 = vmatpush1.bf16.msra.mxu0 %v5098
    %6589 = vmatprep.subr.bf16.mxu0 %v5083
    %6590 = vmatpush1.bf16.msra.mxu0 %v5082
    %6591 = vmatprep.subr.bf16.mxu0 %v5067
    %6592 = vmatpush1.bf16.msra.mxu0 %v5066
    %6593 = vmatprep.subr.bf16.mxu0 %v5051
    %6594 = vmatpush1.bf16.msra.mxu0 %v5050
    %6595 = vmatprep.subr.bf16.mxu0 %v5035
    %6596 = vmatpush1.bf16.msra.mxu0 %v5034
    %6597 = vmatprep.subr.bf16.mxu0 %v5019
    %6598 = vmatpush1.bf16.msra.mxu0 %v5018
    %6599 = vmatprep.subr.bf16.mxu0 %v5259
    %6600 = vmatpush2.bf16.msra.mxu0 %v5258
    %6601 = vmatprep.subr.bf16.mxu0 %v5243
    %6602 = vmatpush2.bf16.msra.mxu0 %v5242
    %6603 = vmatprep.subr.bf16.mxu0 %v5227
    %6604 = vmatpush2.bf16.msra.mxu0 %v5226
    %6605 = vmatprep.subr.bf16.mxu0 %v5211
    %6606 = vmatpush2.bf16.msra.mxu0 %v5210
    %6607 = vmatprep.subr.bf16.mxu0 %v5195
    %6608 = vmatpush2.bf16.msra.mxu0 %v5194
    %6609 = vmatprep.subr.bf16.mxu0 %v5179
    %6610 = vmatpush2.bf16.msra.mxu0 %v5178
    %6611 = vmatprep.subr.bf16.mxu0 %v5163
    %6612 = vmatpush2.bf16.msra.mxu0 %v5162
    %6613 = vmatprep.subr.bf16.mxu0 %v5147
    %6614 = vmatpush2.bf16.msra.mxu0 %v5146
    %6615 = vmatprep.mubr.bf16.mxu0 %v1167
    %6616 = vmatmul.mubr.bf16.gmra.mxu0 %v1166
    %v6617 = vpop.f32.mrf.mxu0
    %v6618 = vadd.f32 %v6577, %v6617
    %v6619 = vpop.f32.mrf.mxu0
    %v6620 = vadd.f32 %v6579, %v6619
    %v6621 = vpop.f32.mrf.mxu0
    %v6622 = vpop.f32.mrf.mxu0
    %6623 = vdwg.mxu0
    %6624 = vmatprep.subr.bf16.mxu0 %v4365
    %6625 = vmatpush1.bf16.msra.mxu0 %v4364
    %6626 = vmatprep.subr.bf16.mxu0 %v4349
    %6627 = vmatpush1.bf16.msra.mxu0 %v4348
    %6628 = vmatprep.subr.bf16.mxu0 %v4333
    %6629 = vmatpush1.bf16.msra.mxu0 %v4332
    %6630 = vmatprep.subr.bf16.mxu0 %v4317
    %6631 = vmatpush1.bf16.msra.mxu0 %v4316
    %6632 = vmatprep.subr.bf16.mxu0 %v4301
    %6633 = vmatpush1.bf16.msra.mxu0 %v4300
    %6634 = vmatprep.subr.bf16.mxu0 %v4285
    %6635 = vmatpush1.bf16.msra.mxu0 %v4284
    %6636 = vmatprep.subr.bf16.mxu0 %v4269
    %6637 = vmatpush1.bf16.msra.mxu0 %v4268
    %6638 = vmatprep.subr.bf16.mxu0 %v4253
    %6639 = vmatpush1.bf16.msra.mxu0 %v4252
    %6640 = vmatprep.subr.bf16.mxu0 %v4493
    %6641 = vmatpush2.bf16.msra.mxu0 %v4492
    %6642 = vmatprep.subr.bf16.mxu0 %v4477
    %6643 = vmatpush2.bf16.msra.mxu0 %v4476
    %6644 = vmatprep.subr.bf16.mxu0 %v4461
    %6645 = vmatpush2.bf16.msra.mxu0 %v4460
    %6646 = vmatprep.subr.bf16.mxu0 %v4445
    %6647 = vmatpush2.bf16.msra.mxu0 %v4444
    %6648 = vmatprep.subr.bf16.mxu0 %v4429
    %6649 = vmatpush2.bf16.msra.mxu0 %v4428
    %6650 = vmatprep.subr.bf16.mxu0 %v4413
    %6651 = vmatpush2.bf16.msra.mxu0 %v4412
    %6652 = vmatprep.subr.bf16.mxu0 %v4397
    %6653 = vmatpush2.bf16.msra.mxu0 %v4396
    %6654 = vmatprep.subr.bf16.mxu0 %v4381
    %6655 = vmatpush2.bf16.msra.mxu0 %v4380
    %6656 = vmatprep.mubr.bf16.mxu0 %v1161
    %6657 = vmatmul.mubr.bf16.gmra.mxu0 %v1160
    %v6658 = vpop.f32.mrf.mxu0
    %v6659 = vadd.f32 0.0, %v6658
    %v6660 = vpop.f32.mrf.mxu0
    %v6661 = vadd.f32 0.0, %v6660
    %v6662 = vpop.f32.mrf.mxu0
    %v6663 = vpop.f32.mrf.mxu0
    %6664 = vdwg.mxu0
    %6665 = vmatprep.subr.bf16.mxu0 %v4621
    %6666 = vmatpush1.bf16.msra.mxu0 %v4620
    %6667 = vmatprep.subr.bf16.mxu0 %v4605
    %6668 = vmatpush1.bf16.msra.mxu0 %v4604
    %6669 = vmatprep.subr.bf16.mxu0 %v4589
    %6670 = vmatpush1.bf16.msra.mxu0 %v4588
    %6671 = vmatprep.subr.bf16.mxu0 %v4573
    %6672 = vmatpush1.bf16.msra.mxu0 %v4572
    %6673 = vmatprep.subr.bf16.mxu0 %v4557
    %6674 = vmatpush1.bf16.msra.mxu0 %v4556
    %6675 = vmatprep.subr.bf16.mxu0 %v4541
    %6676 = vmatpush1.bf16.msra.mxu0 %v4540
    %6677 = vmatprep.subr.bf16.mxu0 %v4525
    %6678 = vmatpush1.bf16.msra.mxu0 %v4524
    %6679 = vmatprep.subr.bf16.mxu0 %v4509
    %6680 = vmatpush1.bf16.msra.mxu0 %v4508
    %6681 = vmatprep.subr.bf16.mxu0 %v4749
    %6682 = vmatpush2.bf16.msra.mxu0 %v4748
    %6683 = vmatprep.subr.bf16.mxu0 %v4733
    %6684 = vmatpush2.bf16.msra.mxu0 %v4732
    %6685 = vmatprep.subr.bf16.mxu0 %v4717
    %6686 = vmatpush2.bf16.msra.mxu0 %v4716
    %6687 = vmatprep.subr.bf16.mxu0 %v4701
    %6688 = vmatpush2.bf16.msra.mxu0 %v4700
    %6689 = vmatprep.subr.bf16.mxu0 %v4685
    %6690 = vmatpush2.bf16.msra.mxu0 %v4684
    %6691 = vmatprep.subr.bf16.mxu0 %v4669
    %6692 = vmatpush2.bf16.msra.mxu0 %v4668
    %6693 = vmatprep.subr.bf16.mxu0 %v4653
    %6694 = vmatpush2.bf16.msra.mxu0 %v4652
    %6695 = vmatprep.subr.bf16.mxu0 %v4637
    %6696 = vmatpush2.bf16.msra.mxu0 %v4636
    %6697 = vmatprep.mubr.bf16.mxu0 %v1163
    %6698 = vmatmul.mubr.bf16.gmra.mxu0 %v1162
    %v6699 = vpop.f32.mrf.mxu0
    %v6700 = vadd.f32 %v6659, %v6699
    %v6701 = vpop.f32.mrf.mxu0
    %v6702 = vadd.f32 %v6661, %v6701
    %v6703 = vpop.f32.mrf.mxu0
    %v6704 = vpop.f32.mrf.mxu0
    %6705 = vdwg.mxu0
    %6706 = vmatprep.subr.bf16.mxu0 %v4877
    %6707 = vmatpush1.bf16.msra.mxu0 %v4876
    %6708 = vmatprep.subr.bf16.mxu0 %v4861
    %6709 = vmatpush1.bf16.msra.mxu0 %v4860
    %6710 = vmatprep.subr.bf16.mxu0 %v4845
    %6711 = vmatpush1.bf16.msra.mxu0 %v4844
    %6712 = vmatprep.subr.bf16.mxu0 %v4829
    %6713 = vmatpush1.bf16.msra.mxu0 %v4828
    %6714 = vmatprep.subr.bf16.mxu0 %v4813
    %6715 = vmatpush1.bf16.msra.mxu0 %v4812
    %6716 = vmatprep.subr.bf16.mxu0 %v4797
    %6717 = vmatpush1.bf16.msra.mxu0 %v4796
    %6718 = vmatprep.subr.bf16.mxu0 %v4781
    %6719 = vmatpush1.bf16.msra.mxu0 %v4780
    %6720 = vmatprep.subr.bf16.mxu0 %v4765
    %6721 = vmatpush1.bf16.msra.mxu0 %v4764
    %6722 = vmatprep.subr.bf16.mxu0 %v5005
    %6723 = vmatpush2.bf16.msra.mxu0 %v5004
    %6724 = vmatprep.subr.bf16.mxu0 %v4989
    %6725 = vmatpush2.bf16.msra.mxu0 %v4988
    %6726 = vmatprep.subr.bf16.mxu0 %v4973
    %6727 = vmatpush2.bf16.msra.mxu0 %v4972
    %6728 = vmatprep.subr.bf16.mxu0 %v4957
    %6729 = vmatpush2.bf16.msra.mxu0 %v4956
    %6730 = vmatprep.subr.bf16.mxu0 %v4941
    %6731 = vmatpush2.bf16.msra.mxu0 %v4940
    %6732 = vmatprep.subr.bf16.mxu0 %v4925
    %6733 = vmatpush2.bf16.msra.mxu0 %v4924
    %6734 = vmatprep.subr.bf16.mxu0 %v4909
    %6735 = vmatpush2.bf16.msra.mxu0 %v4908
    %6736 = vmatprep.subr.bf16.mxu0 %v4893
    %6737 = vmatpush2.bf16.msra.mxu0 %v4892
    %6738 = vmatprep.mubr.bf16.mxu0 %v1165
    %6739 = vmatmul.mubr.bf16.gmra.mxu0 %v1164
    %v6740 = vpop.f32.mrf.mxu0
    %v6741 = vadd.f32 %v6700, %v6740
    %v6742 = vpop.f32.mrf.mxu0
    %v6743 = vadd.f32 %v6702, %v6742
    %v6744 = vpop.f32.mrf.mxu0
    %v6745 = vpop.f32.mrf.mxu0
    %6746 = vdwg.mxu0
    %6747 = vmatprep.subr.bf16.mxu0 %v5133
    %6748 = vmatpush1.bf16.msra.mxu0 %v5132
    %6749 = vmatprep.subr.bf16.mxu0 %v5117
    %6750 = vmatpush1.bf16.msra.mxu0 %v5116
    %6751 = vmatprep.subr.bf16.mxu0 %v5101
    %6752 = vmatpush1.bf16.msra.mxu0 %v5100
    %6753 = vmatprep.subr.bf16.mxu0 %v5085
    %6754 = vmatpush1.bf16.msra.mxu0 %v5084
    %6755 = vmatprep.subr.bf16.mxu0 %v5069
    %6756 = vmatpush1.bf16.msra.mxu0 %v5068
    %6757 = vmatprep.subr.bf16.mxu0 %v5053
    %6758 = vmatpush1.bf16.msra.mxu0 %v5052
    %6759 = vmatprep.subr.bf16.mxu0 %v5037
    %6760 = vmatpush1.bf16.msra.mxu0 %v5036
    %6761 = vmatprep.subr.bf16.mxu0 %v5021
    %6762 = vmatpush1.bf16.msra.mxu0 %v5020
    %6763 = vmatprep.subr.bf16.mxu0 %v5261
    %6764 = vmatpush2.bf16.msra.mxu0 %v5260
    %6765 = vmatprep.subr.bf16.mxu0 %v5245
    %6766 = vmatpush2.bf16.msra.mxu0 %v5244
    %6767 = vmatprep.subr.bf16.mxu0 %v5229
    %6768 = vmatpush2.bf16.msra.mxu0 %v5228
    %6769 = vmatprep.subr.bf16.mxu0 %v5213
    %6770 = vmatpush2.bf16.msra.mxu0 %v5212
    %6771 = vmatprep.subr.bf16.mxu0 %v5197
    %6772 = vmatpush2.bf16.msra.mxu0 %v5196
    %6773 = vmatprep.subr.bf16.mxu0 %v5181
    %6774 = vmatpush2.bf16.msra.mxu0 %v5180
    %6775 = vmatprep.subr.bf16.mxu0 %v5165
    %6776 = vmatpush2.bf16.msra.mxu0 %v5164
    %6777 = vmatprep.subr.bf16.mxu0 %v5149
    %6778 = vmatpush2.bf16.msra.mxu0 %v5148
    %6779 = vmatprep.mubr.bf16.mxu0 %v1167
    %6780 = vmatmul.mubr.bf16.gmra.mxu0 %v1166
    %v6781 = vpop.f32.mrf.mxu0
    %v6782 = vadd.f32 %v6741, %v6781
    %v6783 = vpop.f32.mrf.mxu0
    %v6784 = vadd.f32 %v6743, %v6783
    %v6785 = vpop.f32.mrf.mxu0
    %v6786 = vpop.f32.mrf.mxu0
    %6787 = vdwg.mxu0
    %6788 = vmatprep.subr.bf16.mxu0 %v4367
    %6789 = vmatpush1.bf16.msra.mxu0 %v4366
    %6790 = vmatprep.subr.bf16.mxu0 %v4351
    %6791 = vmatpush1.bf16.msra.mxu0 %v4350
    %6792 = vmatprep.subr.bf16.mxu0 %v4335
    %6793 = vmatpush1.bf16.msra.mxu0 %v4334
    %6794 = vmatprep.subr.bf16.mxu0 %v4319
    %6795 = vmatpush1.bf16.msra.mxu0 %v4318
    %6796 = vmatprep.subr.bf16.mxu0 %v4303
    %6797 = vmatpush1.bf16.msra.mxu0 %v4302
    %6798 = vmatprep.subr.bf16.mxu0 %v4287
    %6799 = vmatpush1.bf16.msra.mxu0 %v4286
    %6800 = vmatprep.subr.bf16.mxu0 %v4271
    %6801 = vmatpush1.bf16.msra.mxu0 %v4270
    %6802 = vmatprep.subr.bf16.mxu0 %v4255
    %6803 = vmatpush1.bf16.msra.mxu0 %v4254
    %6804 = vmatprep.subr.bf16.mxu0 %v4495
    %6805 = vmatpush2.bf16.msra.mxu0 %v4494
    %6806 = vmatprep.subr.bf16.mxu0 %v4479
    %6807 = vmatpush2.bf16.msra.mxu0 %v4478
    %6808 = vmatprep.subr.bf16.mxu0 %v4463
    %6809 = vmatpush2.bf16.msra.mxu0 %v4462
    %6810 = vmatprep.subr.bf16.mxu0 %v4447
    %6811 = vmatpush2.bf16.msra.mxu0 %v4446
    %6812 = vmatprep.subr.bf16.mxu0 %v4431
    %6813 = vmatpush2.bf16.msra.mxu0 %v4430
    %6814 = vmatprep.subr.bf16.mxu0 %v4415
    %6815 = vmatpush2.bf16.msra.mxu0 %v4414
    %6816 = vmatprep.subr.bf16.mxu0 %v4399
    %6817 = vmatpush2.bf16.msra.mxu0 %v4398
    %6818 = vmatprep.subr.bf16.mxu0 %v4383
    %6819 = vmatpush2.bf16.msra.mxu0 %v4382
    %6820 = vmatprep.mubr.bf16.mxu0 %v1161
    %6821 = vmatmul.mubr.bf16.gmra.mxu0 %v1160
    %v6822 = vpop.f32.mrf.mxu0
    %v6823 = vadd.f32 0.0, %v6822
    %v6824 = vpop.f32.mrf.mxu0
    %v6825 = vadd.f32 0.0, %v6824
    %v6826 = vpop.f32.mrf.mxu0
    %v6827 = vpop.f32.mrf.mxu0
    %6828 = vdwg.mxu0
    %6829 = vmatprep.subr.bf16.mxu0 %v4623
    %6830 = vmatpush1.bf16.msra.mxu0 %v4622
    %6831 = vmatprep.subr.bf16.mxu0 %v4607
    %6832 = vmatpush1.bf16.msra.mxu0 %v4606
    %6833 = vmatprep.subr.bf16.mxu0 %v4591
    %6834 = vmatpush1.bf16.msra.mxu0 %v4590
    %6835 = vmatprep.subr.bf16.mxu0 %v4575
    %6836 = vmatpush1.bf16.msra.mxu0 %v4574
    %6837 = vmatprep.subr.bf16.mxu0 %v4559
    %6838 = vmatpush1.bf16.msra.mxu0 %v4558
    %6839 = vmatprep.subr.bf16.mxu0 %v4543
    %6840 = vmatpush1.bf16.msra.mxu0 %v4542
    %6841 = vmatprep.subr.bf16.mxu0 %v4527
    %6842 = vmatpush1.bf16.msra.mxu0 %v4526
    %6843 = vmatprep.subr.bf16.mxu0 %v4511
    %6844 = vmatpush1.bf16.msra.mxu0 %v4510
    %6845 = vmatprep.subr.bf16.mxu0 %v4751
    %6846 = vmatpush2.bf16.msra.mxu0 %v4750
    %6847 = vmatprep.subr.bf16.mxu0 %v4735
    %6848 = vmatpush2.bf16.msra.mxu0 %v4734
    %6849 = vmatprep.subr.bf16.mxu0 %v4719
    %6850 = vmatpush2.bf16.msra.mxu0 %v4718
    %6851 = vmatprep.subr.bf16.mxu0 %v4703
    %6852 = vmatpush2.bf16.msra.mxu0 %v4702
    %6853 = vmatprep.subr.bf16.mxu0 %v4687
    %6854 = vmatpush2.bf16.msra.mxu0 %v4686
    %6855 = vmatprep.subr.bf16.mxu0 %v4671
    %6856 = vmatpush2.bf16.msra.mxu0 %v4670
    %6857 = vmatprep.subr.bf16.mxu0 %v4655
    %6858 = vmatpush2.bf16.msra.mxu0 %v4654
    %6859 = vmatprep.subr.bf16.mxu0 %v4639
    %6860 = vmatpush2.bf16.msra.mxu0 %v4638
    %6861 = vmatprep.mubr.bf16.mxu0 %v1163
    %6862 = vmatmul.mubr.bf16.gmra.mxu0 %v1162
    %v6863 = vpop.f32.mrf.mxu0
    %v6864 = vadd.f32 %v6823, %v6863
    %v6865 = vpop.f32.mrf.mxu0
    %v6866 = vadd.f32 %v6825, %v6865
    %v6867 = vpop.f32.mrf.mxu0
    %v6868 = vpop.f32.mrf.mxu0
    %6869 = vdwg.mxu0
    %6870 = vmatprep.subr.bf16.mxu0 %v4879
    %6871 = vmatpush1.bf16.msra.mxu0 %v4878
    %6872 = vmatprep.subr.bf16.mxu0 %v4863
    %6873 = vmatpush1.bf16.msra.mxu0 %v4862
    %6874 = vmatprep.subr.bf16.mxu0 %v4847
    %6875 = vmatpush1.bf16.msra.mxu0 %v4846
    %6876 = vmatprep.subr.bf16.mxu0 %v4831
    %6877 = vmatpush1.bf16.msra.mxu0 %v4830
    %6878 = vmatprep.subr.bf16.mxu0 %v4815
    %6879 = vmatpush1.bf16.msra.mxu0 %v4814
    %6880 = vmatprep.subr.bf16.mxu0 %v4799
    %6881 = vmatpush1.bf16.msra.mxu0 %v4798
    %6882 = vmatprep.subr.bf16.mxu0 %v4783
    %6883 = vmatpush1.bf16.msra.mxu0 %v4782
    %6884 = vmatprep.subr.bf16.mxu0 %v4767
    %6885 = vmatpush1.bf16.msra.mxu0 %v4766
    %6886 = vmatprep.subr.bf16.mxu0 %v5007
    %6887 = vmatpush2.bf16.msra.mxu0 %v5006
    %6888 = vmatprep.subr.bf16.mxu0 %v4991
    %6889 = vmatpush2.bf16.msra.mxu0 %v4990
    %6890 = vmatprep.subr.bf16.mxu0 %v4975
    %6891 = vmatpush2.bf16.msra.mxu0 %v4974
    %6892 = vmatprep.subr.bf16.mxu0 %v4959
    %6893 = vmatpush2.bf16.msra.mxu0 %v4958
    %6894 = vmatprep.subr.bf16.mxu0 %v4943
    %6895 = vmatpush2.bf16.msra.mxu0 %v4942
    %6896 = vmatprep.subr.bf16.mxu0 %v4927
    %6897 = vmatpush2.bf16.msra.mxu0 %v4926
    %6898 = vmatprep.subr.bf16.mxu0 %v4911
    %6899 = vmatpush2.bf16.msra.mxu0 %v4910
    %6900 = vmatprep.subr.bf16.mxu0 %v4895
    %6901 = vmatpush2.bf16.msra.mxu0 %v4894
    %6902 = vmatprep.mubr.bf16.mxu0 %v1165
    %6903 = vmatmul.mubr.bf16.gmra.mxu0 %v1164
    %v6904 = vpop.f32.mrf.mxu0
    %v6905 = vadd.f32 %v6864, %v6904
    %v6906 = vpop.f32.mrf.mxu0
    %v6907 = vadd.f32 %v6866, %v6906
    %v6908 = vpop.f32.mrf.mxu0
    %v6909 = vpop.f32.mrf.mxu0
    %6910 = vdwg.mxu0
    %6911 = vmatprep.subr.bf16.mxu0 %v5135
    %6912 = vmatpush1.bf16.msra.mxu0 %v5134
    %6913 = vmatprep.subr.bf16.mxu0 %v5119
    %6914 = vmatpush1.bf16.msra.mxu0 %v5118
    %6915 = vmatprep.subr.bf16.mxu0 %v5103
    %6916 = vmatpush1.bf16.msra.mxu0 %v5102
    %6917 = vmatprep.subr.bf16.mxu0 %v5087
    %6918 = vmatpush1.bf16.msra.mxu0 %v5086
    %6919 = vmatprep.subr.bf16.mxu0 %v5071
    %6920 = vmatpush1.bf16.msra.mxu0 %v5070
    %6921 = vmatprep.subr.bf16.mxu0 %v5055
    %6922 = vmatpush1.bf16.msra.mxu0 %v5054
    %6923 = vmatprep.subr.bf16.mxu0 %v5039
    %6924 = vmatpush1.bf16.msra.mxu0 %v5038
    %6925 = vmatprep.subr.bf16.mxu0 %v5023
    %6926 = vmatpush1.bf16.msra.mxu0 %v5022
    %6927 = vmatprep.subr.bf16.mxu0 %v5263
    %6928 = vmatpush2.bf16.msra.mxu0 %v5262
    %6929 = vmatprep.subr.bf16.mxu0 %v5247
    %6930 = vmatpush2.bf16.msra.mxu0 %v5246
    %6931 = vmatprep.subr.bf16.mxu0 %v5231
    %6932 = vmatpush2.bf16.msra.mxu0 %v5230
    %6933 = vmatprep.subr.bf16.mxu0 %v5215
    %6934 = vmatpush2.bf16.msra.mxu0 %v5214
    %6935 = vmatprep.subr.bf16.mxu0 %v5199
    %6936 = vmatpush2.bf16.msra.mxu0 %v5198
    %6937 = vmatprep.subr.bf16.mxu0 %v5183
    %6938 = vmatpush2.bf16.msra.mxu0 %v5182
    %6939 = vmatprep.subr.bf16.mxu0 %v5167
    %6940 = vmatpush2.bf16.msra.mxu0 %v5166
    %6941 = vmatprep.subr.bf16.mxu0 %v5151
    %6942 = vmatpush2.bf16.msra.mxu0 %v5150
    %6943 = vmatprep.mubr.bf16.mxu0 %v1167
    %6944 = vmatmul.mubr.bf16.gmra.mxu0 %v1166
    %v6945 = vpop.f32.mrf.mxu0
    %v6946 = vadd.f32 %v6905, %v6945
    %v6947 = vpop.f32.mrf.mxu0
    %v6948 = vadd.f32 %v6907, %v6947
    %v6949 = vpop.f32.mrf.mxu0
    %v6950 = vpop.f32.mrf.mxu0
    %6951 = vdwg.mxu0
    %6952 = vmatprep.subr.bf16.mxu0 %v4369
    %6953 = vmatpush1.bf16.msra.mxu0 %v4368
    %6954 = vmatprep.subr.bf16.mxu0 %v4353
    %6955 = vmatpush1.bf16.msra.mxu0 %v4352
    %6956 = vmatprep.subr.bf16.mxu0 %v4337
    %6957 = vmatpush1.bf16.msra.mxu0 %v4336
    %6958 = vmatprep.subr.bf16.mxu0 %v4321
    %6959 = vmatpush1.bf16.msra.mxu0 %v4320
    %6960 = vmatprep.subr.bf16.mxu0 %v4305
    %6961 = vmatpush1.bf16.msra.mxu0 %v4304
    %6962 = vmatprep.subr.bf16.mxu0 %v4289
    %6963 = vmatpush1.bf16.msra.mxu0 %v4288
    %6964 = vmatprep.subr.bf16.mxu0 %v4273
    %6965 = vmatpush1.bf16.msra.mxu0 %v4272
    %6966 = vmatprep.subr.bf16.mxu0 %v4257
    %6967 = vmatpush1.bf16.msra.mxu0 %v4256
    %6968 = vmatprep.subr.bf16.mxu0 %v4497
    %6969 = vmatpush2.bf16.msra.mxu0 %v4496
    %6970 = vmatprep.subr.bf16.mxu0 %v4481
    %6971 = vmatpush2.bf16.msra.mxu0 %v4480
    %6972 = vmatprep.subr.bf16.mxu0 %v4465
    %6973 = vmatpush2.bf16.msra.mxu0 %v4464
    %6974 = vmatprep.subr.bf16.mxu0 %v4449
    %6975 = vmatpush2.bf16.msra.mxu0 %v4448
    %6976 = vmatprep.subr.bf16.mxu0 %v4433
    %6977 = vmatpush2.bf16.msra.mxu0 %v4432
    %6978 = vmatprep.subr.bf16.mxu0 %v4417
    %6979 = vmatpush2.bf16.msra.mxu0 %v4416
    %6980 = vmatprep.subr.bf16.mxu0 %v4401
    %6981 = vmatpush2.bf16.msra.mxu0 %v4400
    %6982 = vmatprep.subr.bf16.mxu0 %v4385
    %6983 = vmatpush2.bf16.msra.mxu0 %v4384
    %6984 = vmatprep.mubr.bf16.mxu0 %v1161
    %6985 = vmatmul.mubr.bf16.gmra.mxu0 %v1160
    %v6986 = vpop.f32.mrf.mxu0
    %v6987 = vadd.f32 0.0, %v6986
    %v6988 = vpop.f32.mrf.mxu0
    %v6989 = vadd.f32 0.0, %v6988
    %v6990 = vpop.f32.mrf.mxu0
    %v6991 = vpop.f32.mrf.mxu0
    %6992 = vdwg.mxu0
    %6993 = vmatprep.subr.bf16.mxu0 %v4625
    %6994 = vmatpush1.bf16.msra.mxu0 %v4624
    %6995 = vmatprep.subr.bf16.mxu0 %v4609
    %6996 = vmatpush1.bf16.msra.mxu0 %v4608
    %6997 = vmatprep.subr.bf16.mxu0 %v4593
    %6998 = vmatpush1.bf16.msra.mxu0 %v4592
    %6999 = vmatprep.subr.bf16.mxu0 %v4577
    %7000 = vmatpush1.bf16.msra.mxu0 %v4576
    %7001 = vmatprep.subr.bf16.mxu0 %v4561
    %7002 = vmatpush1.bf16.msra.mxu0 %v4560
    %7003 = vmatprep.subr.bf16.mxu0 %v4545
    %7004 = vmatpush1.bf16.msra.mxu0 %v4544
    %7005 = vmatprep.subr.bf16.mxu0 %v4529
    %7006 = vmatpush1.bf16.msra.mxu0 %v4528
    %7007 = vmatprep.subr.bf16.mxu0 %v4513
    %7008 = vmatpush1.bf16.msra.mxu0 %v4512
    %7009 = vmatprep.subr.bf16.mxu0 %v4753
    %7010 = vmatpush2.bf16.msra.mxu0 %v4752
    %7011 = vmatprep.subr.bf16.mxu0 %v4737
    %7012 = vmatpush2.bf16.msra.mxu0 %v4736
    %7013 = vmatprep.subr.bf16.mxu0 %v4721
    %7014 = vmatpush2.bf16.msra.mxu0 %v4720
    %7015 = vmatprep.subr.bf16.mxu0 %v4705
    %7016 = vmatpush2.bf16.msra.mxu0 %v4704
    %7017 = vmatprep.subr.bf16.mxu0 %v4689
    %7018 = vmatpush2.bf16.msra.mxu0 %v4688
    %7019 = vmatprep.subr.bf16.mxu0 %v4673
    %7020 = vmatpush2.bf16.msra.mxu0 %v4672
    %7021 = vmatprep.subr.bf16.mxu0 %v4657
    %7022 = vmatpush2.bf16.msra.mxu0 %v4656
    %7023 = vmatprep.subr.bf16.mxu0 %v4641
    %7024 = vmatpush2.bf16.msra.mxu0 %v4640
    %7025 = vmatprep.mubr.bf16.mxu0 %v1163
    %7026 = vmatmul.mubr.bf16.gmra.mxu0 %v1162
    %v7027 = vpop.f32.mrf.mxu0
    %v7028 = vadd.f32 %v6987, %v7027
    %v7029 = vpop.f32.mrf.mxu0
    %v7030 = vadd.f32 %v6989, %v7029
    %v7031 = vpop.f32.mrf.mxu0
    %v7032 = vpop.f32.mrf.mxu0
    %7033 = vdwg.mxu0
    %7034 = vmatprep.subr.bf16.mxu0 %v4881
    %7035 = vmatpush1.bf16.msra.mxu0 %v4880
    %7036 = vmatprep.subr.bf16.mxu0 %v4865
    %7037 = vmatpush1.bf16.msra.mxu0 %v4864
    %7038 = vmatprep.subr.bf16.mxu0 %v4849
    %7039 = vmatpush1.bf16.msra.mxu0 %v4848
    %7040 = vmatprep.subr.bf16.mxu0 %v4833
    %7041 = vmatpush1.bf16.msra.mxu0 %v4832
    %7042 = vmatprep.subr.bf16.mxu0 %v4817
    %7043 = vmatpush1.bf16.msra.mxu0 %v4816
    %7044 = vmatprep.subr.bf16.mxu0 %v4801
    %7045 = vmatpush1.bf16.msra.mxu0 %v4800
    %7046 = vmatprep.subr.bf16.mxu0 %v4785
    %7047 = vmatpush1.bf16.msra.mxu0 %v4784
    %7048 = vmatprep.subr.bf16.mxu0 %v4769
    %7049 = vmatpush1.bf16.msra.mxu0 %v4768
    %7050 = vmatprep.subr.bf16.mxu0 %v5009
    %7051 = vmatpush2.bf16.msra.mxu0 %v5008
    %7052 = vmatprep.subr.bf16.mxu0 %v4993
    %7053 = vmatpush2.bf16.msra.mxu0 %v4992
    %7054 = vmatprep.subr.bf16.mxu0 %v4977
    %7055 = vmatpush2.bf16.msra.mxu0 %v4976
    %7056 = vmatprep.subr.bf16.mxu0 %v4961
    %7057 = vmatpush2.bf16.msra.mxu0 %v4960
    %7058 = vmatprep.subr.bf16.mxu0 %v4945
    %7059 = vmatpush2.bf16.msra.mxu0 %v4944
    %7060 = vmatprep.subr.bf16.mxu0 %v4929
    %7061 = vmatpush2.bf16.msra.mxu0 %v4928
    %7062 = vmatprep.subr.bf16.mxu0 %v4913
    %7063 = vmatpush2.bf16.msra.mxu0 %v4912
    %7064 = vmatprep.subr.bf16.mxu0 %v4897
    %7065 = vmatpush2.bf16.msra.mxu0 %v4896
    %7066 = vmatprep.mubr.bf16.mxu0 %v1165
    %7067 = vmatmul.mubr.bf16.gmra.mxu0 %v1164
    %v7068 = vpop.f32.mrf.mxu0
    %v7069 = vadd.f32 %v7028, %v7068
    %v7070 = vpop.f32.mrf.mxu0
    %v7071 = vadd.f32 %v7030, %v7070
    %v7072 = vpop.f32.mrf.mxu0
    %v7073 = vpop.f32.mrf.mxu0
    %7074 = vdwg.mxu0
    %7075 = vmatprep.subr.bf16.mxu0 %v5137
    %7076 = vmatpush1.bf16.msra.mxu0 %v5136
    %7077 = vmatprep.subr.bf16.mxu0 %v5121
    %7078 = vmatpush1.bf16.msra.mxu0 %v5120
    %7079 = vmatprep.subr.bf16.mxu0 %v5105
    %7080 = vmatpush1.bf16.msra.mxu0 %v5104
    %7081 = vmatprep.subr.bf16.mxu0 %v5089
    %7082 = vmatpush1.bf16.msra.mxu0 %v5088
    %7083 = vmatprep.subr.bf16.mxu0 %v5073
    %7084 = vmatpush1.bf16.msra.mxu0 %v5072
    %7085 = vmatprep.subr.bf16.mxu0 %v5057
    %7086 = vmatpush1.bf16.msra.mxu0 %v5056
    %7087 = vmatprep.subr.bf16.mxu0 %v5041
    %7088 = vmatpush1.bf16.msra.mxu0 %v5040
    %7089 = vmatprep.subr.bf16.mxu0 %v5025
    %7090 = vmatpush1.bf16.msra.mxu0 %v5024
    %7091 = vmatprep.subr.bf16.mxu0 %v5265
    %7092 = vmatpush2.bf16.msra.mxu0 %v5264
    %7093 = vmatprep.subr.bf16.mxu0 %v5249
    %7094 = vmatpush2.bf16.msra.mxu0 %v5248
    %7095 = vmatprep.subr.bf16.mxu0 %v5233
    %7096 = vmatpush2.bf16.msra.mxu0 %v5232
    %7097 = vmatprep.subr.bf16.mxu0 %v5217
    %7098 = vmatpush2.bf16.msra.mxu0 %v5216
    %7099 = vmatprep.subr.bf16.mxu0 %v5201
    %7100 = vmatpush2.bf16.msra.mxu0 %v5200
    %7101 = vmatprep.subr.bf16.mxu0 %v5185
    %7102 = vmatpush2.bf16.msra.mxu0 %v5184
    %7103 = vmatprep.subr.bf16.mxu0 %v5169
    %7104 = vmatpush2.bf16.msra.mxu0 %v5168
    %7105 = vmatprep.subr.bf16.mxu0 %v5153
    %7106 = vmatpush2.bf16.msra.mxu0 %v5152
    %7107 = vmatprep.mubr.bf16.mxu0 %v1167
    %7108 = vmatmul.mubr.bf16.gmra.mxu0 %v1166
    %v7109 = vpop.f32.mrf.mxu0
    %v7110 = vadd.f32 %v7069, %v7109
    %v7111 = vpop.f32.mrf.mxu0
    %v7112 = vadd.f32 %v7071, %v7111
    %v7113 = vpop.f32.mrf.mxu0
    %v7114 = vpop.f32.mrf.mxu0
    %7115 = vdwg.mxu0
    %7116 = vmatprep.subr.bf16.mxu0 %v4371
    %7117 = vmatpush1.bf16.msra.mxu0 %v4370
    %7118 = vmatprep.subr.bf16.mxu0 %v4355
    %7119 = vmatpush1.bf16.msra.mxu0 %v4354
    %7120 = vmatprep.subr.bf16.mxu0 %v4339
    %7121 = vmatpush1.bf16.msra.mxu0 %v4338
    %7122 = vmatprep.subr.bf16.mxu0 %v4323
    %7123 = vmatpush1.bf16.msra.mxu0 %v4322
    %7124 = vmatprep.subr.bf16.mxu0 %v4307
    %7125 = vmatpush1.bf16.msra.mxu0 %v4306
    %7126 = vmatprep.subr.bf16.mxu0 %v4291
    %7127 = vmatpush1.bf16.msra.mxu0 %v4290
    %7128 = vmatprep.subr.bf16.mxu0 %v4275
    %7129 = vmatpush1.bf16.msra.mxu0 %v4274
    %7130 = vmatprep.subr.bf16.mxu0 %v4259
    %7131 = vmatpush1.bf16.msra.mxu0 %v4258
    %7132 = vmatprep.subr.bf16.mxu0 %v4499
    %7133 = vmatpush2.bf16.msra.mxu0 %v4498
    %7134 = vmatprep.subr.bf16.mxu0 %v4483
    %7135 = vmatpush2.bf16.msra.mxu0 %v4482
    %7136 = vmatprep.subr.bf16.mxu0 %v4467
    %7137 = vmatpush2.bf16.msra.mxu0 %v4466
    %7138 = vmatprep.subr.bf16.mxu0 %v4451
    %7139 = vmatpush2.bf16.msra.mxu0 %v4450
    %7140 = vmatprep.subr.bf16.mxu0 %v4435
    %7141 = vmatpush2.bf16.msra.mxu0 %v4434
    %7142 = vmatprep.subr.bf16.mxu0 %v4419
    %7143 = vmatpush2.bf16.msra.mxu0 %v4418
    %7144 = vmatprep.subr.bf16.mxu0 %v4403
    %7145 = vmatpush2.bf16.msra.mxu0 %v4402
    %7146 = vmatprep.subr.bf16.mxu0 %v4387
    %7147 = vmatpush2.bf16.msra.mxu0 %v4386
    %7148 = vmatprep.mubr.bf16.mxu0 %v1161
    %7149 = vmatmul.mubr.bf16.gmra.mxu0 %v1160
    %v7150 = vpop.f32.mrf.mxu0
    %v7151 = vadd.f32 0.0, %v7150
    %v7152 = vpop.f32.mrf.mxu0
    %v7153 = vadd.f32 0.0, %v7152
    %v7154 = vpop.f32.mrf.mxu0
    %v7155 = vpop.f32.mrf.mxu0
    %7156 = vdwg.mxu0
    %7157 = vmatprep.subr.bf16.mxu0 %v4627
    %7158 = vmatpush1.bf16.msra.mxu0 %v4626
    %7159 = vmatprep.subr.bf16.mxu0 %v4611
    %7160 = vmatpush1.bf16.msra.mxu0 %v4610
    %7161 = vmatprep.subr.bf16.mxu0 %v4595
    %7162 = vmatpush1.bf16.msra.mxu0 %v4594
    %7163 = vmatprep.subr.bf16.mxu0 %v4579
    %7164 = vmatpush1.bf16.msra.mxu0 %v4578
    %7165 = vmatprep.subr.bf16.mxu0 %v4563
    %7166 = vmatpush1.bf16.msra.mxu0 %v4562
    %7167 = vmatprep.subr.bf16.mxu0 %v4547
    %7168 = vmatpush1.bf16.msra.mxu0 %v4546
    %7169 = vmatprep.subr.bf16.mxu0 %v4531
    %7170 = vmatpush1.bf16.msra.mxu0 %v4530
    %7171 = vmatprep.subr.bf16.mxu0 %v4515
    %7172 = vmatpush1.bf16.msra.mxu0 %v4514
    %7173 = vmatprep.subr.bf16.mxu0 %v4755
    %7174 = vmatpush2.bf16.msra.mxu0 %v4754
    %7175 = vmatprep.subr.bf16.mxu0 %v4739
    %7176 = vmatpush2.bf16.msra.mxu0 %v4738
    %7177 = vmatprep.subr.bf16.mxu0 %v4723
    %7178 = vmatpush2.bf16.msra.mxu0 %v4722
    %7179 = vmatprep.subr.bf16.mxu0 %v4707
    %7180 = vmatpush2.bf16.msra.mxu0 %v4706
    %7181 = vmatprep.subr.bf16.mxu0 %v4691
    %7182 = vmatpush2.bf16.msra.mxu0 %v4690
    %7183 = vmatprep.subr.bf16.mxu0 %v4675
    %7184 = vmatpush2.bf16.msra.mxu0 %v4674
    %7185 = vmatprep.subr.bf16.mxu0 %v4659
    %7186 = vmatpush2.bf16.msra.mxu0 %v4658
    %7187 = vmatprep.subr.bf16.mxu0 %v4643
    %7188 = vmatpush2.bf16.msra.mxu0 %v4642
    %7189 = vmatprep.mubr.bf16.mxu0 %v1163
    %7190 = vmatmul.mubr.bf16.gmra.mxu0 %v1162
    %v7191 = vpop.f32.mrf.mxu0
    %v7192 = vadd.f32 %v7151, %v7191
    %v7193 = vpop.f32.mrf.mxu0
    %v7194 = vadd.f32 %v7153, %v7193
    %v7195 = vpop.f32.mrf.mxu0
    %v7196 = vpop.f32.mrf.mxu0
    %7197 = vdwg.mxu0
    %7198 = vmatprep.subr.bf16.mxu0 %v4883
    %7199 = vmatpush1.bf16.msra.mxu0 %v4882
    %7200 = vmatprep.subr.bf16.mxu0 %v4867
    %7201 = vmatpush1.bf16.msra.mxu0 %v4866
    %7202 = vmatprep.subr.bf16.mxu0 %v4851
    %7203 = vmatpush1.bf16.msra.mxu0 %v4850
    %7204 = vmatprep.subr.bf16.mxu0 %v4835
    %7205 = vmatpush1.bf16.msra.mxu0 %v4834
    %7206 = vmatprep.subr.bf16.mxu0 %v4819
    %7207 = vmatpush1.bf16.msra.mxu0 %v4818
    %7208 = vmatprep.subr.bf16.mxu0 %v4803
    %7209 = vmatpush1.bf16.msra.mxu0 %v4802
    %7210 = vmatprep.subr.bf16.mxu0 %v4787
    %7211 = vmatpush1.bf16.msra.mxu0 %v4786
    %7212 = vmatprep.subr.bf16.mxu0 %v4771
    %7213 = vmatpush1.bf16.msra.mxu0 %v4770
    %7214 = vmatprep.subr.bf16.mxu0 %v5011
    %7215 = vmatpush2.bf16.msra.mxu0 %v5010
    %7216 = vmatprep.subr.bf16.mxu0 %v4995
    %7217 = vmatpush2.bf16.msra.mxu0 %v4994
    %7218 = vmatprep.subr.bf16.mxu0 %v4979
    %7219 = vmatpush2.bf16.msra.mxu0 %v4978
    %7220 = vmatprep.subr.bf16.mxu0 %v4963
    %7221 = vmatpush2.bf16.msra.mxu0 %v4962
    %7222 = vmatprep.subr.bf16.mxu0 %v4947
    %7223 = vmatpush2.bf16.msra.mxu0 %v4946
    %7224 = vmatprep.subr.bf16.mxu0 %v4931
    %7225 = vmatpush2.bf16.msra.mxu0 %v4930
    %7226 = vmatprep.subr.bf16.mxu0 %v4915
    %7227 = vmatpush2.bf16.msra.mxu0 %v4914
    %7228 = vmatprep.subr.bf16.mxu0 %v4899
    %7229 = vmatpush2.bf16.msra.mxu0 %v4898
    %7230 = vmatprep.mubr.bf16.mxu0 %v1165
    %7231 = vmatmul.mubr.bf16.gmra.mxu0 %v1164
    %v7232 = vpop.f32.mrf.mxu0
    %v7233 = vadd.f32 %v7192, %v7232
    %v7234 = vpop.f32.mrf.mxu0
    %v7235 = vadd.f32 %v7194, %v7234
    %v7236 = vpop.f32.mrf.mxu0
    %v7237 = vpop.f32.mrf.mxu0
    %7238 = vdwg.mxu0
    %7239 = vmatprep.subr.bf16.mxu0 %v5139
    %7240 = vmatpush1.bf16.msra.mxu0 %v5138
    %7241 = vmatprep.subr.bf16.mxu0 %v5123
    %7242 = vmatpush1.bf16.msra.mxu0 %v5122
    %7243 = vmatprep.subr.bf16.mxu0 %v5107
    %7244 = vmatpush1.bf16.msra.mxu0 %v5106
    %7245 = vmatprep.subr.bf16.mxu0 %v5091
    %7246 = vmatpush1.bf16.msra.mxu0 %v5090
    %7247 = vmatprep.subr.bf16.mxu0 %v5075
    %7248 = vmatpush1.bf16.msra.mxu0 %v5074
    %7249 = vmatprep.subr.bf16.mxu0 %v5059
    %7250 = vmatpush1.bf16.msra.mxu0 %v5058
    %7251 = vmatprep.subr.bf16.mxu0 %v5043
    %7252 = vmatpush1.bf16.msra.mxu0 %v5042
    %7253 = vmatprep.subr.bf16.mxu0 %v5027
    %7254 = vmatpush1.bf16.msra.mxu0 %v5026
    %7255 = vmatprep.subr.bf16.mxu0 %v5267
    %7256 = vmatpush2.bf16.msra.mxu0 %v5266
    %7257 = vmatprep.subr.bf16.mxu0 %v5251
    %7258 = vmatpush2.bf16.msra.mxu0 %v5250
    %7259 = vmatprep.subr.bf16.mxu0 %v5235
    %7260 = vmatpush2.bf16.msra.mxu0 %v5234
    %7261 = vmatprep.subr.bf16.mxu0 %v5219
    %7262 = vmatpush2.bf16.msra.mxu0 %v5218
    %7263 = vmatprep.subr.bf16.mxu0 %v5203
    %7264 = vmatpush2.bf16.msra.mxu0 %v5202
    %7265 = vmatprep.subr.bf16.mxu0 %v5187
    %7266 = vmatpush2.bf16.msra.mxu0 %v5186
    %7267 = vmatprep.subr.bf16.mxu0 %v5171
    %7268 = vmatpush2.bf16.msra.mxu0 %v5170
    %7269 = vmatprep.subr.bf16.mxu0 %v5155
    %7270 = vmatpush2.bf16.msra.mxu0 %v5154
    %7271 = vmatprep.mubr.bf16.mxu0 %v1167
    %7272 = vmatmul.mubr.bf16.gmra.mxu0 %v1166
    %v7273 = vpop.f32.mrf.mxu0
    %v7274 = vadd.f32 %v7233, %v7273
    %v7275 = vpop.f32.mrf.mxu0
    %v7276 = vadd.f32 %v7235, %v7275
    %v7277 = vpop.f32.mrf.mxu0
    %v7278 = vpop.f32.mrf.mxu0
    %7279 = vdwg.mxu0
    %7280 = vmatprep.subr.bf16.mxu0 %v4373
    %7281 = vmatpush1.bf16.msra.mxu0 %v4372
    %7282 = vmatprep.subr.bf16.mxu0 %v4357
    %7283 = vmatpush1.bf16.msra.mxu0 %v4356
    %7284 = vmatprep.subr.bf16.mxu0 %v4341
    %7285 = vmatpush1.bf16.msra.mxu0 %v4340
    %7286 = vmatprep.subr.bf16.mxu0 %v4325
    %7287 = vmatpush1.bf16.msra.mxu0 %v4324
    %7288 = vmatprep.subr.bf16.mxu0 %v4309
    %7289 = vmatpush1.bf16.msra.mxu0 %v4308
    %7290 = vmatprep.subr.bf16.mxu0 %v4293
    %7291 = vmatpush1.bf16.msra.mxu0 %v4292
    %7292 = vmatprep.subr.bf16.mxu0 %v4277
    %7293 = vmatpush1.bf16.msra.mxu0 %v4276
    %7294 = vmatprep.subr.bf16.mxu0 %v4261
    %7295 = vmatpush1.bf16.msra.mxu0 %v4260
    %7296 = vmatprep.subr.bf16.mxu0 %v4501
    %7297 = vmatpush2.bf16.msra.mxu0 %v4500
    %7298 = vmatprep.subr.bf16.mxu0 %v4485
    %7299 = vmatpush2.bf16.msra.mxu0 %v4484
    %7300 = vmatprep.subr.bf16.mxu0 %v4469
    %7301 = vmatpush2.bf16.msra.mxu0 %v4468
    %7302 = vmatprep.subr.bf16.mxu0 %v4453
    %7303 = vmatpush2.bf16.msra.mxu0 %v4452
    %7304 = vmatprep.subr.bf16.mxu0 %v4437
    %7305 = vmatpush2.bf16.msra.mxu0 %v4436
    %7306 = vmatprep.subr.bf16.mxu0 %v4421
    %7307 = vmatpush2.bf16.msra.mxu0 %v4420
    %7308 = vmatprep.subr.bf16.mxu0 %v4405
    %7309 = vmatpush2.bf16.msra.mxu0 %v4404
    %7310 = vmatprep.subr.bf16.mxu0 %v4389
    %7311 = vmatpush2.bf16.msra.mxu0 %v4388
    %7312 = vmatprep.mubr.bf16.mxu0 %v1161
    %7313 = vmatmul.mubr.bf16.gmra.mxu0 %v1160
    %v7314 = vpop.f32.mrf.mxu0
    %v7315 = vadd.f32 0.0, %v7314
    %v7316 = vpop.f32.mrf.mxu0
    %v7317 = vadd.f32 0.0, %v7316
    %v7318 = vpop.f32.mrf.mxu0
    %v7319 = vpop.f32.mrf.mxu0
    %7320 = vdwg.mxu0
    %7321 = vmatprep.subr.bf16.mxu0 %v4629
    %7322 = vmatpush1.bf16.msra.mxu0 %v4628
    %7323 = vmatprep.subr.bf16.mxu0 %v4613
    %7324 = vmatpush1.bf16.msra.mxu0 %v4612
    %7325 = vmatprep.subr.bf16.mxu0 %v4597
    %7326 = vmatpush1.bf16.msra.mxu0 %v4596
    %7327 = vmatprep.subr.bf16.mxu0 %v4581
    %7328 = vmatpush1.bf16.msra.mxu0 %v4580
    %7329 = vmatprep.subr.bf16.mxu0 %v4565
    %7330 = vmatpush1.bf16.msra.mxu0 %v4564
    %7331 = vmatprep.subr.bf16.mxu0 %v4549
    %7332 = vmatpush1.bf16.msra.mxu0 %v4548
    %7333 = vmatprep.subr.bf16.mxu0 %v4533
    %7334 = vmatpush1.bf16.msra.mxu0 %v4532
    %7335 = vmatprep.subr.bf16.mxu0 %v4517
    %7336 = vmatpush1.bf16.msra.mxu0 %v4516
    %7337 = vmatprep.subr.bf16.mxu0 %v4757
    %7338 = vmatpush2.bf16.msra.mxu0 %v4756
    %7339 = vmatprep.subr.bf16.mxu0 %v4741
    %7340 = vmatpush2.bf16.msra.mxu0 %v4740
    %7341 = vmatprep.subr.bf16.mxu0 %v4725
    %7342 = vmatpush2.bf16.msra.mxu0 %v4724
    %7343 = vmatprep.subr.bf16.mxu0 %v4709
    %7344 = vmatpush2.bf16.msra.mxu0 %v4708
    %7345 = vmatprep.subr.bf16.mxu0 %v4693
    %7346 = vmatpush2.bf16.msra.mxu0 %v4692
    %7347 = vmatprep.subr.bf16.mxu0 %v4677
    %7348 = vmatpush2.bf16.msra.mxu0 %v4676
    %7349 = vmatprep.subr.bf16.mxu0 %v4661
    %7350 = vmatpush2.bf16.msra.mxu0 %v4660
    %7351 = vmatprep.subr.bf16.mxu0 %v4645
    %7352 = vmatpush2.bf16.msra.mxu0 %v4644
    %7353 = vmatprep.mubr.bf16.mxu0 %v1163
    %7354 = vmatmul.mubr.bf16.gmra.mxu0 %v1162
    %v7355 = vpop.f32.mrf.mxu0
    %v7356 = vadd.f32 %v7315, %v7355
    %v7357 = vpop.f32.mrf.mxu0
    %v7358 = vadd.f32 %v7317, %v7357
    %v7359 = vpop.f32.mrf.mxu0
    %v7360 = vpop.f32.mrf.mxu0
    %7361 = vdwg.mxu0
    %7362 = vmatprep.subr.bf16.mxu0 %v4885
    %7363 = vmatpush1.bf16.msra.mxu0 %v4884
    %7364 = vmatprep.subr.bf16.mxu0 %v4869
    %7365 = vmatpush1.bf16.msra.mxu0 %v4868
    %7366 = vmatprep.subr.bf16.mxu0 %v4853
    %7367 = vmatpush1.bf16.msra.mxu0 %v4852
    %7368 = vmatprep.subr.bf16.mxu0 %v4837
    %7369 = vmatpush1.bf16.msra.mxu0 %v4836
    %7370 = vmatprep.subr.bf16.mxu0 %v4821
    %7371 = vmatpush1.bf16.msra.mxu0 %v4820
    %7372 = vmatprep.subr.bf16.mxu0 %v4805
    %7373 = vmatpush1.bf16.msra.mxu0 %v4804
    %7374 = vmatprep.subr.bf16.mxu0 %v4789
    %7375 = vmatpush1.bf16.msra.mxu0 %v4788
    %7376 = vmatprep.subr.bf16.mxu0 %v4773
    %7377 = vmatpush1.bf16.msra.mxu0 %v4772
    %7378 = vmatprep.subr.bf16.mxu0 %v5013
    %7379 = vmatpush2.bf16.msra.mxu0 %v5012
    %7380 = vmatprep.subr.bf16.mxu0 %v4997
    %7381 = vmatpush2.bf16.msra.mxu0 %v4996
    %7382 = vmatprep.subr.bf16.mxu0 %v4981
    %7383 = vmatpush2.bf16.msra.mxu0 %v4980
    %7384 = vmatprep.subr.bf16.mxu0 %v4965
    %7385 = vmatpush2.bf16.msra.mxu0 %v4964
    %7386 = vmatprep.subr.bf16.mxu0 %v4949
    %7387 = vmatpush2.bf16.msra.mxu0 %v4948
    %7388 = vmatprep.subr.bf16.mxu0 %v4933
    %7389 = vmatpush2.bf16.msra.mxu0 %v4932
    %7390 = vmatprep.subr.bf16.mxu0 %v4917
    %7391 = vmatpush2.bf16.msra.mxu0 %v4916
    %7392 = vmatprep.subr.bf16.mxu0 %v4901
    %7393 = vmatpush2.bf16.msra.mxu0 %v4900
    %7394 = vmatprep.mubr.bf16.mxu0 %v1165
    %7395 = vmatmul.mubr.bf16.gmra.mxu0 %v1164
    %v7396 = vpop.f32.mrf.mxu0
    %v7397 = vadd.f32 %v7356, %v7396
    %v7398 = vpop.f32.mrf.mxu0
    %v7399 = vadd.f32 %v7358, %v7398
    %v7400 = vpop.f32.mrf.mxu0
    %v7401 = vpop.f32.mrf.mxu0
    %7402 = vdwg.mxu0
    %7403 = vmatprep.subr.bf16.mxu0 %v5141
    %7404 = vmatpush1.bf16.msra.mxu0 %v5140
    %7405 = vmatprep.subr.bf16.mxu0 %v5125
    %7406 = vmatpush1.bf16.msra.mxu0 %v5124
    %7407 = vmatprep.subr.bf16.mxu0 %v5109
    %7408 = vmatpush1.bf16.msra.mxu0 %v5108
    %7409 = vmatprep.subr.bf16.mxu0 %v5093
    %7410 = vmatpush1.bf16.msra.mxu0 %v5092
    %7411 = vmatprep.subr.bf16.mxu0 %v5077
    %7412 = vmatpush1.bf16.msra.mxu0 %v5076
    %7413 = vmatprep.subr.bf16.mxu0 %v5061
    %7414 = vmatpush1.bf16.msra.mxu0 %v5060
    %7415 = vmatprep.subr.bf16.mxu0 %v5045
    %7416 = vmatpush1.bf16.msra.mxu0 %v5044
    %7417 = vmatprep.subr.bf16.mxu0 %v5029
    %7418 = vmatpush1.bf16.msra.mxu0 %v5028
    %7419 = vmatprep.subr.bf16.mxu0 %v5269
    %7420 = vmatpush2.bf16.msra.mxu0 %v5268
    %7421 = vmatprep.subr.bf16.mxu0 %v5253
    %7422 = vmatpush2.bf16.msra.mxu0 %v5252
    %7423 = vmatprep.subr.bf16.mxu0 %v5237
    %7424 = vmatpush2.bf16.msra.mxu0 %v5236
    %7425 = vmatprep.subr.bf16.mxu0 %v5221
    %7426 = vmatpush2.bf16.msra.mxu0 %v5220
    %7427 = vmatprep.subr.bf16.mxu0 %v5205
    %7428 = vmatpush2.bf16.msra.mxu0 %v5204
    %7429 = vmatprep.subr.bf16.mxu0 %v5189
    %7430 = vmatpush2.bf16.msra.mxu0 %v5188
    %7431 = vmatprep.subr.bf16.mxu0 %v5173
    %7432 = vmatpush2.bf16.msra.mxu0 %v5172
    %7433 = vmatprep.subr.bf16.mxu0 %v5157
    %7434 = vmatpush2.bf16.msra.mxu0 %v5156
    %7435 = vmatprep.mubr.bf16.mxu0 %v1167
    %7436 = vmatmul.mubr.bf16.gmra.mxu0 %v1166
    %v7437 = vpop.f32.mrf.mxu0
    %v7438 = vadd.f32 %v7397, %v7437
    %v7439 = vpop.f32.mrf.mxu0
    %v7440 = vadd.f32 %v7399, %v7439
    %v7441 = vpop.f32.mrf.mxu0
    %v7442 = vpop.f32.mrf.mxu0
    %7443 = vdwg.mxu0
    %7444 = vmatprep.subr.bf16.mxu0 %v4375
    %7445 = vmatpush1.bf16.msra.mxu0 %v4374
    %7446 = vmatprep.subr.bf16.mxu0 %v4359
    %7447 = vmatpush1.bf16.msra.mxu0 %v4358
    %7448 = vmatprep.subr.bf16.mxu0 %v4343
    %7449 = vmatpush1.bf16.msra.mxu0 %v4342
    %7450 = vmatprep.subr.bf16.mxu0 %v4327
    %7451 = vmatpush1.bf16.msra.mxu0 %v4326
    %7452 = vmatprep.subr.bf16.mxu0 %v4311
    %7453 = vmatpush1.bf16.msra.mxu0 %v4310
    %7454 = vmatprep.subr.bf16.mxu0 %v4295
    %7455 = vmatpush1.bf16.msra.mxu0 %v4294
    %7456 = vmatprep.subr.bf16.mxu0 %v4279
    %7457 = vmatpush1.bf16.msra.mxu0 %v4278
    %7458 = vmatprep.subr.bf16.mxu0 %v4263
    %7459 = vmatpush1.bf16.msra.mxu0 %v4262
    %7460 = vmatprep.subr.bf16.mxu0 %v4503
    %7461 = vmatpush2.bf16.msra.mxu0 %v4502
    %7462 = vmatprep.subr.bf16.mxu0 %v4487
    %7463 = vmatpush2.bf16.msra.mxu0 %v4486
    %7464 = vmatprep.subr.bf16.mxu0 %v4471
    %7465 = vmatpush2.bf16.msra.mxu0 %v4470
    %7466 = vmatprep.subr.bf16.mxu0 %v4455
    %7467 = vmatpush2.bf16.msra.mxu0 %v4454
    %7468 = vmatprep.subr.bf16.mxu0 %v4439
    %7469 = vmatpush2.bf16.msra.mxu0 %v4438
    %7470 = vmatprep.subr.bf16.mxu0 %v4423
    %7471 = vmatpush2.bf16.msra.mxu0 %v4422
    %7472 = vmatprep.subr.bf16.mxu0 %v4407
    %7473 = vmatpush2.bf16.msra.mxu0 %v4406
    %7474 = vmatprep.subr.bf16.mxu0 %v4391
    %7475 = vmatpush2.bf16.msra.mxu0 %v4390
    %7476 = vmatprep.mubr.bf16.mxu0 %v1161
    %7477 = vmatmul.mubr.bf16.gmra.mxu0 %v1160
    %v7478 = vpop.f32.mrf.mxu0
    %v7479 = vadd.f32 0.0, %v7478
    %v7480 = vpop.f32.mrf.mxu0
    %v7481 = vadd.f32 0.0, %v7480
    %v7482 = vpop.f32.mrf.mxu0
    %v7483 = vpop.f32.mrf.mxu0
    %7484 = vdwg.mxu0
    %7485 = vmatprep.subr.bf16.mxu0 %v4631
    %7486 = vmatpush1.bf16.msra.mxu0 %v4630
    %7487 = vmatprep.subr.bf16.mxu0 %v4615
    %7488 = vmatpush1.bf16.msra.mxu0 %v4614
    %7489 = vmatprep.subr.bf16.mxu0 %v4599
    %7490 = vmatpush1.bf16.msra.mxu0 %v4598
    %7491 = vmatprep.subr.bf16.mxu0 %v4583
    %7492 = vmatpush1.bf16.msra.mxu0 %v4582
    %7493 = vmatprep.subr.bf16.mxu0 %v4567
    %7494 = vmatpush1.bf16.msra.mxu0 %v4566
    %7495 = vmatprep.subr.bf16.mxu0 %v4551
    %7496 = vmatpush1.bf16.msra.mxu0 %v4550
    %7497 = vmatprep.subr.bf16.mxu0 %v4535
    %7498 = vmatpush1.bf16.msra.mxu0 %v4534
    %7499 = vmatprep.subr.bf16.mxu0 %v4519
    %7500 = vmatpush1.bf16.msra.mxu0 %v4518
    %7501 = vmatprep.subr.bf16.mxu0 %v4759
    %7502 = vmatpush2.bf16.msra.mxu0 %v4758
    %7503 = vmatprep.subr.bf16.mxu0 %v4743
    %7504 = vmatpush2.bf16.msra.mxu0 %v4742
    %7505 = vmatprep.subr.bf16.mxu0 %v4727
    %7506 = vmatpush2.bf16.msra.mxu0 %v4726
    %7507 = vmatprep.subr.bf16.mxu0 %v4711
    %7508 = vmatpush2.bf16.msra.mxu0 %v4710
    %7509 = vmatprep.subr.bf16.mxu0 %v4695
    %7510 = vmatpush2.bf16.msra.mxu0 %v4694
    %7511 = vmatprep.subr.bf16.mxu0 %v4679
    %7512 = vmatpush2.bf16.msra.mxu0 %v4678
    %7513 = vmatprep.subr.bf16.mxu0 %v4663
    %7514 = vmatpush2.bf16.msra.mxu0 %v4662
    %7515 = vmatprep.subr.bf16.mxu0 %v4647
    %7516 = vmatpush2.bf16.msra.mxu0 %v4646
    %7517 = vmatprep.mubr.bf16.mxu0 %v1163
    %7518 = vmatmul.mubr.bf16.gmra.mxu0 %v1162
    %v7519 = vpop.f32.mrf.mxu0
    %v7520 = vadd.f32 %v7479, %v7519
    %v7521 = vpop.f32.mrf.mxu0
    %v7522 = vadd.f32 %v7481, %v7521
    %v7523 = vpop.f32.mrf.mxu0
    %v7524 = vpop.f32.mrf.mxu0
    %7525 = vdwg.mxu0
    %7526 = vmatprep.subr.bf16.mxu0 %v4887
    %7527 = vmatpush1.bf16.msra.mxu0 %v4886
    %7528 = vmatprep.subr.bf16.mxu0 %v4871
    %7529 = vmatpush1.bf16.msra.mxu0 %v4870
    %7530 = vmatprep.subr.bf16.mxu0 %v4855
    %7531 = vmatpush1.bf16.msra.mxu0 %v4854
    %7532 = vmatprep.subr.bf16.mxu0 %v4839
    %7533 = vmatpush1.bf16.msra.mxu0 %v4838
    %7534 = vmatprep.subr.bf16.mxu0 %v4823
    %7535 = vmatpush1.bf16.msra.mxu0 %v4822
    %7536 = vmatprep.subr.bf16.mxu0 %v4807
    %7537 = vmatpush1.bf16.msra.mxu0 %v4806
    %7538 = vmatprep.subr.bf16.mxu0 %v4791
    %7539 = vmatpush1.bf16.msra.mxu0 %v4790
    %7540 = vmatprep.subr.bf16.mxu0 %v4775
    %7541 = vmatpush1.bf16.msra.mxu0 %v4774
    %7542 = vmatprep.subr.bf16.mxu0 %v5015
    %7543 = vmatpush2.bf16.msra.mxu0 %v5014
    %7544 = vmatprep.subr.bf16.mxu0 %v4999
    %7545 = vmatpush2.bf16.msra.mxu0 %v4998
    %7546 = vmatprep.subr.bf16.mxu0 %v4983
    %7547 = vmatpush2.bf16.msra.mxu0 %v4982
    %7548 = vmatprep.subr.bf16.mxu0 %v4967
    %7549 = vmatpush2.bf16.msra.mxu0 %v4966
    %7550 = vmatprep.subr.bf16.mxu0 %v4951
    %7551 = vmatpush2.bf16.msra.mxu0 %v4950
    %7552 = vmatprep.subr.bf16.mxu0 %v4935
    %7553 = vmatpush2.bf16.msra.mxu0 %v4934
    %7554 = vmatprep.subr.bf16.mxu0 %v4919
    %7555 = vmatpush2.bf16.msra.mxu0 %v4918
    %7556 = vmatprep.subr.bf16.mxu0 %v4903
    %7557 = vmatpush2.bf16.msra.mxu0 %v4902
    %7558 = vmatprep.mubr.bf16.mxu0 %v1165
    %7559 = vmatmul.mubr.bf16.gmra.mxu0 %v1164
    %v7560 = vpop.f32.mrf.mxu0
    %v7561 = vadd.f32 %v7520, %v7560
    %v7562 = vpop.f32.mrf.mxu0
    %v7563 = vadd.f32 %v7522, %v7562
    %v7564 = vpop.f32.mrf.mxu0
    %v7565 = vpop.f32.mrf.mxu0
    %7566 = vdwg.mxu0
    %7567 = vmatprep.subr.bf16.mxu0 %v5143
    %7568 = vmatpush1.bf16.msra.mxu0 %v5142
    %7569 = vmatprep.subr.bf16.mxu0 %v5127
    %7570 = vmatpush1.bf16.msra.mxu0 %v5126
    %7571 = vmatprep.subr.bf16.mxu0 %v5111
    %7572 = vmatpush1.bf16.msra.mxu0 %v5110
    %7573 = vmatprep.subr.bf16.mxu0 %v5095
    %7574 = vmatpush1.bf16.msra.mxu0 %v5094
    %7575 = vmatprep.subr.bf16.mxu0 %v5079
    %7576 = vmatpush1.bf16.msra.mxu0 %v5078
    %7577 = vmatprep.subr.bf16.mxu0 %v5063
    %7578 = vmatpush1.bf16.msra.mxu0 %v5062
    %7579 = vmatprep.subr.bf16.mxu0 %v5047
    %7580 = vmatpush1.bf16.msra.mxu0 %v5046
    %7581 = vmatprep.subr.bf16.mxu0 %v5031
    %7582 = vmatpush1.bf16.msra.mxu0 %v5030
    %7583 = vmatprep.subr.bf16.mxu0 %v5271
    %7584 = vmatpush2.bf16.msra.mxu0 %v5270
    %7585 = vmatprep.subr.bf16.mxu0 %v5255
    %7586 = vmatpush2.bf16.msra.mxu0 %v5254
    %7587 = vmatprep.subr.bf16.mxu0 %v5239
    %7588 = vmatpush2.bf16.msra.mxu0 %v5238
    %7589 = vmatprep.subr.bf16.mxu0 %v5223
    %7590 = vmatpush2.bf16.msra.mxu0 %v5222
    %7591 = vmatprep.subr.bf16.mxu0 %v5207
    %7592 = vmatpush2.bf16.msra.mxu0 %v5206
    %7593 = vmatprep.subr.bf16.mxu0 %v5191
    %7594 = vmatpush2.bf16.msra.mxu0 %v5190
    %7595 = vmatprep.subr.bf16.mxu0 %v5175
    %7596 = vmatpush2.bf16.msra.mxu0 %v5174
    %7597 = vmatprep.subr.bf16.mxu0 %v5159
    %7598 = vmatpush2.bf16.msra.mxu0 %v5158
    %7599 = vmatprep.mubr.bf16.mxu0 %v1167
    %7600 = vmatmul.mubr.bf16.gmra.mxu0 %v1166
    %v7601 = vpop.f32.mrf.mxu0
    %v7602 = vadd.f32 %v7561, %v7601
    %v7603 = vpop.f32.mrf.mxu0
    %v7604 = vadd.f32 %v7563, %v7603
    %v7605 = vpop.f32.mrf.mxu0
    %v7606 = vpop.f32.mrf.mxu0
    %7607 = vdwg.mxu0
    %v7608 = vmax.f32 %v6454, %v6782
    %v7609 = vmax.f32 %v6456, %v6784
    %v7610 = vmax.f32 %v6618, %v6946
    %v7611 = vmax.f32 %v6620, %v6948
    %v7612 = vmax.f32 %v7110, %v7438
    %v7613 = vmax.f32 %v7112, %v7440
    %v7614 = vmax.f32 %v7274, %v7602
    %v7615 = vmax.f32 %v7276, %v7604
    %v7616 = vmax.f32 %v7608, %v7612
    %v7617 = vmax.f32 %v7609, %v7613
    %v7618 = vmax.f32 %v7610, %v7614
    %v7619 = vmax.f32 %v7611, %v7615
    %v7620 = vld [vmem:[#allocation4] sm:$0xf]
    %v7622 = vlaneseq
    %v7623 = vshrl.u32 %v7622, 7
    %v7624 = vsub.s32 0, %v7623
    %v7625 = vrot.slane %v7620, %v7624
    %v7626 = vlaneseq
    %v7627 = vshrl.u32 %v7626, 7
    %v7628 = vsub.s32 1, %v7627
    %v7629 = vrot.slane %v7620, %v7628
    %v7630 = vlaneseq
    %v7631 = vshrl.u32 %v7630, 7
    %v7632 = vsub.s32 2, %v7631
    %v7633 = vrot.slane %v7620, %v7632
    %v7634 = vlaneseq
    %v7635 = vshrl.u32 %v7634, 7
    %v7636 = vsub.s32 3, %v7635
    %v7637 = vrot.slane %v7620, %v7636
    %v7642 = vadd.f32 %v7616, %v7625
    %v7643 = vadd.f32 %v7617, %v7629
    %v7644 = vadd.f32 %v7618, %v7633
    %v7645 = vadd.f32 %v7619, %v7637
    %v7646 = vmax.f32 %v7642, 0.0
    %v7647 = vmax.f32 %v7643, 0.0
    %v7648 = vmax.f32 %v7644, 0.0
    %v7649 = vmax.f32 %v7645, 0.0
    %v7650 = vpack.c.bf16 %v7646, %v7646
    %v7651 = vpack.c.bf16 %v7647, %v7647
    %v7652 = vpack.c.bf16 %v7648, %v7648
    %v7653 = vpack.c.bf16 %v7649, %v7649
    %v7654 = vld [vmem:[#allocation6] sm:$0xff]
    %v7655 = vld [vmem:[#allocation6 + $0x8] sm:$0xff]
    %v7656 = vld [vmem:[#allocation6 + $0x10] sm:$0xff]
    %v7657 = vld [vmem:[#allocation6 + $0x18] sm:$0xff]
    %v7658 = vld [vmem:[#allocation6 + $0x20] sm:$0xff]
    %v7659 = vld [vmem:[#allocation6 + $0x28] sm:$0xff]
    %v7660 = vld [vmem:[#allocation6 + $0x30] sm:$0xff]
    %v7661 = vld [vmem:[#allocation6 + $0x38] sm:$0xff]
    %v7662 = vld [vmem:[#allocation6 + $0x40] sm:$0xff]
    %v7663 = vld [vmem:[#allocation6 + $0x48] sm:$0xff]
    %v7664 = vld [vmem:[#allocation6 + $0x50] sm:$0xff]
    %v7665 = vld [vmem:[#allocation6 + $0x58] sm:$0xff]
    %v7666 = vld [vmem:[#allocation6 + $0x60] sm:$0xff]
    %v7667 = vld [vmem:[#allocation6 + $0x68] sm:$0xff]
    %v7668 = vld [vmem:[#allocation6 + $0x70] sm:$0xff]
    %v7669 = vld [vmem:[#allocation6 + $0x78] sm:$0xff]
    %v7670 = vld [vmem:[#allocation6 + $0x80] sm:$0xff]
    %v7671 = vld [vmem:[#allocation6 + $0x88] sm:$0xff]
    %v7672 = vld [vmem:[#allocation6 + $0x90] sm:$0xff]
    %v7673 = vld [vmem:[#allocation6 + $0x98] sm:$0xff]
    %v7674 = vld [vmem:[#allocation6 + $0xa0] sm:$0xff]
    %v7675 = vld [vmem:[#allocation6 + $0xa8] sm:$0xff]
    %v7676 = vld [vmem:[#allocation6 + $0xb0] sm:$0xff]
    %v7677 = vld [vmem:[#allocation6 + $0xb8] sm:$0xff]
    %v7678 = vld [vmem:[#allocation6 + $0xc0] sm:$0xff]
    %v7679 = vld [vmem:[#allocation6 + $0xc8] sm:$0xff]
    %v7680 = vld [vmem:[#allocation6 + $0xd0] sm:$0xff]
    %v7681 = vld [vmem:[#allocation6 + $0xd8] sm:$0xff]
    %v7682 = vld [vmem:[#allocation6 + $0xe0] sm:$0xff]
    %v7683 = vld [vmem:[#allocation6 + $0xe8] sm:$0xff]
    %v7684 = vld [vmem:[#allocation6 + $0xf0] sm:$0xff]
    %v7685 = vld [vmem:[#allocation6 + $0xf8] sm:$0xff]
    %v7686 = vld [vmem:[#allocation6 + $0x100] sm:$0xff]
    %v7687 = vld [vmem:[#allocation6 + $0x108] sm:$0xff]
    %v7688 = vld [vmem:[#allocation6 + $0x110] sm:$0xff]
    %v7689 = vld [vmem:[#allocation6 + $0x118] sm:$0xff]
    %v7690 = vld [vmem:[#allocation6 + $0x120] sm:$0xff]
    %v7691 = vld [vmem:[#allocation6 + $0x128] sm:$0xff]
    %v7692 = vld [vmem:[#allocation6 + $0x130] sm:$0xff]
    %v7693 = vld [vmem:[#allocation6 + $0x138] sm:$0xff]
    %v7694 = vld [vmem:[#allocation6 + $0x140] sm:$0xff]
    %v7695 = vld [vmem:[#allocation6 + $0x148] sm:$0xff]
    %v7696 = vld [vmem:[#allocation6 + $0x150] sm:$0xff]
    %v7697 = vld [vmem:[#allocation6 + $0x158] sm:$0xff]
    %v7698 = vld [vmem:[#allocation6 + $0x160] sm:$0xff]
    %v7699 = vld [vmem:[#allocation6 + $0x168] sm:$0xff]
    %v7700 = vld [vmem:[#allocation6 + $0x170] sm:$0xff]
    %v7701 = vld [vmem:[#allocation6 + $0x178] sm:$0xff]
    %v7702 = vld [vmem:[#allocation6 + $0x180] sm:$0xff]
    %v7703 = vld [vmem:[#allocation6 + $0x188] sm:$0xff]
    %v7704 = vld [vmem:[#allocation6 + $0x190] sm:$0xff]
    %v7705 = vld [vmem:[#allocation6 + $0x198] sm:$0xff]
    %v7706 = vld [vmem:[#allocation6 + $0x1a0] sm:$0xff]
    %v7707 = vld [vmem:[#allocation6 + $0x1a8] sm:$0xff]
    %v7708 = vld [vmem:[#allocation6 + $0x1b0] sm:$0xff]
    %v7709 = vld [vmem:[#allocation6 + $0x1b8] sm:$0xff]
    %v7710 = vld [vmem:[#allocation6 + $0x1c0] sm:$0xff]
    %v7711 = vld [vmem:[#allocation6 + $0x1c8] sm:$0xff]
    %v7712 = vld [vmem:[#allocation6 + $0x1d0] sm:$0xff]
    %v7713 = vld [vmem:[#allocation6 + $0x1d8] sm:$0xff]
    %v7714 = vld [vmem:[#allocation6 + $0x1e0] sm:$0xff]
    %v7715 = vld [vmem:[#allocation6 + $0x1e8] sm:$0xff]
    %v7716 = vld [vmem:[#allocation6 + $0x1f0] sm:$0xff]
    %v7717 = vld [vmem:[#allocation6 + $0x1f8] sm:$0xff]
    %v7718 = vld [vmem:[#allocation6 + $0x200] sm:$0xff]
    %v7719 = vld [vmem:[#allocation6 + $0x208] sm:$0xff]
    %v7720 = vld [vmem:[#allocation6 + $0x210] sm:$0xff]
    %v7721 = vld [vmem:[#allocation6 + $0x218] sm:$0xff]
    %v7722 = vld [vmem:[#allocation6 + $0x220] sm:$0xff]
    %v7723 = vld [vmem:[#allocation6 + $0x228] sm:$0xff]
    %v7724 = vld [vmem:[#allocation6 + $0x230] sm:$0xff]
    %v7725 = vld [vmem:[#allocation6 + $0x238] sm:$0xff]
    %v7726 = vld [vmem:[#allocation6 + $0x240] sm:$0xff]
    %v7727 = vld [vmem:[#allocation6 + $0x248] sm:$0xff]
    %v7728 = vld [vmem:[#allocation6 + $0x250] sm:$0xff]
    %v7729 = vld [vmem:[#allocation6 + $0x258] sm:$0xff]
    %v7730 = vld [vmem:[#allocation6 + $0x260] sm:$0xff]
    %v7731 = vld [vmem:[#allocation6 + $0x268] sm:$0xff]
    %v7732 = vld [vmem:[#allocation6 + $0x270] sm:$0xff]
    %v7733 = vld [vmem:[#allocation6 + $0x278] sm:$0xff]
    %v7734 = vld [vmem:[#allocation6 + $0x280] sm:$0xff]
    %v7735 = vld [vmem:[#allocation6 + $0x288] sm:$0xff]
    %v7736 = vld [vmem:[#allocation6 + $0x290] sm:$0xff]
    %v7737 = vld [vmem:[#allocation6 + $0x298] sm:$0xff]
    %v7738 = vld [vmem:[#allocation6 + $0x2a0] sm:$0xff]
    %v7739 = vld [vmem:[#allocation6 + $0x2a8] sm:$0xff]
    %v7740 = vld [vmem:[#allocation6 + $0x2b0] sm:$0xff]
    %v7741 = vld [vmem:[#allocation6 + $0x2b8] sm:$0xff]
    %v7742 = vld [vmem:[#allocation6 + $0x2c0] sm:$0xff]
    %v7743 = vld [vmem:[#allocation6 + $0x2c8] sm:$0xff]
    %v7744 = vld [vmem:[#allocation6 + $0x2d0] sm:$0xff]
    %v7745 = vld [vmem:[#allocation6 + $0x2d8] sm:$0xff]
    %v7746 = vld [vmem:[#allocation6 + $0x2e0] sm:$0xff]
    %v7747 = vld [vmem:[#allocation6 + $0x2e8] sm:$0xff]
    %v7748 = vld [vmem:[#allocation6 + $0x2f0] sm:$0xff]
    %v7749 = vld [vmem:[#allocation6 + $0x2f8] sm:$0xff]
    %v7750 = vld [vmem:[#allocation6 + $0x300] sm:$0xff]
    %v7751 = vld [vmem:[#allocation6 + $0x308] sm:$0xff]
    %v7752 = vld [vmem:[#allocation6 + $0x310] sm:$0xff]
    %v7753 = vld [vmem:[#allocation6 + $0x318] sm:$0xff]
    %v7754 = vld [vmem:[#allocation6 + $0x320] sm:$0xff]
    %v7755 = vld [vmem:[#allocation6 + $0x328] sm:$0xff]
    %v7756 = vld [vmem:[#allocation6 + $0x330] sm:$0xff]
    %v7757 = vld [vmem:[#allocation6 + $0x338] sm:$0xff]
    %v7758 = vld [vmem:[#allocation6 + $0x340] sm:$0xff]
    %v7759 = vld [vmem:[#allocation6 + $0x348] sm:$0xff]
    %v7760 = vld [vmem:[#allocation6 + $0x350] sm:$0xff]
    %v7761 = vld [vmem:[#allocation6 + $0x358] sm:$0xff]
    %v7762 = vld [vmem:[#allocation6 + $0x360] sm:$0xff]
    %v7763 = vld [vmem:[#allocation6 + $0x368] sm:$0xff]
    %v7764 = vld [vmem:[#allocation6 + $0x370] sm:$0xff]
    %v7765 = vld [vmem:[#allocation6 + $0x378] sm:$0xff]
    %v7766 = vld [vmem:[#allocation6 + $0x380] sm:$0xff]
    %v7767 = vld [vmem:[#allocation6 + $0x388] sm:$0xff]
    %v7768 = vld [vmem:[#allocation6 + $0x390] sm:$0xff]
    %v7769 = vld [vmem:[#allocation6 + $0x398] sm:$0xff]
    %v7770 = vld [vmem:[#allocation6 + $0x3a0] sm:$0xff]
    %v7771 = vld [vmem:[#allocation6 + $0x3a8] sm:$0xff]
    %v7772 = vld [vmem:[#allocation6 + $0x3b0] sm:$0xff]
    %v7773 = vld [vmem:[#allocation6 + $0x3b8] sm:$0xff]
    %v7774 = vld [vmem:[#allocation6 + $0x3c0] sm:$0xff]
    %v7775 = vld [vmem:[#allocation6 + $0x3c8] sm:$0xff]
    %v7776 = vld [vmem:[#allocation6 + $0x3d0] sm:$0xff]
    %v7777 = vld [vmem:[#allocation6 + $0x3d8] sm:$0xff]
    %v7778 = vld [vmem:[#allocation6 + $0x3e0] sm:$0xff]
    %v7779 = vld [vmem:[#allocation6 + $0x3e8] sm:$0xff]
    %v7780 = vld [vmem:[#allocation6 + $0x3f0] sm:$0xff]
    %v7781 = vld [vmem:[#allocation6 + $0x3f8] sm:$0xff]
    %v7782 = vld [vmem:[#allocation6 + $0x400] sm:$0xff]
    %v7783 = vld [vmem:[#allocation6 + $0x408] sm:$0xff]
    %v7784 = vld [vmem:[#allocation6 + $0x410] sm:$0xff]
    %v7785 = vld [vmem:[#allocation6 + $0x418] sm:$0xff]
    %v7786 = vld [vmem:[#allocation6 + $0x420] sm:$0xff]
    %v7787 = vld [vmem:[#allocation6 + $0x428] sm:$0xff]
    %v7788 = vld [vmem:[#allocation6 + $0x430] sm:$0xff]
    %v7789 = vld [vmem:[#allocation6 + $0x438] sm:$0xff]
    %v7790 = vld [vmem:[#allocation6 + $0x440] sm:$0xff]
    %v7791 = vld [vmem:[#allocation6 + $0x448] sm:$0xff]
    %v7792 = vld [vmem:[#allocation6 + $0x450] sm:$0xff]
    %v7793 = vld [vmem:[#allocation6 + $0x458] sm:$0xff]
    %v7794 = vld [vmem:[#allocation6 + $0x460] sm:$0xff]
    %v7795 = vld [vmem:[#allocation6 + $0x468] sm:$0xff]
    %v7796 = vld [vmem:[#allocation6 + $0x470] sm:$0xff]
    %v7797 = vld [vmem:[#allocation6 + $0x478] sm:$0xff]
    %v7798 = vld [vmem:[#allocation6 + $0x480] sm:$0xff]
    %v7799 = vld [vmem:[#allocation6 + $0x488] sm:$0xff]
    %v7800 = vld [vmem:[#allocation6 + $0x490] sm:$0xff]
    %v7801 = vld [vmem:[#allocation6 + $0x498] sm:$0xff]
    %v7802 = vld [vmem:[#allocation6 + $0x4a0] sm:$0xff]
    %v7803 = vld [vmem:[#allocation6 + $0x4a8] sm:$0xff]
    %v7804 = vld [vmem:[#allocation6 + $0x4b0] sm:$0xff]
    %v7805 = vld [vmem:[#allocation6 + $0x4b8] sm:$0xff]
    %v7806 = vld [vmem:[#allocation6 + $0x4c0] sm:$0xff]
    %v7807 = vld [vmem:[#allocation6 + $0x4c8] sm:$0xff]
    %v7808 = vld [vmem:[#allocation6 + $0x4d0] sm:$0xff]
    %v7809 = vld [vmem:[#allocation6 + $0x4d8] sm:$0xff]
    %v7810 = vld [vmem:[#allocation6 + $0x4e0] sm:$0xff]
    %v7811 = vld [vmem:[#allocation6 + $0x4e8] sm:$0xff]
    %v7812 = vld [vmem:[#allocation6 + $0x4f0] sm:$0xff]
    %v7813 = vld [vmem:[#allocation6 + $0x4f8] sm:$0xff]
    %v7814 = vld [vmem:[#allocation6 + $0x500] sm:$0xff]
    %v7815 = vld [vmem:[#allocation6 + $0x508] sm:$0xff]
    %v7816 = vld [vmem:[#allocation6 + $0x510] sm:$0xff]
    %v7817 = vld [vmem:[#allocation6 + $0x518] sm:$0xff]
    %v7818 = vld [vmem:[#allocation6 + $0x520] sm:$0xff]
    %v7819 = vld [vmem:[#allocation6 + $0x528] sm:$0xff]
    %v7820 = vld [vmem:[#allocation6 + $0x530] sm:$0xff]
    %v7821 = vld [vmem:[#allocation6 + $0x538] sm:$0xff]
    %v7822 = vld [vmem:[#allocation6 + $0x540] sm:$0xff]
    %v7823 = vld [vmem:[#allocation6 + $0x548] sm:$0xff]
    %v7824 = vld [vmem:[#allocation6 + $0x550] sm:$0xff]
    %v7825 = vld [vmem:[#allocation6 + $0x558] sm:$0xff]
    %v7826 = vld [vmem:[#allocation6 + $0x560] sm:$0xff]
    %v7827 = vld [vmem:[#allocation6 + $0x568] sm:$0xff]
    %v7828 = vld [vmem:[#allocation6 + $0x570] sm:$0xff]
    %v7829 = vld [vmem:[#allocation6 + $0x578] sm:$0xff]
    %v7830 = vld [vmem:[#allocation6 + $0x580] sm:$0xff]
    %v7831 = vld [vmem:[#allocation6 + $0x588] sm:$0xff]
    %v7832 = vld [vmem:[#allocation6 + $0x590] sm:$0xff]
    %v7833 = vld [vmem:[#allocation6 + $0x598] sm:$0xff]
    %v7834 = vld [vmem:[#allocation6 + $0x5a0] sm:$0xff]
    %v7835 = vld [vmem:[#allocation6 + $0x5a8] sm:$0xff]
    %v7836 = vld [vmem:[#allocation6 + $0x5b0] sm:$0xff]
    %v7837 = vld [vmem:[#allocation6 + $0x5b8] sm:$0xff]
    %v7838 = vld [vmem:[#allocation6 + $0x5c0] sm:$0xff]
    %v7839 = vld [vmem:[#allocation6 + $0x5c8] sm:$0xff]
    %v7840 = vld [vmem:[#allocation6 + $0x5d0] sm:$0xff]
    %v7841 = vld [vmem:[#allocation6 + $0x5d8] sm:$0xff]
    %v7842 = vld [vmem:[#allocation6 + $0x5e0] sm:$0xff]
    %v7843 = vld [vmem:[#allocation6 + $0x5e8] sm:$0xff]
    %v7844 = vld [vmem:[#allocation6 + $0x5f0] sm:$0xff]
    %v7845 = vld [vmem:[#allocation6 + $0x5f8] sm:$0xff]
    %v7846 = vld [vmem:[#allocation6 + $0x600] sm:$0xff]
    %v7847 = vld [vmem:[#allocation6 + $0x608] sm:$0xff]
    %v7848 = vld [vmem:[#allocation6 + $0x610] sm:$0xff]
    %v7849 = vld [vmem:[#allocation6 + $0x618] sm:$0xff]
    %v7850 = vld [vmem:[#allocation6 + $0x620] sm:$0xff]
    %v7851 = vld [vmem:[#allocation6 + $0x628] sm:$0xff]
    %v7852 = vld [vmem:[#allocation6 + $0x630] sm:$0xff]
    %v7853 = vld [vmem:[#allocation6 + $0x638] sm:$0xff]
    %v7854 = vld [vmem:[#allocation6 + $0x640] sm:$0xff]
    %v7855 = vld [vmem:[#allocation6 + $0x648] sm:$0xff]
    %v7856 = vld [vmem:[#allocation6 + $0x650] sm:$0xff]
    %v7857 = vld [vmem:[#allocation6 + $0x658] sm:$0xff]
    %v7858 = vld [vmem:[#allocation6 + $0x660] sm:$0xff]
    %v7859 = vld [vmem:[#allocation6 + $0x668] sm:$0xff]
    %v7860 = vld [vmem:[#allocation6 + $0x670] sm:$0xff]
    %v7861 = vld [vmem:[#allocation6 + $0x678] sm:$0xff]
    %v7862 = vld [vmem:[#allocation6 + $0x680] sm:$0xff]
    %v7863 = vld [vmem:[#allocation6 + $0x688] sm:$0xff]
    %v7864 = vld [vmem:[#allocation6 + $0x690] sm:$0xff]
    %v7865 = vld [vmem:[#allocation6 + $0x698] sm:$0xff]
    %v7866 = vld [vmem:[#allocation6 + $0x6a0] sm:$0xff]
    %v7867 = vld [vmem:[#allocation6 + $0x6a8] sm:$0xff]
    %v7868 = vld [vmem:[#allocation6 + $0x6b0] sm:$0xff]
    %v7869 = vld [vmem:[#allocation6 + $0x6b8] sm:$0xff]
    %v7870 = vld [vmem:[#allocation6 + $0x6c0] sm:$0xff]
    %v7871 = vld [vmem:[#allocation6 + $0x6c8] sm:$0xff]
    %v7872 = vld [vmem:[#allocation6 + $0x6d0] sm:$0xff]
    %v7873 = vld [vmem:[#allocation6 + $0x6d8] sm:$0xff]
    %v7874 = vld [vmem:[#allocation6 + $0x6e0] sm:$0xff]
    %v7875 = vld [vmem:[#allocation6 + $0x6e8] sm:$0xff]
    %v7876 = vld [vmem:[#allocation6 + $0x6f0] sm:$0xff]
    %v7877 = vld [vmem:[#allocation6 + $0x6f8] sm:$0xff]
    %v7878 = vld [vmem:[#allocation6 + $0x700] sm:$0xff]
    %v7879 = vld [vmem:[#allocation6 + $0x708] sm:$0xff]
    %v7880 = vld [vmem:[#allocation6 + $0x710] sm:$0xff]
    %v7881 = vld [vmem:[#allocation6 + $0x718] sm:$0xff]
    %v7882 = vld [vmem:[#allocation6 + $0x720] sm:$0xff]
    %v7883 = vld [vmem:[#allocation6 + $0x728] sm:$0xff]
    %v7884 = vld [vmem:[#allocation6 + $0x730] sm:$0xff]
    %v7885 = vld [vmem:[#allocation6 + $0x738] sm:$0xff]
    %v7886 = vld [vmem:[#allocation6 + $0x740] sm:$0xff]
    %v7887 = vld [vmem:[#allocation6 + $0x748] sm:$0xff]
    %v7888 = vld [vmem:[#allocation6 + $0x750] sm:$0xff]
    %v7889 = vld [vmem:[#allocation6 + $0x758] sm:$0xff]
    %v7890 = vld [vmem:[#allocation6 + $0x760] sm:$0xff]
    %v7891 = vld [vmem:[#allocation6 + $0x768] sm:$0xff]
    %v7892 = vld [vmem:[#allocation6 + $0x770] sm:$0xff]
    %v7893 = vld [vmem:[#allocation6 + $0x778] sm:$0xff]
    %v7894 = vld [vmem:[#allocation6 + $0x780] sm:$0xff]
    %v7895 = vld [vmem:[#allocation6 + $0x788] sm:$0xff]
    %v7896 = vld [vmem:[#allocation6 + $0x790] sm:$0xff]
    %v7897 = vld [vmem:[#allocation6 + $0x798] sm:$0xff]
    %v7898 = vld [vmem:[#allocation6 + $0x7a0] sm:$0xff]
    %v7899 = vld [vmem:[#allocation6 + $0x7a8] sm:$0xff]
    %v7900 = vld [vmem:[#allocation6 + $0x7b0] sm:$0xff]
    %v7901 = vld [vmem:[#allocation6 + $0x7b8] sm:$0xff]
    %v7902 = vld [vmem:[#allocation6 + $0x7c0] sm:$0xff]
    %v7903 = vld [vmem:[#allocation6 + $0x7c8] sm:$0xff]
    %v7904 = vld [vmem:[#allocation6 + $0x7d0] sm:$0xff]
    %v7905 = vld [vmem:[#allocation6 + $0x7d8] sm:$0xff]
    %v7906 = vld [vmem:[#allocation6 + $0x7e0] sm:$0xff]
    %v7907 = vld [vmem:[#allocation6 + $0x7e8] sm:$0xff]
    %v7908 = vld [vmem:[#allocation6 + $0x7f0] sm:$0xff]
    %v7909 = vld [vmem:[#allocation6 + $0x7f8] sm:$0xff]
    %v8166 = vunpack.c.l.b16 %v7654
    %v8167 = vunpack.c.h.b16 %v7654
    %v8168 = vunpack.c.l.b16 %v7655
    %v8169 = vunpack.c.h.b16 %v7655
    %v8170 = vunpack.c.l.b16 %v7656
    %v8171 = vunpack.c.h.b16 %v7656
    %v8172 = vunpack.c.l.b16 %v7657
    %v8173 = vunpack.c.h.b16 %v7657
    %v8174 = vunpack.c.l.b16 %v7658
    %v8175 = vunpack.c.h.b16 %v7658
    %v8176 = vunpack.c.l.b16 %v7659
    %v8177 = vunpack.c.h.b16 %v7659
    %v8178 = vunpack.c.l.b16 %v7660
    %v8179 = vunpack.c.h.b16 %v7660
    %v8180 = vunpack.c.l.b16 %v7661
    %v8181 = vunpack.c.h.b16 %v7661
    %v8182 = vunpack.c.l.b16 %v7662
    %v8183 = vunpack.c.h.b16 %v7662
    %v8184 = vunpack.c.l.b16 %v7663
    %v8185 = vunpack.c.h.b16 %v7663
    %v8186 = vunpack.c.l.b16 %v7664
    %v8187 = vunpack.c.h.b16 %v7664
    %v8188 = vunpack.c.l.b16 %v7665
    %v8189 = vunpack.c.h.b16 %v7665
    %v8190 = vunpack.c.l.b16 %v7666
    %v8191 = vunpack.c.h.b16 %v7666
    %v8192 = vunpack.c.l.b16 %v7667
    %v8193 = vunpack.c.h.b16 %v7667
    %v8194 = vunpack.c.l.b16 %v7668
    %v8195 = vunpack.c.h.b16 %v7668
    %v8196 = vunpack.c.l.b16 %v7669
    %v8197 = vunpack.c.h.b16 %v7669
    %v8198 = vunpack.c.l.b16 %v7670
    %v8199 = vunpack.c.h.b16 %v7670
    %v8200 = vunpack.c.l.b16 %v7671
    %v8201 = vunpack.c.h.b16 %v7671
    %v8202 = vunpack.c.l.b16 %v7672
    %v8203 = vunpack.c.h.b16 %v7672
    %v8204 = vunpack.c.l.b16 %v7673
    %v8205 = vunpack.c.h.b16 %v7673
    %v8206 = vunpack.c.l.b16 %v7674
    %v8207 = vunpack.c.h.b16 %v7674
    %v8208 = vunpack.c.l.b16 %v7675
    %v8209 = vunpack.c.h.b16 %v7675
    %v8210 = vunpack.c.l.b16 %v7676
    %v8211 = vunpack.c.h.b16 %v7676
    %v8212 = vunpack.c.l.b16 %v7677
    %v8213 = vunpack.c.h.b16 %v7677
    %v8214 = vunpack.c.l.b16 %v7678
    %v8215 = vunpack.c.h.b16 %v7678
    %v8216 = vunpack.c.l.b16 %v7679
    %v8217 = vunpack.c.h.b16 %v7679
    %v8218 = vunpack.c.l.b16 %v7680
    %v8219 = vunpack.c.h.b16 %v7680
    %v8220 = vunpack.c.l.b16 %v7681
    %v8221 = vunpack.c.h.b16 %v7681
    %v8222 = vunpack.c.l.b16 %v7682
    %v8223 = vunpack.c.h.b16 %v7682
    %v8224 = vunpack.c.l.b16 %v7683
    %v8225 = vunpack.c.h.b16 %v7683
    %v8226 = vunpack.c.l.b16 %v7684
    %v8227 = vunpack.c.h.b16 %v7684
    %v8228 = vunpack.c.l.b16 %v7685
    %v8229 = vunpack.c.h.b16 %v7685
    %v8230 = vunpack.c.l.b16 %v7686
    %v8231 = vunpack.c.h.b16 %v7686
    %v8232 = vunpack.c.l.b16 %v7687
    %v8233 = vunpack.c.h.b16 %v7687
    %v8234 = vunpack.c.l.b16 %v7688
    %v8235 = vunpack.c.h.b16 %v7688
    %v8236 = vunpack.c.l.b16 %v7689
    %v8237 = vunpack.c.h.b16 %v7689
    %v8238 = vunpack.c.l.b16 %v7690
    %v8239 = vunpack.c.h.b16 %v7690
    %v8240 = vunpack.c.l.b16 %v7691
    %v8241 = vunpack.c.h.b16 %v7691
    %v8242 = vunpack.c.l.b16 %v7692
    %v8243 = vunpack.c.h.b16 %v7692
    %v8244 = vunpack.c.l.b16 %v7693
    %v8245 = vunpack.c.h.b16 %v7693
    %v8246 = vunpack.c.l.b16 %v7694
    %v8247 = vunpack.c.h.b16 %v7694
    %v8248 = vunpack.c.l.b16 %v7695
    %v8249 = vunpack.c.h.b16 %v7695
    %v8250 = vunpack.c.l.b16 %v7696
    %v8251 = vunpack.c.h.b16 %v7696
    %v8252 = vunpack.c.l.b16 %v7697
    %v8253 = vunpack.c.h.b16 %v7697
    %v8254 = vunpack.c.l.b16 %v7698
    %v8255 = vunpack.c.h.b16 %v7698
    %v8256 = vunpack.c.l.b16 %v7699
    %v8257 = vunpack.c.h.b16 %v7699
    %v8258 = vunpack.c.l.b16 %v7700
    %v8259 = vunpack.c.h.b16 %v7700
    %v8260 = vunpack.c.l.b16 %v7701
    %v8261 = vunpack.c.h.b16 %v7701
    %v8262 = vunpack.c.l.b16 %v7702
    %v8263 = vunpack.c.h.b16 %v7702
    %v8264 = vunpack.c.l.b16 %v7703
    %v8265 = vunpack.c.h.b16 %v7703
    %v8266 = vunpack.c.l.b16 %v7704
    %v8267 = vunpack.c.h.b16 %v7704
    %v8268 = vunpack.c.l.b16 %v7705
    %v8269 = vunpack.c.h.b16 %v7705
    %v8270 = vunpack.c.l.b16 %v7706
    %v8271 = vunpack.c.h.b16 %v7706
    %v8272 = vunpack.c.l.b16 %v7707
    %v8273 = vunpack.c.h.b16 %v7707
    %v8274 = vunpack.c.l.b16 %v7708
    %v8275 = vunpack.c.h.b16 %v7708
    %v8276 = vunpack.c.l.b16 %v7709
    %v8277 = vunpack.c.h.b16 %v7709
    %v8278 = vunpack.c.l.b16 %v7710
    %v8279 = vunpack.c.h.b16 %v7710
    %v8280 = vunpack.c.l.b16 %v7711
    %v8281 = vunpack.c.h.b16 %v7711
    %v8282 = vunpack.c.l.b16 %v7712
    %v8283 = vunpack.c.h.b16 %v7712
    %v8284 = vunpack.c.l.b16 %v7713
    %v8285 = vunpack.c.h.b16 %v7713
    %v8286 = vunpack.c.l.b16 %v7714
    %v8287 = vunpack.c.h.b16 %v7714
    %v8288 = vunpack.c.l.b16 %v7715
    %v8289 = vunpack.c.h.b16 %v7715
    %v8290 = vunpack.c.l.b16 %v7716
    %v8291 = vunpack.c.h.b16 %v7716
    %v8292 = vunpack.c.l.b16 %v7717
    %v8293 = vunpack.c.h.b16 %v7717
    %v8294 = vunpack.c.l.b16 %v7718
    %v8295 = vunpack.c.h.b16 %v7718
    %v8296 = vunpack.c.l.b16 %v7719
    %v8297 = vunpack.c.h.b16 %v7719
    %v8298 = vunpack.c.l.b16 %v7720
    %v8299 = vunpack.c.h.b16 %v7720
    %v8300 = vunpack.c.l.b16 %v7721
    %v8301 = vunpack.c.h.b16 %v7721
    %v8302 = vunpack.c.l.b16 %v7722
    %v8303 = vunpack.c.h.b16 %v7722
    %v8304 = vunpack.c.l.b16 %v7723
    %v8305 = vunpack.c.h.b16 %v7723
    %v8306 = vunpack.c.l.b16 %v7724
    %v8307 = vunpack.c.h.b16 %v7724
    %v8308 = vunpack.c.l.b16 %v7725
    %v8309 = vunpack.c.h.b16 %v7725
    %v8310 = vunpack.c.l.b16 %v7726
    %v8311 = vunpack.c.h.b16 %v7726
    %v8312 = vunpack.c.l.b16 %v7727
    %v8313 = vunpack.c.h.b16 %v7727
    %v8314 = vunpack.c.l.b16 %v7728
    %v8315 = vunpack.c.h.b16 %v7728
    %v8316 = vunpack.c.l.b16 %v7729
    %v8317 = vunpack.c.h.b16 %v7729
    %v8318 = vunpack.c.l.b16 %v7730
    %v8319 = vunpack.c.h.b16 %v7730
    %v8320 = vunpack.c.l.b16 %v7731
    %v8321 = vunpack.c.h.b16 %v7731
    %v8322 = vunpack.c.l.b16 %v7732
    %v8323 = vunpack.c.h.b16 %v7732
    %v8324 = vunpack.c.l.b16 %v7733
    %v8325 = vunpack.c.h.b16 %v7733
    %v8326 = vunpack.c.l.b16 %v7734
    %v8327 = vunpack.c.h.b16 %v7734
    %v8328 = vunpack.c.l.b16 %v7735
    %v8329 = vunpack.c.h.b16 %v7735
    %v8330 = vunpack.c.l.b16 %v7736
    %v8331 = vunpack.c.h.b16 %v7736
    %v8332 = vunpack.c.l.b16 %v7737
    %v8333 = vunpack.c.h.b16 %v7737
    %v8334 = vunpack.c.l.b16 %v7738
    %v8335 = vunpack.c.h.b16 %v7738
    %v8336 = vunpack.c.l.b16 %v7739
    %v8337 = vunpack.c.h.b16 %v7739
    %v8338 = vunpack.c.l.b16 %v7740
    %v8339 = vunpack.c.h.b16 %v7740
    %v8340 = vunpack.c.l.b16 %v7741
    %v8341 = vunpack.c.h.b16 %v7741
    %v8342 = vunpack.c.l.b16 %v7742
    %v8343 = vunpack.c.h.b16 %v7742
    %v8344 = vunpack.c.l.b16 %v7743
    %v8345 = vunpack.c.h.b16 %v7743
    %v8346 = vunpack.c.l.b16 %v7744
    %v8347 = vunpack.c.h.b16 %v7744
    %v8348 = vunpack.c.l.b16 %v7745
    %v8349 = vunpack.c.h.b16 %v7745
    %v8350 = vunpack.c.l.b16 %v7746
    %v8351 = vunpack.c.h.b16 %v7746
    %v8352 = vunpack.c.l.b16 %v7747
    %v8353 = vunpack.c.h.b16 %v7747
    %v8354 = vunpack.c.l.b16 %v7748
    %v8355 = vunpack.c.h.b16 %v7748
    %v8356 = vunpack.c.l.b16 %v7749
    %v8357 = vunpack.c.h.b16 %v7749
    %v8358 = vunpack.c.l.b16 %v7750
    %v8359 = vunpack.c.h.b16 %v7750
    %v8360 = vunpack.c.l.b16 %v7751
    %v8361 = vunpack.c.h.b16 %v7751
    %v8362 = vunpack.c.l.b16 %v7752
    %v8363 = vunpack.c.h.b16 %v7752
    %v8364 = vunpack.c.l.b16 %v7753
    %v8365 = vunpack.c.h.b16 %v7753
    %v8366 = vunpack.c.l.b16 %v7754
    %v8367 = vunpack.c.h.b16 %v7754
    %v8368 = vunpack.c.l.b16 %v7755
    %v8369 = vunpack.c.h.b16 %v7755
    %v8370 = vunpack.c.l.b16 %v7756
    %v8371 = vunpack.c.h.b16 %v7756
    %v8372 = vunpack.c.l.b16 %v7757
    %v8373 = vunpack.c.h.b16 %v7757
    %v8374 = vunpack.c.l.b16 %v7758
    %v8375 = vunpack.c.h.b16 %v7758
    %v8376 = vunpack.c.l.b16 %v7759
    %v8377 = vunpack.c.h.b16 %v7759
    %v8378 = vunpack.c.l.b16 %v7760
    %v8379 = vunpack.c.h.b16 %v7760
    %v8380 = vunpack.c.l.b16 %v7761
    %v8381 = vunpack.c.h.b16 %v7761
    %v8382 = vunpack.c.l.b16 %v7762
    %v8383 = vunpack.c.h.b16 %v7762
    %v8384 = vunpack.c.l.b16 %v7763
    %v8385 = vunpack.c.h.b16 %v7763
    %v8386 = vunpack.c.l.b16 %v7764
    %v8387 = vunpack.c.h.b16 %v7764
    %v8388 = vunpack.c.l.b16 %v7765
    %v8389 = vunpack.c.h.b16 %v7765
    %v8390 = vunpack.c.l.b16 %v7766
    %v8391 = vunpack.c.h.b16 %v7766
    %v8392 = vunpack.c.l.b16 %v7767
    %v8393 = vunpack.c.h.b16 %v7767
    %v8394 = vunpack.c.l.b16 %v7768
    %v8395 = vunpack.c.h.b16 %v7768
    %v8396 = vunpack.c.l.b16 %v7769
    %v8397 = vunpack.c.h.b16 %v7769
    %v8398 = vunpack.c.l.b16 %v7770
    %v8399 = vunpack.c.h.b16 %v7770
    %v8400 = vunpack.c.l.b16 %v7771
    %v8401 = vunpack.c.h.b16 %v7771
    %v8402 = vunpack.c.l.b16 %v7772
    %v8403 = vunpack.c.h.b16 %v7772
    %v8404 = vunpack.c.l.b16 %v7773
    %v8405 = vunpack.c.h.b16 %v7773
    %v8406 = vunpack.c.l.b16 %v7774
    %v8407 = vunpack.c.h.b16 %v7774
    %v8408 = vunpack.c.l.b16 %v7775
    %v8409 = vunpack.c.h.b16 %v7775
    %v8410 = vunpack.c.l.b16 %v7776
    %v8411 = vunpack.c.h.b16 %v7776
    %v8412 = vunpack.c.l.b16 %v7777
    %v8413 = vunpack.c.h.b16 %v7777
    %v8414 = vunpack.c.l.b16 %v7778
    %v8415 = vunpack.c.h.b16 %v7778
    %v8416 = vunpack.c.l.b16 %v7779
    %v8417 = vunpack.c.h.b16 %v7779
    %v8418 = vunpack.c.l.b16 %v7780
    %v8419 = vunpack.c.h.b16 %v7780
    %v8420 = vunpack.c.l.b16 %v7781
    %v8421 = vunpack.c.h.b16 %v7781
    %v8422 = vunpack.c.l.b16 %v7782
    %v8423 = vunpack.c.h.b16 %v7782
    %v8424 = vunpack.c.l.b16 %v7783
    %v8425 = vunpack.c.h.b16 %v7783
    %v8426 = vunpack.c.l.b16 %v7784
    %v8427 = vunpack.c.h.b16 %v7784
    %v8428 = vunpack.c.l.b16 %v7785
    %v8429 = vunpack.c.h.b16 %v7785
    %v8430 = vunpack.c.l.b16 %v7786
    %v8431 = vunpack.c.h.b16 %v7786
    %v8432 = vunpack.c.l.b16 %v7787
    %v8433 = vunpack.c.h.b16 %v7787
    %v8434 = vunpack.c.l.b16 %v7788
    %v8435 = vunpack.c.h.b16 %v7788
    %v8436 = vunpack.c.l.b16 %v7789
    %v8437 = vunpack.c.h.b16 %v7789
    %v8438 = vunpack.c.l.b16 %v7790
    %v8439 = vunpack.c.h.b16 %v7790
    %v8440 = vunpack.c.l.b16 %v7791
    %v8441 = vunpack.c.h.b16 %v7791
    %v8442 = vunpack.c.l.b16 %v7792
    %v8443 = vunpack.c.h.b16 %v7792
    %v8444 = vunpack.c.l.b16 %v7793
    %v8445 = vunpack.c.h.b16 %v7793
    %v8446 = vunpack.c.l.b16 %v7794
    %v8447 = vunpack.c.h.b16 %v7794
    %v8448 = vunpack.c.l.b16 %v7795
    %v8449 = vunpack.c.h.b16 %v7795
    %v8450 = vunpack.c.l.b16 %v7796
    %v8451 = vunpack.c.h.b16 %v7796
    %v8452 = vunpack.c.l.b16 %v7797
    %v8453 = vunpack.c.h.b16 %v7797
    %v8454 = vunpack.c.l.b16 %v7798
    %v8455 = vunpack.c.h.b16 %v7798
    %v8456 = vunpack.c.l.b16 %v7799
    %v8457 = vunpack.c.h.b16 %v7799
    %v8458 = vunpack.c.l.b16 %v7800
    %v8459 = vunpack.c.h.b16 %v7800
    %v8460 = vunpack.c.l.b16 %v7801
    %v8461 = vunpack.c.h.b16 %v7801
    %v8462 = vunpack.c.l.b16 %v7802
    %v8463 = vunpack.c.h.b16 %v7802
    %v8464 = vunpack.c.l.b16 %v7803
    %v8465 = vunpack.c.h.b16 %v7803
    %v8466 = vunpack.c.l.b16 %v7804
    %v8467 = vunpack.c.h.b16 %v7804
    %v8468 = vunpack.c.l.b16 %v7805
    %v8469 = vunpack.c.h.b16 %v7805
    %v8470 = vunpack.c.l.b16 %v7806
    %v8471 = vunpack.c.h.b16 %v7806
    %v8472 = vunpack.c.l.b16 %v7807
    %v8473 = vunpack.c.h.b16 %v7807
    %v8474 = vunpack.c.l.b16 %v7808
    %v8475 = vunpack.c.h.b16 %v7808
    %v8476 = vunpack.c.l.b16 %v7809
    %v8477 = vunpack.c.h.b16 %v7809
    %v8478 = vunpack.c.l.b16 %v7810
    %v8479 = vunpack.c.h.b16 %v7810
    %v8480 = vunpack.c.l.b16 %v7811
    %v8481 = vunpack.c.h.b16 %v7811
    %v8482 = vunpack.c.l.b16 %v7812
    %v8483 = vunpack.c.h.b16 %v7812
    %v8484 = vunpack.c.l.b16 %v7813
    %v8485 = vunpack.c.h.b16 %v7813
    %v8486 = vunpack.c.l.b16 %v7814
    %v8487 = vunpack.c.h.b16 %v7814
    %v8488 = vunpack.c.l.b16 %v7815
    %v8489 = vunpack.c.h.b16 %v7815
    %v8490 = vunpack.c.l.b16 %v7816
    %v8491 = vunpack.c.h.b16 %v7816
    %v8492 = vunpack.c.l.b16 %v7817
    %v8493 = vunpack.c.h.b16 %v7817
    %v8494 = vunpack.c.l.b16 %v7818
    %v8495 = vunpack.c.h.b16 %v7818
    %v8496 = vunpack.c.l.b16 %v7819
    %v8497 = vunpack.c.h.b16 %v7819
    %v8498 = vunpack.c.l.b16 %v7820
    %v8499 = vunpack.c.h.b16 %v7820
    %v8500 = vunpack.c.l.b16 %v7821
    %v8501 = vunpack.c.h.b16 %v7821
    %v8502 = vunpack.c.l.b16 %v7822
    %v8503 = vunpack.c.h.b16 %v7822
    %v8504 = vunpack.c.l.b16 %v7823
    %v8505 = vunpack.c.h.b16 %v7823
    %v8506 = vunpack.c.l.b16 %v7824
    %v8507 = vunpack.c.h.b16 %v7824
    %v8508 = vunpack.c.l.b16 %v7825
    %v8509 = vunpack.c.h.b16 %v7825
    %v8510 = vunpack.c.l.b16 %v7826
    %v8511 = vunpack.c.h.b16 %v7826
    %v8512 = vunpack.c.l.b16 %v7827
    %v8513 = vunpack.c.h.b16 %v7827
    %v8514 = vunpack.c.l.b16 %v7828
    %v8515 = vunpack.c.h.b16 %v7828
    %v8516 = vunpack.c.l.b16 %v7829
    %v8517 = vunpack.c.h.b16 %v7829
    %v8518 = vunpack.c.l.b16 %v7830
    %v8519 = vunpack.c.h.b16 %v7830
    %v8520 = vunpack.c.l.b16 %v7831
    %v8521 = vunpack.c.h.b16 %v7831
    %v8522 = vunpack.c.l.b16 %v7832
    %v8523 = vunpack.c.h.b16 %v7832
    %v8524 = vunpack.c.l.b16 %v7833
    %v8525 = vunpack.c.h.b16 %v7833
    %v8526 = vunpack.c.l.b16 %v7834
    %v8527 = vunpack.c.h.b16 %v7834
    %v8528 = vunpack.c.l.b16 %v7835
    %v8529 = vunpack.c.h.b16 %v7835
    %v8530 = vunpack.c.l.b16 %v7836
    %v8531 = vunpack.c.h.b16 %v7836
    %v8532 = vunpack.c.l.b16 %v7837
    %v8533 = vunpack.c.h.b16 %v7837
    %v8534 = vunpack.c.l.b16 %v7838
    %v8535 = vunpack.c.h.b16 %v7838
    %v8536 = vunpack.c.l.b16 %v7839
    %v8537 = vunpack.c.h.b16 %v7839
    %v8538 = vunpack.c.l.b16 %v7840
    %v8539 = vunpack.c.h.b16 %v7840
    %v8540 = vunpack.c.l.b16 %v7841
    %v8541 = vunpack.c.h.b16 %v7841
    %v8542 = vunpack.c.l.b16 %v7842
    %v8543 = vunpack.c.h.b16 %v7842
    %v8544 = vunpack.c.l.b16 %v7843
    %v8545 = vunpack.c.h.b16 %v7843
    %v8546 = vunpack.c.l.b16 %v7844
    %v8547 = vunpack.c.h.b16 %v7844
    %v8548 = vunpack.c.l.b16 %v7845
    %v8549 = vunpack.c.h.b16 %v7845
    %v8550 = vunpack.c.l.b16 %v7846
    %v8551 = vunpack.c.h.b16 %v7846
    %v8552 = vunpack.c.l.b16 %v7847
    %v8553 = vunpack.c.h.b16 %v7847
    %v8554 = vunpack.c.l.b16 %v7848
    %v8555 = vunpack.c.h.b16 %v7848
    %v8556 = vunpack.c.l.b16 %v7849
    %v8557 = vunpack.c.h.b16 %v7849
    %v8558 = vunpack.c.l.b16 %v7850
    %v8559 = vunpack.c.h.b16 %v7850
    %v8560 = vunpack.c.l.b16 %v7851
    %v8561 = vunpack.c.h.b16 %v7851
    %v8562 = vunpack.c.l.b16 %v7852
    %v8563 = vunpack.c.h.b16 %v7852
    %v8564 = vunpack.c.l.b16 %v7853
    %v8565 = vunpack.c.h.b16 %v7853
    %v8566 = vunpack.c.l.b16 %v7854
    %v8567 = vunpack.c.h.b16 %v7854
    %v8568 = vunpack.c.l.b16 %v7855
    %v8569 = vunpack.c.h.b16 %v7855
    %v8570 = vunpack.c.l.b16 %v7856
    %v8571 = vunpack.c.h.b16 %v7856
    %v8572 = vunpack.c.l.b16 %v7857
    %v8573 = vunpack.c.h.b16 %v7857
    %v8574 = vunpack.c.l.b16 %v7858
    %v8575 = vunpack.c.h.b16 %v7858
    %v8576 = vunpack.c.l.b16 %v7859
    %v8577 = vunpack.c.h.b16 %v7859
    %v8578 = vunpack.c.l.b16 %v7860
    %v8579 = vunpack.c.h.b16 %v7860
    %v8580 = vunpack.c.l.b16 %v7861
    %v8581 = vunpack.c.h.b16 %v7861
    %v8582 = vunpack.c.l.b16 %v7862
    %v8583 = vunpack.c.h.b16 %v7862
    %v8584 = vunpack.c.l.b16 %v7863
    %v8585 = vunpack.c.h.b16 %v7863
    %v8586 = vunpack.c.l.b16 %v7864
    %v8587 = vunpack.c.h.b16 %v7864
    %v8588 = vunpack.c.l.b16 %v7865
    %v8589 = vunpack.c.h.b16 %v7865
    %v8590 = vunpack.c.l.b16 %v7866
    %v8591 = vunpack.c.h.b16 %v7866
    %v8592 = vunpack.c.l.b16 %v7867
    %v8593 = vunpack.c.h.b16 %v7867
    %v8594 = vunpack.c.l.b16 %v7868
    %v8595 = vunpack.c.h.b16 %v7868
    %v8596 = vunpack.c.l.b16 %v7869
    %v8597 = vunpack.c.h.b16 %v7869
    %v8598 = vunpack.c.l.b16 %v7870
    %v8599 = vunpack.c.h.b16 %v7870
    %v8600 = vunpack.c.l.b16 %v7871
    %v8601 = vunpack.c.h.b16 %v7871
    %v8602 = vunpack.c.l.b16 %v7872
    %v8603 = vunpack.c.h.b16 %v7872
    %v8604 = vunpack.c.l.b16 %v7873
    %v8605 = vunpack.c.h.b16 %v7873
    %v8606 = vunpack.c.l.b16 %v7874
    %v8607 = vunpack.c.h.b16 %v7874
    %v8608 = vunpack.c.l.b16 %v7875
    %v8609 = vunpack.c.h.b16 %v7875
    %v8610 = vunpack.c.l.b16 %v7876
    %v8611 = vunpack.c.h.b16 %v7876
    %v8612 = vunpack.c.l.b16 %v7877
    %v8613 = vunpack.c.h.b16 %v7877
    %v8614 = vunpack.c.l.b16 %v7878
    %v8615 = vunpack.c.h.b16 %v7878
    %v8616 = vunpack.c.l.b16 %v7879
    %v8617 = vunpack.c.h.b16 %v7879
    %v8618 = vunpack.c.l.b16 %v7880
    %v8619 = vunpack.c.h.b16 %v7880
    %v8620 = vunpack.c.l.b16 %v7881
    %v8621 = vunpack.c.h.b16 %v7881
    %v8622 = vunpack.c.l.b16 %v7882
    %v8623 = vunpack.c.h.b16 %v7882
    %v8624 = vunpack.c.l.b16 %v7883
    %v8625 = vunpack.c.h.b16 %v7883
    %v8626 = vunpack.c.l.b16 %v7884
    %v8627 = vunpack.c.h.b16 %v7884
    %v8628 = vunpack.c.l.b16 %v7885
    %v8629 = vunpack.c.h.b16 %v7885
    %v8630 = vunpack.c.l.b16 %v7886
    %v8631 = vunpack.c.h.b16 %v7886
    %v8632 = vunpack.c.l.b16 %v7887
    %v8633 = vunpack.c.h.b16 %v7887
    %v8634 = vunpack.c.l.b16 %v7888
    %v8635 = vunpack.c.h.b16 %v7888
    %v8636 = vunpack.c.l.b16 %v7889
    %v8637 = vunpack.c.h.b16 %v7889
    %v8638 = vunpack.c.l.b16 %v7890
    %v8639 = vunpack.c.h.b16 %v7890
    %v8640 = vunpack.c.l.b16 %v7891
    %v8641 = vunpack.c.h.b16 %v7891
    %v8642 = vunpack.c.l.b16 %v7892
    %v8643 = vunpack.c.h.b16 %v7892
    %v8644 = vunpack.c.l.b16 %v7893
    %v8645 = vunpack.c.h.b16 %v7893
    %v8646 = vunpack.c.l.b16 %v7894
    %v8647 = vunpack.c.h.b16 %v7894
    %v8648 = vunpack.c.l.b16 %v7895
    %v8649 = vunpack.c.h.b16 %v7895
    %v8650 = vunpack.c.l.b16 %v7896
    %v8651 = vunpack.c.h.b16 %v7896
    %v8652 = vunpack.c.l.b16 %v7897
    %v8653 = vunpack.c.h.b16 %v7897
    %v8654 = vunpack.c.l.b16 %v7898
    %v8655 = vunpack.c.h.b16 %v7898
    %v8656 = vunpack.c.l.b16 %v7899
    %v8657 = vunpack.c.h.b16 %v7899
    %v8658 = vunpack.c.l.b16 %v7900
    %v8659 = vunpack.c.h.b16 %v7900
    %v8660 = vunpack.c.l.b16 %v7901
    %v8661 = vunpack.c.h.b16 %v7901
    %v8662 = vunpack.c.l.b16 %v7902
    %v8663 = vunpack.c.h.b16 %v7902
    %v8664 = vunpack.c.l.b16 %v7903
    %v8665 = vunpack.c.h.b16 %v7903
    %v8666 = vunpack.c.l.b16 %v7904
    %v8667 = vunpack.c.h.b16 %v7904
    %v8668 = vunpack.c.l.b16 %v7905
    %v8669 = vunpack.c.h.b16 %v7905
    %v8670 = vunpack.c.l.b16 %v7906
    %v8671 = vunpack.c.h.b16 %v7906
    %v8672 = vunpack.c.l.b16 %v7907
    %v8673 = vunpack.c.h.b16 %v7907
    %v8674 = vunpack.c.l.b16 %v7908
    %v8675 = vunpack.c.h.b16 %v7908
    %v8676 = vunpack.c.l.b16 %v7909
    %v8677 = vunpack.c.h.b16 %v7909
    %v8678 = vpack.c.b16 %v8174, %v8166
    %v8679 = vpack.c.b16 %v8175, %v8167
    %v8680 = vpack.c.b16 %v8176, %v8168
    %v8681 = vpack.c.b16 %v8177, %v8169
    %v8682 = vpack.c.b16 %v8178, %v8170
    %v8683 = vpack.c.b16 %v8179, %v8171
    %v8684 = vpack.c.b16 %v8180, %v8172
    %v8685 = vpack.c.b16 %v8181, %v8173
    %v8686 = vpack.c.b16 %v8190, %v8182
    %v8687 = vpack.c.b16 %v8191, %v8183
    %v8688 = vpack.c.b16 %v8192, %v8184
    %v8689 = vpack.c.b16 %v8193, %v8185
    %v8690 = vpack.c.b16 %v8194, %v8186
    %v8691 = vpack.c.b16 %v8195, %v8187
    %v8692 = vpack.c.b16 %v8196, %v8188
    %v8693 = vpack.c.b16 %v8197, %v8189
    %v8694 = vpack.c.b16 %v8206, %v8198
    %v8695 = vpack.c.b16 %v8207, %v8199
    %v8696 = vpack.c.b16 %v8208, %v8200
    %v8697 = vpack.c.b16 %v8209, %v8201
    %v8698 = vpack.c.b16 %v8210, %v8202
    %v8699 = vpack.c.b16 %v8211, %v8203
    %v8700 = vpack.c.b16 %v8212, %v8204
    %v8701 = vpack.c.b16 %v8213, %v8205
    %v8702 = vpack.c.b16 %v8222, %v8214
    %v8703 = vpack.c.b16 %v8223, %v8215
    %v8704 = vpack.c.b16 %v8224, %v8216
    %v8705 = vpack.c.b16 %v8225, %v8217
    %v8706 = vpack.c.b16 %v8226, %v8218
    %v8707 = vpack.c.b16 %v8227, %v8219
    %v8708 = vpack.c.b16 %v8228, %v8220
    %v8709 = vpack.c.b16 %v8229, %v8221
    %v8710 = vpack.c.b16 %v8238, %v8230
    %v8711 = vpack.c.b16 %v8239, %v8231
    %v8712 = vpack.c.b16 %v8240, %v8232
    %v8713 = vpack.c.b16 %v8241, %v8233
    %v8714 = vpack.c.b16 %v8242, %v8234
    %v8715 = vpack.c.b16 %v8243, %v8235
    %v8716 = vpack.c.b16 %v8244, %v8236
    %v8717 = vpack.c.b16 %v8245, %v8237
    %v8718 = vpack.c.b16 %v8254, %v8246
    %v8719 = vpack.c.b16 %v8255, %v8247
    %v8720 = vpack.c.b16 %v8256, %v8248
    %v8721 = vpack.c.b16 %v8257, %v8249
    %v8722 = vpack.c.b16 %v8258, %v8250
    %v8723 = vpack.c.b16 %v8259, %v8251
    %v8724 = vpack.c.b16 %v8260, %v8252
    %v8725 = vpack.c.b16 %v8261, %v8253
    %v8726 = vpack.c.b16 %v8270, %v8262
    %v8727 = vpack.c.b16 %v8271, %v8263
    %v8728 = vpack.c.b16 %v8272, %v8264
    %v8729 = vpack.c.b16 %v8273, %v8265
    %v8730 = vpack.c.b16 %v8274, %v8266
    %v8731 = vpack.c.b16 %v8275, %v8267
    %v8732 = vpack.c.b16 %v8276, %v8268
    %v8733 = vpack.c.b16 %v8277, %v8269
    %v8734 = vpack.c.b16 %v8286, %v8278
    %v8735 = vpack.c.b16 %v8287, %v8279
    %v8736 = vpack.c.b16 %v8288, %v8280
    %v8737 = vpack.c.b16 %v8289, %v8281
    %v8738 = vpack.c.b16 %v8290, %v8282
    %v8739 = vpack.c.b16 %v8291, %v8283
    %v8740 = vpack.c.b16 %v8292, %v8284
    %v8741 = vpack.c.b16 %v8293, %v8285
    %v8742 = vpack.c.b16 %v8302, %v8294
    %v8743 = vpack.c.b16 %v8303, %v8295
    %v8744 = vpack.c.b16 %v8304, %v8296
    %v8745 = vpack.c.b16 %v8305, %v8297
    %v8746 = vpack.c.b16 %v8306, %v8298
    %v8747 = vpack.c.b16 %v8307, %v8299
    %v8748 = vpack.c.b16 %v8308, %v8300
    %v8749 = vpack.c.b16 %v8309, %v8301
    %v8750 = vpack.c.b16 %v8318, %v8310
    %v8751 = vpack.c.b16 %v8319, %v8311
    %v8752 = vpack.c.b16 %v8320, %v8312
    %v8753 = vpack.c.b16 %v8321, %v8313
    %v8754 = vpack.c.b16 %v8322, %v8314
    %v8755 = vpack.c.b16 %v8323, %v8315
    %v8756 = vpack.c.b16 %v8324, %v8316
    %v8757 = vpack.c.b16 %v8325, %v8317
    %v8758 = vpack.c.b16 %v8334, %v8326
    %v8759 = vpack.c.b16 %v8335, %v8327
    %v8760 = vpack.c.b16 %v8336, %v8328
    %v8761 = vpack.c.b16 %v8337, %v8329
    %v8762 = vpack.c.b16 %v8338, %v8330
    %v8763 = vpack.c.b16 %v8339, %v8331
    %v8764 = vpack.c.b16 %v8340, %v8332
    %v8765 = vpack.c.b16 %v8341, %v8333
    %v8766 = vpack.c.b16 %v8350, %v8342
    %v8767 = vpack.c.b16 %v8351, %v8343
    %v8768 = vpack.c.b16 %v8352, %v8344
    %v8769 = vpack.c.b16 %v8353, %v8345
    %v8770 = vpack.c.b16 %v8354, %v8346
    %v8771 = vpack.c.b16 %v8355, %v8347
    %v8772 = vpack.c.b16 %v8356, %v8348
    %v8773 = vpack.c.b16 %v8357, %v8349
    %v8774 = vpack.c.b16 %v8366, %v8358
    %v8775 = vpack.c.b16 %v8367, %v8359
    %v8776 = vpack.c.b16 %v8368, %v8360
    %v8777 = vpack.c.b16 %v8369, %v8361
    %v8778 = vpack.c.b16 %v8370, %v8362
    %v8779 = vpack.c.b16 %v8371, %v8363
    %v8780 = vpack.c.b16 %v8372, %v8364
    %v8781 = vpack.c.b16 %v8373, %v8365
    %v8782 = vpack.c.b16 %v8382, %v8374
    %v8783 = vpack.c.b16 %v8383, %v8375
    %v8784 = vpack.c.b16 %v8384, %v8376
    %v8785 = vpack.c.b16 %v8385, %v8377
    %v8786 = vpack.c.b16 %v8386, %v8378
    %v8787 = vpack.c.b16 %v8387, %v8379
    %v8788 = vpack.c.b16 %v8388, %v8380
    %v8789 = vpack.c.b16 %v8389, %v8381
    %v8790 = vpack.c.b16 %v8398, %v8390
    %v8791 = vpack.c.b16 %v8399, %v8391
    %v8792 = vpack.c.b16 %v8400, %v8392
    %v8793 = vpack.c.b16 %v8401, %v8393
    %v8794 = vpack.c.b16 %v8402, %v8394
    %v8795 = vpack.c.b16 %v8403, %v8395
    %v8796 = vpack.c.b16 %v8404, %v8396
    %v8797 = vpack.c.b16 %v8405, %v8397
    %v8798 = vpack.c.b16 %v8414, %v8406
    %v8799 = vpack.c.b16 %v8415, %v8407
    %v8800 = vpack.c.b16 %v8416, %v8408
    %v8801 = vpack.c.b16 %v8417, %v8409
    %v8802 = vpack.c.b16 %v8418, %v8410
    %v8803 = vpack.c.b16 %v8419, %v8411
    %v8804 = vpack.c.b16 %v8420, %v8412
    %v8805 = vpack.c.b16 %v8421, %v8413
    %v8806 = vpack.c.b16 %v8430, %v8422
    %v8807 = vpack.c.b16 %v8431, %v8423
    %v8808 = vpack.c.b16 %v8432, %v8424
    %v8809 = vpack.c.b16 %v8433, %v8425
    %v8810 = vpack.c.b16 %v8434, %v8426
    %v8811 = vpack.c.b16 %v8435, %v8427
    %v8812 = vpack.c.b16 %v8436, %v8428
    %v8813 = vpack.c.b16 %v8437, %v8429
    %v8814 = vpack.c.b16 %v8446, %v8438
    %v8815 = vpack.c.b16 %v8447, %v8439
    %v8816 = vpack.c.b16 %v8448, %v8440
    %v8817 = vpack.c.b16 %v8449, %v8441
    %v8818 = vpack.c.b16 %v8450, %v8442
    %v8819 = vpack.c.b16 %v8451, %v8443
    %v8820 = vpack.c.b16 %v8452, %v8444
    %v8821 = vpack.c.b16 %v8453, %v8445
    %v8822 = vpack.c.b16 %v8462, %v8454
    %v8823 = vpack.c.b16 %v8463, %v8455
    %v8824 = vpack.c.b16 %v8464, %v8456
    %v8825 = vpack.c.b16 %v8465, %v8457
    %v8826 = vpack.c.b16 %v8466, %v8458
    %v8827 = vpack.c.b16 %v8467, %v8459
    %v8828 = vpack.c.b16 %v8468, %v8460
    %v8829 = vpack.c.b16 %v8469, %v8461
    %v8830 = vpack.c.b16 %v8478, %v8470
    %v8831 = vpack.c.b16 %v8479, %v8471
    %v8832 = vpack.c.b16 %v8480, %v8472
    %v8833 = vpack.c.b16 %v8481, %v8473
    %v8834 = vpack.c.b16 %v8482, %v8474
    %v8835 = vpack.c.b16 %v8483, %v8475
    %v8836 = vpack.c.b16 %v8484, %v8476
    %v8837 = vpack.c.b16 %v8485, %v8477
    %v8838 = vpack.c.b16 %v8494, %v8486
    %v8839 = vpack.c.b16 %v8495, %v8487
    %v8840 = vpack.c.b16 %v8496, %v8488
    %v8841 = vpack.c.b16 %v8497, %v8489
    %v8842 = vpack.c.b16 %v8498, %v8490
    %v8843 = vpack.c.b16 %v8499, %v8491
    %v8844 = vpack.c.b16 %v8500, %v8492
    %v8845 = vpack.c.b16 %v8501, %v8493
    %v8846 = vpack.c.b16 %v8510, %v8502
    %v8847 = vpack.c.b16 %v8511, %v8503
    %v8848 = vpack.c.b16 %v8512, %v8504
    %v8849 = vpack.c.b16 %v8513, %v8505
    %v8850 = vpack.c.b16 %v8514, %v8506
    %v8851 = vpack.c.b16 %v8515, %v8507
    %v8852 = vpack.c.b16 %v8516, %v8508
    %v8853 = vpack.c.b16 %v8517, %v8509
    %v8854 = vpack.c.b16 %v8526, %v8518
    %v8855 = vpack.c.b16 %v8527, %v8519
    %v8856 = vpack.c.b16 %v8528, %v8520
    %v8857 = vpack.c.b16 %v8529, %v8521
    %v8858 = vpack.c.b16 %v8530, %v8522
    %v8859 = vpack.c.b16 %v8531, %v8523
    %v8860 = vpack.c.b16 %v8532, %v8524
    %v8861 = vpack.c.b16 %v8533, %v8525
    %v8862 = vpack.c.b16 %v8542, %v8534
    %v8863 = vpack.c.b16 %v8543, %v8535
    %v8864 = vpack.c.b16 %v8544, %v8536
    %v8865 = vpack.c.b16 %v8545, %v8537
    %v8866 = vpack.c.b16 %v8546, %v8538
    %v8867 = vpack.c.b16 %v8547, %v8539
    %v8868 = vpack.c.b16 %v8548, %v8540
    %v8869 = vpack.c.b16 %v8549, %v8541
    %v8870 = vpack.c.b16 %v8558, %v8550
    %v8871 = vpack.c.b16 %v8559, %v8551
    %v8872 = vpack.c.b16 %v8560, %v8552
    %v8873 = vpack.c.b16 %v8561, %v8553
    %v8874 = vpack.c.b16 %v8562, %v8554
    %v8875 = vpack.c.b16 %v8563, %v8555
    %v8876 = vpack.c.b16 %v8564, %v8556
    %v8877 = vpack.c.b16 %v8565, %v8557
    %v8878 = vpack.c.b16 %v8574, %v8566
    %v8879 = vpack.c.b16 %v8575, %v8567
    %v8880 = vpack.c.b16 %v8576, %v8568
    %v8881 = vpack.c.b16 %v8577, %v8569
    %v8882 = vpack.c.b16 %v8578, %v8570
    %v8883 = vpack.c.b16 %v8579, %v8571
    %v8884 = vpack.c.b16 %v8580, %v8572
    %v8885 = vpack.c.b16 %v8581, %v8573
    %v8886 = vpack.c.b16 %v8590, %v8582
    %v8887 = vpack.c.b16 %v8591, %v8583
    %v8888 = vpack.c.b16 %v8592, %v8584
    %v8889 = vpack.c.b16 %v8593, %v8585
    %v8890 = vpack.c.b16 %v8594, %v8586
    %v8891 = vpack.c.b16 %v8595, %v8587
    %v8892 = vpack.c.b16 %v8596, %v8588
    %v8893 = vpack.c.b16 %v8597, %v8589
    %v8894 = vpack.c.b16 %v8606, %v8598
    %v8895 = vpack.c.b16 %v8607, %v8599
    %v8896 = vpack.c.b16 %v8608, %v8600
    %v8897 = vpack.c.b16 %v8609, %v8601
    %v8898 = vpack.c.b16 %v8610, %v8602
    %v8899 = vpack.c.b16 %v8611, %v8603
    %v8900 = vpack.c.b16 %v8612, %v8604
    %v8901 = vpack.c.b16 %v8613, %v8605
    %v8902 = vpack.c.b16 %v8622, %v8614
    %v8903 = vpack.c.b16 %v8623, %v8615
    %v8904 = vpack.c.b16 %v8624, %v8616
    %v8905 = vpack.c.b16 %v8625, %v8617
    %v8906 = vpack.c.b16 %v8626, %v8618
    %v8907 = vpack.c.b16 %v8627, %v8619
    %v8908 = vpack.c.b16 %v8628, %v8620
    %v8909 = vpack.c.b16 %v8629, %v8621
    %v8910 = vpack.c.b16 %v8638, %v8630
    %v8911 = vpack.c.b16 %v8639, %v8631
    %v8912 = vpack.c.b16 %v8640, %v8632
    %v8913 = vpack.c.b16 %v8641, %v8633
    %v8914 = vpack.c.b16 %v8642, %v8634
    %v8915 = vpack.c.b16 %v8643, %v8635
    %v8916 = vpack.c.b16 %v8644, %v8636
    %v8917 = vpack.c.b16 %v8645, %v8637
    %v8918 = vpack.c.b16 %v8654, %v8646
    %v8919 = vpack.c.b16 %v8655, %v8647
    %v8920 = vpack.c.b16 %v8656, %v8648
    %v8921 = vpack.c.b16 %v8657, %v8649
    %v8922 = vpack.c.b16 %v8658, %v8650
    %v8923 = vpack.c.b16 %v8659, %v8651
    %v8924 = vpack.c.b16 %v8660, %v8652
    %v8925 = vpack.c.b16 %v8661, %v8653
    %v8926 = vpack.c.b16 %v8670, %v8662
    %v8927 = vpack.c.b16 %v8671, %v8663
    %v8928 = vpack.c.b16 %v8672, %v8664
    %v8929 = vpack.c.b16 %v8673, %v8665
    %v8930 = vpack.c.b16 %v8674, %v8666
    %v8931 = vpack.c.b16 %v8675, %v8667
    %v8932 = vpack.c.b16 %v8676, %v8668
    %v8933 = vpack.c.b16 %v8677, %v8669
    %9190 = vmatprep.subr.bf16.mxu0 %v8735
    %9191 = vmatpush1.bf16.msra.mxu0 %v8734
    %9192 = vmatprep.subr.bf16.mxu0 %v8727
    %9193 = vmatpush1.bf16.msra.mxu0 %v8726
    %9194 = vmatprep.subr.bf16.mxu0 %v8719
    %9195 = vmatpush1.bf16.msra.mxu0 %v8718
    %9196 = vmatprep.subr.bf16.mxu0 %v8711
    %9197 = vmatpush1.bf16.msra.mxu0 %v8710
    %9198 = vmatprep.subr.bf16.mxu0 %v8703
    %9199 = vmatpush1.bf16.msra.mxu0 %v8702
    %9200 = vmatprep.subr.bf16.mxu0 %v8695
    %9201 = vmatpush1.bf16.msra.mxu0 %v8694
    %9202 = vmatprep.subr.bf16.mxu0 %v8687
    %9203 = vmatpush1.bf16.msra.mxu0 %v8686
    %9204 = vmatprep.subr.bf16.mxu0 %v8679
    %9205 = vmatpush1.bf16.msra.mxu0 %v8678
    %9206 = vmatprep.subr.bf16.mxu0 %v8799
    %9207 = vmatpush2.bf16.msra.mxu0 %v8798
    %9208 = vmatprep.subr.bf16.mxu0 %v8791
    %9209 = vmatpush2.bf16.msra.mxu0 %v8790
    %9210 = vmatprep.subr.bf16.mxu0 %v8783
    %9211 = vmatpush2.bf16.msra.mxu0 %v8782
    %9212 = vmatprep.subr.bf16.mxu0 %v8775
    %9213 = vmatpush2.bf16.msra.mxu0 %v8774
    %9214 = vmatprep.subr.bf16.mxu0 %v8767
    %9215 = vmatpush2.bf16.msra.mxu0 %v8766
    %9216 = vmatprep.subr.bf16.mxu0 %v8759
    %9217 = vmatpush2.bf16.msra.mxu0 %v8758
    %9218 = vmatprep.subr.bf16.mxu0 %v8751
    %9219 = vmatpush2.bf16.msra.mxu0 %v8750
    %9220 = vmatprep.subr.bf16.mxu0 %v8743
    %9221 = vmatpush2.bf16.msra.mxu0 %v8742
    %9222 = vmatprep.mubr.bf16.mxu0 %v7651
    %9223 = vmatmul.mubr.bf16.gmra.mxu0 %v7650
    %v9224 = vpop.f32.mrf.mxu0
    %v9225 = vadd.f32 0.0, %v9224
    %v9226 = vpop.f32.mrf.mxu0
    %v9227 = vadd.f32 0.0, %v9226
    %v9228 = vpop.f32.mrf.mxu0
    %v9229 = vpop.f32.mrf.mxu0
    %9230 = vdwg.mxu0
    %9231 = vmatprep.subr.bf16.mxu0 %v8863
    %9232 = vmatpush1.bf16.msra.mxu0 %v8862
    %9233 = vmatprep.subr.bf16.mxu0 %v8855
    %9234 = vmatpush1.bf16.msra.mxu0 %v8854
    %9235 = vmatprep.subr.bf16.mxu0 %v8847
    %9236 = vmatpush1.bf16.msra.mxu0 %v8846
    %9237 = vmatprep.subr.bf16.mxu0 %v8839
    %9238 = vmatpush1.bf16.msra.mxu0 %v8838
    %9239 = vmatprep.subr.bf16.mxu0 %v8831
    %9240 = vmatpush1.bf16.msra.mxu0 %v8830
    %9241 = vmatprep.subr.bf16.mxu0 %v8823
    %9242 = vmatpush1.bf16.msra.mxu0 %v8822
    %9243 = vmatprep.subr.bf16.mxu0 %v8815
    %9244 = vmatpush1.bf16.msra.mxu0 %v8814
    %9245 = vmatprep.subr.bf16.mxu0 %v8807
    %9246 = vmatpush1.bf16.msra.mxu0 %v8806
    %9247 = vmatprep.subr.bf16.mxu0 %v8927
    %9248 = vmatpush2.bf16.msra.mxu0 %v8926
    %9249 = vmatprep.subr.bf16.mxu0 %v8919
    %9250 = vmatpush2.bf16.msra.mxu0 %v8918
    %9251 = vmatprep.subr.bf16.mxu0 %v8911
    %9252 = vmatpush2.bf16.msra.mxu0 %v8910
    %9253 = vmatprep.subr.bf16.mxu0 %v8903
    %9254 = vmatpush2.bf16.msra.mxu0 %v8902
    %9255 = vmatprep.subr.bf16.mxu0 %v8895
    %9256 = vmatpush2.bf16.msra.mxu0 %v8894
    %9257 = vmatprep.subr.bf16.mxu0 %v8887
    %9258 = vmatpush2.bf16.msra.mxu0 %v8886
    %9259 = vmatprep.subr.bf16.mxu0 %v8879
    %9260 = vmatpush2.bf16.msra.mxu0 %v8878
    %9261 = vmatprep.subr.bf16.mxu0 %v8871
    %9262 = vmatpush2.bf16.msra.mxu0 %v8870
    %9263 = vmatprep.mubr.bf16.mxu0 %v7653
    %9264 = vmatmul.mubr.bf16.gmra.mxu0 %v7652
    %v9265 = vpop.f32.mrf.mxu0
    %v9266 = vadd.f32 %v9225, %v9265
    %v9267 = vpop.f32.mrf.mxu0
    %v9268 = vadd.f32 %v9227, %v9267
    %v9269 = vpop.f32.mrf.mxu0
    %v9270 = vpop.f32.mrf.mxu0
    %9271 = vdwg.mxu0
    %9272 = vmatprep.subr.bf16.mxu0 %v8737
    %9273 = vmatpush1.bf16.msra.mxu0 %v8736
    %9274 = vmatprep.subr.bf16.mxu0 %v8729
    %9275 = vmatpush1.bf16.msra.mxu0 %v8728
    %9276 = vmatprep.subr.bf16.mxu0 %v8721
    %9277 = vmatpush1.bf16.msra.mxu0 %v8720
    %9278 = vmatprep.subr.bf16.mxu0 %v8713
    %9279 = vmatpush1.bf16.msra.mxu0 %v8712
    %9280 = vmatprep.subr.bf16.mxu0 %v8705
    %9281 = vmatpush1.bf16.msra.mxu0 %v8704
    %9282 = vmatprep.subr.bf16.mxu0 %v8697
    %9283 = vmatpush1.bf16.msra.mxu0 %v8696
    %9284 = vmatprep.subr.bf16.mxu0 %v8689
    %9285 = vmatpush1.bf16.msra.mxu0 %v8688
    %9286 = vmatprep.subr.bf16.mxu0 %v8681
    %9287 = vmatpush1.bf16.msra.mxu0 %v8680
    %9288 = vmatprep.subr.bf16.mxu0 %v8801
    %9289 = vmatpush2.bf16.msra.mxu0 %v8800
    %9290 = vmatprep.subr.bf16.mxu0 %v8793
    %9291 = vmatpush2.bf16.msra.mxu0 %v8792
    %9292 = vmatprep.subr.bf16.mxu0 %v8785
    %9293 = vmatpush2.bf16.msra.mxu0 %v8784
    %9294 = vmatprep.subr.bf16.mxu0 %v8777
    %9295 = vmatpush2.bf16.msra.mxu0 %v8776
    %9296 = vmatprep.subr.bf16.mxu0 %v8769
    %9297 = vmatpush2.bf16.msra.mxu0 %v8768
    %9298 = vmatprep.subr.bf16.mxu0 %v8761
    %9299 = vmatpush2.bf16.msra.mxu0 %v8760
    %9300 = vmatprep.subr.bf16.mxu0 %v8753
    %9301 = vmatpush2.bf16.msra.mxu0 %v8752
    %9302 = vmatprep.subr.bf16.mxu0 %v8745
    %9303 = vmatpush2.bf16.msra.mxu0 %v8744
    %9304 = vmatprep.mubr.bf16.mxu0 %v7651
    %9305 = vmatmul.mubr.bf16.gmra.mxu0 %v7650
    %v9306 = vpop.f32.mrf.mxu0
    %v9307 = vadd.f32 0.0, %v9306
    %v9308 = vpop.f32.mrf.mxu0
    %v9309 = vadd.f32 0.0, %v9308
    %v9310 = vpop.f32.mrf.mxu0
    %v9311 = vpop.f32.mrf.mxu0
    %9312 = vdwg.mxu0
    %9313 = vmatprep.subr.bf16.mxu0 %v8865
    %9314 = vmatpush1.bf16.msra.mxu0 %v8864
    %9315 = vmatprep.subr.bf16.mxu0 %v8857
    %9316 = vmatpush1.bf16.msra.mxu0 %v8856
    %9317 = vmatprep.subr.bf16.mxu0 %v8849
    %9318 = vmatpush1.bf16.msra.mxu0 %v8848
    %9319 = vmatprep.subr.bf16.mxu0 %v8841
    %9320 = vmatpush1.bf16.msra.mxu0 %v8840
    %9321 = vmatprep.subr.bf16.mxu0 %v8833
    %9322 = vmatpush1.bf16.msra.mxu0 %v8832
    %9323 = vmatprep.subr.bf16.mxu0 %v8825
    %9324 = vmatpush1.bf16.msra.mxu0 %v8824
    %9325 = vmatprep.subr.bf16.mxu0 %v8817
    %9326 = vmatpush1.bf16.msra.mxu0 %v8816
    %9327 = vmatprep.subr.bf16.mxu0 %v8809
    %9328 = vmatpush1.bf16.msra.mxu0 %v8808
    %9329 = vmatprep.subr.bf16.mxu0 %v8929
    %9330 = vmatpush2.bf16.msra.mxu0 %v8928
    %9331 = vmatprep.subr.bf16.mxu0 %v8921
    %9332 = vmatpush2.bf16.msra.mxu0 %v8920
    %9333 = vmatprep.subr.bf16.mxu0 %v8913
    %9334 = vmatpush2.bf16.msra.mxu0 %v8912
    %9335 = vmatprep.subr.bf16.mxu0 %v8905
    %9336 = vmatpush2.bf16.msra.mxu0 %v8904
    %9337 = vmatprep.subr.bf16.mxu0 %v8897
    %9338 = vmatpush2.bf16.msra.mxu0 %v8896
    %9339 = vmatprep.subr.bf16.mxu0 %v8889
    %9340 = vmatpush2.bf16.msra.mxu0 %v8888
    %9341 = vmatprep.subr.bf16.mxu0 %v8881
    %9342 = vmatpush2.bf16.msra.mxu0 %v8880
    %9343 = vmatprep.subr.bf16.mxu0 %v8873
    %9344 = vmatpush2.bf16.msra.mxu0 %v8872
    %9345 = vmatprep.mubr.bf16.mxu0 %v7653
    %9346 = vmatmul.mubr.bf16.gmra.mxu0 %v7652
    %v9347 = vpop.f32.mrf.mxu0
    %v9348 = vadd.f32 %v9307, %v9347
    %v9349 = vpop.f32.mrf.mxu0
    %v9350 = vadd.f32 %v9309, %v9349
    %v9351 = vpop.f32.mrf.mxu0
    %v9352 = vpop.f32.mrf.mxu0
    %9353 = vdwg.mxu0
    %9354 = vmatprep.subr.bf16.mxu0 %v8739
    %9355 = vmatpush1.bf16.msra.mxu0 %v8738
    %9356 = vmatprep.subr.bf16.mxu0 %v8731
    %9357 = vmatpush1.bf16.msra.mxu0 %v8730
    %9358 = vmatprep.subr.bf16.mxu0 %v8723
    %9359 = vmatpush1.bf16.msra.mxu0 %v8722
    %9360 = vmatprep.subr.bf16.mxu0 %v8715
    %9361 = vmatpush1.bf16.msra.mxu0 %v8714
    %9362 = vmatprep.subr.bf16.mxu0 %v8707
    %9363 = vmatpush1.bf16.msra.mxu0 %v8706
    %9364 = vmatprep.subr.bf16.mxu0 %v8699
    %9365 = vmatpush1.bf16.msra.mxu0 %v8698
    %9366 = vmatprep.subr.bf16.mxu0 %v8691
    %9367 = vmatpush1.bf16.msra.mxu0 %v8690
    %9368 = vmatprep.subr.bf16.mxu0 %v8683
    %9369 = vmatpush1.bf16.msra.mxu0 %v8682
    %9370 = vmatprep.subr.bf16.mxu0 %v8803
    %9371 = vmatpush2.bf16.msra.mxu0 %v8802
    %9372 = vmatprep.subr.bf16.mxu0 %v8795
    %9373 = vmatpush2.bf16.msra.mxu0 %v8794
    %9374 = vmatprep.subr.bf16.mxu0 %v8787
    %9375 = vmatpush2.bf16.msra.mxu0 %v8786
    %9376 = vmatprep.subr.bf16.mxu0 %v8779
    %9377 = vmatpush2.bf16.msra.mxu0 %v8778
    %9378 = vmatprep.subr.bf16.mxu0 %v8771
    %9379 = vmatpush2.bf16.msra.mxu0 %v8770
    %9380 = vmatprep.subr.bf16.mxu0 %v8763
    %9381 = vmatpush2.bf16.msra.mxu0 %v8762
    %9382 = vmatprep.subr.bf16.mxu0 %v8755
    %9383 = vmatpush2.bf16.msra.mxu0 %v8754
    %9384 = vmatprep.subr.bf16.mxu0 %v8747
    %9385 = vmatpush2.bf16.msra.mxu0 %v8746
    %9386 = vmatprep.mubr.bf16.mxu0 %v7651
    %9387 = vmatmul.mubr.bf16.gmra.mxu0 %v7650
    %v9388 = vpop.f32.mrf.mxu0
    %v9389 = vadd.f32 0.0, %v9388
    %v9390 = vpop.f32.mrf.mxu0
    %v9391 = vadd.f32 0.0, %v9390
    %v9392 = vpop.f32.mrf.mxu0
    %v9393 = vpop.f32.mrf.mxu0
    %9394 = vdwg.mxu0
    %9395 = vmatprep.subr.bf16.mxu0 %v8867
    %9396 = vmatpush1.bf16.msra.mxu0 %v8866
    %9397 = vmatprep.subr.bf16.mxu0 %v8859
    %9398 = vmatpush1.bf16.msra.mxu0 %v8858
    %9399 = vmatprep.subr.bf16.mxu0 %v8851
    %9400 = vmatpush1.bf16.msra.mxu0 %v8850
    %9401 = vmatprep.subr.bf16.mxu0 %v8843
    %9402 = vmatpush1.bf16.msra.mxu0 %v8842
    %9403 = vmatprep.subr.bf16.mxu0 %v8835
    %9404 = vmatpush1.bf16.msra.mxu0 %v8834
    %9405 = vmatprep.subr.bf16.mxu0 %v8827
    %9406 = vmatpush1.bf16.msra.mxu0 %v8826
    %9407 = vmatprep.subr.bf16.mxu0 %v8819
    %9408 = vmatpush1.bf16.msra.mxu0 %v8818
    %9409 = vmatprep.subr.bf16.mxu0 %v8811
    %9410 = vmatpush1.bf16.msra.mxu0 %v8810
    %9411 = vmatprep.subr.bf16.mxu0 %v8931
    %9412 = vmatpush2.bf16.msra.mxu0 %v8930
    %9413 = vmatprep.subr.bf16.mxu0 %v8923
    %9414 = vmatpush2.bf16.msra.mxu0 %v8922
    %9415 = vmatprep.subr.bf16.mxu0 %v8915
    %9416 = vmatpush2.bf16.msra.mxu0 %v8914
    %9417 = vmatprep.subr.bf16.mxu0 %v8907
    %9418 = vmatpush2.bf16.msra.mxu0 %v8906
    %9419 = vmatprep.subr.bf16.mxu0 %v8899
    %9420 = vmatpush2.bf16.msra.mxu0 %v8898
    %9421 = vmatprep.subr.bf16.mxu0 %v8891
    %9422 = vmatpush2.bf16.msra.mxu0 %v8890
    %9423 = vmatprep.subr.bf16.mxu0 %v8883
    %9424 = vmatpush2.bf16.msra.mxu0 %v8882
    %9425 = vmatprep.subr.bf16.mxu0 %v8875
    %9426 = vmatpush2.bf16.msra.mxu0 %v8874
    %9427 = vmatprep.mubr.bf16.mxu0 %v7653
    %9428 = vmatmul.mubr.bf16.gmra.mxu0 %v7652
    %v9429 = vpop.f32.mrf.mxu0
    %v9430 = vadd.f32 %v9389, %v9429
    %v9431 = vpop.f32.mrf.mxu0
    %v9432 = vadd.f32 %v9391, %v9431
    %v9433 = vpop.f32.mrf.mxu0
    %v9434 = vpop.f32.mrf.mxu0
    %9435 = vdwg.mxu0
    %9436 = vmatprep.subr.bf16.mxu0 %v8741
    %9437 = vmatpush1.bf16.msra.mxu0 %v8740
    %9438 = vmatprep.subr.bf16.mxu0 %v8733
    %9439 = vmatpush1.bf16.msra.mxu0 %v8732
    %9440 = vmatprep.subr.bf16.mxu0 %v8725
    %9441 = vmatpush1.bf16.msra.mxu0 %v8724
    %9442 = vmatprep.subr.bf16.mxu0 %v8717
    %9443 = vmatpush1.bf16.msra.mxu0 %v8716
    %9444 = vmatprep.subr.bf16.mxu0 %v8709
    %9445 = vmatpush1.bf16.msra.mxu0 %v8708
    %9446 = vmatprep.subr.bf16.mxu0 %v8701
    %9447 = vmatpush1.bf16.msra.mxu0 %v8700
    %9448 = vmatprep.subr.bf16.mxu0 %v8693
    %9449 = vmatpush1.bf16.msra.mxu0 %v8692
    %9450 = vmatprep.subr.bf16.mxu0 %v8685
    %9451 = vmatpush1.bf16.msra.mxu0 %v8684
    %9452 = vmatprep.subr.bf16.mxu0 %v8805
    %9453 = vmatpush2.bf16.msra.mxu0 %v8804
    %9454 = vmatprep.subr.bf16.mxu0 %v8797
    %9455 = vmatpush2.bf16.msra.mxu0 %v8796
    %9456 = vmatprep.subr.bf16.mxu0 %v8789
    %9457 = vmatpush2.bf16.msra.mxu0 %v8788
    %9458 = vmatprep.subr.bf16.mxu0 %v8781
    %9459 = vmatpush2.bf16.msra.mxu0 %v8780
    %9460 = vmatprep.subr.bf16.mxu0 %v8773
    %9461 = vmatpush2.bf16.msra.mxu0 %v8772
    %9462 = vmatprep.subr.bf16.mxu0 %v8765
    %9463 = vmatpush2.bf16.msra.mxu0 %v8764
    %9464 = vmatprep.subr.bf16.mxu0 %v8757
    %9465 = vmatpush2.bf16.msra.mxu0 %v8756
    %9466 = vmatprep.subr.bf16.mxu0 %v8749
    %9467 = vmatpush2.bf16.msra.mxu0 %v8748
    %9468 = vmatprep.mubr.bf16.mxu0 %v7651
    %9469 = vmatmul.mubr.bf16.gmra.mxu0 %v7650
    %v9470 = vpop.f32.mrf.mxu0
    %v9471 = vadd.f32 0.0, %v9470
    %v9472 = vpop.f32.mrf.mxu0
    %v9473 = vadd.f32 0.0, %v9472
    %v9474 = vpop.f32.mrf.mxu0
    %v9475 = vpop.f32.mrf.mxu0
    %9476 = vdwg.mxu0
    %9477 = vmatprep.subr.bf16.mxu0 %v8869
    %9478 = vmatpush1.bf16.msra.mxu0 %v8868
    %9479 = vmatprep.subr.bf16.mxu0 %v8861
    %9480 = vmatpush1.bf16.msra.mxu0 %v8860
    %9481 = vmatprep.subr.bf16.mxu0 %v8853
    %9482 = vmatpush1.bf16.msra.mxu0 %v8852
    %9483 = vmatprep.subr.bf16.mxu0 %v8845
    %9484 = vmatpush1.bf16.msra.mxu0 %v8844
    %9485 = vmatprep.subr.bf16.mxu0 %v8837
    %9486 = vmatpush1.bf16.msra.mxu0 %v8836
    %9487 = vmatprep.subr.bf16.mxu0 %v8829
    %9488 = vmatpush1.bf16.msra.mxu0 %v8828
    %9489 = vmatprep.subr.bf16.mxu0 %v8821
    %9490 = vmatpush1.bf16.msra.mxu0 %v8820
    %9491 = vmatprep.subr.bf16.mxu0 %v8813
    %9492 = vmatpush1.bf16.msra.mxu0 %v8812
    %9493 = vmatprep.subr.bf16.mxu0 %v8933
    %9494 = vmatpush2.bf16.msra.mxu0 %v8932
    %9495 = vmatprep.subr.bf16.mxu0 %v8925
    %9496 = vmatpush2.bf16.msra.mxu0 %v8924
    %9497 = vmatprep.subr.bf16.mxu0 %v8917
    %9498 = vmatpush2.bf16.msra.mxu0 %v8916
    %9499 = vmatprep.subr.bf16.mxu0 %v8909
    %9500 = vmatpush2.bf16.msra.mxu0 %v8908
    %9501 = vmatprep.subr.bf16.mxu0 %v8901
    %9502 = vmatpush2.bf16.msra.mxu0 %v8900
    %9503 = vmatprep.subr.bf16.mxu0 %v8893
    %9504 = vmatpush2.bf16.msra.mxu0 %v8892
    %9505 = vmatprep.subr.bf16.mxu0 %v8885
    %9506 = vmatpush2.bf16.msra.mxu0 %v8884
    %9507 = vmatprep.subr.bf16.mxu0 %v8877
    %9508 = vmatpush2.bf16.msra.mxu0 %v8876
    %9509 = vmatprep.mubr.bf16.mxu0 %v7653
    %9510 = vmatmul.mubr.bf16.gmra.mxu0 %v7652
    %v9511 = vpop.f32.mrf.mxu0
    %v9512 = vadd.f32 %v9471, %v9511
    %v9513 = vpop.f32.mrf.mxu0
    %v9514 = vadd.f32 %v9473, %v9513
    %v9515 = vpop.f32.mrf.mxu0
    %v9516 = vpop.f32.mrf.mxu0
    %9517 = vdwg.mxu0
    %v9518 = vmax.f32 %v9266, %v9348
    %v9519 = vmax.f32 %v9268, %v9350
    %v9520 = vmax.f32 %v9430, %v9512
    %v9521 = vmax.f32 %v9432, %v9514
    %v9522 = vmax.f32 %v9518, %v9520
    %v9523 = vmax.f32 %v9519, %v9521
    %v9524 = vld [vmem:[#allocation7] sm:$0x3]
    %v9526 = vlaneseq
    %v9527 = vshrl.u32 %v9526, 7
    %v9528 = vsub.s32 0, %v9527
    %v9529 = vrot.slane %v9524, %v9528
    %v9530 = vlaneseq
    %v9531 = vshrl.u32 %v9530, 7
    %v9532 = vsub.s32 1, %v9531
    %v9533 = vrot.slane %v9524, %v9532
    %v9536 = vadd.f32 %v9522, %v9529
    %v9537 = vadd.f32 %v9523, %v9533
    %v9538 = vmax.f32 %v9536, 0.0
    %v9539 = vmax.f32 %v9537, 0.0
    %v9540 = vpack.c.bf16 %v9538, %v9538
    %v9541 = vpack.c.bf16 %v9539, %v9539
    %v9542 = vld [vmem:[%s5] sm:$0xf]
    %v9543 = vld [vmem:[%s5 + $0x4] sm:$0xf]
    %v9544 = vld [vmem:[%s5 + $0x8] sm:$0xf]
    %v9545 = vld [vmem:[%s5 + $0xc] sm:$0xf]
    %v9546 = vld [vmem:[%s5 + $0x10] sm:$0xf]
    %v9547 = vld [vmem:[%s5 + $0x14] sm:$0xf]
    %v9548 = vld [vmem:[%s5 + $0x18] sm:$0xf]
    %v9549 = vld [vmem:[%s5 + $0x1c] sm:$0xf]
    %v9550 = vld [vmem:[%s5 + $0x20] sm:$0xf]
    %v9551 = vld [vmem:[%s5 + $0x24] sm:$0xf]
    %v9552 = vld [vmem:[%s5 + $0x28] sm:$0xf]
    %v9553 = vld [vmem:[%s5 + $0x2c] sm:$0xf]
    %v9554 = vld [vmem:[%s5 + $0x30] sm:$0xf]
    %v9555 = vld [vmem:[%s5 + $0x34] sm:$0xf]
    %v9556 = vld [vmem:[%s5 + $0x38] sm:$0xf]
    %v9557 = vld [vmem:[%s5 + $0x3c] sm:$0xf]
    %v9558 = vld [vmem:[%s5 + $0x40] sm:$0xf]
    %v9559 = vld [vmem:[%s5 + $0x44] sm:$0xf]
    %v9560 = vld [vmem:[%s5 + $0x48] sm:$0xf]
    %v9561 = vld [vmem:[%s5 + $0x4c] sm:$0xf]
    %v9562 = vld [vmem:[%s5 + $0x50] sm:$0xf]
    %v9563 = vld [vmem:[%s5 + $0x54] sm:$0xf]
    %v9564 = vld [vmem:[%s5 + $0x58] sm:$0xf]
    %v9565 = vld [vmem:[%s5 + $0x5c] sm:$0xf]
    %v9566 = vld [vmem:[%s5 + $0x60] sm:$0xf]
    %v9567 = vld [vmem:[%s5 + $0x64] sm:$0xf]
    %v9568 = vld [vmem:[%s5 + $0x68] sm:$0xf]
    %v9569 = vld [vmem:[%s5 + $0x6c] sm:$0xf]
    %v9570 = vld [vmem:[%s5 + $0x70] sm:$0xf]
    %v9571 = vld [vmem:[%s5 + $0x74] sm:$0xf]
    %v9572 = vld [vmem:[%s5 + $0x78] sm:$0xf]
    %v9573 = vld [vmem:[%s5 + $0x7c] sm:$0xf]
    %v9574 = vld [vmem:[#allocation9] sm:$0x1]
    %v9576 = vlaneseq
    %v9577 = vshrl.u32 %v9576, 7
    %v9578 = vsub.s32 0, %v9577
    %v9579 = vrot.slane %v9574, %v9578
    %v9613 = vunpack.c.l.b16 %v9542
    %v9614 = vunpack.c.l.b16 %v9543
    %v9615 = vunpack.c.l.b16 %v9544
    %v9616 = vunpack.c.l.b16 %v9545
    %v9617 = vunpack.c.l.b16 %v9546
    %v9618 = vunpack.c.l.b16 %v9547
    %v9619 = vunpack.c.l.b16 %v9548
    %v9620 = vunpack.c.l.b16 %v9549
    %v9621 = vunpack.c.l.b16 %v9550
    %v9622 = vunpack.c.l.b16 %v9551
    %v9623 = vunpack.c.l.b16 %v9552
    %v9624 = vunpack.c.l.b16 %v9553
    %v9625 = vunpack.c.l.b16 %v9554
    %v9626 = vunpack.c.l.b16 %v9555
    %v9627 = vunpack.c.l.b16 %v9556
    %v9628 = vunpack.c.l.b16 %v9557
    %v9629 = vunpack.c.l.b16 %v9558
    %v9630 = vunpack.c.l.b16 %v9559
    %v9631 = vunpack.c.l.b16 %v9560
    %v9632 = vunpack.c.l.b16 %v9561
    %v9633 = vunpack.c.l.b16 %v9562
    %v9634 = vunpack.c.l.b16 %v9563
    %v9635 = vunpack.c.l.b16 %v9564
    %v9636 = vunpack.c.l.b16 %v9565
    %v9637 = vunpack.c.l.b16 %v9566
    %v9638 = vunpack.c.l.b16 %v9567
    %v9639 = vunpack.c.l.b16 %v9568
    %v9640 = vunpack.c.l.b16 %v9569
    %v9641 = vunpack.c.l.b16 %v9570
    %v9642 = vunpack.c.l.b16 %v9571
    %v9643 = vunpack.c.l.b16 %v9572
    %v9644 = vunpack.c.l.b16 %v9573
    %v9645 = vpack.c.b16 %v9614, %v9613
    %v9646 = vpack.c.b16 %v9616, %v9615
    %v9647 = vpack.c.b16 %v9618, %v9617
    %v9648 = vpack.c.b16 %v9620, %v9619
    %v9649 = vpack.c.b16 %v9622, %v9621
    %v9650 = vpack.c.b16 %v9624, %v9623
    %v9651 = vpack.c.b16 %v9626, %v9625
    %v9652 = vpack.c.b16 %v9628, %v9627
    %v9653 = vpack.c.b16 %v9630, %v9629
    %v9654 = vpack.c.b16 %v9632, %v9631
    %v9655 = vpack.c.b16 %v9634, %v9633
    %v9656 = vpack.c.b16 %v9636, %v9635
    %v9657 = vpack.c.b16 %v9638, %v9637
    %v9658 = vpack.c.b16 %v9640, %v9639
    %v9659 = vpack.c.b16 %v9642, %v9641
    %v9660 = vpack.c.b16 %v9644, %v9643
    %9677 = vmatprep.subr.bf16.mxu0 0
    %9678 = vmatpush1.bf16.msra.mxu0 %v9652
    %9679 = vmatprep.subr.bf16.mxu0 0
    %9680 = vmatpush1.bf16.msra.mxu0 %v9651
    %9681 = vmatprep.subr.bf16.mxu0 0
    %9682 = vmatpush1.bf16.msra.mxu0 %v9650
    %9683 = vmatprep.subr.bf16.mxu0 0
    %9684 = vmatpush1.bf16.msra.mxu0 %v9649
    %9685 = vmatprep.subr.bf16.mxu0 0
    %9686 = vmatpush1.bf16.msra.mxu0 %v9648
    %9687 = vmatprep.subr.bf16.mxu0 0
    %9688 = vmatpush1.bf16.msra.mxu0 %v9647
    %9689 = vmatprep.subr.bf16.mxu0 0
    %9690 = vmatpush1.bf16.msra.mxu0 %v9646
    %9691 = vmatprep.subr.bf16.mxu0 0
    %9692 = vmatpush1.bf16.msra.mxu0 %v9645
    %9693 = vmatprep.subr.bf16.mxu0 0
    %9694 = vmatpush2.bf16.msra.mxu0 %v9660
    %9695 = vmatprep.subr.bf16.mxu0 0
    %9696 = vmatpush2.bf16.msra.mxu0 %v9659
    %9697 = vmatprep.subr.bf16.mxu0 0
    %9698 = vmatpush2.bf16.msra.mxu0 %v9658
    %9699 = vmatprep.subr.bf16.mxu0 0
    %9700 = vmatpush2.bf16.msra.mxu0 %v9657
    %9701 = vmatprep.subr.bf16.mxu0 0
    %9702 = vmatpush2.bf16.msra.mxu0 %v9656
    %9703 = vmatprep.subr.bf16.mxu0 0
    %9704 = vmatpush2.bf16.msra.mxu0 %v9655
    %9705 = vmatprep.subr.bf16.mxu0 0
    %9706 = vmatpush2.bf16.msra.mxu0 %v9654
    %9707 = vmatprep.subr.bf16.mxu0 0
    %9708 = vmatpush2.bf16.msra.mxu0 %v9653
    %9709 = vmatprep.mubr.bf16.mxu0 %v9541
    %9710 = vmatmul.mubr.bf16.gmra.mxu0 %v9540
    %v9711 = vpop.f32.mrf.mxu0
    %v9712 = vadd.f32 %v9579, %v9711
    %v9713 = vpop.f32.mrf.mxu0
    %v9714 = vpop.f32.mrf.mxu0
    %v9715 = vpop.f32.mrf.mxu0
    %9716 = vdwg.mxu0
    %v9717 = vmax.f32 %v9712, 0.0
    %v9718 = vld [vmem:[#allocation10] sm:$0xff]
    %v9719 = vld [vmem:[#allocation10 + $0x8] sm:$0xff]
    %v9720 = vld [vmem:[#allocation10 + $0x10] sm:$0xff]
    %v9721 = vld [vmem:[#allocation10 + $0x18] sm:$0xff]
    %v9722 = vld [vmem:[#allocation12] sm:$0x1]
    %v9724 = vlaneseq
    %v9725 = vshrl.u32 %v9724, 7
    %v9726 = vsub.s32 0, %v9725
    %v9727 = vrot.slane %v9722, %v9726
    %vm9729 = vcmask 261120
    %v9731 = vsel %vm9729, %v9717, 0
    %9733 = vmatprep.subr.mxu0 0.0
    %9734 = vmatpush1.msra.mxu0 0.0
    %9735 = vmatprep.subr.mxu0 0.0
    %9736 = vmatpush1.msra.mxu0 0.0
    %9737 = vmatprep.subr.mxu0 0.0
    %9738 = vmatpush1.msra.mxu0 0.0
    %9739 = vmatprep.subr.mxu0 0.0
    %9740 = vmatpush1.msra.mxu0 0.0
    %9741 = vmatprep.subr.mxu0 0.0
    %9742 = vmatpush1.msra.mxu0 0.0
    %9743 = vmatprep.subr.mxu0 0.0
    %9744 = vmatpush1.msra.mxu0 0.0
    %9745 = vmatprep.subr.mxu0 0.0
    %9746 = vmatpush1.msra.mxu0 0.0
    %9747 = vmatprep.subr.mxu0 0.0
    %9748 = vmatpush1.msra.mxu0 0.0
    %9749 = vmatprep.subr.mxu0 0.0
    %9750 = vmatpush1.msra.mxu0 0.0
    %9751 = vmatprep.subr.mxu0 0.0
    %9752 = vmatpush1.msra.mxu0 0.0
    %9753 = vmatprep.subr.mxu0 0.0
    %9754 = vmatpush1.msra.mxu0 0.0
    %9755 = vmatprep.subr.mxu0 0.0
    %9756 = vmatpush1.msra.mxu0 0.0
    %9757 = vmatprep.subr.mxu0 0.0
    %9758 = vmatpush1.msra.mxu0 %v9721
    %9759 = vmatprep.subr.mxu0 0.0
    %9760 = vmatpush1.msra.mxu0 %v9720
    %9761 = vmatprep.subr.mxu0 0.0
    %9762 = vmatpush1.msra.mxu0 %v9719
    %9763 = vmatprep.subr.mxu0 0.0
    %9764 = vmatpush1.msra.mxu0 %v9718
    %9765 = vmatprep.subr.mxu0 0.0
    %9766 = vmatpush2.msra.mxu0 0.0
    %9767 = vmatprep.subr.mxu0 0.0
    %9768 = vmatpush2.msra.mxu0 0.0
    %9769 = vmatprep.subr.mxu0 0.0
    %9770 = vmatpush2.msra.mxu0 0.0
    %9771 = vmatprep.subr.mxu0 0.0
    %9772 = vmatpush2.msra.mxu0 0.0
    %9773 = vmatprep.subr.mxu0 0.0
    %9774 = vmatpush2.msra.mxu0 0.0
    %9775 = vmatprep.subr.mxu0 0.0
    %9776 = vmatpush2.msra.mxu0 0.0
    %9777 = vmatprep.subr.mxu0 0.0
    %9778 = vmatpush2.msra.mxu0 0.0
    %9779 = vmatprep.subr.mxu0 0.0
    %9780 = vmatpush2.msra.mxu0 0.0
    %9781 = vmatprep.subr.mxu0 0.0
    %9782 = vmatpush2.msra.mxu0 0.0
    %9783 = vmatprep.subr.mxu0 0.0
    %9784 = vmatpush2.msra.mxu0 0.0
    %9785 = vmatprep.subr.mxu0 0.0
    %9786 = vmatpush2.msra.mxu0 0.0
    %9787 = vmatprep.subr.mxu0 0.0
    %9788 = vmatpush2.msra.mxu0 0.0
    %9789 = vmatprep.subr.mxu0 0.0
    %9790 = vmatpush2.msra.mxu0 0.0
    %9791 = vmatprep.subr.mxu0 0.0
    %9792 = vmatpush2.msra.mxu0 0.0
    %9793 = vmatprep.subr.mxu0 0.0
    %9794 = vmatpush2.msra.mxu0 0.0
    %9795 = vmatprep.subr.mxu0 0.0
    %9796 = vmatpush2.msra.mxu0 0.0
    %9797 = vmatprep.mubr.f32.mxu0 0.0
    %9798 = vmatmul.mubr.f32.gmra.mxu0 %v9731
    %v9799 = vpop.f32.mrf.mxu0
    %v9800 = vadd.f32 %v9727, %v9799
    %v9801 = vpop.f32.mrf.mxu0
    %9802 = vdwg.mxu0
    %9803 = vmax.xlane.f32.xlu0 %v9800
    %v9804 = vpop.xlane.xlu0 %9803
    %v9805 = vsub.f32 %v9800, %v9804
    %v9806 = vmul.f32 %v9805, 1.442695
    %v9807 = vpow.pop %v9806
    %9808 = vadd.xlane.f32.xlu0 %v9807
    %v9809 = vpop.xlane.xlu0 %9808
    %v9810 = vlog2.pop %v9809
    %v9811 = vmul.f32 %v9810, 0.6931472
    %v9812 = vadd.f32 %v9811, %v9804
    %v9813 = vsub.f32 %v9800, %v9812
    %9814 = vst [vmem:[%s9] sm:$0xff] %v9813
    // Predicated region
    $region66: #{struct_like_forward.1} parent=1 // pred_check
      _
    $region67: #{struct_like_forward.1} parent=1 // pred_check_branch
      %9816 = sbr.rel (0) target = $region69
    $region68: #{struct_like_forward.1} parent=1 // pred_region
      _
    $region69: #{struct_like_forward.1} parent=1 // pred_fallthru
      _
    // Predicated region
    $region70: #{struct_like_forward.1} parent=1 // pred_check
      _
    $region71: #{struct_like_forward.1} parent=1 // pred_check_branch
      %9818 = sbr.rel (0) target = $region73
    $region72: #{struct_like_forward.1} parent=1 // pred_region
      _
    $region73: #{struct_like_forward.1} parent=1 // pred_fallthru
      _
    %9819 = vsyncpa [#allocation3], 1
    %9820 = vsyncpa [#allocation5], 1
    %9821 = vsyncpa [#allocation8], 1
    %9822 = vsyncpa [#allocation11], 1

</llo_original>
